<compile_context>
chip_gen: v7x
topology: tpu7x:2x2x1
jax: 0.10.0
libtpu: 0.0.40
codegen_flags: <defaults>
</compile_context>

<pallas_src>
import jax
import jax.numpy as jnp
from jax.experimental import pallas as pl
from jax.experimental.pallas import tpu as pltpu

EPS = 1e-5

_COMPILER_PARAMS = pltpu.CompilerParams(
    dimension_semantics=("parallel",),      # batch images are independent
    vmem_limit_bytes=32 * 1024 * 1024,      # fits v7x (64 MiB) / v6e / v5e
)


# ----------------------------- Pallas kernels ------------------------------ #

def _bn1_stats_kernel(x_ref, s_ref, ss_ref):
    """Per-image, per-channel sum and sum-of-squares of x (phase-1 BN1 reduction)."""
    _, h, w, c = x_ref.shape
    x = x_ref[0].astype(jnp.float32).reshape(h * w, c)
    s_ref[0] = jnp.sum(x, axis=0, keepdims=True)          # (1, C)
    ss_ref[0] = jnp.sum(x * x, axis=0, keepdims=True)      # (1, C)


def _conv3x3_from_halo(apad_ref, w_ref, h, w, cin, cout):
    """3x3 conv (pad=1, stride=1) as 9 shifted matmuls over a padded VMEM buffer.

    apad_ref: (H+2, W+2, Cin) f32 VMEM scratch with the activation in its interior
              and a zero halo; w_ref: (9, Cin, Cout) bf16 (index = 3*dy + dx).
    """
    acc = jnp.zeros((h * w, cout), jnp.float32)
    for dy in range(3):
        for dx in range(3):
            patch = apad_ref[dy:dy + h, dx:dx + w, :].reshape(h * w, cin)
            acc = acc + jnp.dot(patch.astype(jnp.bfloat16), w_ref[3 * dy + dx],
                                preferred_element_type=jnp.float32)
    return acc                                              # (H*W, Cout) f32


def _bn1_conv1_kernel(x_ref, s1_ref, t1_ref, w1_ref,
                      z1_ref, zs_ref, zss_ref, apad_ref):
    """a1 = relu(x*scale1 + shift1); z1 = conv3x3(a1, w1); emit per-image z1 stats."""
    _, h, w, cin = x_ref.shape
    cout = w1_ref.shape[2]

    x = x_ref[0].astype(jnp.float32).reshape(h * w, cin)
    a1 = jnp.maximum(x * s1_ref[...] + t1_ref[...], 0.0)    # folded BN1 + ReLU (f32)

    apad_ref[...] = jnp.zeros_like(apad_ref)                 # zero halo border
    apad_ref[1:h + 1, 1:w + 1, :] = a1.reshape(h, w, cin)    # interior

    z1 = _conv3x3_from_halo(apad_ref, w1_ref, h, w, cin, cout)
    z1_ref[0] = z1.reshape(h, w, cout)
    zs_ref[0] = jnp.sum(z1, axis=0, keepdims=True)           # partial BN2 stats
    zss_ref[0] = jnp.sum(z1 * z1, axis=0, keepdims=True)


def _bn2_conv2_add_kernel(x_ref, s1_ref, t1_ref, z1_ref, s2_ref, t2_ref, w2_ref,
                          o_ref, apad_ref):
    """shortcut = relu(x*scale1+shift1) (recomputed a1); a2 = relu(z1*scale2+shift2);
    out = conv3x3(a2, w2) + shortcut."""
    _, h, w, cin = x_ref.shape
    planes = w2_ref.shape[2]

    x = x_ref[0].astype(jnp.float32).reshape(h * w, cin)
    shortcut = jnp.maximum(x * s1_ref[...] + t1_ref[...], 0.0)   # identity shortcut

    z1 = z1_ref[0].reshape(h * w, planes)
    a2 = jnp.maximum(z1 * s2_ref[...] + t2_ref[...], 0.0)        # folded BN2 + ReLU

    apad_ref[...] = jnp.zeros_like(apad_ref)
    apad_ref[1:h + 1, 1:w + 1, :] = a2.reshape(h, w, planes)

    out = _conv3x3_from_halo(apad_ref, w2_ref, h, w, planes, planes)
    o_ref[0] = (out + shortcut).reshape(h, w, planes)


# ------------------------------ JAX glue ----------------------------------- #

def _fold_bn(psum, psumsq, m, gamma, beta):
    """Finalize batch stats from per-image partial sums; fold into y = x*scale + shift."""
    mean = jnp.sum(psum, axis=0) / m                              # (1, C)
    var = jnp.maximum(jnp.sum(psumsq, axis=0) / m - mean * mean, 0.0)
    scale = gamma * jax.lax.rsqrt(var + EPS)
    shift = beta - mean * scale
    return scale, shift


def preact_block_forward(x_nchw, params):
    n, c, h, w = x_nchw.shape
    planes = params["w1"].shape[2]
    assert c == planes, "identity shortcut requires in_planes == planes (stride=1)"
    m = n * h * w

    x = jnp.transpose(x_nchw, (0, 2, 3, 1))                       # NHWC (C on lanes)

    img_spec_c = pl.BlockSpec((1, h, w, c), lambda i: (i, 0, 0, 0))
    img_spec_p = pl.BlockSpec((1, h, w, planes), lambda i: (i, 0, 0, 0))
    vec_spec_c = pl.BlockSpec((1, c), lambda i: (0, 0))
    vec_spec_p = pl.BlockSpec((1, planes), lambda i: (0, 0))
    stat_spec_c = pl.BlockSpec((1, 1, c), lambda i: (i, 0, 0))
    stat_spec_p = pl.BlockSpec((1, 1, planes), lambda i: (i, 0, 0))
    w1_spec = pl.BlockSpec((9, c, planes), lambda i: (0, 0, 0))
    w2_spec = pl.BlockSpec((9, planes, planes), lambda i: (0, 0, 0))

    # Phase 1: BN1 batch statistics (per-image partial sums, reduced outside).
    xs, xss = pl.pallas_call(
        _bn1_stats_kernel,
        out_shape=(jax.ShapeDtypeStruct((n, 1, c), jnp.float32),
                   jax.ShapeDtypeStruct((n, 1, c), jnp.float32)),
        grid=(n,),
        in_specs=[img_spec_c],
        out_specs=(stat_spec_c, stat_spec_c),
        compiler_params=_COMPILER_PARAMS,
    )(x)
    scale1, shift1 = _fold_bn(xs, xss, m, params["g1"], params["b1"])

    # Phase 2: a1 = relu(bn1(x)); z1 = conv1(a1); partial BN2 stats of z1.
    z1, zs, zss = pl.pallas_call(
        _bn1_conv1_kernel,
        out_shape=(jax.ShapeDtypeStruct((n, h, w, planes), jnp.float32),
                   jax.ShapeDtypeStruct((n, 1, planes), jnp.float32),
                   jax.ShapeDtypeStruct((n, 1, planes), jnp.float32)),
        grid=(n,),
        in_specs=[img_spec_c, vec_spec_c, vec_spec_c, w1_spec],
        out_specs=(img_spec_p, stat_spec_p, stat_spec_p),
        scratch_shapes=[pltpu.VMEM((h + 2, w + 2, c), jnp.float32)],
        compiler_params=_COMPILER_PARAMS,
    )(x, scale1, shift1, params["w1"])
    scale2, shift2 = _fold_bn(zs, zss, m, params["g2"], params["b2"])

    # Phase 3: a2 = relu(bn2(z1)); out = conv2(a2) + a1 (a1 recomputed from x).
    out = pl.pallas_call(
        _bn2_conv2_add_kernel,
        out_shape=jax.ShapeDtypeStruct((n, h, w, planes), jnp.float32),
        grid=(n,),
        in_specs=[img_spec_c, vec_spec_c, vec_spec_c, img_spec_p,
                  vec_spec_p, vec_spec_p, w2_spec],
        out_specs=img_spec_p,
        scratch_shapes=[pltpu.VMEM((h + 2, w + 2, planes), jnp.float32)],
        compiler_params=_COMPILER_PARAMS,
    )(x, scale1, shift1, z1, scale2, shift2, params["w2"])

    return jnp.transpose(out, (0, 3, 1, 2))                       # NHWC -> NCHW


def _reference_forward(x_nchw, params):
    """Pure-JAX f32 reference of the PyTorch module (for a sanity check)."""
    x = jnp.transpose(x_nchw, (0, 2, 3, 1))

    def bn_relu(v, g, b):
        mean = jnp.mean(v, axis=(0, 1, 2), keepdims=True)
        var = jnp.mean((v - mean) ** 2, axis=(0, 1, 2), keepdims=True)
        y = (v - mean) * jax.lax.rsqrt(var + EPS) * g.reshape(1, 1, 1, -1) \
            + b.reshape(1, 1, 1, -1)
        return jnp.maximum(y, 0.0)

    def conv3x3(v, w9):
        wf = w9.astype(jnp.float32).reshape(3, 3, w9.shape[1], w9.shape[2])
        return jax.lax.conv_general_dilated(
            v, wf, (1, 1), "SAME", dimension_numbers=("NHWC", "HWIO", "NHWC"))

    a1 = bn_relu(x, params["g1"], params["b1"])
    z1 = conv3x3(a1, params["w1"])
    a2 = bn_relu(z1, params["g2"], params["b2"])
    out = conv3x3(a2, params["w2"]) + a1
    return jnp.transpose(out, (0, 3, 1, 2))


def init_params(key, in_planes, planes):
    """Deterministic synthetic parameters with the shapes implied by __init__."""
    k1, k2, k3, k4, k5, k6 = jax.random.split(key, 6)
    w1_oihw = 0.1 * jax.random.normal(k1, (planes, in_planes, 3, 3), jnp.float32)
    w2_oihw = 0.1 * jax.random.normal(k2, (planes, planes, 3, 3), jnp.float32)
    # Torch OIHW -> (ky, kx, cin, cout) -> (9, cin, cout); stored bf16 for the MXU.
    w1 = jnp.transpose(w1_oihw, (2, 3, 1, 0)).reshape(9, in_planes, planes)
    w2 = jnp.transpose(w2_oihw, (2, 3, 1, 0)).reshape(9, planes, planes)
    g1 = 1.0 + 0.1 * jax.random.normal(k3, (1, in_planes), jnp.float32)
    b1 = 0.1 * jax.random.normal(k4, (1, in_planes), jnp.float32)
    g2 = 1.0 + 0.1 * jax.random.normal(k5, (1, planes), jnp.float32)
    b2 = 0.1 * jax.random.normal(k6, (1, planes), jnp.float32)
    return dict(w1=w1.astype(jnp.bfloat16), w2=w2.astype(jnp.bfloat16),
                g1=g1, b1=b1, g2=g2, b2=b2)


if __name__ == "__main__":
    key = jax.random.PRNGKey(0)
    kx, kp = jax.random.split(key)

    N, C, H, W = 2, 4, 16, 16          # in_planes = planes = 4, stride = 1
    x = jax.random.normal(kx, (N, C, H, W), jnp.float32)
    params = init_params(kp, in_planes=C, planes=C)

    out = jax.jit(preact_block_forward)(x, params)
    jax.block_until_ready(out)
    assert out.shape == (N, C, H, W) and out.dtype == jnp.float32

    ref = _reference_forward(x, params)
    err = float(jnp.max(jnp.abs(out - ref)))
    assert err < 5e-2, f"max abs error vs reference: {err}"

    print("KERNEL_OK")
</pallas_src>

<mosaic_0001>
module attributes {stable_mosaic.version = 11 : i64} {
  func.func @_bn1_stats_kernel(%arg0: i32, %arg1: memref<1x16x16x4xf32, #tpu.memory_space<vmem>>, %arg2: memref<1x1x4xf32, #tpu.memory_space<vmem>>, %arg3: memref<1x1x4xf32, #tpu.memory_space<vmem>>) attributes {dimension_semantics = [#tpu.dimension_semantics<parallel>], iteration_bounds = array<i64: 2>, scalar_prefetch = 0 : i64, scratch_operands = 0 : i64, tpu.core_type = #tpu.core_type<tc>, window_params = [{transform_indices = @transform_0, window_bounds = array<i64: 1, 16, 16, 4>}, {transform_indices = @transform_1, window_bounds = array<i64: 1, 1, 4>}, {transform_indices = @transform_2, window_bounds = array<i64: 1, 1, 4>}]} {
    %c0 = arith.constant 0 : index
    %c0_0 = arith.constant 0 : index
    %c0_1 = arith.constant 0 : index
    %c0_2 = arith.constant 0 : index
    %0 = vector.load %arg1[%c0, %c0_0, %c0_1, %c0_2] : memref<1x16x16x4xf32, #tpu.memory_space<vmem>>, vector<1x16x16x4xf32>
    %1 = vector.shape_cast %0 : vector<1x16x16x4xf32> to vector<16x16x4xf32>
    %2 = vector.shape_cast %1 : vector<16x16x4xf32> to vector<256x4xf32>
    %cst = arith.constant dense<0.000000e+00> : vector<4xf32>
    %3 = vector.multi_reduction <add>, %2, %cst [0] : vector<256x4xf32> to vector<4xf32>
    %4 = vector.shape_cast %3 : vector<4xf32> to vector<1x4xf32>
    %c0_3 = arith.constant 0 : index
    %c0_4 = arith.constant 0 : index
    %c0_5 = arith.constant 0 : index
    %5 = vector.load %arg2[%c0_3, %c0_4, %c0_5] : memref<1x1x4xf32, #tpu.memory_space<vmem>>, vector<1x1x4xf32>
    %6 = vector.shape_cast %5 : vector<1x1x4xf32> to vector<1x4xf32>
    %7 = vector.shape_cast %4 : vector<1x4xf32> to vector<1x1x4xf32>
    tpu.vector_store %arg2[%c0_3, %c0_4, %c0_5], %7 {strides = array<i32>} : memref<1x1x4xf32, #tpu.memory_space<vmem>>, vector<1x1x4xf32>,
    %8 = arith.mulf %2, %2 : vector<256x4xf32>
    %cst_6 = arith.constant dense<0.000000e+00> : vector<4xf32>
    %9 = vector.multi_reduction <add>, %8, %cst_6 [0] : vector<256x4xf32> to vector<4xf32>
    %10 = vector.shape_cast %9 : vector<4xf32> to vector<1x4xf32>
    %c0_7 = arith.constant 0 : index
    %c0_8 = arith.constant 0 : index
    %c0_9 = arith.constant 0 : index
    %11 = vector.load %arg3[%c0_7, %c0_8, %c0_9] : memref<1x1x4xf32, #tpu.memory_space<vmem>>, vector<1x1x4xf32>
    %12 = vector.shape_cast %11 : vector<1x1x4xf32> to vector<1x4xf32>
    %13 = vector.shape_cast %10 : vector<1x4xf32> to vector<1x1x4xf32>
    tpu.vector_store %arg3[%c0_7, %c0_8, %c0_9], %13 {strides = array<i32>} : memref<1x1x4xf32, #tpu.memory_space<vmem>>, vector<1x1x4xf32>,
    return
  }
  func.func @transform_0(%arg0: i32) -> (i32, i32, i32, i32) {
    %c0_i32 = arith.constant 0 : i32
    %c0_i32_0 = arith.constant 0 : i32
    %c0_i32_1 = arith.constant 0 : i32
    %c0_i32_2 = arith.constant 0 : i32
    return %arg0, %c0_i32, %c0_i32_0, %c0_i32_1 : i32, i32, i32, i32
  }
  func.func @transform_1(%arg0: i32) -> (i32, i32, i32) {
    %c0_i32 = arith.constant 0 : i32
    %c0_i32_0 = arith.constant 0 : i32
    %c0_i32_1 = arith.constant 0 : i32
    return %arg0, %c0_i32, %c0_i32_0 : i32, i32, i32
  }
  func.func @transform_2(%arg0: i32) -> (i32, i32, i32) {
    %c0_i32 = arith.constant 0 : i32
    %c0_i32_0 = arith.constant 0 : i32
    %c0_i32_1 = arith.constant 0 : i32
    return %arg0, %c0_i32, %c0_i32_0 : i32, i32, i32
  }
}

module attributes {stable_mosaic.version = 11 : i64} {
  func.func @_bn1_conv1_kernel(%arg0: i32, %arg1: memref<1x16x16x4xf32, #tpu.memory_space<vmem>>, %arg2: memref<1x4xf32, #tpu.memory_space<vmem>>, %arg3: memref<1x4xf32, #tpu.memory_space<vmem>>, %arg4: memref<9x4x4xbf16, #tpu.memory_space<vmem>>, %arg5: memref<1x16x16x4xf32, #tpu.memory_space<vmem>>, %arg6: memref<1x1x4xf32, #tpu.memory_space<vmem>>, %arg7: memref<1x1x4xf32, #tpu.memory_space<vmem>>, %arg8: memref<18x18x4xf32, #tpu.memory_space<vmem>>) attributes {dimension_semantics = [#tpu.dimension_semantics<parallel>], iteration_bounds = array<i64: 2>, scalar_prefetch = 0 : i64, scratch_operands = 1 : i64, tpu.core_type = #tpu.core_type<tc>, window_params = [{transform_indices = @transform_0, window_bounds = array<i64: 1, 16, 16, 4>}, {pipeline_mode = #tpu.pipeline_mode<synchronous>, transform_indices = @transform_1, window_bounds = array<i64: 1, 4>}, {pipeline_mode = #tpu.pipeline_mode<synchronous>, transform_indices = @transform_2, window_bounds = array<i64: 1, 4>}, {pipeline_mode = #tpu.pipeline_mode<synchronous>, transform_indices = @transform_3, window_bounds = array<i64: 9, 4, 4>}, {transform_indices = @transform_4, window_bounds = array<i64: 1, 16, 16, 4>}, {transform_indices = @transform_5, window_bounds = array<i64: 1, 1, 4>}, {transform_indices = @transform_6, window_bounds = array<i64: 1, 1, 4>}]} {
    %c0 = arith.constant 0 : index
    %c0_0 = arith.constant 0 : index
    %c0_1 = arith.constant 0 : index
    %c0_2 = arith.constant 0 : index
    %0 = vector.load %arg1[%c0, %c0_0, %c0_1, %c0_2] : memref<1x16x16x4xf32, #tpu.memory_space<vmem>>, vector<1x16x16x4xf32>
    %1 = vector.shape_cast %0 : vector<1x16x16x4xf32> to vector<16x16x4xf32>
    %2 = vector.shape_cast %1 : vector<16x16x4xf32> to vector<256x4xf32>
    %c0_3 = arith.constant 0 : index
    %c0_4 = arith.constant 0 : index
    %3 = vector.load %arg2[%c0_3, %c0_4] : memref<1x4xf32, #tpu.memory_space<vmem>>, vector<1x4xf32>
    %4 = vector.broadcast %3 : vector<1x4xf32> to vector<256x4xf32>
    %5 = arith.mulf %2, %4 : vector<256x4xf32>
    %c0_5 = arith.constant 0 : index
    %c0_6 = arith.constant 0 : index
    %6 = vector.load %arg3[%c0_5, %c0_6] : memref<1x4xf32, #tpu.memory_space<vmem>>, vector<1x4xf32>
    %7 = vector.broadcast %6 : vector<1x4xf32> to vector<256x4xf32>
    %8 = arith.addf %5, %7 : vector<256x4xf32>
    %cst = arith.constant 0.000000e+00 : f32
    %9 = vector.broadcast %cst : f32 to vector<256x4xf32>
    %10 = arith.maximumf %8, %9 : vector<256x4xf32>
    %cst_7 = arith.constant 0.000000e+00 : f32
    %11 = vector.broadcast %cst_7 : f32 to vector<18x18x4xf32>
    %c0_8 = arith.constant 0 : index
    %c0_9 = arith.constant 0 : index
    %c0_10 = arith.constant 0 : index
    %12 = vector.load %arg8[%c0_8, %c0_9, %c0_10] : memref<18x18x4xf32, #tpu.memory_space<vmem>>, vector<18x18x4xf32>
    tpu.vector_store %arg8[%c0_8, %c0_9, %c0_10], %11 {strides = array<i32>} : memref<18x18x4xf32, #tpu.memory_space<vmem>>, vector<18x18x4xf32>,
    %13 = vector.shape_cast %10 : vector<256x4xf32> to vector<16x16x4xf32>
    %c1 = arith.constant 1 : index
    %c1_11 = arith.constant 1 : index
    %c0_12 = arith.constant 0 : index
    %14 = vector.load %arg8[%c1, %c1_11, %c0_12] : memref<18x18x4xf32, #tpu.memory_space<vmem>>, vector<16x16x4xf32>
    tpu.vector_store %arg8[%c1, %c1_11, %c0_12], %13 {strides = array<i32>} : memref<18x18x4xf32, #tpu.memory_space<vmem>>, vector<16x16x4xf32>,
    %cst_13 = arith.constant 0.000000e+00 : f32
    %15 = vector.broadcast %cst_13 : f32 to vector<256x4xf32>
    %c0_14 = arith.constant 0 : index
    %c0_15 = arith.constant 0 : index
    %c0_16 = arith.constant 0 : index
    %16 = vector.load %arg8[%c0_14, %c0_15, %c0_16] : memref<18x18x4xf32, #tpu.memory_space<vmem>>, vector<16x16x4xf32>
    %17 = vector.shape_cast %16 : vector<16x16x4xf32> to vector<256x4xf32>
    %18 = arith.truncf %17 : vector<256x4xf32> to vector<256x4xbf16>
    %c0_17 = arith.constant 0 : index
    %c0_18 = arith.constant 0 : index
    %c0_19 = arith.constant 0 : index
    %19 = vector.load %arg4[%c0_17, %c0_18, %c0_19] : memref<9x4x4xbf16, #tpu.memory_space<vmem>>, vector<1x4x4xbf16>
    %20 = vector.shape_cast %19 : vector<1x4x4xbf16> to vector<4x4xbf16>
    %cst_20 = arith.constant dense<0.000000e+00> : vector<256x4xf32>
    %21 = tpu.matmul %18, %20, %cst_20 {dimension_numbers = #tpu.dot_dimension_numbers<[1], [0], [0], [1], [0, 0, 1, 1], [], []>} : vector<256x4xbf16>, vector<4x4xbf16>, vector<256x4xf32> -> vector<256x4xf32>
    %22 = arith.addf %15, %21 : vector<256x4xf32>
    %c0_21 = arith.constant 0 : index
    %c1_22 = arith.constant 1 : index
    %c0_23 = arith.constant 0 : index
    %23 = vector.load %arg8[%c0_21, %c1_22, %c0_23] : memref<18x18x4xf32, #tpu.memory_space<vmem>>, vector<16x16x4xf32>
    %24 = vector.shape_cast %23 : vector<16x16x4xf32> to vector<256x4xf32>
    %25 = arith.truncf %24 : vector<256x4xf32> to vector<256x4xbf16>
    %c1_24 = arith.constant 1 : index
    %c0_25 = arith.constant 0 : index
    %c0_26 = arith.constant 0 : index
    %26 = vector.load %arg4[%c1_24, %c0_25, %c0_26] : memref<9x4x4xbf16, #tpu.memory_space<vmem>>, vector<1x4x4xbf16>
    %27 = vector.shape_cast %26 : vector<1x4x4xbf16> to vector<4x4xbf16>
    %cst_27 = arith.constant dense<0.000000e+00> : vector<256x4xf32>
    %28 = tpu.matmul %25, %27, %cst_27 {dimension_numbers = #tpu.dot_dimension_numbers<[1], [0], [0], [1], [0, 0, 1, 1], [], []>} : vector<256x4xbf16>, vector<4x4xbf16>, vector<256x4xf32> -> vector<256x4xf32>
    %29 = arith.addf %22, %28 : vector<256x4xf32>
    %c0_28 = arith.constant 0 : index
    %c2 = arith.constant 2 : index
    %c0_29 = arith.constant 0 : index
    %30 = vector.load %arg8[%c0_28, %c2, %c0_29] : memref<18x18x4xf32, #tpu.memory_space<vmem>>, vector<16x16x4xf32>
    %31 = vector.shape_cast %30 : vector<16x16x4xf32> to vector<256x4xf32>
    %32 = arith.truncf %31 : vector<256x4xf32> to vector<256x4xbf16>
    %c2_30 = arith.constant 2 : index
    %c0_31 = arith.constant 0 : index
    %c0_32 = arith.constant 0 : index
    %33 = vector.load %arg4[%c2_30, %c0_31, %c0_32] : memref<9x4x4xbf16, #tpu.memory_space<vmem>>, vector<1x4x4xbf16>
    %34 = vector.shape_cast %33 : vector<1x4x4xbf16> to vector<4x4xbf16>
    %cst_33 = arith.constant dense<0.000000e+00> : vector<256x4xf32>
    %35 = tpu.matmul %32, %34, %cst_33 {dimension_numbers = #tpu.dot_dimension_numbers<[1], [0], [0], [1], [0, 0, 1, 1], [], []>} : vector<256x4xbf16>, vector<4x4xbf16>, vector<256x4xf32> -> vector<256x4xf32>
    %36 = arith.addf %29, %35 : vector<256x4xf32>
    %c1_34 = arith.constant 1 : index
    %c0_35 = arith.constant 0 : index
    %c0_36 = arith.constant 0 : index
    %37 = vector.load %arg8[%c1_34, %c0_35, %c0_36] : memref<18x18x4xf32, #tpu.memory_space<vmem>>, vector<16x16x4xf32>
    %38 = vector.shape_cast %37 : vector<16x16x4xf32> to vector<256x4xf32>
    %39 = arith.truncf %38 : vector<256x4xf32> to vector<256x4xbf16>
    %c3 = arith.constant 3 : index
    %c0_37 = arith.constant 0 : index
    %c0_38 = arith.constant 0 : index
    %40 = vector.load %arg4[%c3, %c0_37, %c0_38] : memref<9x4x4xbf16, #tpu.memory_space<vmem>>, vector<1x4x4xbf16>
    %41 = vector.shape_cast %40 : vector<1x4x4xbf16> to vector<4x4xbf16>
    %cst_39 = arith.constant dense<0.000000e+00> : vector<256x4xf32>
    %42 = tpu.matmul %39, %41, %cst_39 {dimension_numbers = #tpu.dot_dimension_numbers<[1], [0], [0], [1], [0, 0, 1, 1], [], []>} : vector<256x4xbf16>, vector<4x4xbf16>, vector<256x4xf32> -> vector<256x4xf32>
    %43 = arith.addf %36, %42 : vector<256x4xf32>
    %c1_40 = arith.constant 1 : index
    %c1_41 = arith.constant 1 : index
    %c0_42 = arith.constant 0 : index
    %44 = vector.load %arg8[%c1_40, %c1_41, %c0_42] : memref<18x18x4xf32, #tpu.memory_space<vmem>>, vector<16x16x4xf32>
    %45 = vector.shape_cast %44 : vector<16x16x4xf32> to vector<256x4xf32>
    %46 = arith.truncf %45 : vector<256x4xf32> to vector<256x4xbf16>
    %c4 = arith.constant 4 : index
    %c0_43 = arith.constant 0 : index
    %c0_44 = arith.constant 0 : index
    %47 = vector.load %arg4[%c4, %c0_43, %c0_44] : memref<9x4x4xbf16, #tpu.memory_space<vmem>>, vector<1x4x4xbf16>
    %48 = vector.shape_cast %47 : vector<1x4x4xbf16> to vector<4x4xbf16>
    %cst_45 = arith.constant dense<0.000000e+00> : vector<256x4xf32>
    %49 = tpu.matmul %46, %48, %cst_45 {dimension_numbers = #tpu.dot_dimension_numbers<[1], [0], [0], [1], [0, 0, 1, 1], [], []>} : vector<256x4xbf16>, vector<4x4xbf16>, vector<256x4xf32> -> vector<256x4xf32>
    %50 = arith.addf %43, %49 : vector<256x4xf32>
    %c1_46 = arith.constant 1 : index
    %c2_47 = arith.constant 2 : index
    %c0_48 = arith.constant 0 : index
    %51 = vector.load %arg8[%c1_46, %c2_47, %c0_48] : memref<18x18x4xf32, #tpu.memory_space<vmem>>, vector<16x16x4xf32>
    %52 = vector.shape_cast %51 : vector<16x16x4xf32> to vector<256x4xf32>
    %53 = arith.truncf %52 : vector<256x4xf32> to vector<256x4xbf16>
    %c5 = arith.constant 5 : index
    %c0_49 = arith.constant 0 : index
    %c0_50 = arith.constant 0 : index
    %54 = vector.load %arg4[%c5, %c0_49, %c0_50] : memref<9x4x4xbf16, #tpu.memory_space<vmem>>, vector<1x4x4xbf16>
    %55 = vector.shape_cast %54 : vector<1x4x4xbf16> to vector<4x4xbf16>
    %cst_51 = arith.constant dense<0.000000e+00> : vector<256x4xf32>
    %56 = tpu.matmul %53, %55, %cst_51 {dimension_numbers = #tpu.dot_dimension_numbers<[1], [0], [0], [1], [0, 0, 1, 1], [], []>} : vector<256x4xbf16>, vector<4x4xbf16>, vector<256x4xf32> -> vector<256x4xf32>
    %57 = arith.addf %50, %56 : vector<256x4xf32>
    %c2_52 = arith.constant 2 : index
    %c0_53 = arith.constant 0 : index
    %c0_54 = arith.constant 0 : index
    %58 = vector.load %arg8[%c2_52, %c0_53, %c0_54] : memref<18x18x4xf32, #tpu.memory_space<vmem>>, vector<16x16x4xf32>
    %59 = vector.shape_cast %58 : vector<16x16x4xf32> to vector<256x4xf32>
    %60 = arith.truncf %59 : vector<256x4xf32> to vector<256x4xbf16>
    %c6 = arith.constant 6 : index
    %c0_55 = arith.constant 0 : index
    %c0_56 = arith.constant 0 : index
    %61 = vector.load %arg4[%c6, %c0_55, %c0_56] : memref<9x4x4xbf16, #tpu.memory_space<vmem>>, vector<1x4x4xbf16>
    %62 = vector.shape_cast %61 : vector<1x4x4xbf16> to vector<4x4xbf16>
    %cst_57 = arith.constant dense<0.000000e+00> : vector<256x4xf32>
    %63 = tpu.matmul %60, %62, %cst_57 {dimension_numbers = #tpu.dot_dimension_numbers<[1], [0], [0], [1], [0, 0, 1, 1], [], []>} : vector<256x4xbf16>, vector<4x4xbf16>, vector<256x4xf32> -> vector<256x4xf32>
    %64 = arith.addf %57, %63 : vector<256x4xf32>
    %c2_58 = arith.constant 2 : index
    %c1_59 = arith.constant 1 : index
    %c0_60 = arith.constant 0 : index
    %65 = vector.load %arg8[%c2_58, %c1_59, %c0_60] : memref<18x18x4xf32, #tpu.memory_space<vmem>>, vector<16x16x4xf32>
    %66 = vector.shape_cast %65 : vector<16x16x4xf32> to vector<256x4xf32>
    %67 = arith.truncf %66 : vector<256x4xf32> to vector<256x4xbf16>
    %c7 = arith.constant 7 : index
    %c0_61 = arith.constant 0 : index
    %c0_62 = arith.constant 0 : index
    %68 = vector.load %arg4[%c7, %c0_61, %c0_62] : memref<9x4x4xbf16, #tpu.memory_space<vmem>>, vector<1x4x4xbf16>
    %69 = vector.shape_cast %68 : vector<1x4x4xbf16> to vector<4x4xbf16>
    %cst_63 = arith.constant dense<0.000000e+00> : vector<256x4xf32>
    %70 = tpu.matmul %67, %69, %cst_63 {dimension_numbers = #tpu.dot_dimension_numbers<[1], [0], [0], [1], [0, 0, 1, 1], [], []>} : vector<256x4xbf16>, vector<4x4xbf16>, vector<256x4xf32> -> vector<256x4xf32>
    %71 = arith.addf %64, %70 : vector<256x4xf32>
    %c2_64 = arith.constant 2 : index
    %c2_65 = arith.constant 2 : index
    %c0_66 = arith.constant 0 : index
    %72 = vector.load %arg8[%c2_64, %c2_65, %c0_66] : memref<18x18x4xf32, #tpu.memory_space<vmem>>, vector<16x16x4xf32>
    %73 = vector.shape_cast %72 : vector<16x16x4xf32> to vector<256x4xf32>
    %74 = arith.truncf %73 : vector<256x4xf32> to vector<256x4xbf16>
    %c8 = arith.constant 8 : index
    %c0_67 = arith.constant 0 : index
    %c0_68 = arith.constant 0 : index
    %75 = vector.load %arg4[%c8, %c0_67, %c0_68] : memref<9x4x4xbf16, #tpu.memory_space<vmem>>, vector<1x4x4xbf16>
    %76 = vector.shape_cast %75 : vector<1x4x4xbf16> to vector<4x4xbf16>
    %cst_69 = arith.constant dense<0.000000e+00> : vector<256x4xf32>
    %77 = tpu.matmul %74, %76, %cst_69 {dimension_numbers = #tpu.dot_dimension_numbers<[1], [0], [0], [1], [0, 0, 1, 1], [], []>} : vector<256x4xbf16>, vector<4x4xbf16>, vector<256x4xf32> -> vector<256x4xf32>
    %78 = arith.addf %71, %77 : vector<256x4xf32>
    %79 = vector.shape_cast %78 : vector<256x4xf32> to vector<16x16x4xf32>
    %c0_70 = arith.constant 0 : index
    %c0_71 = arith.constant 0 : index
    %c0_72 = arith.constant 0 : index
    %c0_73 = arith.constant 0 : index
    %80 = vector.load %arg5[%c0_70, %c0_71, %c0_72, %c0_73] : memref<1x16x16x4xf32, #tpu.memory_space<vmem>>, vector<1x16x16x4xf32>
    %81 = vector.shape_cast %80 : vector<1x16x16x4xf32> to vector<16x16x4xf32>
    %82 = vector.shape_cast %79 : vector<16x16x4xf32> to vector<1x16x16x4xf32>
    tpu.vector_store %arg5[%c0_70, %c0_71, %c0_72, %c0_73], %82 {strides = array<i32>} : memref<1x16x16x4xf32, #tpu.memory_space<vmem>>, vector<1x16x16x4xf32>,
    %cst_74 = arith.constant dense<0.000000e+00> : vector<4xf32>
    %83 = vector.multi_reduction <add>, %78, %cst_74 [0] : vector<256x4xf32> to vector<4xf32>
    %84 = vector.shape_cast %83 : vector<4xf32> to vector<1x4xf32>
    %c0_75 = arith.constant 0 : index
    %c0_76 = arith.constant 0 : index
    %c0_77 = arith.constant 0 : index
    %85 = vector.load %arg6[%c0_75, %c0_76, %c0_77] : memref<1x1x4xf32, #tpu.memory_space<vmem>>, vector<1x1x4xf32>
    %86 = vector.shape_cast %85 : vector<1x1x4xf32> to vector<1x4xf32>
    %87 = vector.shape_cast %84 : vector<1x4xf32> to vector<1x1x4xf32>
    tpu.vector_store %arg6[%c0_75, %c0_76, %c0_77], %87 {strides = array<i32>} : memref<1x1x4xf32, #tpu.memory_space<vmem>>, vector<1x1x4xf32>,
    %88 = arith.mulf %78, %78 : vector<256x4xf32>
    %cst_78 = arith.constant dense<0.000000e+00> : vector<4xf32>
    %89 = vector.multi_reduction <add>, %88, %cst_78 [0] : vector<256x4xf32> to vector<4xf32>
    %90 = vector.shape_cast %89 : vector<4xf32> to vector<1x4xf32>
    %c0_79 = arith.constant 0 : index
    %c0_80 = arith.constant 0 : index
    %c0_81 = arith.constant 0 : index
    %91 = vector.load %arg7[%c0_79, %c0_80, %c0_81] : memref<1x1x4xf32, #tpu.memory_space<vmem>>, vector<1x1x4xf32>
    %92 = vector.shape_cast %91 : vector<1x1x4xf32> to vector<1x4xf32>
    %93 = vector.shape_cast %90 : vector<1x4xf32> to vector<1x1x4xf32>
    tpu.vector_store %arg7[%c0_79, %c0_80, %c0_81], %93 {strides = array<i32>} : memref<1x1x4xf32, #tpu.memory_space<vmem>>, vector<1x1x4xf32>,
    return
  }
  func.func @transform_0(%arg0: i32) -> (i32, i32, i32, i32) {
    %c0_i32 = arith.constant 0 : i32
    %c0_i32_0 = arith.constant 0 : i32
    %c0_i32_1 = arith.constant 0 : i32
    %c0_i32_2 = arith.constant 0 : i32
    return %arg0, %c0_i32, %c0_i32_0, %c0_i32_1 : i32, i32, i32, i32
  }
  func.func @transform_1(%arg0: i32) -> (i32, i32) {
    %c0_i32 = arith.constant 0 : i32
    %c0_i32_0 = arith.constant 0 : i32
    %c0_i32_1 = arith.constant 0 : i32
    return %c0_i32, %c0_i32_0 : i32, i32
  }
  func.func @transform_2(%arg0: i32) -> (i32, i32) {
    %c0_i32 = arith.constant 0 : i32
    %c0_i32_0 = arith.constant 0 : i32
    %c0_i32_1 = arith.constant 0 : i32
    return %c0_i32, %c0_i32_0 : i32, i32
  }
  func.func @transform_3(%arg0: i32) -> (i32, i32, i32) {
    %c0_i32 = arith.constant 0 : i32
    %c0_i32_0 = arith.constant 0 : i32
    %c0_i32_1 = arith.constant 0 : i32
    %c0_i32_2 = arith.constant 0 : i32
    return %c0_i32, %c0_i32_0, %c0_i32_1 : i32, i32, i32
  }
  func.func @transform_4(%arg0: i32) -> (i32, i32, i32, i32) {
    %c0_i32 = arith.constant 0 : i32
    %c0_i32_0 = arith.constant 0 : i32
    %c0_i32_1 = arith.constant 0 : i32
    %c0_i32_2 = arith.constant 0 : i32
    return %arg0, %c0_i32, %c0_i32_0, %c0_i32_1 : i32, i32, i32, i32
  }
  func.func @transform_5(%arg0: i32) -> (i32, i32, i32) {
    %c0_i32 = arith.constant 0 : i32
    %c0_i32_0 = arith.constant 0 : i32
    %c0_i32_1 = arith.constant 0 : i32
    return %arg0, %c0_i32, %c0_i32_0 : i32, i32, i32
  }
  func.func @transform_6(%arg0: i32) -> (i32, i32, i32) {
    %c0_i32 = arith.constant 0 : i32
    %c0_i32_0 = arith.constant 0 : i32
    %c0_i32_1 = arith.constant 0 : i32
    return %arg0, %c0_i32, %c0_i32_0 : i32, i32, i32
  }
}

module attributes {stable_mosaic.version = 11 : i64} {
  func.func @_bn2_conv2_add_kernel(%arg0: i32, %arg1: memref<1x16x16x4xf32, #tpu.memory_space<vmem>>, %arg2: memref<1x4xf32, #tpu.memory_space<vmem>>, %arg3: memref<1x4xf32, #tpu.memory_space<vmem>>, %arg4: memref<1x16x16x4xf32, #tpu.memory_space<vmem>>, %arg5: memref<1x4xf32, #tpu.memory_space<vmem>>, %arg6: memref<1x4xf32, #tpu.memory_space<vmem>>, %arg7: memref<9x4x4xbf16, #tpu.memory_space<vmem>>, %arg8: memref<1x16x16x4xf32, #tpu.memory_space<vmem>>, %arg9: memref<18x18x4xf32, #tpu.memory_space<vmem>>) attributes {dimension_semantics = [#tpu.dimension_semantics<parallel>], iteration_bounds = array<i64: 2>, scalar_prefetch = 0 : i64, scratch_operands = 1 : i64, tpu.core_type = #tpu.core_type<tc>, window_params = [{transform_indices = @transform_0, window_bounds = array<i64: 1, 16, 16, 4>}, {pipeline_mode = #tpu.pipeline_mode<synchronous>, transform_indices = @transform_1, window_bounds = array<i64: 1, 4>}, {pipeline_mode = #tpu.pipeline_mode<synchronous>, transform_indices = @transform_2, window_bounds = array<i64: 1, 4>}, {transform_indices = @transform_3, window_bounds = array<i64: 1, 16, 16, 4>}, {pipeline_mode = #tpu.pipeline_mode<synchronous>, transform_indices = @transform_4, window_bounds = array<i64: 1, 4>}, {pipeline_mode = #tpu.pipeline_mode<synchronous>, transform_indices = @transform_5, window_bounds = array<i64: 1, 4>}, {pipeline_mode = #tpu.pipeline_mode<synchronous>, transform_indices = @transform_6, window_bounds = array<i64: 9, 4, 4>}, {transform_indices = @transform_7, window_bounds = array<i64: 1, 16, 16, 4>}]} {
    %c0 = arith.constant 0 : index
    %c0_0 = arith.constant 0 : index
    %c0_1 = arith.constant 0 : index
    %c0_2 = arith.constant 0 : index
    %0 = vector.load %arg1[%c0, %c0_0, %c0_1, %c0_2] : memref<1x16x16x4xf32, #tpu.memory_space<vmem>>, vector<1x16x16x4xf32>
    %1 = vector.shape_cast %0 : vector<1x16x16x4xf32> to vector<16x16x4xf32>
    %2 = vector.shape_cast %1 : vector<16x16x4xf32> to vector<256x4xf32>
    %c0_3 = arith.constant 0 : index
    %c0_4 = arith.constant 0 : index
    %3 = vector.load %arg2[%c0_3, %c0_4] : memref<1x4xf32, #tpu.memory_space<vmem>>, vector<1x4xf32>
    %4 = vector.broadcast %3 : vector<1x4xf32> to vector<256x4xf32>
    %5 = arith.mulf %2, %4 : vector<256x4xf32>
    %c0_5 = arith.constant 0 : index
    %c0_6 = arith.constant 0 : index
    %6 = vector.load %arg3[%c0_5, %c0_6] : memref<1x4xf32, #tpu.memory_space<vmem>>, vector<1x4xf32>
    %7 = vector.broadcast %6 : vector<1x4xf32> to vector<256x4xf32>
    %8 = arith.addf %5, %7 : vector<256x4xf32>
    %cst = arith.constant 0.000000e+00 : f32
    %9 = vector.broadcast %cst : f32 to vector<256x4xf32>
    %10 = arith.maximumf %8, %9 : vector<256x4xf32>
    %c0_7 = arith.constant 0 : index
    %c0_8 = arith.constant 0 : index
    %c0_9 = arith.constant 0 : index
    %c0_10 = arith.constant 0 : index
    %11 = vector.load %arg4[%c0_7, %c0_8, %c0_9, %c0_10] : memref<1x16x16x4xf32, #tpu.memory_space<vmem>>, vector<1x16x16x4xf32>
    %12 = vector.shape_cast %11 : vector<1x16x16x4xf32> to vector<16x16x4xf32>
    %13 = vector.shape_cast %12 : vector<16x16x4xf32> to vector<256x4xf32>
    %c0_11 = arith.constant 0 : index
    %c0_12 = arith.constant 0 : index
    %14 = vector.load %arg5[%c0_11, %c0_12] : memref<1x4xf32, #tpu.memory_space<vmem>>, vector<1x4xf32>
    %15 = vector.broadcast %14 : vector<1x4xf32> to vector<256x4xf32>
    %16 = arith.mulf %13, %15 : vector<256x4xf32>
    %c0_13 = arith.constant 0 : index
    %c0_14 = arith.constant 0 : index
    %17 = vector.load %arg6[%c0_13, %c0_14] : memref<1x4xf32, #tpu.memory_space<vmem>>, vector<1x4xf32>
    %18 = vector.broadcast %17 : vector<1x4xf32> to vector<256x4xf32>
    %19 = arith.addf %16, %18 : vector<256x4xf32>
    %cst_15 = arith.constant 0.000000e+00 : f32
    %20 = vector.broadcast %cst_15 : f32 to vector<256x4xf32>
    %21 = arith.maximumf %19, %20 : vector<256x4xf32>
    %cst_16 = arith.constant 0.000000e+00 : f32
    %22 = vector.broadcast %cst_16 : f32 to vector<18x18x4xf32>
    %c0_17 = arith.constant 0 : index
    %c0_18 = arith.constant 0 : index
    %c0_19 = arith.constant 0 : index
    %23 = vector.load %arg9[%c0_17, %c0_18, %c0_19] : memref<18x18x4xf32, #tpu.memory_space<vmem>>, vector<18x18x4xf32>
    tpu.vector_store %arg9[%c0_17, %c0_18, %c0_19], %22 {strides = array<i32>} : memref<18x18x4xf32, #tpu.memory_space<vmem>>, vector<18x18x4xf32>,
    %24 = vector.shape_cast %21 : vector<256x4xf32> to vector<16x16x4xf32>
    %c1 = arith.constant 1 : index
    %c1_20 = arith.constant 1 : index
    %c0_21 = arith.constant 0 : index
    %25 = vector.load %arg9[%c1, %c1_20, %c0_21] : memref<18x18x4xf32, #tpu.memory_space<vmem>>, vector<16x16x4xf32>
    tpu.vector_store %arg9[%c1, %c1_20, %c0_21], %24 {strides = array<i32>} : memref<18x18x4xf32, #tpu.memory_space<vmem>>, vector<16x16x4xf32>,
    %cst_22 = arith.constant 0.000000e+00 : f32
    %26 = vector.broadcast %cst_22 : f32 to vector<256x4xf32>
    %c0_23 = arith.constant 0 : index
    %c0_24 = arith.constant 0 : index
    %c0_25 = arith.constant 0 : index
    %27 = vector.load %arg9[%c0_23, %c0_24, %c0_25] : memref<18x18x4xf32, #tpu.memory_space<vmem>>, vector<16x16x4xf32>
    %28 = vector.shape_cast %27 : vector<16x16x4xf32> to vector<256x4xf32>
    %29 = arith.truncf %28 : vector<256x4xf32> to vector<256x4xbf16>
    %c0_26 = arith.constant 0 : index
    %c0_27 = arith.constant 0 : index
    %c0_28 = arith.constant 0 : index
    %30 = vector.load %arg7[%c0_26, %c0_27, %c0_28] : memref<9x4x4xbf16, #tpu.memory_space<vmem>>, vector<1x4x4xbf16>
    %31 = vector.shape_cast %30 : vector<1x4x4xbf16> to vector<4x4xbf16>
    %cst_29 = arith.constant dense<0.000000e+00> : vector<256x4xf32>
    %32 = tpu.matmul %29, %31, %cst_29 {dimension_numbers = #tpu.dot_dimension_numbers<[1], [0], [0], [1], [0, 0, 1, 1], [], []>} : vector<256x4xbf16>, vector<4x4xbf16>, vector<256x4xf32> -> vector<256x4xf32>
    %33 = arith.addf %26, %32 : vector<256x4xf32>
    %c0_30 = arith.constant 0 : index
    %c1_31 = arith.constant 1 : index
    %c0_32 = arith.constant 0 : index
    %34 = vector.load %arg9[%c0_30, %c1_31, %c0_32] : memref<18x18x4xf32, #tpu.memory_space<vmem>>, vector<16x16x4xf32>
    %35 = vector.shape_cast %34 : vector<16x16x4xf32> to vector<256x4xf32>
    %36 = arith.truncf %35 : vector<256x4xf32> to vector<256x4xbf16>
    %c1_33 = arith.constant 1 : index
    %c0_34 = arith.constant 0 : index
    %c0_35 = arith.constant 0 : index
    %37 = vector.load %arg7[%c1_33, %c0_34, %c0_35] : memref<9x4x4xbf16, #tpu.memory_space<vmem>>, vector<1x4x4xbf16>
    %38 = vector.shape_cast %37 : vector<1x4x4xbf16> to vector<4x4xbf16>
    %cst_36 = arith.constant dense<0.000000e+00> : vector<256x4xf32>
    %39 = tpu.matmul %36, %38, %cst_36 {dimension_numbers = #tpu.dot_dimension_numbers<[1], [0], [0], [1], [0, 0, 1, 1], [], []>} : vector<256x4xbf16>, vector<4x4xbf16>, vector<256x4xf32> -> vector<256x4xf32>
    %40 = arith.addf %33, %39 : vector<256x4xf32>
    %c0_37 = arith.constant 0 : index
    %c2 = arith.constant 2 : index
    %c0_38 = arith.constant 0 : index
    %41 = vector.load %arg9[%c0_37, %c2, %c0_38] : memref<18x18x4xf32, #tpu.memory_space<vmem>>, vector<16x16x4xf32>
    %42 = vector.shape_cast %41 : vector<16x16x4xf32> to vector<256x4xf32>
    %43 = arith.truncf %42 : vector<256x4xf32> to vector<256x4xbf16>
    %c2_39 = arith.constant 2 : index
    %c0_40 = arith.constant 0 : index
    %c0_41 = arith.constant 0 : index
    %44 = vector.load %arg7[%c2_39, %c0_40, %c0_41] : memref<9x4x4xbf16, #tpu.memory_space<vmem>>, vector<1x4x4xbf16>
    %45 = vector.shape_cast %44 : vector<1x4x4xbf16> to vector<4x4xbf16>
    %cst_42 = arith.constant dense<0.000000e+00> : vector<256x4xf32>
    %46 = tpu.matmul %43, %45, %cst_42 {dimension_numbers = #tpu.dot_dimension_numbers<[1], [0], [0], [1], [0, 0, 1, 1], [], []>} : vector<256x4xbf16>, vector<4x4xbf16>, vector<256x4xf32> -> vector<256x4xf32>
    %47 = arith.addf %40, %46 : vector<256x4xf32>
    %c1_43 = arith.constant 1 : index
    %c0_44 = arith.constant 0 : index
    %c0_45 = arith.constant 0 : index
    %48 = vector.load %arg9[%c1_43, %c0_44, %c0_45] : memref<18x18x4xf32, #tpu.memory_space<vmem>>, vector<16x16x4xf32>
    %49 = vector.shape_cast %48 : vector<16x16x4xf32> to vector<256x4xf32>
    %50 = arith.truncf %49 : vector<256x4xf32> to vector<256x4xbf16>
    %c3 = arith.constant 3 : index
    %c0_46 = arith.constant 0 : index
    %c0_47 = arith.constant 0 : index
    %51 = vector.load %arg7[%c3, %c0_46, %c0_47] : memref<9x4x4xbf16, #tpu.memory_space<vmem>>, vector<1x4x4xbf16>
    %52 = vector.shape_cast %51 : vector<1x4x4xbf16> to vector<4x4xbf16>
    %cst_48 = arith.constant dense<0.000000e+00> : vector<256x4xf32>
    %53 = tpu.matmul %50, %52, %cst_48 {dimension_numbers = #tpu.dot_dimension_numbers<[1], [0], [0], [1], [0, 0, 1, 1], [], []>} : vector<256x4xbf16>, vector<4x4xbf16>, vector<256x4xf32> -> vector<256x4xf32>
    %54 = arith.addf %47, %53 : vector<256x4xf32>
    %c1_49 = arith.constant 1 : index
    %c1_50 = arith.constant 1 : index
    %c0_51 = arith.constant 0 : index
    %55 = vector.load %arg9[%c1_49, %c1_50, %c0_51] : memref<18x18x4xf32, #tpu.memory_space<vmem>>, vector<16x16x4xf32>
    %56 = vector.shape_cast %55 : vector<16x16x4xf32> to vector<256x4xf32>
    %57 = arith.truncf %56 : vector<256x4xf32> to vector<256x4xbf16>
    %c4 = arith.constant 4 : index
    %c0_52 = arith.constant 0 : index
    %c0_53 = arith.constant 0 : index
    %58 = vector.load %arg7[%c4, %c0_52, %c0_53] : memref<9x4x4xbf16, #tpu.memory_space<vmem>>, vector<1x4x4xbf16>
    %59 = vector.shape_cast %58 : vector<1x4x4xbf16> to vector<4x4xbf16>
    %cst_54 = arith.constant dense<0.000000e+00> : vector<256x4xf32>
    %60 = tpu.matmul %57, %59, %cst_54 {dimension_numbers = #tpu.dot_dimension_numbers<[1], [0], [0], [1], [0, 0, 1, 1], [], []>} : vector<256x4xbf16>, vector<4x4xbf16>, vector<256x4xf32> -> vector<256x4xf32>
    %61 = arith.addf %54, %60 : vector<256x4xf32>
    %c1_55 = arith.constant 1 : index
    %c2_56 = arith.constant 2 : index
    %c0_57 = arith.constant 0 : index
    %62 = vector.load %arg9[%c1_55, %c2_56, %c0_57] : memref<18x18x4xf32, #tpu.memory_space<vmem>>, vector<16x16x4xf32>
    %63 = vector.shape_cast %62 : vector<16x16x4xf32> to vector<256x4xf32>
    %64 = arith.truncf %63 : vector<256x4xf32> to vector<256x4xbf16>
    %c5 = arith.constant 5 : index
    %c0_58 = arith.constant 0 : index
    %c0_59 = arith.constant 0 : index
    %65 = vector.load %arg7[%c5, %c0_58, %c0_59] : memref<9x4x4xbf16, #tpu.memory_space<vmem>>, vector<1x4x4xbf16>
    %66 = vector.shape_cast %65 : vector<1x4x4xbf16> to vector<4x4xbf16>
    %cst_60 = arith.constant dense<0.000000e+00> : vector<256x4xf32>
    %67 = tpu.matmul %64, %66, %cst_60 {dimension_numbers = #tpu.dot_dimension_numbers<[1], [0], [0], [1], [0, 0, 1, 1], [], []>} : vector<256x4xbf16>, vector<4x4xbf16>, vector<256x4xf32> -> vector<256x4xf32>
    %68 = arith.addf %61, %67 : vector<256x4xf32>
    %c2_61 = arith.constant 2 : index
    %c0_62 = arith.constant 0 : index
    %c0_63 = arith.constant 0 : index
    %69 = vector.load %arg9[%c2_61, %c0_62, %c0_63] : memref<18x18x4xf32, #tpu.memory_space<vmem>>, vector<16x16x4xf32>
    %70 = vector.shape_cast %69 : vector<16x16x4xf32> to vector<256x4xf32>
    %71 = arith.truncf %70 : vector<256x4xf32> to vector<256x4xbf16>
    %c6 = arith.constant 6 : index
    %c0_64 = arith.constant 0 : index
    %c0_65 = arith.constant 0 : index
    %72 = vector.load %arg7[%c6, %c0_64, %c0_65] : memref<9x4x4xbf16, #tpu.memory_space<vmem>>, vector<1x4x4xbf16>
    %73 = vector.shape_cast %72 : vector<1x4x4xbf16> to vector<4x4xbf16>
    %cst_66 = arith.constant dense<0.000000e+00> : vector<256x4xf32>
    %74 = tpu.matmul %71, %73, %cst_66 {dimension_numbers = #tpu.dot_dimension_numbers<[1], [0], [0], [1], [0, 0, 1, 1], [], []>} : vector<256x4xbf16>, vector<4x4xbf16>, vector<256x4xf32> -> vector<256x4xf32>
    %75 = arith.addf %68, %74 : vector<256x4xf32>
    %c2_67 = arith.constant 2 : index
    %c1_68 = arith.constant 1 : index
    %c0_69 = arith.constant 0 : index
    %76 = vector.load %arg9[%c2_67, %c1_68, %c0_69] : memref<18x18x4xf32, #tpu.memory_space<vmem>>, vector<16x16x4xf32>
    %77 = vector.shape_cast %76 : vector<16x16x4xf32> to vector<256x4xf32>
    %78 = arith.truncf %77 : vector<256x4xf32> to vector<256x4xbf16>
    %c7 = arith.constant 7 : index
    %c0_70 = arith.constant 0 : index
    %c0_71 = arith.constant 0 : index
    %79 = vector.load %arg7[%c7, %c0_70, %c0_71] : memref<9x4x4xbf16, #tpu.memory_space<vmem>>, vector<1x4x4xbf16>
    %80 = vector.shape_cast %79 : vector<1x4x4xbf16> to vector<4x4xbf16>
    %cst_72 = arith.constant dense<0.000000e+00> : vector<256x4xf32>
    %81 = tpu.matmul %78, %80, %cst_72 {dimension_numbers = #tpu.dot_dimension_numbers<[1], [0], [0], [1], [0, 0, 1, 1], [], []>} : vector<256x4xbf16>, vector<4x4xbf16>, vector<256x4xf32> -> vector<256x4xf32>
    %82 = arith.addf %75, %81 : vector<256x4xf32>
    %c2_73 = arith.constant 2 : index
    %c2_74 = arith.constant 2 : index
    %c0_75 = arith.constant 0 : index
    %83 = vector.load %arg9[%c2_73, %c2_74, %c0_75] : memref<18x18x4xf32, #tpu.memory_space<vmem>>, vector<16x16x4xf32>
    %84 = vector.shape_cast %83 : vector<16x16x4xf32> to vector<256x4xf32>
    %85 = arith.truncf %84 : vector<256x4xf32> to vector<256x4xbf16>
    %c8 = arith.constant 8 : index
    %c0_76 = arith.constant 0 : index
    %c0_77 = arith.constant 0 : index
    %86 = vector.load %arg7[%c8, %c0_76, %c0_77] : memref<9x4x4xbf16, #tpu.memory_space<vmem>>, vector<1x4x4xbf16>
    %87 = vector.shape_cast %86 : vector<1x4x4xbf16> to vector<4x4xbf16>
    %cst_78 = arith.constant dense<0.000000e+00> : vector<256x4xf32>
    %88 = tpu.matmul %85, %87, %cst_78 {dimension_numbers = #tpu.dot_dimension_numbers<[1], [0], [0], [1], [0, 0, 1, 1], [], []>} : vector<256x4xbf16>, vector<4x4xbf16>, vector<256x4xf32> -> vector<256x4xf32>
    %89 = arith.addf %82, %88 : vector<256x4xf32>
    %90 = arith.addf %89, %10 : vector<256x4xf32>
    %91 = vector.shape_cast %90 : vector<256x4xf32> to vector<16x16x4xf32>
    %c0_79 = arith.constant 0 : index
    %c0_80 = arith.constant 0 : index
    %c0_81 = arith.constant 0 : index
    %c0_82 = arith.constant 0 : index
    %92 = vector.load %arg8[%c0_79, %c0_80, %c0_81, %c0_82] : memref<1x16x16x4xf32, #tpu.memory_space<vmem>>, vector<1x16x16x4xf32>
    %93 = vector.shape_cast %92 : vector<1x16x16x4xf32> to vector<16x16x4xf32>
    %94 = vector.shape_cast %91 : vector<16x16x4xf32> to vector<1x16x16x4xf32>
    tpu.vector_store %arg8[%c0_79, %c0_80, %c0_81, %c0_82], %94 {strides = array<i32>} : memref<1x16x16x4xf32, #tpu.memory_space<vmem>>, vector<1x16x16x4xf32>,
    return
  }
  func.func @transform_0(%arg0: i32) -> (i32, i32, i32, i32) {
    %c0_i32 = arith.constant 0 : i32
    %c0_i32_0 = arith.constant 0 : i32
    %c0_i32_1 = arith.constant 0 : i32
    %c0_i32_2 = arith.constant 0 : i32
    return %arg0, %c0_i32, %c0_i32_0, %c0_i32_1 : i32, i32, i32, i32
  }
  func.func @transform_1(%arg0: i32) -> (i32, i32) {
    %c0_i32 = arith.constant 0 : i32
    %c0_i32_0 = arith.constant 0 : i32
    %c0_i32_1 = arith.constant 0 : i32
    return %c0_i32, %c0_i32_0 : i32, i32
  }
  func.func @transform_2(%arg0: i32) -> (i32, i32) {
    %c0_i32 = arith.constant 0 : i32
    %c0_i32_0 = arith.constant 0 : i32
    %c0_i32_1 = arith.constant 0 : i32
    return %c0_i32, %c0_i32_0 : i32, i32
  }
  func.func @transform_3(%arg0: i32) -> (i32, i32, i32, i32) {
    %c0_i32 = arith.constant 0 : i32
    %c0_i32_0 = arith.constant 0 : i32
    %c0_i32_1 = arith.constant 0 : i32
    %c0_i32_2 = arith.constant 0 : i32
    return %arg0, %c0_i32, %c0_i32_0, %c0_i32_1 : i32, i32, i32, i32
  }
  func.func @transform_4(%arg0: i32) -> (i32, i32) {
    %c0_i32 = arith.constant 0 : i32
    %c0_i32_0 = arith.constant 0 : i32
    %c0_i32_1 = arith.constant 0 : i32
    return %c0_i32, %c0_i32_0 : i32, i32
  }
  func.func @transform_5(%arg0: i32) -> (i32, i32) {
    %c0_i32 = arith.constant 0 : i32
    %c0_i32_0 = arith.constant 0 : i32
    %c0_i32_1 = arith.constant 0 : i32
    return %c0_i32, %c0_i32_0 : i32, i32
  }
  func.func @transform_6(%arg0: i32) -> (i32, i32, i32) {
    %c0_i32 = arith.constant 0 : i32
    %c0_i32_0 = arith.constant 0 : i32
    %c0_i32_1 = arith.constant 0 : i32
    %c0_i32_2 = arith.constant 0 : i32
    return %c0_i32, %c0_i32_0, %c0_i32_1 : i32, i32, i32
  }
  func.func @transform_7(%arg0: i32) -> (i32, i32, i32, i32) {
    %c0_i32 = arith.constant 0 : i32
    %c0_i32_0 = arith.constant 0 : i32
    %c0_i32_1 = arith.constant 0 : i32
    %c0_i32_2 = arith.constant 0 : i32
    return %arg0, %c0_i32, %c0_i32_0, %c0_i32_1 : i32, i32, i32, i32
  }
}

</mosaic_0001>

<llo_original>
// kernel: preact_block_forward.3
$region0: #{preact_block_forward.3}
  #allocation0 [shape = 'u32[]', space=smem, size = 0x4, offset = 0x4, fixed_abs, tag = 'smem constant byte address 0x4 - core index']
  #allocation1 [shape = 'u32[144,128]{1,0:T(1,128)}', space=vmem, size = 0x12000, scoped, tag = 'internal scratch']
  %s0 = inlined_call_operand.vmem [shape: f32[2,16,16,4], index: 0, kind: input, shape index: {}]
  %s1 = inlined_call_operand.vmem [shape: f32[2,1,4], index: 1, kind: output, shape index: {0}]
  %s2 = inlined_call_operand.vmem [shape: f32[2,1,4], index: 2, kind: output, shape index: {1}]
  %3 = xla_tuple %s1, %s2
  %s4 = sld [smem:[#allocation0]]
  $region45: #{preact_block_forward.3} parent=0
    _
  %s6 = ssub.s32 1, %s4
  %s7 = scalar_select 0, %s6, %s4
  loop: start=0, step=1, limit=4
  $region2: #{preact_block_forward.3} parent=0 // loop_pre_header
    _
  $region3: #{preact_block_forward.3} parent=0 // loop_header
    %s9 = sphi 0, %s13
    %p10 = scmp.ge.s32.totalorder %s9, 4
    %s19 = sphi 0, %s21
    %s22 = sphi 0, %s19
    %s23 = sphi 0, %s22
    %s39 = sphi 0, %s23
    %s45 = sphi 0, %s47
    %s48 = sphi 0, %s45
    %s49 = sphi 0, %s48
    %s65 = sphi 0, %s49
    %s71 = sphi 0, %s73
    %s74 = sphi 0, %s71
    %s75 = sphi 0, %s74
    %s91 = sphi 0, %s75
  $region4: #{preact_block_forward.3} parent=0 // loop_header_branch
    %12 = sbr.rel (%p10) target = $region8
  $region5: #{preact_block_forward.3} parent=0 // loop_body
    %s14 = ssub.s32 %s9, 1
    %s15 = ssub.s32 %s9, 2
    %s16 = sadd.s32 %s9, 1
    %s17 = ssub.s32 %s9, %s16
    %p18 = scmp.eq.s32.totalorder %s17, 0
    %s20 = sadd.s32 %s19, 1
    %s21 = scalar_select %p18, %s19, %s20
    %p24 = pneg %p18
    %p25 = scmp.eq.s32.totalorder %s9, 1
    %p26 = por %p24, %p25
    %p27 = scmp.ne.s32.totalorder %s19, %s22
    %p28 = scmp.eq.s32.totalorder %s9, 0
    %p29 = por %p27, %p28
    %p30 = scmp.ne.s32.totalorder %s19, %s22
    %p31 = scmp.eq.s32.totalorder %s14, 1
    %p32 = por %p30, %p31
    %p33 = scmp.ne.s32.totalorder %s22, %s23
    %p34 = scmp.eq.s32.totalorder %s14, 0
    %p35 = por %p33, %p34
    %p36 = scmp.ne.s32.totalorder %s22, %s23
    %p37 = scmp.eq.s32.totalorder %s15, 1
    %p38 = por %p36, %p37
    %p40 = scmp.ne.s32.totalorder %s23, %s39
    %p41 = scmp.eq.s32.totalorder %s15, 0
    %p42 = por %p40, %p41
    %s43 = ssub.s32 %s9, %s16
    %p44 = scmp.eq.s32.totalorder %s43, 0
    %s46 = sadd.s32 %s45, 1
    %s47 = scalar_select %p44, %s45, %s46
    %p50 = pneg %p44
    %p51 = scmp.eq.s32.totalorder %s9, 1
    %p52 = por %p50, %p51
    %p53 = scmp.ne.s32.totalorder %s45, %s48
    %p54 = scmp.eq.s32.totalorder %s9, 0
    %p55 = por %p53, %p54
    %p56 = scmp.ne.s32.totalorder %s45, %s48
    %p57 = scmp.eq.s32.totalorder %s14, 1
    %p58 = por %p56, %p57
    %p59 = scmp.ne.s32.totalorder %s48, %s49
    %p60 = scmp.eq.s32.totalorder %s14, 0
    %p61 = por %p59, %p60
    %p62 = scmp.ne.s32.totalorder %s48, %s49
    %p63 = scmp.eq.s32.totalorder %s15, 1
    %p64 = por %p62, %p63
    %p66 = scmp.ne.s32.totalorder %s49, %s65
    %p67 = scmp.eq.s32.totalorder %s15, 0
    %p68 = por %p66, %p67
    %s69 = ssub.s32 %s9, %s16
    %p70 = scmp.eq.s32.totalorder %s69, 0
    %s72 = sadd.s32 %s71, 1
    %s73 = scalar_select %p70, %s71, %s72
    %p76 = pneg %p70
    %p77 = scmp.eq.s32.totalorder %s9, 1
    %p78 = por %p76, %p77
    %p79 = scmp.ne.s32.totalorder %s71, %s74
    %p80 = scmp.eq.s32.totalorder %s9, 0
    %p81 = por %p79, %p80
    %p82 = scmp.ne.s32.totalorder %s71, %s74
    %p83 = scmp.eq.s32.totalorder %s14, 1
    %p84 = por %p82, %p83
    %p85 = scmp.ne.s32.totalorder %s74, %s75
    %p86 = scmp.eq.s32.totalorder %s14, 0
    %p87 = por %p85, %p86
    %p88 = scmp.ne.s32.totalorder %s74, %s75
    %p89 = scmp.eq.s32.totalorder %s15, 1
    %p90 = por %p88, %p89
    %p92 = scmp.ne.s32.totalorder %s75, %s91
    %p93 = scmp.eq.s32.totalorder %s15, 0
    %p94 = por %p92, %p93
    %p95 = scmp.le.s32.totalorder 1, %s9
    %p96 = scmp.lt.s32.totalorder %s9, 3
    %p97 = pnand %p95, %p96
    %p98 = pneg %p97
    // Predicated region
    $region9: #{preact_block_forward.3} parent=5 // pred_check
      _
    $region10: #{preact_block_forward.3} parent=5 // pred_check_branch
      %100 = sbr.rel (%p97) target = $region12
    $region11: #{preact_block_forward.3} parent=5 // pred_region
      %s101 = ssub.s32 %s9, 1
    $region12: #{preact_block_forward.3} parent=5 // pred_fallthru
      _
    %p102 = scmp.lt.s32.totalorder %s9, 2
    // Predicated region
    $region13: #{preact_block_forward.3} parent=5 // pred_check
      %p103 = pneg %p102
    $region14: #{preact_block_forward.3} parent=5 // pred_check_branch
      %105 = sbr.rel (%p103) target = $region16
    $region15: #{preact_block_forward.3} parent=5 // pred_region
      // Predicated region
      $region17: #{preact_block_forward.3} parent=15 // pred_check
        %p106 = pneg %p29
      $region18: #{preact_block_forward.3} parent=15 // pred_check_branch
        %108 = sbr.rel (%p106) target = $region20
      $region19: #{preact_block_forward.3} parent=15 // pred_region
        %p109 = scmp.lt.s32.totalorder %s9, 1
        %s110 = scalar_select %p109, %s9, 1
        %s111 = smul.addr %s110, 32
        %s112 = smul.addr %s111, 8
        %s113 = scalar_lea.vmem %s0, %s112
      $region20: #{preact_block_forward.3} parent=15 // pred_fallthru
        _
    $region16: #{preact_block_forward.3} parent=5 // pred_fallthru
      _
    %p114 = scmp.le.s32.totalorder 1, %s9
    %p115 = scmp.lt.s32.totalorder %s9, 3
    %p116 = pnand %p114, %p115
    %p117 = pneg %p116
    // Predicated region
    $region21: #{preact_block_forward.3} parent=5 // pred_check
      _
    $region22: #{preact_block_forward.3} parent=5 // pred_check_branch
      %119 = sbr.rel (%p116) target = $region24
    $region23: #{preact_block_forward.3} parent=5 // pred_region
      %s120 = ssub.s32 %s9, 1
      %p121 = scmp.lt.s32.totalorder %s14, 1
      %s122 = scalar_select %p121, %s14, 1
      %s123 = smul.addr %s122, 32
      %s124 = smul.addr %s123, 8
      %s125 = scalar_lea.vmem %s0, %s124
      %p126 = pneg %p35
      %p127 = pneg %p32
      %p128 = pneg %p61
      %p129 = pneg %p58
      %p130 = scmp.lt.s32.totalorder %s14, 1
      %s131 = scalar_select %p130, %s14, 1
      %s132 = scalar_lea.vmem %s1, %s131
      %p133 = pneg %p87
      %p134 = pneg %p84
      %p135 = scmp.lt.s32.totalorder %s14, 1
      %s136 = scalar_select %p135, %s14, 1
      %s137 = scalar_lea.vmem %s2, %s136
      %p138 = scmp.lt.s32.totalorder %s14, 1
      %s139 = scalar_select %p138, %s14, 1
      %s140 = smul.addr %s139, 32
      %s141 = smul.addr %s140, 8
      %s142 = scalar_lea.vmem %s0, %s141
      %p143 = scmp.lt.s32.totalorder %s14, 1
      %s144 = scalar_select %p143, %s14, 1
      %s145 = scalar_lea.vmem %s1, %s144
      %p146 = scmp.lt.s32.totalorder %s14, 1
      %s147 = scalar_select %p146, %s14, 1
      %s148 = scalar_lea.vmem %s2, %s147
      %v149 = vld [vmem:[%s142] sm:$0xff]
      %v150 = vld [vmem:[%s142 + $0x8] sm:$0xff]
      %v151 = vld [vmem:[%s142 + $0x10] sm:$0xff]
      %v152 = vld [vmem:[%s142 + $0x18] sm:$0xff]
      %v153 = vld [vmem:[%s142 + $0x20] sm:$0xff]
      %v154 = vld [vmem:[%s142 + $0x28] sm:$0xff]
      %v155 = vld [vmem:[%s142 + $0x30] sm:$0xff]
      %v156 = vld [vmem:[%s142 + $0x38] sm:$0xff]
      %v157 = vld [vmem:[%s142 + $0x40] sm:$0xff]
      %v158 = vld [vmem:[%s142 + $0x48] sm:$0xff]
      %v159 = vld [vmem:[%s142 + $0x50] sm:$0xff]
      %v160 = vld [vmem:[%s142 + $0x58] sm:$0xff]
      %v161 = vld [vmem:[%s142 + $0x60] sm:$0xff]
      %v162 = vld [vmem:[%s142 + $0x68] sm:$0xff]
      %v163 = vld [vmem:[%s142 + $0x70] sm:$0xff]
      %v164 = vld [vmem:[%s142 + $0x78] sm:$0xff]
      %v165 = vld [vmem:[%s142 + $0x80] sm:$0xff]
      %v166 = vld [vmem:[%s142 + $0x88] sm:$0xff]
      %v167 = vld [vmem:[%s142 + $0x90] sm:$0xff]
      %v168 = vld [vmem:[%s142 + $0x98] sm:$0xff]
      %v169 = vld [vmem:[%s142 + $0xa0] sm:$0xff]
      %v170 = vld [vmem:[%s142 + $0xa8] sm:$0xff]
      %v171 = vld [vmem:[%s142 + $0xb0] sm:$0xff]
      %v172 = vld [vmem:[%s142 + $0xb8] sm:$0xff]
      %v173 = vld [vmem:[%s142 + $0xc0] sm:$0xff]
      %v174 = vld [vmem:[%s142 + $0xc8] sm:$0xff]
      %v175 = vld [vmem:[%s142 + $0xd0] sm:$0xff]
      %v176 = vld [vmem:[%s142 + $0xd8] sm:$0xff]
      %v177 = vld [vmem:[%s142 + $0xe0] sm:$0xff]
      %v178 = vld [vmem:[%s142 + $0xe8] sm:$0xff]
      %v179 = vld [vmem:[%s142 + $0xf0] sm:$0xff]
      %v180 = vld [vmem:[%s142 + $0xf8] sm:$0xff]
      %vm181 = vcmask 31744
      %v182 = vsel %vm181, %v149, 0.0
      %v183 = vsel %vm181, %v150, 0.0
      %v184 = vadd.f32 %v182, %v183
      %v185 = vsel %vm181, %v151, 0.0
      %v186 = vadd.f32 %v184, %v185
      %v187 = vsel %vm181, %v152, 0.0
      %v188 = vadd.f32 %v186, %v187
      %v189 = vsel %vm181, %v153, 0.0
      %v190 = vadd.f32 %v188, %v189
      %v191 = vsel %vm181, %v154, 0.0
      %v192 = vadd.f32 %v190, %v191
      %v193 = vsel %vm181, %v155, 0.0
      %v194 = vadd.f32 %v192, %v193
      %v195 = vsel %vm181, %v156, 0.0
      %v196 = vadd.f32 %v194, %v195
      %v197 = vsel %vm181, %v157, 0.0
      %v198 = vadd.f32 %v196, %v197
      %v199 = vsel %vm181, %v158, 0.0
      %v200 = vadd.f32 %v198, %v199
      %v201 = vsel %vm181, %v159, 0.0
      %v202 = vadd.f32 %v200, %v201
      %v203 = vsel %vm181, %v160, 0.0
      %v204 = vadd.f32 %v202, %v203
      %v205 = vsel %vm181, %v161, 0.0
      %v206 = vadd.f32 %v204, %v205
      %v207 = vsel %vm181, %v162, 0.0
      %v208 = vadd.f32 %v206, %v207
      %v209 = vsel %vm181, %v163, 0.0
      %v210 = vadd.f32 %v208, %v209
      %v211 = vsel %vm181, %v164, 0.0
      %v212 = vadd.f32 %v210, %v211
      %v213 = vsel %vm181, %v165, 0.0
      %v214 = vadd.f32 %v212, %v213
      %v215 = vsel %vm181, %v166, 0.0
      %v216 = vadd.f32 %v214, %v215
      %v217 = vsel %vm181, %v167, 0.0
      %v218 = vadd.f32 %v216, %v217
      %v219 = vsel %vm181, %v168, 0.0
      %v220 = vadd.f32 %v218, %v219
      %v221 = vsel %vm181, %v169, 0.0
      %v222 = vadd.f32 %v220, %v221
      %v223 = vsel %vm181, %v170, 0.0
      %v224 = vadd.f32 %v222, %v223
      %v225 = vsel %vm181, %v171, 0.0
      %v226 = vadd.f32 %v224, %v225
      %v227 = vsel %vm181, %v172, 0.0
      %v228 = vadd.f32 %v226, %v227
      %v229 = vsel %vm181, %v173, 0.0
      %v230 = vadd.f32 %v228, %v229
      %v231 = vsel %vm181, %v174, 0.0
      %v232 = vadd.f32 %v230, %v231
      %v233 = vsel %vm181, %v175, 0.0
      %v234 = vadd.f32 %v232, %v233
      %v235 = vsel %vm181, %v176, 0.0
      %v236 = vadd.f32 %v234, %v235
      %v237 = vsel %vm181, %v177, 0.0
      %v238 = vadd.f32 %v236, %v237
      %v239 = vsel %vm181, %v178, 0.0
      %v240 = vadd.f32 %v238, %v239
      %v241 = vsel %vm181, %v179, 0.0
      %v242 = vadd.f32 %v240, %v241
      %v243 = vsel %vm181, %v180, 0.0
      %v244 = vadd.f32 %v242, %v243
      %v245 = vrot.slane %v244, 4
      %v246 = vadd.f32 %v244, %v245
      %v247 = vrot.slane %v246, 2
      %v248 = vadd.f32 %v246, %v247
      %v249 = vrot.slane %v248, 1
      %v250 = vadd.f32 %v248, %v249
      %vm251 = vcmask 24576
      %252 = vst.msk [vmem:[%s145] sm:$0x1] %vm251, %v250
      %v253 = vmul.f32 %v149, %v149
      %v254 = vmul.f32 %v150, %v150
      %v255 = vmul.f32 %v151, %v151
      %v256 = vmul.f32 %v152, %v152
      %v257 = vmul.f32 %v153, %v153
      %v258 = vmul.f32 %v154, %v154
      %v259 = vmul.f32 %v155, %v155
      %v260 = vmul.f32 %v156, %v156
      %v261 = vmul.f32 %v157, %v157
      %v262 = vmul.f32 %v158, %v158
      %v263 = vmul.f32 %v159, %v159
      %v264 = vmul.f32 %v160, %v160
      %v265 = vmul.f32 %v161, %v161
      %v266 = vmul.f32 %v162, %v162
      %v267 = vmul.f32 %v163, %v163
      %v268 = vmul.f32 %v164, %v164
      %v269 = vmul.f32 %v165, %v165
      %v270 = vmul.f32 %v166, %v166
      %v271 = vmul.f32 %v167, %v167
      %v272 = vmul.f32 %v168, %v168
      %v273 = vmul.f32 %v169, %v169
      %v274 = vmul.f32 %v170, %v170
      %v275 = vmul.f32 %v171, %v171
      %v276 = vmul.f32 %v172, %v172
      %v277 = vmul.f32 %v173, %v173
      %v278 = vmul.f32 %v174, %v174
      %v279 = vmul.f32 %v175, %v175
      %v280 = vmul.f32 %v176, %v176
      %v281 = vmul.f32 %v177, %v177
      %v282 = vmul.f32 %v178, %v178
      %v283 = vmul.f32 %v179, %v179
      %v284 = vmul.f32 %v180, %v180
      %v285 = vsel %vm181, %v253, 0.0
      %v286 = vsel %vm181, %v254, 0.0
      %v287 = vadd.f32 %v285, %v286
      %v288 = vsel %vm181, %v255, 0.0
      %v289 = vadd.f32 %v287, %v288
      %v290 = vsel %vm181, %v256, 0.0
      %v291 = vadd.f32 %v289, %v290
      %v292 = vsel %vm181, %v257, 0.0
      %v293 = vadd.f32 %v291, %v292
      %v294 = vsel %vm181, %v258, 0.0
      %v295 = vadd.f32 %v293, %v294
      %v296 = vsel %vm181, %v259, 0.0
      %v297 = vadd.f32 %v295, %v296
      %v298 = vsel %vm181, %v260, 0.0
      %v299 = vadd.f32 %v297, %v298
      %v300 = vsel %vm181, %v261, 0.0
      %v301 = vadd.f32 %v299, %v300
      %v302 = vsel %vm181, %v262, 0.0
      %v303 = vadd.f32 %v301, %v302
      %v304 = vsel %vm181, %v263, 0.0
      %v305 = vadd.f32 %v303, %v304
      %v306 = vsel %vm181, %v264, 0.0
      %v307 = vadd.f32 %v305, %v306
      %v308 = vsel %vm181, %v265, 0.0
      %v309 = vadd.f32 %v307, %v308
      %v310 = vsel %vm181, %v266, 0.0
      %v311 = vadd.f32 %v309, %v310
      %v312 = vsel %vm181, %v267, 0.0
      %v313 = vadd.f32 %v311, %v312
      %v314 = vsel %vm181, %v268, 0.0
      %v315 = vadd.f32 %v313, %v314
      %v316 = vsel %vm181, %v269, 0.0
      %v317 = vadd.f32 %v315, %v316
      %v318 = vsel %vm181, %v270, 0.0
      %v319 = vadd.f32 %v317, %v318
      %v320 = vsel %vm181, %v271, 0.0
      %v321 = vadd.f32 %v319, %v320
      %v322 = vsel %vm181, %v272, 0.0
      %v323 = vadd.f32 %v321, %v322
      %v324 = vsel %vm181, %v273, 0.0
      %v325 = vadd.f32 %v323, %v324
      %v326 = vsel %vm181, %v274, 0.0
      %v327 = vadd.f32 %v325, %v326
      %v328 = vsel %vm181, %v275, 0.0
      %v329 = vadd.f32 %v327, %v328
      %v330 = vsel %vm181, %v276, 0.0
      %v331 = vadd.f32 %v329, %v330
      %v332 = vsel %vm181, %v277, 0.0
      %v333 = vadd.f32 %v331, %v332
      %v334 = vsel %vm181, %v278, 0.0
      %v335 = vadd.f32 %v333, %v334
      %v336 = vsel %vm181, %v279, 0.0
      %v337 = vadd.f32 %v335, %v336
      %v338 = vsel %vm181, %v280, 0.0
      %v339 = vadd.f32 %v337, %v338
      %v340 = vsel %vm181, %v281, 0.0
      %v341 = vadd.f32 %v339, %v340
      %v342 = vsel %vm181, %v282, 0.0
      %v343 = vadd.f32 %v341, %v342
      %v344 = vsel %vm181, %v283, 0.0
      %v345 = vadd.f32 %v343, %v344
      %v346 = vsel %vm181, %v284, 0.0
      %v347 = vadd.f32 %v345, %v346
      %v348 = vrot.slane %v347, 4
      %v349 = vadd.f32 %v347, %v348
      %v350 = vrot.slane %v349, 2
      %v351 = vadd.f32 %v349, %v350
      %v352 = vrot.slane %v351, 1
      %v353 = vadd.f32 %v351, %v352
      %354 = vst.msk [vmem:[%s148] sm:$0x1] %vm251, %v353
      %p355 = scmp.lt.s32.totalorder %s14, 1
      %s356 = scalar_select %p355, %s14, 1
      %s357 = scalar_lea.vmem %s1, %s356
      %p358 = scmp.lt.s32.totalorder %s14, 1
      %s359 = scalar_select %p358, %s14, 1
      %s360 = scalar_lea.vmem %s2, %s359
      // Predicated region
      $region25: #{preact_block_forward.3} parent=23 // pred_check
        %p361 = pneg %p58
      $region26: #{preact_block_forward.3} parent=23 // pred_check_branch
        %363 = sbr.rel (%p361) target = $region28
      $region27: #{preact_block_forward.3} parent=23 // pred_region
        _
      $region28: #{preact_block_forward.3} parent=23 // pred_fallthru
        _
      // Predicated region
      $region29: #{preact_block_forward.3} parent=23 // pred_check
        %p364 = pneg %p84
      $region30: #{preact_block_forward.3} parent=23 // pred_check_branch
        %366 = sbr.rel (%p364) target = $region32
      $region31: #{preact_block_forward.3} parent=23 // pred_region
        _
      $region32: #{preact_block_forward.3} parent=23 // pred_fallthru
        _
    $region24: #{preact_block_forward.3} parent=5 // pred_fallthru
      _
    %p367 = scmp.le.s32.totalorder 2, %s9
    // Predicated region
    $region33: #{preact_block_forward.3} parent=5 // pred_check
      %p368 = pneg %p367
    $region34: #{preact_block_forward.3} parent=5 // pred_check_branch
      %370 = sbr.rel (%p368) target = $region36
    $region35: #{preact_block_forward.3} parent=5 // pred_region
      %s371 = ssub.s32 %s9, 2
      // Predicated region
      $region37: #{preact_block_forward.3} parent=35 // pred_check
        %p372 = pneg %p64
      $region38: #{preact_block_forward.3} parent=35 // pred_check_branch
        %374 = sbr.rel (%p372) target = $region40
      $region39: #{preact_block_forward.3} parent=35 // pred_region
        %p375 = scmp.lt.s32.totalorder %s15, 1
        %s376 = scalar_select %p375, %s15, 1
        %s377 = scalar_lea.vmem %s1, %s376
      $region40: #{preact_block_forward.3} parent=35 // pred_fallthru
        _
      // Predicated region
      $region41: #{preact_block_forward.3} parent=35 // pred_check
        %p378 = pneg %p90
      $region42: #{preact_block_forward.3} parent=35 // pred_check_branch
        %380 = sbr.rel (%p378) target = $region44
      $region43: #{preact_block_forward.3} parent=35 // pred_region
        %p381 = scmp.lt.s32.totalorder %s15, 1
        %s382 = scalar_select %p381, %s15, 1
        %s383 = scalar_lea.vmem %s2, %s382
      $region44: #{preact_block_forward.3} parent=35 // pred_fallthru
        _
    $region36: #{preact_block_forward.3} parent=5 // pred_fallthru
      _
  $region6: #{preact_block_forward.3} parent=0 // loop_footer
    %s13 = sadd.s32 1, %s9
  $region7: #{preact_block_forward.3} parent=0 // loop_footer_branch
    %8 = sbr.rel target = $region3
  $region8: #{preact_block_forward.3} parent=0 // loop_exit
    _

// kernel: preact_block_forward.4
$region0: #{preact_block_forward.4}
  #allocation0 [shape = 'u32[]', space=smem, size = 0x4, offset = 0x4, fixed_abs, tag = 'smem constant byte address 0x4 - core index']
  #allocation1 [shape = 'u32[144,128]{1,0:T(1,128)}', space=vmem, size = 0x12000, scoped, tag = 'internal scratch']
  #allocation2 [shape = 'f32[18,18,4]{2,1,0:T(8,128)}', space=vmem, size = 0x36000, scoped, tag = 'scratch operand']
  %s0 = inlined_call_operand.vmem [shape: f32[2,16,16,4], index: 0, kind: input, shape index: {}]
  %s1 = inlined_call_operand.vmem [shape: f32[1,4], index: 1, kind: input, shape index: {}]
  %s2 = inlined_call_operand.vmem [shape: f32[1,4], index: 2, kind: input, shape index: {}]
  %s3 = inlined_call_operand.vmem [shape: bf16[9,4,4], index: 3, kind: input, shape index: {}]
  %s4 = inlined_call_operand.vmem [shape: f32[2,16,16,4], index: 4, kind: output, shape index: {0}]
  %s5 = inlined_call_operand.vmem [shape: f32[2,1,4], index: 5, kind: output, shape index: {1}]
  %s6 = inlined_call_operand.vmem [shape: f32[2,1,4], index: 6, kind: output, shape index: {2}]
  %7 = xla_tuple %s4, %s5, %s6
  %s8 = sld [smem:[#allocation0]]
  $region65: #{preact_block_forward.4} parent=0
    _
  %s10 = ssub.s32 1, %s8
  %s11 = scalar_select 0, %s10, %s8
  loop: start=0, step=1, limit=4
  $region2: #{preact_block_forward.4} parent=0 // loop_pre_header
    _
  $region3: #{preact_block_forward.4} parent=0 // loop_header
    %s13 = sphi 0, %s17
    %p14 = scmp.ge.s32.totalorder %s13, 4
    %s23 = sphi 0, %s25
    %s26 = sphi 0, %s23
    %s27 = sphi 0, %s26
    %s43 = sphi 0, %s27
    %s47 = sphi 0, %s47
    %s49 = sphi 0, %s47
    %s50 = sphi 0, %s49
    %s64 = sphi 0, %s50
    %s68 = sphi 0, %s68
    %s70 = sphi 0, %s68
    %s71 = sphi 0, %s70
    %s85 = sphi 0, %s71
    %s89 = sphi 0, %s89
    %s91 = sphi 0, %s89
    %s92 = sphi 0, %s91
    %s106 = sphi 0, %s92
    %s112 = sphi 0, %s114
    %s115 = sphi 0, %s112
    %s116 = sphi 0, %s115
    %s132 = sphi 0, %s116
    %s138 = sphi 0, %s140
    %s141 = sphi 0, %s138
    %s142 = sphi 0, %s141
    %s158 = sphi 0, %s142
    %s164 = sphi 0, %s166
    %s167 = sphi 0, %s164
    %s168 = sphi 0, %s167
    %s184 = sphi 0, %s168
  $region4: #{preact_block_forward.4} parent=0 // loop_header_branch
    %16 = sbr.rel (%p14) target = $region8
  $region5: #{preact_block_forward.4} parent=0 // loop_body
    %s18 = ssub.s32 %s13, 1
    %s19 = ssub.s32 %s13, 2
    %s20 = sadd.s32 %s13, 1
    %s21 = ssub.s32 %s13, %s20
    %p22 = scmp.eq.s32.totalorder %s21, 0
    %s24 = sadd.s32 %s23, 1
    %s25 = scalar_select %p22, %s23, %s24
    %p28 = pneg %p22
    %p29 = scmp.eq.s32.totalorder %s13, 1
    %p30 = por %p28, %p29
    %p31 = scmp.ne.s32.totalorder %s23, %s26
    %p32 = scmp.eq.s32.totalorder %s13, 0
    %p33 = por %p31, %p32
    %p34 = scmp.ne.s32.totalorder %s23, %s26
    %p35 = scmp.eq.s32.totalorder %s18, 1
    %p36 = por %p34, %p35
    %p37 = scmp.ne.s32.totalorder %s26, %s27
    %p38 = scmp.eq.s32.totalorder %s18, 0
    %p39 = por %p37, %p38
    %p40 = scmp.ne.s32.totalorder %s26, %s27
    %p41 = scmp.eq.s32.totalorder %s19, 1
    %p42 = por %p40, %p41
    %p44 = scmp.ne.s32.totalorder %s27, %s43
    %p45 = scmp.eq.s32.totalorder %s19, 0
    %p46 = por %p44, %p45
    %s48 = sadd.s32 %s47, 1
    %p51 = scmp.eq.s32.totalorder %s13, 1
    %p52 = scmp.ne.s32.totalorder %s47, %s49
    %p53 = scmp.eq.s32.totalorder %s13, 0
    %p54 = por %p52, %p53
    %p55 = scmp.ne.s32.totalorder %s47, %s49
    %p56 = scmp.eq.s32.totalorder %s18, 1
    %p57 = por %p55, %p56
    %p58 = scmp.ne.s32.totalorder %s49, %s50
    %p59 = scmp.eq.s32.totalorder %s18, 0
    %p60 = por %p58, %p59
    %p61 = scmp.ne.s32.totalorder %s49, %s50
    %p62 = scmp.eq.s32.totalorder %s19, 1
    %p63 = por %p61, %p62
    %p65 = scmp.ne.s32.totalorder %s50, %s64
    %p66 = scmp.eq.s32.totalorder %s19, 0
    %p67 = por %p65, %p66
    %s69 = sadd.s32 %s68, 1
    %p72 = scmp.eq.s32.totalorder %s13, 1
    %p73 = scmp.ne.s32.totalorder %s68, %s70
    %p74 = scmp.eq.s32.totalorder %s13, 0
    %p75 = por %p73, %p74
    %p76 = scmp.ne.s32.totalorder %s68, %s70
    %p77 = scmp.eq.s32.totalorder %s18, 1
    %p78 = por %p76, %p77
    %p79 = scmp.ne.s32.totalorder %s70, %s71
    %p80 = scmp.eq.s32.totalorder %s18, 0
    %p81 = por %p79, %p80
    %p82 = scmp.ne.s32.totalorder %s70, %s71
    %p83 = scmp.eq.s32.totalorder %s19, 1
    %p84 = por %p82, %p83
    %p86 = scmp.ne.s32.totalorder %s71, %s85
    %p87 = scmp.eq.s32.totalorder %s19, 0
    %p88 = por %p86, %p87
    %s90 = sadd.s32 %s89, 1
    %p93 = scmp.eq.s32.totalorder %s13, 1
    %p94 = scmp.ne.s32.totalorder %s89, %s91
    %p95 = scmp.eq.s32.totalorder %s13, 0
    %p96 = por %p94, %p95
    %p97 = scmp.ne.s32.totalorder %s89, %s91
    %p98 = scmp.eq.s32.totalorder %s18, 1
    %p99 = por %p97, %p98
    %p100 = scmp.ne.s32.totalorder %s91, %s92
    %p101 = scmp.eq.s32.totalorder %s18, 0
    %p102 = por %p100, %p101
    %p103 = scmp.ne.s32.totalorder %s91, %s92
    %p104 = scmp.eq.s32.totalorder %s19, 1
    %p105 = por %p103, %p104
    %p107 = scmp.ne.s32.totalorder %s92, %s106
    %p108 = scmp.eq.s32.totalorder %s19, 0
    %p109 = por %p107, %p108
    %s110 = ssub.s32 %s13, %s20
    %p111 = scmp.eq.s32.totalorder %s110, 0
    %s113 = sadd.s32 %s112, 1
    %s114 = scalar_select %p111, %s112, %s113
    %p117 = pneg %p111
    %p118 = scmp.eq.s32.totalorder %s13, 1
    %p119 = por %p117, %p118
    %p120 = scmp.ne.s32.totalorder %s112, %s115
    %p121 = scmp.eq.s32.totalorder %s13, 0
    %p122 = por %p120, %p121
    %p123 = scmp.ne.s32.totalorder %s112, %s115
    %p124 = scmp.eq.s32.totalorder %s18, 1
    %p125 = por %p123, %p124
    %p126 = scmp.ne.s32.totalorder %s115, %s116
    %p127 = scmp.eq.s32.totalorder %s18, 0
    %p128 = por %p126, %p127
    %p129 = scmp.ne.s32.totalorder %s115, %s116
    %p130 = scmp.eq.s32.totalorder %s19, 1
    %p131 = por %p129, %p130
    %p133 = scmp.ne.s32.totalorder %s116, %s132
    %p134 = scmp.eq.s32.totalorder %s19, 0
    %p135 = por %p133, %p134
    %s136 = ssub.s32 %s13, %s20
    %p137 = scmp.eq.s32.totalorder %s136, 0
    %s139 = sadd.s32 %s138, 1
    %s140 = scalar_select %p137, %s138, %s139
    %p143 = pneg %p137
    %p144 = scmp.eq.s32.totalorder %s13, 1
    %p145 = por %p143, %p144
    %p146 = scmp.ne.s32.totalorder %s138, %s141
    %p147 = scmp.eq.s32.totalorder %s13, 0
    %p148 = por %p146, %p147
    %p149 = scmp.ne.s32.totalorder %s138, %s141
    %p150 = scmp.eq.s32.totalorder %s18, 1
    %p151 = por %p149, %p150
    %p152 = scmp.ne.s32.totalorder %s141, %s142
    %p153 = scmp.eq.s32.totalorder %s18, 0
    %p154 = por %p152, %p153
    %p155 = scmp.ne.s32.totalorder %s141, %s142
    %p156 = scmp.eq.s32.totalorder %s19, 1
    %p157 = por %p155, %p156
    %p159 = scmp.ne.s32.totalorder %s142, %s158
    %p160 = scmp.eq.s32.totalorder %s19, 0
    %p161 = por %p159, %p160
    %s162 = ssub.s32 %s13, %s20
    %p163 = scmp.eq.s32.totalorder %s162, 0
    %s165 = sadd.s32 %s164, 1
    %s166 = scalar_select %p163, %s164, %s165
    %p169 = pneg %p163
    %p170 = scmp.eq.s32.totalorder %s13, 1
    %p171 = por %p169, %p170
    %p172 = scmp.ne.s32.totalorder %s164, %s167
    %p173 = scmp.eq.s32.totalorder %s13, 0
    %p174 = por %p172, %p173
    %p175 = scmp.ne.s32.totalorder %s164, %s167
    %p176 = scmp.eq.s32.totalorder %s18, 1
    %p177 = por %p175, %p176
    %p178 = scmp.ne.s32.totalorder %s167, %s168
    %p179 = scmp.eq.s32.totalorder %s18, 0
    %p180 = por %p178, %p179
    %p181 = scmp.ne.s32.totalorder %s167, %s168
    %p182 = scmp.eq.s32.totalorder %s19, 1
    %p183 = por %p181, %p182
    %p185 = scmp.ne.s32.totalorder %s168, %s184
    %p186 = scmp.eq.s32.totalorder %s19, 0
    %p187 = por %p185, %p186
    %p188 = scmp.le.s32.totalorder 1, %s13
    %p189 = scmp.lt.s32.totalorder %s13, 3
    %p190 = pnand %p188, %p189
    %p191 = pneg %p190
    // Predicated region
    $region9: #{preact_block_forward.4} parent=5 // pred_check
      _
    $region10: #{preact_block_forward.4} parent=5 // pred_check_branch
      %193 = sbr.rel (%p190) target = $region12
    $region11: #{preact_block_forward.4} parent=5 // pred_region
      %s194 = ssub.s32 %s13, 1
      // Predicated region
      $region13: #{preact_block_forward.4} parent=11 // pred_check
        %p195 = pneg %p60
      $region14: #{preact_block_forward.4} parent=11 // pred_check_branch
        %197 = sbr.rel (%p195) target = $region16
      $region15: #{preact_block_forward.4} parent=11 // pred_region
        _
      $region16: #{preact_block_forward.4} parent=11 // pred_fallthru
        _
      // Predicated region
      $region17: #{preact_block_forward.4} parent=11 // pred_check
        %p198 = pneg %p81
      $region18: #{preact_block_forward.4} parent=11 // pred_check_branch
        %200 = sbr.rel (%p198) target = $region20
      $region19: #{preact_block_forward.4} parent=11 // pred_region
        _
      $region20: #{preact_block_forward.4} parent=11 // pred_fallthru
        _
      // Predicated region
      $region21: #{preact_block_forward.4} parent=11 // pred_check
        %p201 = pneg %p102
      $region22: #{preact_block_forward.4} parent=11 // pred_check_branch
        %203 = sbr.rel (%p201) target = $region24
      $region23: #{preact_block_forward.4} parent=11 // pred_region
        _
      $region24: #{preact_block_forward.4} parent=11 // pred_fallthru
        _
    $region12: #{preact_block_forward.4} parent=5 // pred_fallthru
      _
    %p204 = scmp.lt.s32.totalorder %s13, 2
    // Predicated region
    $region25: #{preact_block_forward.4} parent=5 // pred_check
      %p205 = pneg %p204
    $region26: #{preact_block_forward.4} parent=5 // pred_check_branch
      %207 = sbr.rel (%p205) target = $region28
    $region27: #{preact_block_forward.4} parent=5 // pred_region
      // Predicated region
      $region29: #{preact_block_forward.4} parent=27 // pred_check
        %p208 = pneg %p33
      $region30: #{preact_block_forward.4} parent=27 // pred_check_branch
        %210 = sbr.rel (%p208) target = $region32
      $region31: #{preact_block_forward.4} parent=27 // pred_region
        %p211 = scmp.lt.s32.totalorder %s13, 1
        %s212 = scalar_select %p211, %s13, 1
        %s213 = smul.addr %s212, 32
        %s214 = smul.addr %s213, 8
        %s215 = scalar_lea.vmem %s0, %s214
      $region32: #{preact_block_forward.4} parent=27 // pred_fallthru
        _
    $region28: #{preact_block_forward.4} parent=5 // pred_fallthru
      _
    %p216 = scmp.le.s32.totalorder 1, %s13
    %p217 = scmp.lt.s32.totalorder %s13, 3
    %p218 = pnand %p216, %p217
    %p219 = pneg %p218
    // Predicated region
    $region33: #{preact_block_forward.4} parent=5 // pred_check
      _
    $region34: #{preact_block_forward.4} parent=5 // pred_check_branch
      %221 = sbr.rel (%p218) target = $region36
    $region35: #{preact_block_forward.4} parent=5 // pred_region
      %s222 = ssub.s32 %s13, 1
      %p223 = scmp.lt.s32.totalorder %s18, 1
      %s224 = scalar_select %p223, %s18, 1
      %s225 = smul.addr %s224, 32
      %s226 = smul.addr %s225, 8
      %s227 = scalar_lea.vmem %s0, %s226
      %p228 = pneg %p39
      %p229 = pneg %p36
      %p230 = pneg %p60
      %p231 = pneg %p57
      %p232 = pneg %p81
      %p233 = pneg %p78
      %p234 = pneg %p102
      %p235 = pneg %p99
      %p236 = pneg %p128
      %p237 = pneg %p125
      %p238 = scmp.lt.s32.totalorder %s18, 1
      %s239 = scalar_select %p238, %s18, 1
      %s240 = smul.addr %s239, 32
      %s241 = smul.addr %s240, 8
      %s242 = scalar_lea.vmem %s4, %s241
      %p243 = pneg %p154
      %p244 = pneg %p151
      %p245 = scmp.lt.s32.totalorder %s18, 1
      %s246 = scalar_select %p245, %s18, 1
      %s247 = scalar_lea.vmem %s5, %s246
      %p248 = pneg %p180
      %p249 = pneg %p177
      %p250 = scmp.lt.s32.totalorder %s18, 1
      %s251 = scalar_select %p250, %s18, 1
      %s252 = scalar_lea.vmem %s6, %s251
      %p253 = scmp.lt.s32.totalorder %s18, 1
      %s254 = scalar_select %p253, %s18, 1
      %s255 = smul.addr %s254, 32
      %s256 = smul.addr %s255, 8
      %s257 = scalar_lea.vmem %s0, %s256
      %p258 = scmp.lt.s32.totalorder %s18, 1
      %s259 = scalar_select %p258, %s18, 1
      %s260 = smul.addr %s259, 32
      %s261 = smul.addr %s260, 8
      %s262 = scalar_lea.vmem %s4, %s261
      %p263 = scmp.lt.s32.totalorder %s18, 1
      %s264 = scalar_select %p263, %s18, 1
      %s265 = scalar_lea.vmem %s5, %s264
      %p266 = scmp.lt.s32.totalorder %s18, 1
      %s267 = scalar_select %p266, %s18, 1
      %s268 = scalar_lea.vmem %s6, %s267
      %v270 = vld [vmem:[%s257] sm:$0xff]
      %v271 = vld [vmem:[%s257 + $0x8] sm:$0xff]
      %v272 = vld [vmem:[%s257 + $0x10] sm:$0xff]
      %v273 = vld [vmem:[%s257 + $0x18] sm:$0xff]
      %v274 = vld [vmem:[%s257 + $0x20] sm:$0xff]
      %v275 = vld [vmem:[%s257 + $0x28] sm:$0xff]
      %v276 = vld [vmem:[%s257 + $0x30] sm:$0xff]
      %v277 = vld [vmem:[%s257 + $0x38] sm:$0xff]
      %v278 = vld [vmem:[%s257 + $0x40] sm:$0xff]
      %v279 = vld [vmem:[%s257 + $0x48] sm:$0xff]
      %v280 = vld [vmem:[%s257 + $0x50] sm:$0xff]
      %v281 = vld [vmem:[%s257 + $0x58] sm:$0xff]
      %v282 = vld [vmem:[%s257 + $0x60] sm:$0xff]
      %v283 = vld [vmem:[%s257 + $0x68] sm:$0xff]
      %v284 = vld [vmem:[%s257 + $0x70] sm:$0xff]
      %v285 = vld [vmem:[%s257 + $0x78] sm:$0xff]
      %v286 = vld [vmem:[%s257 + $0x80] sm:$0xff]
      %v287 = vld [vmem:[%s257 + $0x88] sm:$0xff]
      %v288 = vld [vmem:[%s257 + $0x90] sm:$0xff]
      %v289 = vld [vmem:[%s257 + $0x98] sm:$0xff]
      %v290 = vld [vmem:[%s257 + $0xa0] sm:$0xff]
      %v291 = vld [vmem:[%s257 + $0xa8] sm:$0xff]
      %v292 = vld [vmem:[%s257 + $0xb0] sm:$0xff]
      %v293 = vld [vmem:[%s257 + $0xb8] sm:$0xff]
      %v294 = vld [vmem:[%s257 + $0xc0] sm:$0xff]
      %v295 = vld [vmem:[%s257 + $0xc8] sm:$0xff]
      %v296 = vld [vmem:[%s257 + $0xd0] sm:$0xff]
      %v297 = vld [vmem:[%s257 + $0xd8] sm:$0xff]
      %v298 = vld [vmem:[%s257 + $0xe0] sm:$0xff]
      %v299 = vld [vmem:[%s257 + $0xe8] sm:$0xff]
      %v300 = vld [vmem:[%s257 + $0xf0] sm:$0xff]
      %v301 = vld [vmem:[%s257 + $0xf8] sm:$0xff]
      %v302 = vld [vmem:[%s1] sm:$0x1]
      %v304 = vlaneseq
      %v305 = vshrl.u32 %v304, 7
      %v306 = vsub.s32 0, %v305
      %v307 = vrot.slane %v302, %v306
      %v309 = vmul.f32 %v270, %v307
      %v310 = vmul.f32 %v271, %v307
      %v311 = vmul.f32 %v272, %v307
      %v312 = vmul.f32 %v273, %v307
      %v313 = vmul.f32 %v274, %v307
      %v314 = vmul.f32 %v275, %v307
      %v315 = vmul.f32 %v276, %v307
      %v316 = vmul.f32 %v277, %v307
      %v317 = vmul.f32 %v278, %v307
      %v318 = vmul.f32 %v279, %v307
      %v319 = vmul.f32 %v280, %v307
      %v320 = vmul.f32 %v281, %v307
      %v321 = vmul.f32 %v282, %v307
      %v322 = vmul.f32 %v283, %v307
      %v323 = vmul.f32 %v284, %v307
      %v324 = vmul.f32 %v285, %v307
      %v325 = vmul.f32 %v286, %v307
      %v326 = vmul.f32 %v287, %v307
      %v327 = vmul.f32 %v288, %v307
      %v328 = vmul.f32 %v289, %v307
      %v329 = vmul.f32 %v290, %v307
      %v330 = vmul.f32 %v291, %v307
      %v331 = vmul.f32 %v292, %v307
      %v332 = vmul.f32 %v293, %v307
      %v333 = vmul.f32 %v294, %v307
      %v334 = vmul.f32 %v295, %v307
      %v335 = vmul.f32 %v296, %v307
      %v336 = vmul.f32 %v297, %v307
      %v337 = vmul.f32 %v298, %v307
      %v338 = vmul.f32 %v299, %v307
      %v339 = vmul.f32 %v300, %v307
      %v340 = vmul.f32 %v301, %v307
      %v341 = vld [vmem:[%s2] sm:$0x1]
      %v343 = vlaneseq
      %v344 = vshrl.u32 %v343, 7
      %v345 = vsub.s32 0, %v344
      %v346 = vrot.slane %v341, %v345
      %v348 = vadd.f32 %v309, %v346
      %v349 = vadd.f32 %v310, %v346
      %v350 = vadd.f32 %v311, %v346
      %v351 = vadd.f32 %v312, %v346
      %v352 = vadd.f32 %v313, %v346
      %v353 = vadd.f32 %v314, %v346
      %v354 = vadd.f32 %v315, %v346
      %v355 = vadd.f32 %v316, %v346
      %v356 = vadd.f32 %v317, %v346
      %v357 = vadd.f32 %v318, %v346
      %v358 = vadd.f32 %v319, %v346
      %v359 = vadd.f32 %v320, %v346
      %v360 = vadd.f32 %v321, %v346
      %v361 = vadd.f32 %v322, %v346
      %v362 = vadd.f32 %v323, %v346
      %v363 = vadd.f32 %v324, %v346
      %v364 = vadd.f32 %v325, %v346
      %v365 = vadd.f32 %v326, %v346
      %v366 = vadd.f32 %v327, %v346
      %v367 = vadd.f32 %v328, %v346
      %v368 = vadd.f32 %v329, %v346
      %v369 = vadd.f32 %v330, %v346
      %v370 = vadd.f32 %v331, %v346
      %v371 = vadd.f32 %v332, %v346
      %v372 = vadd.f32 %v333, %v346
      %v373 = vadd.f32 %v334, %v346
      %v374 = vadd.f32 %v335, %v346
      %v375 = vadd.f32 %v336, %v346
      %v376 = vadd.f32 %v337, %v346
      %v377 = vadd.f32 %v338, %v346
      %v378 = vadd.f32 %v339, %v346
      %v379 = vadd.f32 %v340, %v346
      %v380 = vmax.f32 %v348, 0.0
      %v381 = vmax.f32 %v349, 0.0
      %v382 = vmax.f32 %v350, 0.0
      %v383 = vmax.f32 %v351, 0.0
      %v384 = vmax.f32 %v352, 0.0
      %v385 = vmax.f32 %v353, 0.0
      %v386 = vmax.f32 %v354, 0.0
      %v387 = vmax.f32 %v355, 0.0
      %v388 = vmax.f32 %v356, 0.0
      %v389 = vmax.f32 %v357, 0.0
      %v390 = vmax.f32 %v358, 0.0
      %v391 = vmax.f32 %v359, 0.0
      %v392 = vmax.f32 %v360, 0.0
      %v393 = vmax.f32 %v361, 0.0
      %v394 = vmax.f32 %v362, 0.0
      %v395 = vmax.f32 %v363, 0.0
      %v396 = vmax.f32 %v364, 0.0
      %v397 = vmax.f32 %v365, 0.0
      %v398 = vmax.f32 %v366, 0.0
      %v399 = vmax.f32 %v367, 0.0
      %v400 = vmax.f32 %v368, 0.0
      %v401 = vmax.f32 %v369, 0.0
      %v402 = vmax.f32 %v370, 0.0
      %v403 = vmax.f32 %v371, 0.0
      %v404 = vmax.f32 %v372, 0.0
      %v405 = vmax.f32 %v373, 0.0
      %v406 = vmax.f32 %v374, 0.0
      %v407 = vmax.f32 %v375, 0.0
      %v408 = vmax.f32 %v376, 0.0
      %v409 = vmax.f32 %v377, 0.0
      %v410 = vmax.f32 %v378, 0.0
      %v411 = vmax.f32 %v379, 0.0
      %vm412 = vcmask 31744
      %413 = vst.msk [vmem:[#allocation2] sm:$0xff] %vm412, 0.0
      %414 = vst.msk [vmem:[#allocation2 + $0x8] sm:$0xff] %vm412, 0.0
      %vm415 = vcmask 25600
      %416 = vst.msk [vmem:[#allocation2 + $0x10] sm:$0x3] %vm415, 0.0
      %417 = vst.msk [vmem:[#allocation2 + $0x18] sm:$0xff] %vm412, 0.0
      %418 = vst.msk [vmem:[#allocation2 + $0x20] sm:$0xff] %vm412, 0.0
      %419 = vst.msk [vmem:[#allocation2 + $0x28] sm:$0x3] %vm415, 0.0
      %420 = vst.msk [vmem:[#allocation2 + $0x30] sm:$0xff] %vm412, 0.0
      %421 = vst.msk [vmem:[#allocation2 + $0x38] sm:$0xff] %vm412, 0.0
      %422 = vst.msk [vmem:[#allocation2 + $0x40] sm:$0x3] %vm415, 0.0
      %423 = vst.msk [vmem:[#allocation2 + $0x48] sm:$0xff] %vm412, 0.0
      %424 = vst.msk [vmem:[#allocation2 + $0x50] sm:$0xff] %vm412, 0.0
      %425 = vst.msk [vmem:[#allocation2 + $0x58] sm:$0x3] %vm415, 0.0
      %426 = vst.msk [vmem:[#allocation2 + $0x60] sm:$0xff] %vm412, 0.0
      %427 = vst.msk [vmem:[#allocation2 + $0x68] sm:$0xff] %vm412, 0.0
      %428 = vst.msk [vmem:[#allocation2 + $0x70] sm:$0x3] %vm415, 0.0
      %429 = vst.msk [vmem:[#allocation2 + $0x78] sm:$0xff] %vm412, 0.0
      %430 = vst.msk [vmem:[#allocation2 + $0x80] sm:$0xff] %vm412, 0.0
      %431 = vst.msk [vmem:[#allocation2 + $0x88] sm:$0x3] %vm415, 0.0
      %432 = vst.msk [vmem:[#allocation2 + $0x90] sm:$0xff] %vm412, 0.0
      %433 = vst.msk [vmem:[#allocation2 + $0x98] sm:$0xff] %vm412, 0.0
      %434 = vst.msk [vmem:[#allocation2 + $0xa0] sm:$0x3] %vm415, 0.0
      %435 = vst.msk [vmem:[#allocation2 + $0xa8] sm:$0xff] %vm412, 0.0
      %436 = vst.msk [vmem:[#allocation2 + $0xb0] sm:$0xff] %vm412, 0.0
      %437 = vst.msk [vmem:[#allocation2 + $0xb8] sm:$0x3] %vm415, 0.0
      %438 = vst.msk [vmem:[#allocation2 + $0xc0] sm:$0xff] %vm412, 0.0
      %439 = vst.msk [vmem:[#allocation2 + $0xc8] sm:$0xff] %vm412, 0.0
      %440 = vst.msk [vmem:[#allocation2 + $0xd0] sm:$0x3] %vm415, 0.0
      %441 = vst.msk [vmem:[#allocation2 + $0xd8] sm:$0xff] %vm412, 0.0
      %442 = vst.msk [vmem:[#allocation2 + $0xe0] sm:$0xff] %vm412, 0.0
      %443 = vst.msk [vmem:[#allocation2 + $0xe8] sm:$0x3] %vm415, 0.0
      %444 = vst.msk [vmem:[#allocation2 + $0xf0] sm:$0xff] %vm412, 0.0
      %445 = vst.msk [vmem:[#allocation2 + $0xf8] sm:$0xff] %vm412, 0.0
      %446 = vst.msk [vmem:[#allocation2 + $0x100] sm:$0x3] %vm415, 0.0
      %447 = vst.msk [vmem:[#allocation2 + $0x108] sm:$0xff] %vm412, 0.0
      %448 = vst.msk [vmem:[#allocation2 + $0x110] sm:$0xff] %vm412, 0.0
      %449 = vst.msk [vmem:[#allocation2 + $0x118] sm:$0x3] %vm415, 0.0
      %450 = vst.msk [vmem:[#allocation2 + $0x120] sm:$0xff] %vm412, 0.0
      %451 = vst.msk [vmem:[#allocation2 + $0x128] sm:$0xff] %vm412, 0.0
      %452 = vst.msk [vmem:[#allocation2 + $0x130] sm:$0x3] %vm415, 0.0
      %453 = vst.msk [vmem:[#allocation2 + $0x138] sm:$0xff] %vm412, 0.0
      %454 = vst.msk [vmem:[#allocation2 + $0x140] sm:$0xff] %vm412, 0.0
      %455 = vst.msk [vmem:[#allocation2 + $0x148] sm:$0x3] %vm415, 0.0
      %456 = vst.msk [vmem:[#allocation2 + $0x150] sm:$0xff] %vm412, 0.0
      %457 = vst.msk [vmem:[#allocation2 + $0x158] sm:$0xff] %vm412, 0.0
      %458 = vst.msk [vmem:[#allocation2 + $0x160] sm:$0x3] %vm415, 0.0
      %459 = vst.msk [vmem:[#allocation2 + $0x168] sm:$0xff] %vm412, 0.0
      %460 = vst.msk [vmem:[#allocation2 + $0x170] sm:$0xff] %vm412, 0.0
      %461 = vst.msk [vmem:[#allocation2 + $0x178] sm:$0x3] %vm415, 0.0
      %462 = vst.msk [vmem:[#allocation2 + $0x180] sm:$0xff] %vm412, 0.0
      %463 = vst.msk [vmem:[#allocation2 + $0x188] sm:$0xff] %vm412, 0.0
      %464 = vst.msk [vmem:[#allocation2 + $0x190] sm:$0x3] %vm415, 0.0
      %465 = vst.msk [vmem:[#allocation2 + $0x198] sm:$0xff] %vm412, 0.0
      %466 = vst.msk [vmem:[#allocation2 + $0x1a0] sm:$0xff] %vm412, 0.0
      %467 = vst.msk [vmem:[#allocation2 + $0x1a8] sm:$0x3] %vm415, 0.0
      %s468 = scalar_lea.vmem [#allocation2], 24
      %469 = vst.msk [vmem:[%s468 + $0x1] sm:$0xff] %vm412, %v380
      %470 = vst.msk [vmem:[%s468 + $0x9] sm:$0xff] %vm412, %v381
      %471 = vst.msk [vmem:[%s468 + $0x19] sm:$0xff] %vm412, %v382
      %472 = vst.msk [vmem:[%s468 + $0x21] sm:$0xff] %vm412, %v383
      %473 = vst.msk [vmem:[%s468 + $0x31] sm:$0xff] %vm412, %v384
      %474 = vst.msk [vmem:[%s468 + $0x39] sm:$0xff] %vm412, %v385
      %475 = vst.msk [vmem:[%s468 + $0x49] sm:$0xff] %vm412, %v386
      %476 = vst.msk [vmem:[%s468 + $0x51] sm:$0xff] %vm412, %v387
      %477 = vst.msk [vmem:[%s468 + $0x61] sm:$0xff] %vm412, %v388
      %478 = vst.msk [vmem:[%s468 + $0x69] sm:$0xff] %vm412, %v389
      %479 = vst.msk [vmem:[%s468 + $0x79] sm:$0xff] %vm412, %v390
      %480 = vst.msk [vmem:[%s468 + $0x81] sm:$0xff] %vm412, %v391
      %481 = vst.msk [vmem:[%s468 + $0x91] sm:$0xff] %vm412, %v392
      %482 = vst.msk [vmem:[%s468 + $0x99] sm:$0xff] %vm412, %v393
      %483 = vst.msk [vmem:[%s468 + $0xa9] sm:$0xff] %vm412, %v394
      %484 = vst.msk [vmem:[%s468 + $0xb1] sm:$0xff] %vm412, %v395
      %485 = vst.msk [vmem:[%s468 + $0xc1] sm:$0xff] %vm412, %v396
      %486 = vst.msk [vmem:[%s468 + $0xc9] sm:$0xff] %vm412, %v397
      %487 = vst.msk [vmem:[%s468 + $0xd9] sm:$0xff] %vm412, %v398
      %488 = vst.msk [vmem:[%s468 + $0xe1] sm:$0xff] %vm412, %v399
      %489 = vst.msk [vmem:[%s468 + $0xf1] sm:$0xff] %vm412, %v400
      %490 = vst.msk [vmem:[%s468 + $0xf9] sm:$0xff] %vm412, %v401
      %491 = vst.msk [vmem:[%s468 + $0x109] sm:$0xff] %vm412, %v402
      %492 = vst.msk [vmem:[%s468 + $0x111] sm:$0xff] %vm412, %v403
      %493 = vst.msk [vmem:[%s468 + $0x121] sm:$0xff] %vm412, %v404
      %494 = vst.msk [vmem:[%s468 + $0x129] sm:$0xff] %vm412, %v405
      %495 = vst.msk [vmem:[%s468 + $0x139] sm:$0xff] %vm412, %v406
      %496 = vst.msk [vmem:[%s468 + $0x141] sm:$0xff] %vm412, %v407
      %497 = vst.msk [vmem:[%s468 + $0x151] sm:$0xff] %vm412, %v408
      %498 = vst.msk [vmem:[%s468 + $0x159] sm:$0xff] %vm412, %v409
      %499 = vst.msk [vmem:[%s468 + $0x169] sm:$0xff] %vm412, %v410
      %500 = vst.msk [vmem:[%s468 + $0x171] sm:$0xff] %vm412, %v411
      %v501 = vld [vmem:[#allocation2] sm:$0xff]
      %v502 = vld [vmem:[#allocation2 + $0x8] sm:$0xff]
      %v503 = vld [vmem:[#allocation2 + $0x18] sm:$0xff]
      %v504 = vld [vmem:[#allocation2 + $0x20] sm:$0xff]
      %v505 = vld [vmem:[#allocation2 + $0x30] sm:$0xff]
      %v506 = vld [vmem:[#allocation2 + $0x38] sm:$0xff]
      %v507 = vld [vmem:[#allocation2 + $0x48] sm:$0xff]
      %v508 = vld [vmem:[#allocation2 + $0x50] sm:$0xff]
      %v509 = vld [vmem:[#allocation2 + $0x60] sm:$0xff]
      %v510 = vld [vmem:[#allocation2 + $0x68] sm:$0xff]
      %v511 = vld [vmem:[#allocation2 + $0x78] sm:$0xff]
      %v512 = vld [vmem:[#allocation2 + $0x80] sm:$0xff]
      %v513 = vld [vmem:[#allocation2 + $0x90] sm:$0xff]
      %v514 = vld [vmem:[#allocation2 + $0x98] sm:$0xff]
      %v515 = vld [vmem:[#allocation2 + $0xa8] sm:$0xff]
      %v516 = vld [vmem:[#allocation2 + $0xb0] sm:$0xff]
      %v517 = vld [vmem:[#allocation2 + $0xc0] sm:$0xff]
      %v518 = vld [vmem:[#allocation2 + $0xc8] sm:$0xff]
      %v519 = vld [vmem:[#allocation2 + $0xd8] sm:$0xff]
      %v520 = vld [vmem:[#allocation2 + $0xe0] sm:$0xff]
      %v521 = vld [vmem:[#allocation2 + $0xf0] sm:$0xff]
      %v522 = vld [vmem:[#allocation2 + $0xf8] sm:$0xff]
      %v523 = vld [vmem:[#allocation2 + $0x108] sm:$0xff]
      %v524 = vld [vmem:[#allocation2 + $0x110] sm:$0xff]
      %v525 = vld [vmem:[#allocation2 + $0x120] sm:$0xff]
      %v526 = vld [vmem:[#allocation2 + $0x128] sm:$0xff]
      %v527 = vld [vmem:[#allocation2 + $0x138] sm:$0xff]
      %v528 = vld [vmem:[#allocation2 + $0x140] sm:$0xff]
      %v529 = vld [vmem:[#allocation2 + $0x150] sm:$0xff]
      %v530 = vld [vmem:[#allocation2 + $0x158] sm:$0xff]
      %v531 = vld [vmem:[#allocation2 + $0x168] sm:$0xff]
      %v532 = vld [vmem:[#allocation2 + $0x170] sm:$0xff]
      %v533 = vpack.c.bf16 %v502, %v501
      %v534 = vpack.c.bf16 %v504, %v503
      %v535 = vpack.c.bf16 %v506, %v505
      %v536 = vpack.c.bf16 %v508, %v507
      %v537 = vpack.c.bf16 %v510, %v509
      %v538 = vpack.c.bf16 %v512, %v511
      %v539 = vpack.c.bf16 %v514, %v513
      %v540 = vpack.c.bf16 %v516, %v515
      %v541 = vpack.c.bf16 %v518, %v517
      %v542 = vpack.c.bf16 %v520, %v519
      %v543 = vpack.c.bf16 %v522, %v521
      %v544 = vpack.c.bf16 %v524, %v523
      %v545 = vpack.c.bf16 %v526, %v525
      %v546 = vpack.c.bf16 %v528, %v527
      %v547 = vpack.c.bf16 %v530, %v529
      %v548 = vpack.c.bf16 %v532, %v531
      %v549 = vld [vmem:[%s3] sm:$0x3]
      %v550 = vld [vmem:[#allocation2 + $0x1] sm:$0xff]
      %v551 = vld [vmem:[#allocation2 + $0x9] sm:$0xff]
      %v552 = vld [vmem:[#allocation2 + $0x19] sm:$0xff]
      %v553 = vld [vmem:[#allocation2 + $0x21] sm:$0xff]
      %v554 = vld [vmem:[#allocation2 + $0x31] sm:$0xff]
      %v555 = vld [vmem:[#allocation2 + $0x39] sm:$0xff]
      %v556 = vld [vmem:[#allocation2 + $0x49] sm:$0xff]
      %v557 = vld [vmem:[#allocation2 + $0x51] sm:$0xff]
      %v558 = vld [vmem:[#allocation2 + $0x61] sm:$0xff]
      %v559 = vld [vmem:[#allocation2 + $0x69] sm:$0xff]
      %v560 = vld [vmem:[#allocation2 + $0x79] sm:$0xff]
      %v561 = vld [vmem:[#allocation2 + $0x81] sm:$0xff]
      %v562 = vld [vmem:[#allocation2 + $0x91] sm:$0xff]
      %v563 = vld [vmem:[#allocation2 + $0x99] sm:$0xff]
      %v564 = vld [vmem:[#allocation2 + $0xa9] sm:$0xff]
      %v565 = vld [vmem:[#allocation2 + $0xb1] sm:$0xff]
      %v566 = vld [vmem:[#allocation2 + $0xc1] sm:$0xff]
      %v567 = vld [vmem:[#allocation2 + $0xc9] sm:$0xff]
      %v568 = vld [vmem:[#allocation2 + $0xd9] sm:$0xff]
      %v569 = vld [vmem:[#allocation2 + $0xe1] sm:$0xff]
      %v570 = vld [vmem:[#allocation2 + $0xf1] sm:$0xff]
      %v571 = vld [vmem:[#allocation2 + $0xf9] sm:$0xff]
      %v572 = vld [vmem:[#allocation2 + $0x109] sm:$0xff]
      %v573 = vld [vmem:[#allocation2 + $0x111] sm:$0xff]
      %v574 = vld [vmem:[#allocation2 + $0x121] sm:$0xff]
      %v575 = vld [vmem:[#allocation2 + $0x129] sm:$0xff]
      %v576 = vld [vmem:[#allocation2 + $0x139] sm:$0xff]
      %v577 = vld [vmem:[#allocation2 + $0x141] sm:$0xff]
      %v578 = vld [vmem:[#allocation2 + $0x151] sm:$0xff]
      %v579 = vld [vmem:[#allocation2 + $0x159] sm:$0xff]
      %v580 = vld [vmem:[#allocation2 + $0x169] sm:$0xff]
      %v581 = vld [vmem:[#allocation2 + $0x171] sm:$0xff]
      %v582 = vpack.c.bf16 %v551, %v550
      %v583 = vpack.c.bf16 %v553, %v552
      %v584 = vpack.c.bf16 %v555, %v554
      %v585 = vpack.c.bf16 %v557, %v556
      %v586 = vpack.c.bf16 %v559, %v558
      %v587 = vpack.c.bf16 %v561, %v560
      %v588 = vpack.c.bf16 %v563, %v562
      %v589 = vpack.c.bf16 %v565, %v564
      %v590 = vpack.c.bf16 %v567, %v566
      %v591 = vpack.c.bf16 %v569, %v568
      %v592 = vpack.c.bf16 %v571, %v570
      %v593 = vpack.c.bf16 %v573, %v572
      %v594 = vpack.c.bf16 %v575, %v574
      %v595 = vpack.c.bf16 %v577, %v576
      %v596 = vpack.c.bf16 %v579, %v578
      %v597 = vpack.c.bf16 %v581, %v580
      %s598 = scalar_lea.vmem %s3, 2
      %v599 = vld [vmem:[%s598] sm:$0x3]
      %v601 = vsel %vm412, %v582, 0
      %v604 = vsel %vm412, %v583, 0
      %v607 = vsel %vm412, %v584, 0
      %v610 = vsel %vm412, %v585, 0
      %v613 = vsel %vm412, %v586, 0
      %v616 = vsel %vm412, %v587, 0
      %v619 = vsel %vm412, %v588, 0
      %v622 = vsel %vm412, %v589, 0
      %v625 = vsel %vm412, %v590, 0
      %v628 = vsel %vm412, %v591, 0
      %v631 = vsel %vm412, %v592, 0
      %v634 = vsel %vm412, %v593, 0
      %v637 = vsel %vm412, %v594, 0
      %v640 = vsel %vm412, %v595, 0
      %v643 = vsel %vm412, %v596, 0
      %v646 = vsel %vm412, %v597, 0
      %vm648 = vcmask 1041408
      %v650 = vsel %vm648, %v599, 0
      %652 = vmatprep.subr.bf16.mxu0 0
      %653 = vmatpush1.bf16.msra.mxu0 %v650
      %654 = vmatprep.subr.bf16.mxu0 0
      %655 = vmatpush1.bf16.msra.mxu0 0
      %656 = vmatprep.subr.bf16.mxu0 0
      %657 = vmatpush1.bf16.msra.mxu0 0
      %658 = vmatprep.subr.bf16.mxu0 0
      %659 = vmatpush1.bf16.msra.mxu0 0
      %660 = vmatprep.subr.bf16.mxu0 0
      %661 = vmatpush1.bf16.msra.mxu0 0
      %662 = vmatprep.subr.bf16.mxu0 0
      %663 = vmatpush1.bf16.msra.mxu0 0
      %664 = vmatprep.subr.bf16.mxu0 0
      %665 = vmatpush1.bf16.msra.mxu0 0
      %666 = vmatprep.subr.bf16.mxu0 0
      %667 = vmatpush1.bf16.msra.mxu0 0
      %668 = vmatprep.subr.bf16.mxu0 0
      %669 = vmatpush1.bf16.msra.mxu0 0
      %670 = vmatprep.subr.bf16.mxu0 0
      %671 = vmatpush1.bf16.msra.mxu0 0
      %672 = vmatprep.subr.bf16.mxu0 0
      %673 = vmatpush1.bf16.msra.mxu0 0
      %674 = vmatprep.subr.bf16.mxu0 0
      %675 = vmatpush1.bf16.msra.mxu0 0
      %676 = vmatprep.subr.bf16.mxu0 0
      %677 = vmatpush1.bf16.msra.mxu0 0
      %678 = vmatprep.subr.bf16.mxu0 0
      %679 = vmatpush1.bf16.msra.mxu0 0
      %680 = vmatprep.subr.bf16.mxu0 0
      %681 = vmatpush1.bf16.msra.mxu0 0
      %682 = vmatprep.subr.bf16.mxu0 0
      %683 = vmatpush1.bf16.msra.mxu0 0
      %684 = vmatprep.mubr.bf16.mxu0 0
      %685 = vmatmul.mubr.bf16.gmra.mrb[0].mxu0 %v601
      %v686 = vpop.f32.mrb[0].mxu0
      %v687 = vadd.f32 0.0, %v686
      %v688 = vpop.f32.mrb[0].mxu0
      %v689 = vpop.f32.mrb[0].mxu0
      %v690 = vadd.f32 0.0, %v689
      %v691 = vpop.f32.mrb[0].mxu0
      %692 = vmatprep.mubr.bf16.mxu0 0
      %693 = vmatmul.mubr.bf16.gmra.mrb[0].mxu0 %v604
      %v694 = vpop.f32.mrb[0].mxu0
      %v695 = vadd.f32 0.0, %v694
      %v696 = vpop.f32.mrb[0].mxu0
      %v697 = vpop.f32.mrb[0].mxu0
      %v698 = vadd.f32 0.0, %v697
      %v699 = vpop.f32.mrb[0].mxu0
      %700 = vmatprep.mubr.bf16.mxu0 0
      %701 = vmatmul.mubr.bf16.gmra.mrb[0].mxu0 %v607
      %v702 = vpop.f32.mrb[0].mxu0
      %v703 = vadd.f32 0.0, %v702
      %v704 = vpop.f32.mrb[0].mxu0
      %v705 = vpop.f32.mrb[0].mxu0
      %v706 = vadd.f32 0.0, %v705
      %v707 = vpop.f32.mrb[0].mxu0
      %708 = vmatprep.mubr.bf16.mxu0 0
      %709 = vmatmul.mubr.bf16.gmra.mrb[0].mxu0 %v610
      %v710 = vpop.f32.mrb[0].mxu0
      %v711 = vadd.f32 0.0, %v710
      %v712 = vpop.f32.mrb[0].mxu0
      %v713 = vpop.f32.mrb[0].mxu0
      %v714 = vadd.f32 0.0, %v713
      %v715 = vpop.f32.mrb[0].mxu0
      %716 = vmatprep.mubr.bf16.mxu0 0
      %717 = vmatmul.mubr.bf16.gmra.mrb[0].mxu0 %v613
      %v718 = vpop.f32.mrb[0].mxu0
      %v719 = vadd.f32 0.0, %v718
      %v720 = vpop.f32.mrb[0].mxu0
      %v721 = vpop.f32.mrb[0].mxu0
      %v722 = vadd.f32 0.0, %v721
      %v723 = vpop.f32.mrb[0].mxu0
      %724 = vmatprep.mubr.bf16.mxu0 0
      %725 = vmatmul.mubr.bf16.gmra.mrb[0].mxu0 %v616
      %v726 = vpop.f32.mrb[0].mxu0
      %v727 = vadd.f32 0.0, %v726
      %v728 = vpop.f32.mrb[0].mxu0
      %v729 = vpop.f32.mrb[0].mxu0
      %v730 = vadd.f32 0.0, %v729
      %v731 = vpop.f32.mrb[0].mxu0
      %732 = vmatprep.mubr.bf16.mxu0 0
      %733 = vmatmul.mubr.bf16.gmra.mrb[0].mxu0 %v619
      %v734 = vpop.f32.mrb[0].mxu0
      %v735 = vadd.f32 0.0, %v734
      %v736 = vpop.f32.mrb[0].mxu0
      %v737 = vpop.f32.mrb[0].mxu0
      %v738 = vadd.f32 0.0, %v737
      %v739 = vpop.f32.mrb[0].mxu0
      %740 = vmatprep.mubr.bf16.mxu0 0
      %741 = vmatmul.mubr.bf16.gmra.mrb[0].mxu0 %v622
      %v742 = vpop.f32.mrb[0].mxu0
      %v743 = vadd.f32 0.0, %v742
      %v744 = vpop.f32.mrb[0].mxu0
      %v745 = vpop.f32.mrb[0].mxu0
      %v746 = vadd.f32 0.0, %v745
      %v747 = vpop.f32.mrb[0].mxu0
      %748 = vmatprep.mubr.bf16.mxu0 0
      %749 = vmatmul.mubr.bf16.gmra.mrb[0].mxu0 %v625
      %v750 = vpop.f32.mrb[0].mxu0
      %v751 = vadd.f32 0.0, %v750
      %v752 = vpop.f32.mrb[0].mxu0
      %v753 = vpop.f32.mrb[0].mxu0
      %v754 = vadd.f32 0.0, %v753
      %v755 = vpop.f32.mrb[0].mxu0
      %756 = vmatprep.mubr.bf16.mxu0 0
      %757 = vmatmul.mubr.bf16.gmra.mrb[0].mxu0 %v628
      %v758 = vpop.f32.mrb[0].mxu0
      %v759 = vadd.f32 0.0, %v758
      %v760 = vpop.f32.mrb[0].mxu0
      %v761 = vpop.f32.mrb[0].mxu0
      %v762 = vadd.f32 0.0, %v761
      %v763 = vpop.f32.mrb[0].mxu0
      %764 = vmatprep.mubr.bf16.mxu0 0
      %765 = vmatmul.mubr.bf16.gmra.mrb[0].mxu0 %v631
      %v766 = vpop.f32.mrb[0].mxu0
      %v767 = vadd.f32 0.0, %v766
      %v768 = vpop.f32.mrb[0].mxu0
      %v769 = vpop.f32.mrb[0].mxu0
      %v770 = vadd.f32 0.0, %v769
      %v771 = vpop.f32.mrb[0].mxu0
      %772 = vmatprep.mubr.bf16.mxu0 0
      %773 = vmatmul.mubr.bf16.gmra.mrb[0].mxu0 %v634
      %v774 = vpop.f32.mrb[0].mxu0
      %v775 = vadd.f32 0.0, %v774
      %v776 = vpop.f32.mrb[0].mxu0
      %v777 = vpop.f32.mrb[0].mxu0
      %v778 = vadd.f32 0.0, %v777
      %v779 = vpop.f32.mrb[0].mxu0
      %780 = vmatprep.mubr.bf16.mxu0 0
      %781 = vmatmul.mubr.bf16.gmra.mrb[0].mxu0 %v637
      %v782 = vpop.f32.mrb[0].mxu0
      %v783 = vadd.f32 0.0, %v782
      %v784 = vpop.f32.mrb[0].mxu0
      %v785 = vpop.f32.mrb[0].mxu0
      %v786 = vadd.f32 0.0, %v785
      %v787 = vpop.f32.mrb[0].mxu0
      %788 = vmatprep.mubr.bf16.mxu0 0
      %789 = vmatmul.mubr.bf16.gmra.mrb[0].mxu0 %v640
      %v790 = vpop.f32.mrb[0].mxu0
      %v791 = vadd.f32 0.0, %v790
      %v792 = vpop.f32.mrb[0].mxu0
      %v793 = vpop.f32.mrb[0].mxu0
      %v794 = vadd.f32 0.0, %v793
      %v795 = vpop.f32.mrb[0].mxu0
      %796 = vmatprep.mubr.bf16.mxu0 0
      %797 = vmatmul.mubr.bf16.gmra.mrb[0].mxu0 %v643
      %v798 = vpop.f32.mrb[0].mxu0
      %v799 = vadd.f32 0.0, %v798
      %v800 = vpop.f32.mrb[0].mxu0
      %v801 = vpop.f32.mrb[0].mxu0
      %v802 = vadd.f32 0.0, %v801
      %v803 = vpop.f32.mrb[0].mxu0
      %804 = vmatprep.mubr.bf16.mxu0 0
      %805 = vmatmul.mubr.bf16.gmra.mrb[0].mxu0 %v646
      %v806 = vpop.f32.mrb[0].mxu0
      %v807 = vadd.f32 0.0, %v806
      %v808 = vpop.f32.mrb[0].mxu0
      %v809 = vpop.f32.mrb[0].mxu0
      %v810 = vadd.f32 0.0, %v809
      %v811 = vpop.f32.mrb[0].mxu0
      %812 = vdwg.mxu0
      %v814 = vsel %vm412, %v533, 0
      %v817 = vsel %vm412, %v534, 0
      %v820 = vsel %vm412, %v535, 0
      %v823 = vsel %vm412, %v536, 0
      %v826 = vsel %vm412, %v537, 0
      %v829 = vsel %vm412, %v538, 0
      %v832 = vsel %vm412, %v539, 0
      %v835 = vsel %vm412, %v540, 0
      %v838 = vsel %vm412, %v541, 0
      %v841 = vsel %vm412, %v542, 0
      %v844 = vsel %vm412, %v543, 0
      %v847 = vsel %vm412, %v544, 0
      %v850 = vsel %vm412, %v545, 0
      %v853 = vsel %vm412, %v546, 0
      %v856 = vsel %vm412, %v547, 0
      %v859 = vsel %vm412, %v548, 0
      %v862 = vsel %vm648, %v549, 0
      %864 = vmatprep.subr.bf16.mxu0 0
      %865 = vmatpush1.bf16.msra.mxu0 %v862
      %866 = vmatprep.subr.bf16.mxu0 0
      %867 = vmatpush1.bf16.msra.mxu0 0
      %868 = vmatprep.subr.bf16.mxu0 0
      %869 = vmatpush1.bf16.msra.mxu0 0
      %870 = vmatprep.subr.bf16.mxu0 0
      %871 = vmatpush1.bf16.msra.mxu0 0
      %872 = vmatprep.subr.bf16.mxu0 0
      %873 = vmatpush1.bf16.msra.mxu0 0
      %874 = vmatprep.subr.bf16.mxu0 0
      %875 = vmatpush1.bf16.msra.mxu0 0
      %876 = vmatprep.subr.bf16.mxu0 0
      %877 = vmatpush1.bf16.msra.mxu0 0
      %878 = vmatprep.subr.bf16.mxu0 0
      %879 = vmatpush1.bf16.msra.mxu0 0
      %880 = vmatprep.subr.bf16.mxu0 0
      %881 = vmatpush1.bf16.msra.mxu0 0
      %882 = vmatprep.subr.bf16.mxu0 0
      %883 = vmatpush1.bf16.msra.mxu0 0
      %884 = vmatprep.subr.bf16.mxu0 0
      %885 = vmatpush1.bf16.msra.mxu0 0
      %886 = vmatprep.subr.bf16.mxu0 0
      %887 = vmatpush1.bf16.msra.mxu0 0
      %888 = vmatprep.subr.bf16.mxu0 0
      %889 = vmatpush1.bf16.msra.mxu0 0
      %890 = vmatprep.subr.bf16.mxu0 0
      %891 = vmatpush1.bf16.msra.mxu0 0
      %892 = vmatprep.subr.bf16.mxu0 0
      %893 = vmatpush1.bf16.msra.mxu0 0
      %894 = vmatprep.subr.bf16.mxu0 0
      %895 = vmatpush1.bf16.msra.mxu0 0
      %896 = vmatprep.mubr.bf16.mxu0 0
      %897 = vmatmul.mubr.bf16.gmra.mrb[0].mxu0 %v814
      %v898 = vpop.f32.mrb[0].mxu0
      %v899 = vadd.f32 %v687, %v898
      %v900 = vpop.f32.mrb[0].mxu0
      %v901 = vpop.f32.mrb[0].mxu0
      %v902 = vadd.f32 %v690, %v901
      %v903 = vpop.f32.mrb[0].mxu0
      %904 = vmatprep.mubr.bf16.mxu0 0
      %905 = vmatmul.mubr.bf16.gmra.mrb[0].mxu0 %v817
      %v906 = vpop.f32.mrb[0].mxu0
      %v907 = vadd.f32 %v695, %v906
      %v908 = vpop.f32.mrb[0].mxu0
      %v909 = vpop.f32.mrb[0].mxu0
      %v910 = vadd.f32 %v698, %v909
      %v911 = vpop.f32.mrb[0].mxu0
      %912 = vmatprep.mubr.bf16.mxu0 0
      %913 = vmatmul.mubr.bf16.gmra.mrb[0].mxu0 %v820
      %v914 = vpop.f32.mrb[0].mxu0
      %v915 = vadd.f32 %v703, %v914
      %v916 = vpop.f32.mrb[0].mxu0
      %v917 = vpop.f32.mrb[0].mxu0
      %v918 = vadd.f32 %v706, %v917
      %v919 = vpop.f32.mrb[0].mxu0
      %920 = vmatprep.mubr.bf16.mxu0 0
      %921 = vmatmul.mubr.bf16.gmra.mrb[0].mxu0 %v823
      %v922 = vpop.f32.mrb[0].mxu0
      %v923 = vadd.f32 %v711, %v922
      %v924 = vpop.f32.mrb[0].mxu0
      %v925 = vpop.f32.mrb[0].mxu0
      %v926 = vadd.f32 %v714, %v925
      %v927 = vpop.f32.mrb[0].mxu0
      %928 = vmatprep.mubr.bf16.mxu0 0
      %929 = vmatmul.mubr.bf16.gmra.mrb[0].mxu0 %v826
      %v930 = vpop.f32.mrb[0].mxu0
      %v931 = vadd.f32 %v719, %v930
      %v932 = vpop.f32.mrb[0].mxu0
      %v933 = vpop.f32.mrb[0].mxu0
      %v934 = vadd.f32 %v722, %v933
      %v935 = vpop.f32.mrb[0].mxu0
      %936 = vmatprep.mubr.bf16.mxu0 0
      %937 = vmatmul.mubr.bf16.gmra.mrb[0].mxu0 %v829
      %v938 = vpop.f32.mrb[0].mxu0
      %v939 = vadd.f32 %v727, %v938
      %v940 = vpop.f32.mrb[0].mxu0
      %v941 = vpop.f32.mrb[0].mxu0
      %v942 = vadd.f32 %v730, %v941
      %v943 = vpop.f32.mrb[0].mxu0
      %944 = vmatprep.mubr.bf16.mxu0 0
      %945 = vmatmul.mubr.bf16.gmra.mrb[0].mxu0 %v832
      %v946 = vpop.f32.mrb[0].mxu0
      %v947 = vadd.f32 %v735, %v946
      %v948 = vpop.f32.mrb[0].mxu0
      %v949 = vpop.f32.mrb[0].mxu0
      %v950 = vadd.f32 %v738, %v949
      %v951 = vpop.f32.mrb[0].mxu0
      %952 = vmatprep.mubr.bf16.mxu0 0
      %953 = vmatmul.mubr.bf16.gmra.mrb[0].mxu0 %v835
      %v954 = vpop.f32.mrb[0].mxu0
      %v955 = vadd.f32 %v743, %v954
      %v956 = vpop.f32.mrb[0].mxu0
      %v957 = vpop.f32.mrb[0].mxu0
      %v958 = vadd.f32 %v746, %v957
      %v959 = vpop.f32.mrb[0].mxu0
      %960 = vmatprep.mubr.bf16.mxu0 0
      %961 = vmatmul.mubr.bf16.gmra.mrb[0].mxu0 %v838
      %v962 = vpop.f32.mrb[0].mxu0
      %v963 = vadd.f32 %v751, %v962
      %v964 = vpop.f32.mrb[0].mxu0
      %v965 = vpop.f32.mrb[0].mxu0
      %v966 = vadd.f32 %v754, %v965
      %v967 = vpop.f32.mrb[0].mxu0
      %968 = vmatprep.mubr.bf16.mxu0 0
      %969 = vmatmul.mubr.bf16.gmra.mrb[0].mxu0 %v841
      %v970 = vpop.f32.mrb[0].mxu0
      %v971 = vadd.f32 %v759, %v970
      %v972 = vpop.f32.mrb[0].mxu0
      %v973 = vpop.f32.mrb[0].mxu0
      %v974 = vadd.f32 %v762, %v973
      %v975 = vpop.f32.mrb[0].mxu0
      %976 = vmatprep.mubr.bf16.mxu0 0
      %977 = vmatmul.mubr.bf16.gmra.mrb[0].mxu0 %v844
      %v978 = vpop.f32.mrb[0].mxu0
      %v979 = vadd.f32 %v767, %v978
      %v980 = vpop.f32.mrb[0].mxu0
      %v981 = vpop.f32.mrb[0].mxu0
      %v982 = vadd.f32 %v770, %v981
      %v983 = vpop.f32.mrb[0].mxu0
      %984 = vmatprep.mubr.bf16.mxu0 0
      %985 = vmatmul.mubr.bf16.gmra.mrb[0].mxu0 %v847
      %v986 = vpop.f32.mrb[0].mxu0
      %v987 = vadd.f32 %v775, %v986
      %v988 = vpop.f32.mrb[0].mxu0
      %v989 = vpop.f32.mrb[0].mxu0
      %v990 = vadd.f32 %v778, %v989
      %v991 = vpop.f32.mrb[0].mxu0
      %992 = vmatprep.mubr.bf16.mxu0 0
      %993 = vmatmul.mubr.bf16.gmra.mrb[0].mxu0 %v850
      %v994 = vpop.f32.mrb[0].mxu0
      %v995 = vadd.f32 %v783, %v994
      %v996 = vpop.f32.mrb[0].mxu0
      %v997 = vpop.f32.mrb[0].mxu0
      %v998 = vadd.f32 %v786, %v997
      %v999 = vpop.f32.mrb[0].mxu0
      %1000 = vmatprep.mubr.bf16.mxu0 0
      %1001 = vmatmul.mubr.bf16.gmra.mrb[0].mxu0 %v853
      %v1002 = vpop.f32.mrb[0].mxu0
      %v1003 = vadd.f32 %v791, %v1002
      %v1004 = vpop.f32.mrb[0].mxu0
      %v1005 = vpop.f32.mrb[0].mxu0
      %v1006 = vadd.f32 %v794, %v1005
      %v1007 = vpop.f32.mrb[0].mxu0
      %1008 = vmatprep.mubr.bf16.mxu0 0
      %1009 = vmatmul.mubr.bf16.gmra.mrb[0].mxu0 %v856
      %v1010 = vpop.f32.mrb[0].mxu0
      %v1011 = vadd.f32 %v799, %v1010
      %v1012 = vpop.f32.mrb[0].mxu0
      %v1013 = vpop.f32.mrb[0].mxu0
      %v1014 = vadd.f32 %v802, %v1013
      %v1015 = vpop.f32.mrb[0].mxu0
      %1016 = vmatprep.mubr.bf16.mxu0 0
      %1017 = vmatmul.mubr.bf16.gmra.mrb[0].mxu0 %v859
      %v1018 = vpop.f32.mrb[0].mxu0
      %v1019 = vadd.f32 %v807, %v1018
      %v1020 = vpop.f32.mrb[0].mxu0
      %v1021 = vpop.f32.mrb[0].mxu0
      %v1022 = vadd.f32 %v810, %v1021
      %v1023 = vpop.f32.mrb[0].mxu0
      %1024 = vdwg.mxu0
      %v1025 = vld [vmem:[#allocation2 + $0x2] sm:$0xff]
      %v1026 = vld [vmem:[#allocation2 + $0xa] sm:$0xff]
      %v1027 = vld [vmem:[#allocation2 + $0x1a] sm:$0xff]
      %v1028 = vld [vmem:[#allocation2 + $0x22] sm:$0xff]
      %v1029 = vld [vmem:[#allocation2 + $0x32] sm:$0xff]
      %v1030 = vld [vmem:[#allocation2 + $0x3a] sm:$0xff]
      %v1031 = vld [vmem:[#allocation2 + $0x4a] sm:$0xff]
      %v1032 = vld [vmem:[#allocation2 + $0x52] sm:$0xff]
      %v1033 = vld [vmem:[#allocation2 + $0x62] sm:$0xff]
      %v1034 = vld [vmem:[#allocation2 + $0x6a] sm:$0xff]
      %v1035 = vld [vmem:[#allocation2 + $0x7a] sm:$0xff]
      %v1036 = vld [vmem:[#allocation2 + $0x82] sm:$0xff]
      %v1037 = vld [vmem:[#allocation2 + $0x92] sm:$0xff]
      %v1038 = vld [vmem:[#allocation2 + $0x9a] sm:$0xff]
      %v1039 = vld [vmem:[#allocation2 + $0xaa] sm:$0xff]
      %v1040 = vld [vmem:[#allocation2 + $0xb2] sm:$0xff]
      %v1041 = vld [vmem:[#allocation2 + $0xc2] sm:$0xff]
      %v1042 = vld [vmem:[#allocation2 + $0xca] sm:$0xff]
      %v1043 = vld [vmem:[#allocation2 + $0xda] sm:$0xff]
      %v1044 = vld [vmem:[#allocation2 + $0xe2] sm:$0xff]
      %v1045 = vld [vmem:[#allocation2 + $0xf2] sm:$0xff]
      %v1046 = vld [vmem:[#allocation2 + $0xfa] sm:$0xff]
      %v1047 = vld [vmem:[#allocation2 + $0x10a] sm:$0xff]
      %v1048 = vld [vmem:[#allocation2 + $0x112] sm:$0xff]
      %v1049 = vld [vmem:[#allocation2 + $0x122] sm:$0xff]
      %v1050 = vld [vmem:[#allocation2 + $0x12a] sm:$0xff]
      %v1051 = vld [vmem:[#allocation2 + $0x13a] sm:$0xff]
      %v1052 = vld [vmem:[#allocation2 + $0x142] sm:$0xff]
      %v1053 = vld [vmem:[#allocation2 + $0x152] sm:$0xff]
      %v1054 = vld [vmem:[#allocation2 + $0x15a] sm:$0xff]
      %v1055 = vld [vmem:[#allocation2 + $0x16a] sm:$0xff]
      %v1056 = vld [vmem:[#allocation2 + $0x172] sm:$0xff]
      %v1057 = vpack.c.bf16 %v1026, %v1025
      %v1058 = vpack.c.bf16 %v1028, %v1027
      %v1059 = vpack.c.bf16 %v1030, %v1029
      %v1060 = vpack.c.bf16 %v1032, %v1031
      %v1061 = vpack.c.bf16 %v1034, %v1033
      %v1062 = vpack.c.bf16 %v1036, %v1035
      %v1063 = vpack.c.bf16 %v1038, %v1037
      %v1064 = vpack.c.bf16 %v1040, %v1039
      %v1065 = vpack.c.bf16 %v1042, %v1041
      %v1066 = vpack.c.bf16 %v1044, %v1043
      %v1067 = vpack.c.bf16 %v1046, %v1045
      %v1068 = vpack.c.bf16 %v1048, %v1047
      %v1069 = vpack.c.bf16 %v1050, %v1049
      %v1070 = vpack.c.bf16 %v1052, %v1051
      %v1071 = vpack.c.bf16 %v1054, %v1053
      %v1072 = vpack.c.bf16 %v1056, %v1055
      %s1073 = scalar_lea.vmem %s3, 4
      %v1074 = vld [vmem:[%s1073] sm:$0x3]
      %v1076 = vsel %vm412, %v1057, 0
      %v1079 = vsel %vm412, %v1058, 0
      %v1082 = vsel %vm412, %v1059, 0
      %v1085 = vsel %vm412, %v1060, 0
      %v1088 = vsel %vm412, %v1061, 0
      %v1091 = vsel %vm412, %v1062, 0
      %v1094 = vsel %vm412, %v1063, 0
      %v1097 = vsel %vm412, %v1064, 0
      %v1100 = vsel %vm412, %v1065, 0
      %v1103 = vsel %vm412, %v1066, 0
      %v1106 = vsel %vm412, %v1067, 0
      %v1109 = vsel %vm412, %v1068, 0
      %v1112 = vsel %vm412, %v1069, 0
      %v1115 = vsel %vm412, %v1070, 0
      %v1118 = vsel %vm412, %v1071, 0
      %v1121 = vsel %vm412, %v1072, 0
      %v1124 = vsel %vm648, %v1074, 0
      %1126 = vmatprep.subr.bf16.mxu0 0
      %1127 = vmatpush1.bf16.msra.mxu0 %v1124
      %1128 = vmatprep.subr.bf16.mxu0 0
      %1129 = vmatpush1.bf16.msra.mxu0 0
      %1130 = vmatprep.subr.bf16.mxu0 0
      %1131 = vmatpush1.bf16.msra.mxu0 0
      %1132 = vmatprep.subr.bf16.mxu0 0
      %1133 = vmatpush1.bf16.msra.mxu0 0
      %1134 = vmatprep.subr.bf16.mxu0 0
      %1135 = vmatpush1.bf16.msra.mxu0 0
      %1136 = vmatprep.subr.bf16.mxu0 0
      %1137 = vmatpush1.bf16.msra.mxu0 0
      %1138 = vmatprep.subr.bf16.mxu0 0
      %1139 = vmatpush1.bf16.msra.mxu0 0
      %1140 = vmatprep.subr.bf16.mxu0 0
      %1141 = vmatpush1.bf16.msra.mxu0 0
      %1142 = vmatprep.subr.bf16.mxu0 0
      %1143 = vmatpush1.bf16.msra.mxu0 0
      %1144 = vmatprep.subr.bf16.mxu0 0
      %1145 = vmatpush1.bf16.msra.mxu0 0
      %1146 = vmatprep.subr.bf16.mxu0 0
      %1147 = vmatpush1.bf16.msra.mxu0 0
      %1148 = vmatprep.subr.bf16.mxu0 0
      %1149 = vmatpush1.bf16.msra.mxu0 0
      %1150 = vmatprep.subr.bf16.mxu0 0
      %1151 = vmatpush1.bf16.msra.mxu0 0
      %1152 = vmatprep.subr.bf16.mxu0 0
      %1153 = vmatpush1.bf16.msra.mxu0 0
      %1154 = vmatprep.subr.bf16.mxu0 0
      %1155 = vmatpush1.bf16.msra.mxu0 0
      %1156 = vmatprep.subr.bf16.mxu0 0
      %1157 = vmatpush1.bf16.msra.mxu0 0
      %1158 = vmatprep.mubr.bf16.mxu0 0
      %1159 = vmatmul.mubr.bf16.gmra.mrb[0].mxu0 %v1076
      %v1160 = vpop.f32.mrb[0].mxu0
      %v1161 = vadd.f32 0.0, %v1160
      %v1162 = vpop.f32.mrb[0].mxu0
      %v1163 = vpop.f32.mrb[0].mxu0
      %v1164 = vadd.f32 0.0, %v1163
      %v1165 = vpop.f32.mrb[0].mxu0
      %1166 = vmatprep.mubr.bf16.mxu0 0
      %1167 = vmatmul.mubr.bf16.gmra.mrb[0].mxu0 %v1079
      %v1168 = vpop.f32.mrb[0].mxu0
      %v1169 = vadd.f32 0.0, %v1168
      %v1170 = vpop.f32.mrb[0].mxu0
      %v1171 = vpop.f32.mrb[0].mxu0
      %v1172 = vadd.f32 0.0, %v1171
      %v1173 = vpop.f32.mrb[0].mxu0
      %1174 = vmatprep.mubr.bf16.mxu0 0
      %1175 = vmatmul.mubr.bf16.gmra.mrb[0].mxu0 %v1082
      %v1176 = vpop.f32.mrb[0].mxu0
      %v1177 = vadd.f32 0.0, %v1176
      %v1178 = vpop.f32.mrb[0].mxu0
      %v1179 = vpop.f32.mrb[0].mxu0
      %v1180 = vadd.f32 0.0, %v1179
      %v1181 = vpop.f32.mrb[0].mxu0
      %1182 = vmatprep.mubr.bf16.mxu0 0
      %1183 = vmatmul.mubr.bf16.gmra.mrb[0].mxu0 %v1085
      %v1184 = vpop.f32.mrb[0].mxu0
      %v1185 = vadd.f32 0.0, %v1184
      %v1186 = vpop.f32.mrb[0].mxu0
      %v1187 = vpop.f32.mrb[0].mxu0
      %v1188 = vadd.f32 0.0, %v1187
      %v1189 = vpop.f32.mrb[0].mxu0
      %1190 = vmatprep.mubr.bf16.mxu0 0
      %1191 = vmatmul.mubr.bf16.gmra.mrb[0].mxu0 %v1088
      %v1192 = vpop.f32.mrb[0].mxu0
      %v1193 = vadd.f32 0.0, %v1192
      %v1194 = vpop.f32.mrb[0].mxu0
      %v1195 = vpop.f32.mrb[0].mxu0
      %v1196 = vadd.f32 0.0, %v1195
      %v1197 = vpop.f32.mrb[0].mxu0
      %1198 = vmatprep.mubr.bf16.mxu0 0
      %1199 = vmatmul.mubr.bf16.gmra.mrb[0].mxu0 %v1091
      %v1200 = vpop.f32.mrb[0].mxu0
      %v1201 = vadd.f32 0.0, %v1200
      %v1202 = vpop.f32.mrb[0].mxu0
      %v1203 = vpop.f32.mrb[0].mxu0
      %v1204 = vadd.f32 0.0, %v1203
      %v1205 = vpop.f32.mrb[0].mxu0
      %1206 = vmatprep.mubr.bf16.mxu0 0
      %1207 = vmatmul.mubr.bf16.gmra.mrb[0].mxu0 %v1094
      %v1208 = vpop.f32.mrb[0].mxu0
      %v1209 = vadd.f32 0.0, %v1208
      %v1210 = vpop.f32.mrb[0].mxu0
      %v1211 = vpop.f32.mrb[0].mxu0
      %v1212 = vadd.f32 0.0, %v1211
      %v1213 = vpop.f32.mrb[0].mxu0
      %1214 = vmatprep.mubr.bf16.mxu0 0
      %1215 = vmatmul.mubr.bf16.gmra.mrb[0].mxu0 %v1097
      %v1216 = vpop.f32.mrb[0].mxu0
      %v1217 = vadd.f32 0.0, %v1216
      %v1218 = vpop.f32.mrb[0].mxu0
      %v1219 = vpop.f32.mrb[0].mxu0
      %v1220 = vadd.f32 0.0, %v1219
      %v1221 = vpop.f32.mrb[0].mxu0
      %1222 = vmatprep.mubr.bf16.mxu0 0
      %1223 = vmatmul.mubr.bf16.gmra.mrb[0].mxu0 %v1100
      %v1224 = vpop.f32.mrb[0].mxu0
      %v1225 = vadd.f32 0.0, %v1224
      %v1226 = vpop.f32.mrb[0].mxu0
      %v1227 = vpop.f32.mrb[0].mxu0
      %v1228 = vadd.f32 0.0, %v1227
      %v1229 = vpop.f32.mrb[0].mxu0
      %1230 = vmatprep.mubr.bf16.mxu0 0
      %1231 = vmatmul.mubr.bf16.gmra.mrb[0].mxu0 %v1103
      %v1232 = vpop.f32.mrb[0].mxu0
      %v1233 = vadd.f32 0.0, %v1232
      %v1234 = vpop.f32.mrb[0].mxu0
      %v1235 = vpop.f32.mrb[0].mxu0
      %v1236 = vadd.f32 0.0, %v1235
      %v1237 = vpop.f32.mrb[0].mxu0
      %1238 = vmatprep.mubr.bf16.mxu0 0
      %1239 = vmatmul.mubr.bf16.gmra.mrb[0].mxu0 %v1106
      %v1240 = vpop.f32.mrb[0].mxu0
      %v1241 = vadd.f32 0.0, %v1240
      %v1242 = vpop.f32.mrb[0].mxu0
      %v1243 = vpop.f32.mrb[0].mxu0
      %v1244 = vadd.f32 0.0, %v1243
      %v1245 = vpop.f32.mrb[0].mxu0
      %1246 = vmatprep.mubr.bf16.mxu0 0
      %1247 = vmatmul.mubr.bf16.gmra.mrb[0].mxu0 %v1109
      %v1248 = vpop.f32.mrb[0].mxu0
      %v1249 = vadd.f32 0.0, %v1248
      %v1250 = vpop.f32.mrb[0].mxu0
      %v1251 = vpop.f32.mrb[0].mxu0
      %v1252 = vadd.f32 0.0, %v1251
      %v1253 = vpop.f32.mrb[0].mxu0
      %1254 = vmatprep.mubr.bf16.mxu0 0
      %1255 = vmatmul.mubr.bf16.gmra.mrb[0].mxu0 %v1112
      %v1256 = vpop.f32.mrb[0].mxu0
      %v1257 = vadd.f32 0.0, %v1256
      %v1258 = vpop.f32.mrb[0].mxu0
      %v1259 = vpop.f32.mrb[0].mxu0
      %v1260 = vadd.f32 0.0, %v1259
      %v1261 = vpop.f32.mrb[0].mxu0
      %1262 = vmatprep.mubr.bf16.mxu0 0
      %1263 = vmatmul.mubr.bf16.gmra.mrb[0].mxu0 %v1115
      %v1264 = vpop.f32.mrb[0].mxu0
      %v1265 = vadd.f32 0.0, %v1264
      %v1266 = vpop.f32.mrb[0].mxu0
      %v1267 = vpop.f32.mrb[0].mxu0
      %v1268 = vadd.f32 0.0, %v1267
      %v1269 = vpop.f32.mrb[0].mxu0
      %1270 = vmatprep.mubr.bf16.mxu0 0
      %1271 = vmatmul.mubr.bf16.gmra.mrb[0].mxu0 %v1118
      %v1272 = vpop.f32.mrb[0].mxu0
      %v1273 = vadd.f32 0.0, %v1272
      %v1274 = vpop.f32.mrb[0].mxu0
      %v1275 = vpop.f32.mrb[0].mxu0
      %v1276 = vadd.f32 0.0, %v1275
      %v1277 = vpop.f32.mrb[0].mxu0
      %1278 = vmatprep.mubr.bf16.mxu0 0
      %1279 = vmatmul.mubr.bf16.gmra.mrb[0].mxu0 %v1121
      %v1280 = vpop.f32.mrb[0].mxu0
      %v1281 = vadd.f32 0.0, %v1280
      %v1282 = vpop.f32.mrb[0].mxu0
      %v1283 = vpop.f32.mrb[0].mxu0
      %v1284 = vadd.f32 0.0, %v1283
      %v1285 = vpop.f32.mrb[0].mxu0
      %1286 = vdwg.mxu0
      %v1287 = vadd.f32 %v899, %v1161
      %v1288 = vadd.f32 %v902, %v1164
      %v1289 = vadd.f32 %v907, %v1169
      %v1290 = vadd.f32 %v910, %v1172
      %v1291 = vadd.f32 %v915, %v1177
      %v1292 = vadd.f32 %v918, %v1180
      %v1293 = vadd.f32 %v923, %v1185
      %v1294 = vadd.f32 %v926, %v1188
      %v1295 = vadd.f32 %v931, %v1193
      %v1296 = vadd.f32 %v934, %v1196
      %v1297 = vadd.f32 %v939, %v1201
      %v1298 = vadd.f32 %v942, %v1204
      %v1299 = vadd.f32 %v947, %v1209
      %v1300 = vadd.f32 %v950, %v1212
      %v1301 = vadd.f32 %v955, %v1217
      %v1302 = vadd.f32 %v958, %v1220
      %v1303 = vadd.f32 %v963, %v1225
      %v1304 = vadd.f32 %v966, %v1228
      %v1305 = vadd.f32 %v971, %v1233
      %v1306 = vadd.f32 %v974, %v1236
      %v1307 = vadd.f32 %v979, %v1241
      %v1308 = vadd.f32 %v982, %v1244
      %v1309 = vadd.f32 %v987, %v1249
      %v1310 = vadd.f32 %v990, %v1252
      %v1311 = vadd.f32 %v995, %v1257
      %v1312 = vadd.f32 %v998, %v1260
      %v1313 = vadd.f32 %v1003, %v1265
      %v1314 = vadd.f32 %v1006, %v1268
      %v1315 = vadd.f32 %v1011, %v1273
      %v1316 = vadd.f32 %v1014, %v1276
      %v1317 = vadd.f32 %v1019, %v1281
      %v1318 = vadd.f32 %v1022, %v1284
      %v1319 = vld [vmem:[%s468] sm:$0xff]
      %v1320 = vld [vmem:[%s468 + $0x8] sm:$0xff]
      %v1321 = vld [vmem:[%s468 + $0x18] sm:$0xff]
      %v1322 = vld [vmem:[%s468 + $0x20] sm:$0xff]
      %v1323 = vld [vmem:[%s468 + $0x30] sm:$0xff]
      %v1324 = vld [vmem:[%s468 + $0x38] sm:$0xff]
      %v1325 = vld [vmem:[%s468 + $0x48] sm:$0xff]
      %v1326 = vld [vmem:[%s468 + $0x50] sm:$0xff]
      %v1327 = vld [vmem:[%s468 + $0x60] sm:$0xff]
      %v1328 = vld [vmem:[%s468 + $0x68] sm:$0xff]
      %v1329 = vld [vmem:[%s468 + $0x78] sm:$0xff]
      %v1330 = vld [vmem:[%s468 + $0x80] sm:$0xff]
      %v1331 = vld [vmem:[%s468 + $0x90] sm:$0xff]
      %v1332 = vld [vmem:[%s468 + $0x98] sm:$0xff]
      %v1333 = vld [vmem:[%s468 + $0xa8] sm:$0xff]
      %v1334 = vld [vmem:[%s468 + $0xb0] sm:$0xff]
      %v1335 = vld [vmem:[%s468 + $0xc0] sm:$0xff]
      %v1336 = vld [vmem:[%s468 + $0xc8] sm:$0xff]
      %v1337 = vld [vmem:[%s468 + $0xd8] sm:$0xff]
      %v1338 = vld [vmem:[%s468 + $0xe0] sm:$0xff]
      %v1339 = vld [vmem:[%s468 + $0xf0] sm:$0xff]
      %v1340 = vld [vmem:[%s468 + $0xf8] sm:$0xff]
      %v1341 = vld [vmem:[%s468 + $0x108] sm:$0xff]
      %v1342 = vld [vmem:[%s468 + $0x110] sm:$0xff]
      %v1343 = vld [vmem:[%s468 + $0x120] sm:$0xff]
      %v1344 = vld [vmem:[%s468 + $0x128] sm:$0xff]
      %v1345 = vld [vmem:[%s468 + $0x138] sm:$0xff]
      %v1346 = vld [vmem:[%s468 + $0x140] sm:$0xff]
      %v1347 = vld [vmem:[%s468 + $0x150] sm:$0xff]
      %v1348 = vld [vmem:[%s468 + $0x158] sm:$0xff]
      %v1349 = vld [vmem:[%s468 + $0x168] sm:$0xff]
      %v1350 = vld [vmem:[%s468 + $0x170] sm:$0xff]
      %v1351 = vpack.c.bf16 %v1320, %v1319
      %v1352 = vpack.c.bf16 %v1322, %v1321
      %v1353 = vpack.c.bf16 %v1324, %v1323
      %v1354 = vpack.c.bf16 %v1326, %v1325
      %v1355 = vpack.c.bf16 %v1328, %v1327
      %v1356 = vpack.c.bf16 %v1330, %v1329
      %v1357 = vpack.c.bf16 %v1332, %v1331
      %v1358 = vpack.c.bf16 %v1334, %v1333
      %v1359 = vpack.c.bf16 %v1336, %v1335
      %v1360 = vpack.c.bf16 %v1338, %v1337
      %v1361 = vpack.c.bf16 %v1340, %v1339
      %v1362 = vpack.c.bf16 %v1342, %v1341
      %v1363 = vpack.c.bf16 %v1344, %v1343
      %v1364 = vpack.c.bf16 %v1346, %v1345
      %v1365 = vpack.c.bf16 %v1348, %v1347
      %v1366 = vpack.c.bf16 %v1350, %v1349
      %s1367 = scalar_lea.vmem %s3, 6
      %v1368 = vld [vmem:[%s1367] sm:$0x3]
      %v1370 = vsel %vm412, %v1351, 0
      %v1373 = vsel %vm412, %v1352, 0
      %v1376 = vsel %vm412, %v1353, 0
      %v1379 = vsel %vm412, %v1354, 0
      %v1382 = vsel %vm412, %v1355, 0
      %v1385 = vsel %vm412, %v1356, 0
      %v1388 = vsel %vm412, %v1357, 0
      %v1391 = vsel %vm412, %v1358, 0
      %v1394 = vsel %vm412, %v1359, 0
      %v1397 = vsel %vm412, %v1360, 0
      %v1400 = vsel %vm412, %v1361, 0
      %v1403 = vsel %vm412, %v1362, 0
      %v1406 = vsel %vm412, %v1363, 0
      %v1409 = vsel %vm412, %v1364, 0
      %v1412 = vsel %vm412, %v1365, 0
      %v1415 = vsel %vm412, %v1366, 0
      %v1418 = vsel %vm648, %v1368, 0
      %1420 = vmatprep.subr.bf16.mxu0 0
      %1421 = vmatpush1.bf16.msra.mxu0 %v1418
      %1422 = vmatprep.subr.bf16.mxu0 0
      %1423 = vmatpush1.bf16.msra.mxu0 0
      %1424 = vmatprep.subr.bf16.mxu0 0
      %1425 = vmatpush1.bf16.msra.mxu0 0
      %1426 = vmatprep.subr.bf16.mxu0 0
      %1427 = vmatpush1.bf16.msra.mxu0 0
      %1428 = vmatprep.subr.bf16.mxu0 0
      %1429 = vmatpush1.bf16.msra.mxu0 0
      %1430 = vmatprep.subr.bf16.mxu0 0
      %1431 = vmatpush1.bf16.msra.mxu0 0
      %1432 = vmatprep.subr.bf16.mxu0 0
      %1433 = vmatpush1.bf16.msra.mxu0 0
      %1434 = vmatprep.subr.bf16.mxu0 0
      %1435 = vmatpush1.bf16.msra.mxu0 0
      %1436 = vmatprep.subr.bf16.mxu0 0
      %1437 = vmatpush1.bf16.msra.mxu0 0
      %1438 = vmatprep.subr.bf16.mxu0 0
      %1439 = vmatpush1.bf16.msra.mxu0 0
      %1440 = vmatprep.subr.bf16.mxu0 0
      %1441 = vmatpush1.bf16.msra.mxu0 0
      %1442 = vmatprep.subr.bf16.mxu0 0
      %1443 = vmatpush1.bf16.msra.mxu0 0
      %1444 = vmatprep.subr.bf16.mxu0 0
      %1445 = vmatpush1.bf16.msra.mxu0 0
      %1446 = vmatprep.subr.bf16.mxu0 0
      %1447 = vmatpush1.bf16.msra.mxu0 0
      %1448 = vmatprep.subr.bf16.mxu0 0
      %1449 = vmatpush1.bf16.msra.mxu0 0
      %1450 = vmatprep.subr.bf16.mxu0 0
      %1451 = vmatpush1.bf16.msra.mxu0 0
      %1452 = vmatprep.mubr.bf16.mxu0 0
      %1453 = vmatmul.mubr.bf16.gmra.mrb[0].mxu0 %v1370
      %v1454 = vpop.f32.mrb[0].mxu0
      %v1455 = vadd.f32 0.0, %v1454
      %v1456 = vpop.f32.mrb[0].mxu0
      %v1457 = vpop.f32.mrb[0].mxu0
      %v1458 = vadd.f32 0.0, %v1457
      %v1459 = vpop.f32.mrb[0].mxu0
      %1460 = vmatprep.mubr.bf16.mxu0 0
      %1461 = vmatmul.mubr.bf16.gmra.mrb[0].mxu0 %v1373
      %v1462 = vpop.f32.mrb[0].mxu0
      %v1463 = vadd.f32 0.0, %v1462
      %v1464 = vpop.f32.mrb[0].mxu0
      %v1465 = vpop.f32.mrb[0].mxu0
      %v1466 = vadd.f32 0.0, %v1465
      %v1467 = vpop.f32.mrb[0].mxu0
      %1468 = vmatprep.mubr.bf16.mxu0 0
      %1469 = vmatmul.mubr.bf16.gmra.mrb[0].mxu0 %v1376
      %v1470 = vpop.f32.mrb[0].mxu0
      %v1471 = vadd.f32 0.0, %v1470
      %v1472 = vpop.f32.mrb[0].mxu0
      %v1473 = vpop.f32.mrb[0].mxu0
      %v1474 = vadd.f32 0.0, %v1473
      %v1475 = vpop.f32.mrb[0].mxu0
      %1476 = vmatprep.mubr.bf16.mxu0 0
      %1477 = vmatmul.mubr.bf16.gmra.mrb[0].mxu0 %v1379
      %v1478 = vpop.f32.mrb[0].mxu0
      %v1479 = vadd.f32 0.0, %v1478
      %v1480 = vpop.f32.mrb[0].mxu0
      %v1481 = vpop.f32.mrb[0].mxu0
      %v1482 = vadd.f32 0.0, %v1481
      %v1483 = vpop.f32.mrb[0].mxu0
      %1484 = vmatprep.mubr.bf16.mxu0 0
      %1485 = vmatmul.mubr.bf16.gmra.mrb[0].mxu0 %v1382
      %v1486 = vpop.f32.mrb[0].mxu0
      %v1487 = vadd.f32 0.0, %v1486
      %v1488 = vpop.f32.mrb[0].mxu0
      %v1489 = vpop.f32.mrb[0].mxu0
      %v1490 = vadd.f32 0.0, %v1489
      %v1491 = vpop.f32.mrb[0].mxu0
      %1492 = vmatprep.mubr.bf16.mxu0 0
      %1493 = vmatmul.mubr.bf16.gmra.mrb[0].mxu0 %v1385
      %v1494 = vpop.f32.mrb[0].mxu0
      %v1495 = vadd.f32 0.0, %v1494
      %v1496 = vpop.f32.mrb[0].mxu0
      %v1497 = vpop.f32.mrb[0].mxu0
      %v1498 = vadd.f32 0.0, %v1497
      %v1499 = vpop.f32.mrb[0].mxu0
      %1500 = vmatprep.mubr.bf16.mxu0 0
      %1501 = vmatmul.mubr.bf16.gmra.mrb[0].mxu0 %v1388
      %v1502 = vpop.f32.mrb[0].mxu0
      %v1503 = vadd.f32 0.0, %v1502
      %v1504 = vpop.f32.mrb[0].mxu0
      %v1505 = vpop.f32.mrb[0].mxu0
      %v1506 = vadd.f32 0.0, %v1505
      %v1507 = vpop.f32.mrb[0].mxu0
      %1508 = vmatprep.mubr.bf16.mxu0 0
      %1509 = vmatmul.mubr.bf16.gmra.mrb[0].mxu0 %v1391
      %v1510 = vpop.f32.mrb[0].mxu0
      %v1511 = vadd.f32 0.0, %v1510
      %v1512 = vpop.f32.mrb[0].mxu0
      %v1513 = vpop.f32.mrb[0].mxu0
      %v1514 = vadd.f32 0.0, %v1513
      %v1515 = vpop.f32.mrb[0].mxu0
      %1516 = vmatprep.mubr.bf16.mxu0 0
      %1517 = vmatmul.mubr.bf16.gmra.mrb[0].mxu0 %v1394
      %v1518 = vpop.f32.mrb[0].mxu0
      %v1519 = vadd.f32 0.0, %v1518
      %v1520 = vpop.f32.mrb[0].mxu0
      %v1521 = vpop.f32.mrb[0].mxu0
      %v1522 = vadd.f32 0.0, %v1521
      %v1523 = vpop.f32.mrb[0].mxu0
      %1524 = vmatprep.mubr.bf16.mxu0 0
      %1525 = vmatmul.mubr.bf16.gmra.mrb[0].mxu0 %v1397
      %v1526 = vpop.f32.mrb[0].mxu0
      %v1527 = vadd.f32 0.0, %v1526
      %v1528 = vpop.f32.mrb[0].mxu0
      %v1529 = vpop.f32.mrb[0].mxu0
      %v1530 = vadd.f32 0.0, %v1529
      %v1531 = vpop.f32.mrb[0].mxu0
      %1532 = vmatprep.mubr.bf16.mxu0 0
      %1533 = vmatmul.mubr.bf16.gmra.mrb[0].mxu0 %v1400
      %v1534 = vpop.f32.mrb[0].mxu0
      %v1535 = vadd.f32 0.0, %v1534
      %v1536 = vpop.f32.mrb[0].mxu0
      %v1537 = vpop.f32.mrb[0].mxu0
      %v1538 = vadd.f32 0.0, %v1537
      %v1539 = vpop.f32.mrb[0].mxu0
      %1540 = vmatprep.mubr.bf16.mxu0 0
      %1541 = vmatmul.mubr.bf16.gmra.mrb[0].mxu0 %v1403
      %v1542 = vpop.f32.mrb[0].mxu0
      %v1543 = vadd.f32 0.0, %v1542
      %v1544 = vpop.f32.mrb[0].mxu0
      %v1545 = vpop.f32.mrb[0].mxu0
      %v1546 = vadd.f32 0.0, %v1545
      %v1547 = vpop.f32.mrb[0].mxu0
      %1548 = vmatprep.mubr.bf16.mxu0 0
      %1549 = vmatmul.mubr.bf16.gmra.mrb[0].mxu0 %v1406
      %v1550 = vpop.f32.mrb[0].mxu0
      %v1551 = vadd.f32 0.0, %v1550
      %v1552 = vpop.f32.mrb[0].mxu0
      %v1553 = vpop.f32.mrb[0].mxu0
      %v1554 = vadd.f32 0.0, %v1553
      %v1555 = vpop.f32.mrb[0].mxu0
      %1556 = vmatprep.mubr.bf16.mxu0 0
      %1557 = vmatmul.mubr.bf16.gmra.mrb[0].mxu0 %v1409
      %v1558 = vpop.f32.mrb[0].mxu0
      %v1559 = vadd.f32 0.0, %v1558
      %v1560 = vpop.f32.mrb[0].mxu0
      %v1561 = vpop.f32.mrb[0].mxu0
      %v1562 = vadd.f32 0.0, %v1561
      %v1563 = vpop.f32.mrb[0].mxu0
      %1564 = vmatprep.mubr.bf16.mxu0 0
      %1565 = vmatmul.mubr.bf16.gmra.mrb[0].mxu0 %v1412
      %v1566 = vpop.f32.mrb[0].mxu0
      %v1567 = vadd.f32 0.0, %v1566
      %v1568 = vpop.f32.mrb[0].mxu0
      %v1569 = vpop.f32.mrb[0].mxu0
      %v1570 = vadd.f32 0.0, %v1569
      %v1571 = vpop.f32.mrb[0].mxu0
      %1572 = vmatprep.mubr.bf16.mxu0 0
      %1573 = vmatmul.mubr.bf16.gmra.mrb[0].mxu0 %v1415
      %v1574 = vpop.f32.mrb[0].mxu0
      %v1575 = vadd.f32 0.0, %v1574
      %v1576 = vpop.f32.mrb[0].mxu0
      %v1577 = vpop.f32.mrb[0].mxu0
      %v1578 = vadd.f32 0.0, %v1577
      %v1579 = vpop.f32.mrb[0].mxu0
      %1580 = vdwg.mxu0
      %v1581 = vadd.f32 %v1287, %v1455
      %v1582 = vadd.f32 %v1288, %v1458
      %v1583 = vadd.f32 %v1289, %v1463
      %v1584 = vadd.f32 %v1290, %v1466
      %v1585 = vadd.f32 %v1291, %v1471
      %v1586 = vadd.f32 %v1292, %v1474
      %v1587 = vadd.f32 %v1293, %v1479
      %v1588 = vadd.f32 %v1294, %v1482
      %v1589 = vadd.f32 %v1295, %v1487
      %v1590 = vadd.f32 %v1296, %v1490
      %v1591 = vadd.f32 %v1297, %v1495
      %v1592 = vadd.f32 %v1298, %v1498
      %v1593 = vadd.f32 %v1299, %v1503
      %v1594 = vadd.f32 %v1300, %v1506
      %v1595 = vadd.f32 %v1301, %v1511
      %v1596 = vadd.f32 %v1302, %v1514
      %v1597 = vadd.f32 %v1303, %v1519
      %v1598 = vadd.f32 %v1304, %v1522
      %v1599 = vadd.f32 %v1305, %v1527
      %v1600 = vadd.f32 %v1306, %v1530
      %v1601 = vadd.f32 %v1307, %v1535
      %v1602 = vadd.f32 %v1308, %v1538
      %v1603 = vadd.f32 %v1309, %v1543
      %v1604 = vadd.f32 %v1310, %v1546
      %v1605 = vadd.f32 %v1311, %v1551
      %v1606 = vadd.f32 %v1312, %v1554
      %v1607 = vadd.f32 %v1313, %v1559
      %v1608 = vadd.f32 %v1314, %v1562
      %v1609 = vadd.f32 %v1315, %v1567
      %v1610 = vadd.f32 %v1316, %v1570
      %v1611 = vadd.f32 %v1317, %v1575
      %v1612 = vadd.f32 %v1318, %v1578
      %v1613 = vld [vmem:[%s468 + $0x1] sm:$0xff]
      %v1614 = vld [vmem:[%s468 + $0x9] sm:$0xff]
      %v1615 = vld [vmem:[%s468 + $0x19] sm:$0xff]
      %v1616 = vld [vmem:[%s468 + $0x21] sm:$0xff]
      %v1617 = vld [vmem:[%s468 + $0x31] sm:$0xff]
      %v1618 = vld [vmem:[%s468 + $0x39] sm:$0xff]
      %v1619 = vld [vmem:[%s468 + $0x49] sm:$0xff]
      %v1620 = vld [vmem:[%s468 + $0x51] sm:$0xff]
      %v1621 = vld [vmem:[%s468 + $0x61] sm:$0xff]
      %v1622 = vld [vmem:[%s468 + $0x69] sm:$0xff]
      %v1623 = vld [vmem:[%s468 + $0x79] sm:$0xff]
      %v1624 = vld [vmem:[%s468 + $0x81] sm:$0xff]
      %v1625 = vld [vmem:[%s468 + $0x91] sm:$0xff]
      %v1626 = vld [vmem:[%s468 + $0x99] sm:$0xff]
      %v1627 = vld [vmem:[%s468 + $0xa9] sm:$0xff]
      %v1628 = vld [vmem:[%s468 + $0xb1] sm:$0xff]
      %v1629 = vld [vmem:[%s468 + $0xc1] sm:$0xff]
      %v1630 = vld [vmem:[%s468 + $0xc9] sm:$0xff]
      %v1631 = vld [vmem:[%s468 + $0xd9] sm:$0xff]
      %v1632 = vld [vmem:[%s468 + $0xe1] sm:$0xff]
      %v1633 = vld [vmem:[%s468 + $0xf1] sm:$0xff]
      %v1634 = vld [vmem:[%s468 + $0xf9] sm:$0xff]
      %v1635 = vld [vmem:[%s468 + $0x109] sm:$0xff]
      %v1636 = vld [vmem:[%s468 + $0x111] sm:$0xff]
      %v1637 = vld [vmem:[%s468 + $0x121] sm:$0xff]
      %v1638 = vld [vmem:[%s468 + $0x129] sm:$0xff]
      %v1639 = vld [vmem:[%s468 + $0x139] sm:$0xff]
      %v1640 = vld [vmem:[%s468 + $0x141] sm:$0xff]
      %v1641 = vld [vmem:[%s468 + $0x151] sm:$0xff]
      %v1642 = vld [vmem:[%s468 + $0x159] sm:$0xff]
      %v1643 = vld [vmem:[%s468 + $0x169] sm:$0xff]
      %v1644 = vld [vmem:[%s468 + $0x171] sm:$0xff]
      %v1645 = vpack.c.bf16 %v1614, %v1613
      %v1646 = vpack.c.bf16 %v1616, %v1615
      %v1647 = vpack.c.bf16 %v1618, %v1617
      %v1648 = vpack.c.bf16 %v1620, %v1619
      %v1649 = vpack.c.bf16 %v1622, %v1621
      %v1650 = vpack.c.bf16 %v1624, %v1623
      %v1651 = vpack.c.bf16 %v1626, %v1625
      %v1652 = vpack.c.bf16 %v1628, %v1627
      %v1653 = vpack.c.bf16 %v1630, %v1629
      %v1654 = vpack.c.bf16 %v1632, %v1631
      %v1655 = vpack.c.bf16 %v1634, %v1633
      %v1656 = vpack.c.bf16 %v1636, %v1635
      %v1657 = vpack.c.bf16 %v1638, %v1637
      %v1658 = vpack.c.bf16 %v1640, %v1639
      %v1659 = vpack.c.bf16 %v1642, %v1641
      %v1660 = vpack.c.bf16 %v1644, %v1643
      %s1661 = scalar_lea.vmem %s3, 8
      %v1662 = vld [vmem:[%s1661] sm:$0x3]
      %v1664 = vsel %vm412, %v1645, 0
      %v1667 = vsel %vm412, %v1646, 0
      %v1670 = vsel %vm412, %v1647, 0
      %v1673 = vsel %vm412, %v1648, 0
      %v1676 = vsel %vm412, %v1649, 0
      %v1679 = vsel %vm412, %v1650, 0
      %v1682 = vsel %vm412, %v1651, 0
      %v1685 = vsel %vm412, %v1652, 0
      %v1688 = vsel %vm412, %v1653, 0
      %v1691 = vsel %vm412, %v1654, 0
      %v1694 = vsel %vm412, %v1655, 0
      %v1697 = vsel %vm412, %v1656, 0
      %v1700 = vsel %vm412, %v1657, 0
      %v1703 = vsel %vm412, %v1658, 0
      %v1706 = vsel %vm412, %v1659, 0
      %v1709 = vsel %vm412, %v1660, 0
      %v1712 = vsel %vm648, %v1662, 0
      %1714 = vmatprep.subr.bf16.mxu0 0
      %1715 = vmatpush1.bf16.msra.mxu0 %v1712
      %1716 = vmatprep.subr.bf16.mxu0 0
      %1717 = vmatpush1.bf16.msra.mxu0 0
      %1718 = vmatprep.subr.bf16.mxu0 0
      %1719 = vmatpush1.bf16.msra.mxu0 0
      %1720 = vmatprep.subr.bf16.mxu0 0
      %1721 = vmatpush1.bf16.msra.mxu0 0
      %1722 = vmatprep.subr.bf16.mxu0 0
      %1723 = vmatpush1.bf16.msra.mxu0 0
      %1724 = vmatprep.subr.bf16.mxu0 0
      %1725 = vmatpush1.bf16.msra.mxu0 0
      %1726 = vmatprep.subr.bf16.mxu0 0
      %1727 = vmatpush1.bf16.msra.mxu0 0
      %1728 = vmatprep.subr.bf16.mxu0 0
      %1729 = vmatpush1.bf16.msra.mxu0 0
      %1730 = vmatprep.subr.bf16.mxu0 0
      %1731 = vmatpush1.bf16.msra.mxu0 0
      %1732 = vmatprep.subr.bf16.mxu0 0
      %1733 = vmatpush1.bf16.msra.mxu0 0
      %1734 = vmatprep.subr.bf16.mxu0 0
      %1735 = vmatpush1.bf16.msra.mxu0 0
      %1736 = vmatprep.subr.bf16.mxu0 0
      %1737 = vmatpush1.bf16.msra.mxu0 0
      %1738 = vmatprep.subr.bf16.mxu0 0
      %1739 = vmatpush1.bf16.msra.mxu0 0
      %1740 = vmatprep.subr.bf16.mxu0 0
      %1741 = vmatpush1.bf16.msra.mxu0 0
      %1742 = vmatprep.subr.bf16.mxu0 0
      %1743 = vmatpush1.bf16.msra.mxu0 0
      %1744 = vmatprep.subr.bf16.mxu0 0
      %1745 = vmatpush1.bf16.msra.mxu0 0
      %1746 = vmatprep.mubr.bf16.mxu0 0
      %1747 = vmatmul.mubr.bf16.gmra.mrb[0].mxu0 %v1664
      %v1748 = vpop.f32.mrb[0].mxu0
      %v1749 = vadd.f32 0.0, %v1748
      %v1750 = vpop.f32.mrb[0].mxu0
      %v1751 = vpop.f32.mrb[0].mxu0
      %v1752 = vadd.f32 0.0, %v1751
      %v1753 = vpop.f32.mrb[0].mxu0
      %1754 = vmatprep.mubr.bf16.mxu0 0
      %1755 = vmatmul.mubr.bf16.gmra.mrb[0].mxu0 %v1667
      %v1756 = vpop.f32.mrb[0].mxu0
      %v1757 = vadd.f32 0.0, %v1756
      %v1758 = vpop.f32.mrb[0].mxu0
      %v1759 = vpop.f32.mrb[0].mxu0
      %v1760 = vadd.f32 0.0, %v1759
      %v1761 = vpop.f32.mrb[0].mxu0
      %1762 = vmatprep.mubr.bf16.mxu0 0
      %1763 = vmatmul.mubr.bf16.gmra.mrb[0].mxu0 %v1670
      %v1764 = vpop.f32.mrb[0].mxu0
      %v1765 = vadd.f32 0.0, %v1764
      %v1766 = vpop.f32.mrb[0].mxu0
      %v1767 = vpop.f32.mrb[0].mxu0
      %v1768 = vadd.f32 0.0, %v1767
      %v1769 = vpop.f32.mrb[0].mxu0
      %1770 = vmatprep.mubr.bf16.mxu0 0
      %1771 = vmatmul.mubr.bf16.gmra.mrb[0].mxu0 %v1673
      %v1772 = vpop.f32.mrb[0].mxu0
      %v1773 = vadd.f32 0.0, %v1772
      %v1774 = vpop.f32.mrb[0].mxu0
      %v1775 = vpop.f32.mrb[0].mxu0
      %v1776 = vadd.f32 0.0, %v1775
      %v1777 = vpop.f32.mrb[0].mxu0
      %1778 = vmatprep.mubr.bf16.mxu0 0
      %1779 = vmatmul.mubr.bf16.gmra.mrb[0].mxu0 %v1676
      %v1780 = vpop.f32.mrb[0].mxu0
      %v1781 = vadd.f32 0.0, %v1780
      %v1782 = vpop.f32.mrb[0].mxu0
      %v1783 = vpop.f32.mrb[0].mxu0
      %v1784 = vadd.f32 0.0, %v1783
      %v1785 = vpop.f32.mrb[0].mxu0
      %1786 = vmatprep.mubr.bf16.mxu0 0
      %1787 = vmatmul.mubr.bf16.gmra.mrb[0].mxu0 %v1679
      %v1788 = vpop.f32.mrb[0].mxu0
      %v1789 = vadd.f32 0.0, %v1788
      %v1790 = vpop.f32.mrb[0].mxu0
      %v1791 = vpop.f32.mrb[0].mxu0
      %v1792 = vadd.f32 0.0, %v1791
      %v1793 = vpop.f32.mrb[0].mxu0
      %1794 = vmatprep.mubr.bf16.mxu0 0
      %1795 = vmatmul.mubr.bf16.gmra.mrb[0].mxu0 %v1682
      %v1796 = vpop.f32.mrb[0].mxu0
      %v1797 = vadd.f32 0.0, %v1796
      %v1798 = vpop.f32.mrb[0].mxu0
      %v1799 = vpop.f32.mrb[0].mxu0
      %v1800 = vadd.f32 0.0, %v1799
      %v1801 = vpop.f32.mrb[0].mxu0
      %1802 = vmatprep.mubr.bf16.mxu0 0
      %1803 = vmatmul.mubr.bf16.gmra.mrb[0].mxu0 %v1685
      %v1804 = vpop.f32.mrb[0].mxu0
      %v1805 = vadd.f32 0.0, %v1804
      %v1806 = vpop.f32.mrb[0].mxu0
      %v1807 = vpop.f32.mrb[0].mxu0
      %v1808 = vadd.f32 0.0, %v1807
      %v1809 = vpop.f32.mrb[0].mxu0
      %1810 = vmatprep.mubr.bf16.mxu0 0
      %1811 = vmatmul.mubr.bf16.gmra.mrb[0].mxu0 %v1688
      %v1812 = vpop.f32.mrb[0].mxu0
      %v1813 = vadd.f32 0.0, %v1812
      %v1814 = vpop.f32.mrb[0].mxu0
      %v1815 = vpop.f32.mrb[0].mxu0
      %v1816 = vadd.f32 0.0, %v1815
      %v1817 = vpop.f32.mrb[0].mxu0
      %1818 = vmatprep.mubr.bf16.mxu0 0
      %1819 = vmatmul.mubr.bf16.gmra.mrb[0].mxu0 %v1691
      %v1820 = vpop.f32.mrb[0].mxu0
      %v1821 = vadd.f32 0.0, %v1820
      %v1822 = vpop.f32.mrb[0].mxu0
      %v1823 = vpop.f32.mrb[0].mxu0
      %v1824 = vadd.f32 0.0, %v1823
      %v1825 = vpop.f32.mrb[0].mxu0
      %1826 = vmatprep.mubr.bf16.mxu0 0
      %1827 = vmatmul.mubr.bf16.gmra.mrb[0].mxu0 %v1694
      %v1828 = vpop.f32.mrb[0].mxu0
      %v1829 = vadd.f32 0.0, %v1828
      %v1830 = vpop.f32.mrb[0].mxu0
      %v1831 = vpop.f32.mrb[0].mxu0
      %v1832 = vadd.f32 0.0, %v1831
      %v1833 = vpop.f32.mrb[0].mxu0
      %1834 = vmatprep.mubr.bf16.mxu0 0
      %1835 = vmatmul.mubr.bf16.gmra.mrb[0].mxu0 %v1697
      %v1836 = vpop.f32.mrb[0].mxu0
      %v1837 = vadd.f32 0.0, %v1836
      %v1838 = vpop.f32.mrb[0].mxu0
      %v1839 = vpop.f32.mrb[0].mxu0
      %v1840 = vadd.f32 0.0, %v1839
      %v1841 = vpop.f32.mrb[0].mxu0
      %1842 = vmatprep.mubr.bf16.mxu0 0
      %1843 = vmatmul.mubr.bf16.gmra.mrb[0].mxu0 %v1700
      %v1844 = vpop.f32.mrb[0].mxu0
      %v1845 = vadd.f32 0.0, %v1844
      %v1846 = vpop.f32.mrb[0].mxu0
      %v1847 = vpop.f32.mrb[0].mxu0
      %v1848 = vadd.f32 0.0, %v1847
      %v1849 = vpop.f32.mrb[0].mxu0
      %1850 = vmatprep.mubr.bf16.mxu0 0
      %1851 = vmatmul.mubr.bf16.gmra.mrb[0].mxu0 %v1703
      %v1852 = vpop.f32.mrb[0].mxu0
      %v1853 = vadd.f32 0.0, %v1852
      %v1854 = vpop.f32.mrb[0].mxu0
      %v1855 = vpop.f32.mrb[0].mxu0
      %v1856 = vadd.f32 0.0, %v1855
      %v1857 = vpop.f32.mrb[0].mxu0
      %1858 = vmatprep.mubr.bf16.mxu0 0
      %1859 = vmatmul.mubr.bf16.gmra.mrb[0].mxu0 %v1706
      %v1860 = vpop.f32.mrb[0].mxu0
      %v1861 = vadd.f32 0.0, %v1860
      %v1862 = vpop.f32.mrb[0].mxu0
      %v1863 = vpop.f32.mrb[0].mxu0
      %v1864 = vadd.f32 0.0, %v1863
      %v1865 = vpop.f32.mrb[0].mxu0
      %1866 = vmatprep.mubr.bf16.mxu0 0
      %1867 = vmatmul.mubr.bf16.gmra.mrb[0].mxu0 %v1709
      %v1868 = vpop.f32.mrb[0].mxu0
      %v1869 = vadd.f32 0.0, %v1868
      %v1870 = vpop.f32.mrb[0].mxu0
      %v1871 = vpop.f32.mrb[0].mxu0
      %v1872 = vadd.f32 0.0, %v1871
      %v1873 = vpop.f32.mrb[0].mxu0
      %1874 = vdwg.mxu0
      %v1875 = vadd.f32 %v1581, %v1749
      %v1876 = vadd.f32 %v1582, %v1752
      %v1877 = vadd.f32 %v1583, %v1757
      %v1878 = vadd.f32 %v1584, %v1760
      %v1879 = vadd.f32 %v1585, %v1765
      %v1880 = vadd.f32 %v1586, %v1768
      %v1881 = vadd.f32 %v1587, %v1773
      %v1882 = vadd.f32 %v1588, %v1776
      %v1883 = vadd.f32 %v1589, %v1781
      %v1884 = vadd.f32 %v1590, %v1784
      %v1885 = vadd.f32 %v1591, %v1789
      %v1886 = vadd.f32 %v1592, %v1792
      %v1887 = vadd.f32 %v1593, %v1797
      %v1888 = vadd.f32 %v1594, %v1800
      %v1889 = vadd.f32 %v1595, %v1805
      %v1890 = vadd.f32 %v1596, %v1808
      %v1891 = vadd.f32 %v1597, %v1813
      %v1892 = vadd.f32 %v1598, %v1816
      %v1893 = vadd.f32 %v1599, %v1821
      %v1894 = vadd.f32 %v1600, %v1824
      %v1895 = vadd.f32 %v1601, %v1829
      %v1896 = vadd.f32 %v1602, %v1832
      %v1897 = vadd.f32 %v1603, %v1837
      %v1898 = vadd.f32 %v1604, %v1840
      %v1899 = vadd.f32 %v1605, %v1845
      %v1900 = vadd.f32 %v1606, %v1848
      %v1901 = vadd.f32 %v1607, %v1853
      %v1902 = vadd.f32 %v1608, %v1856
      %v1903 = vadd.f32 %v1609, %v1861
      %v1904 = vadd.f32 %v1610, %v1864
      %v1905 = vadd.f32 %v1611, %v1869
      %v1906 = vadd.f32 %v1612, %v1872
      %v1907 = vld [vmem:[%s468 + $0x2] sm:$0xff]
      %v1908 = vld [vmem:[%s468 + $0xa] sm:$0xff]
      %v1909 = vld [vmem:[%s468 + $0x1a] sm:$0xff]
      %v1910 = vld [vmem:[%s468 + $0x22] sm:$0xff]
      %v1911 = vld [vmem:[%s468 + $0x32] sm:$0xff]
      %v1912 = vld [vmem:[%s468 + $0x3a] sm:$0xff]
      %v1913 = vld [vmem:[%s468 + $0x4a] sm:$0xff]
      %v1914 = vld [vmem:[%s468 + $0x52] sm:$0xff]
      %v1915 = vld [vmem:[%s468 + $0x62] sm:$0xff]
      %v1916 = vld [vmem:[%s468 + $0x6a] sm:$0xff]
      %v1917 = vld [vmem:[%s468 + $0x7a] sm:$0xff]
      %v1918 = vld [vmem:[%s468 + $0x82] sm:$0xff]
      %v1919 = vld [vmem:[%s468 + $0x92] sm:$0xff]
      %v1920 = vld [vmem:[%s468 + $0x9a] sm:$0xff]
      %v1921 = vld [vmem:[%s468 + $0xaa] sm:$0xff]
      %v1922 = vld [vmem:[%s468 + $0xb2] sm:$0xff]
      %v1923 = vld [vmem:[%s468 + $0xc2] sm:$0xff]
      %v1924 = vld [vmem:[%s468 + $0xca] sm:$0xff]
      %v1925 = vld [vmem:[%s468 + $0xda] sm:$0xff]
      %v1926 = vld [vmem:[%s468 + $0xe2] sm:$0xff]
      %v1927 = vld [vmem:[%s468 + $0xf2] sm:$0xff]
      %v1928 = vld [vmem:[%s468 + $0xfa] sm:$0xff]
      %v1929 = vld [vmem:[%s468 + $0x10a] sm:$0xff]
      %v1930 = vld [vmem:[%s468 + $0x112] sm:$0xff]
      %v1931 = vld [vmem:[%s468 + $0x122] sm:$0xff]
      %v1932 = vld [vmem:[%s468 + $0x12a] sm:$0xff]
      %v1933 = vld [vmem:[%s468 + $0x13a] sm:$0xff]
      %v1934 = vld [vmem:[%s468 + $0x142] sm:$0xff]
      %v1935 = vld [vmem:[%s468 + $0x152] sm:$0xff]
      %v1936 = vld [vmem:[%s468 + $0x15a] sm:$0xff]
      %v1937 = vld [vmem:[%s468 + $0x16a] sm:$0xff]
      %v1938 = vld [vmem:[%s468 + $0x172] sm:$0xff]
      %v1939 = vpack.c.bf16 %v1908, %v1907
      %v1940 = vpack.c.bf16 %v1910, %v1909
      %v1941 = vpack.c.bf16 %v1912, %v1911
      %v1942 = vpack.c.bf16 %v1914, %v1913
      %v1943 = vpack.c.bf16 %v1916, %v1915
      %v1944 = vpack.c.bf16 %v1918, %v1917
      %v1945 = vpack.c.bf16 %v1920, %v1919
      %v1946 = vpack.c.bf16 %v1922, %v1921
      %v1947 = vpack.c.bf16 %v1924, %v1923
      %v1948 = vpack.c.bf16 %v1926, %v1925
      %v1949 = vpack.c.bf16 %v1928, %v1927
      %v1950 = vpack.c.bf16 %v1930, %v1929
      %v1951 = vpack.c.bf16 %v1932, %v1931
      %v1952 = vpack.c.bf16 %v1934, %v1933
      %v1953 = vpack.c.bf16 %v1936, %v1935
      %v1954 = vpack.c.bf16 %v1938, %v1937
      %s1955 = scalar_lea.vmem %s3, 10
      %v1956 = vld [vmem:[%s1955] sm:$0x3]
      %v1958 = vsel %vm412, %v1939, 0
      %v1961 = vsel %vm412, %v1940, 0
      %v1964 = vsel %vm412, %v1941, 0
      %v1967 = vsel %vm412, %v1942, 0
      %v1970 = vsel %vm412, %v1943, 0
      %v1973 = vsel %vm412, %v1944, 0
      %v1976 = vsel %vm412, %v1945, 0
      %v1979 = vsel %vm412, %v1946, 0
      %v1982 = vsel %vm412, %v1947, 0
      %v1985 = vsel %vm412, %v1948, 0
      %v1988 = vsel %vm412, %v1949, 0
      %v1991 = vsel %vm412, %v1950, 0
      %v1994 = vsel %vm412, %v1951, 0
      %v1997 = vsel %vm412, %v1952, 0
      %v2000 = vsel %vm412, %v1953, 0
      %v2003 = vsel %vm412, %v1954, 0
      %v2006 = vsel %vm648, %v1956, 0
      %2008 = vmatprep.subr.bf16.mxu0 0
      %2009 = vmatpush1.bf16.msra.mxu0 %v2006
      %2010 = vmatprep.subr.bf16.mxu0 0
      %2011 = vmatpush1.bf16.msra.mxu0 0
      %2012 = vmatprep.subr.bf16.mxu0 0
      %2013 = vmatpush1.bf16.msra.mxu0 0
      %2014 = vmatprep.subr.bf16.mxu0 0
      %2015 = vmatpush1.bf16.msra.mxu0 0
      %2016 = vmatprep.subr.bf16.mxu0 0
      %2017 = vmatpush1.bf16.msra.mxu0 0
      %2018 = vmatprep.subr.bf16.mxu0 0
      %2019 = vmatpush1.bf16.msra.mxu0 0
      %2020 = vmatprep.subr.bf16.mxu0 0
      %2021 = vmatpush1.bf16.msra.mxu0 0
      %2022 = vmatprep.subr.bf16.mxu0 0
      %2023 = vmatpush1.bf16.msra.mxu0 0
      %2024 = vmatprep.subr.bf16.mxu0 0
      %2025 = vmatpush1.bf16.msra.mxu0 0
      %2026 = vmatprep.subr.bf16.mxu0 0
      %2027 = vmatpush1.bf16.msra.mxu0 0
      %2028 = vmatprep.subr.bf16.mxu0 0
      %2029 = vmatpush1.bf16.msra.mxu0 0
      %2030 = vmatprep.subr.bf16.mxu0 0
      %2031 = vmatpush1.bf16.msra.mxu0 0
      %2032 = vmatprep.subr.bf16.mxu0 0
      %2033 = vmatpush1.bf16.msra.mxu0 0
      %2034 = vmatprep.subr.bf16.mxu0 0
      %2035 = vmatpush1.bf16.msra.mxu0 0
      %2036 = vmatprep.subr.bf16.mxu0 0
      %2037 = vmatpush1.bf16.msra.mxu0 0
      %2038 = vmatprep.subr.bf16.mxu0 0
      %2039 = vmatpush1.bf16.msra.mxu0 0
      %2040 = vmatprep.mubr.bf16.mxu0 0
      %2041 = vmatmul.mubr.bf16.gmra.mrb[0].mxu0 %v1958
      %v2042 = vpop.f32.mrb[0].mxu0
      %v2043 = vadd.f32 0.0, %v2042
      %v2044 = vpop.f32.mrb[0].mxu0
      %v2045 = vpop.f32.mrb[0].mxu0
      %v2046 = vadd.f32 0.0, %v2045
      %v2047 = vpop.f32.mrb[0].mxu0
      %2048 = vmatprep.mubr.bf16.mxu0 0
      %2049 = vmatmul.mubr.bf16.gmra.mrb[0].mxu0 %v1961
      %v2050 = vpop.f32.mrb[0].mxu0
      %v2051 = vadd.f32 0.0, %v2050
      %v2052 = vpop.f32.mrb[0].mxu0
      %v2053 = vpop.f32.mrb[0].mxu0
      %v2054 = vadd.f32 0.0, %v2053
      %v2055 = vpop.f32.mrb[0].mxu0
      %2056 = vmatprep.mubr.bf16.mxu0 0
      %2057 = vmatmul.mubr.bf16.gmra.mrb[0].mxu0 %v1964
      %v2058 = vpop.f32.mrb[0].mxu0
      %v2059 = vadd.f32 0.0, %v2058
      %v2060 = vpop.f32.mrb[0].mxu0
      %v2061 = vpop.f32.mrb[0].mxu0
      %v2062 = vadd.f32 0.0, %v2061
      %v2063 = vpop.f32.mrb[0].mxu0
      %2064 = vmatprep.mubr.bf16.mxu0 0
      %2065 = vmatmul.mubr.bf16.gmra.mrb[0].mxu0 %v1967
      %v2066 = vpop.f32.mrb[0].mxu0
      %v2067 = vadd.f32 0.0, %v2066
      %v2068 = vpop.f32.mrb[0].mxu0
      %v2069 = vpop.f32.mrb[0].mxu0
      %v2070 = vadd.f32 0.0, %v2069
      %v2071 = vpop.f32.mrb[0].mxu0
      %2072 = vmatprep.mubr.bf16.mxu0 0
      %2073 = vmatmul.mubr.bf16.gmra.mrb[0].mxu0 %v1970
      %v2074 = vpop.f32.mrb[0].mxu0
      %v2075 = vadd.f32 0.0, %v2074
      %v2076 = vpop.f32.mrb[0].mxu0
      %v2077 = vpop.f32.mrb[0].mxu0
      %v2078 = vadd.f32 0.0, %v2077
      %v2079 = vpop.f32.mrb[0].mxu0
      %2080 = vmatprep.mubr.bf16.mxu0 0
      %2081 = vmatmul.mubr.bf16.gmra.mrb[0].mxu0 %v1973
      %v2082 = vpop.f32.mrb[0].mxu0
      %v2083 = vadd.f32 0.0, %v2082
      %v2084 = vpop.f32.mrb[0].mxu0
      %v2085 = vpop.f32.mrb[0].mxu0
      %v2086 = vadd.f32 0.0, %v2085
      %v2087 = vpop.f32.mrb[0].mxu0
      %2088 = vmatprep.mubr.bf16.mxu0 0
      %2089 = vmatmul.mubr.bf16.gmra.mrb[0].mxu0 %v1976
      %v2090 = vpop.f32.mrb[0].mxu0
      %v2091 = vadd.f32 0.0, %v2090
      %v2092 = vpop.f32.mrb[0].mxu0
      %v2093 = vpop.f32.mrb[0].mxu0
      %v2094 = vadd.f32 0.0, %v2093
      %v2095 = vpop.f32.mrb[0].mxu0
      %2096 = vmatprep.mubr.bf16.mxu0 0
      %2097 = vmatmul.mubr.bf16.gmra.mrb[0].mxu0 %v1979
      %v2098 = vpop.f32.mrb[0].mxu0
      %v2099 = vadd.f32 0.0, %v2098
      %v2100 = vpop.f32.mrb[0].mxu0
      %v2101 = vpop.f32.mrb[0].mxu0
      %v2102 = vadd.f32 0.0, %v2101
      %v2103 = vpop.f32.mrb[0].mxu0
      %2104 = vmatprep.mubr.bf16.mxu0 0
      %2105 = vmatmul.mubr.bf16.gmra.mrb[0].mxu0 %v1982
      %v2106 = vpop.f32.mrb[0].mxu0
      %v2107 = vadd.f32 0.0, %v2106
      %v2108 = vpop.f32.mrb[0].mxu0
      %v2109 = vpop.f32.mrb[0].mxu0
      %v2110 = vadd.f32 0.0, %v2109
      %v2111 = vpop.f32.mrb[0].mxu0
      %2112 = vmatprep.mubr.bf16.mxu0 0
      %2113 = vmatmul.mubr.bf16.gmra.mrb[0].mxu0 %v1985
      %v2114 = vpop.f32.mrb[0].mxu0
      %v2115 = vadd.f32 0.0, %v2114
      %v2116 = vpop.f32.mrb[0].mxu0
      %v2117 = vpop.f32.mrb[0].mxu0
      %v2118 = vadd.f32 0.0, %v2117
      %v2119 = vpop.f32.mrb[0].mxu0
      %2120 = vmatprep.mubr.bf16.mxu0 0
      %2121 = vmatmul.mubr.bf16.gmra.mrb[0].mxu0 %v1988
      %v2122 = vpop.f32.mrb[0].mxu0
      %v2123 = vadd.f32 0.0, %v2122
      %v2124 = vpop.f32.mrb[0].mxu0
      %v2125 = vpop.f32.mrb[0].mxu0
      %v2126 = vadd.f32 0.0, %v2125
      %v2127 = vpop.f32.mrb[0].mxu0
      %2128 = vmatprep.mubr.bf16.mxu0 0
      %2129 = vmatmul.mubr.bf16.gmra.mrb[0].mxu0 %v1991
      %v2130 = vpop.f32.mrb[0].mxu0
      %v2131 = vadd.f32 0.0, %v2130
      %v2132 = vpop.f32.mrb[0].mxu0
      %v2133 = vpop.f32.mrb[0].mxu0
      %v2134 = vadd.f32 0.0, %v2133
      %v2135 = vpop.f32.mrb[0].mxu0
      %2136 = vmatprep.mubr.bf16.mxu0 0
      %2137 = vmatmul.mubr.bf16.gmra.mrb[0].mxu0 %v1994
      %v2138 = vpop.f32.mrb[0].mxu0
      %v2139 = vadd.f32 0.0, %v2138
      %v2140 = vpop.f32.mrb[0].mxu0
      %v2141 = vpop.f32.mrb[0].mxu0
      %v2142 = vadd.f32 0.0, %v2141
      %v2143 = vpop.f32.mrb[0].mxu0
      %2144 = vmatprep.mubr.bf16.mxu0 0
      %2145 = vmatmul.mubr.bf16.gmra.mrb[0].mxu0 %v1997
      %v2146 = vpop.f32.mrb[0].mxu0
      %v2147 = vadd.f32 0.0, %v2146
      %v2148 = vpop.f32.mrb[0].mxu0
      %v2149 = vpop.f32.mrb[0].mxu0
      %v2150 = vadd.f32 0.0, %v2149
      %v2151 = vpop.f32.mrb[0].mxu0
      %2152 = vmatprep.mubr.bf16.mxu0 0
      %2153 = vmatmul.mubr.bf16.gmra.mrb[0].mxu0 %v2000
      %v2154 = vpop.f32.mrb[0].mxu0
      %v2155 = vadd.f32 0.0, %v2154
      %v2156 = vpop.f32.mrb[0].mxu0
      %v2157 = vpop.f32.mrb[0].mxu0
      %v2158 = vadd.f32 0.0, %v2157
      %v2159 = vpop.f32.mrb[0].mxu0
      %2160 = vmatprep.mubr.bf16.mxu0 0
      %2161 = vmatmul.mubr.bf16.gmra.mrb[0].mxu0 %v2003
      %v2162 = vpop.f32.mrb[0].mxu0
      %v2163 = vadd.f32 0.0, %v2162
      %v2164 = vpop.f32.mrb[0].mxu0
      %v2165 = vpop.f32.mrb[0].mxu0
      %v2166 = vadd.f32 0.0, %v2165
      %v2167 = vpop.f32.mrb[0].mxu0
      %2168 = vdwg.mxu0
      %v2169 = vadd.f32 %v1875, %v2043
      %v2170 = vadd.f32 %v1876, %v2046
      %v2171 = vadd.f32 %v1877, %v2051
      %v2172 = vadd.f32 %v1878, %v2054
      %v2173 = vadd.f32 %v1879, %v2059
      %v2174 = vadd.f32 %v1880, %v2062
      %v2175 = vadd.f32 %v1881, %v2067
      %v2176 = vadd.f32 %v1882, %v2070
      %v2177 = vadd.f32 %v1883, %v2075
      %v2178 = vadd.f32 %v1884, %v2078
      %v2179 = vadd.f32 %v1885, %v2083
      %v2180 = vadd.f32 %v1886, %v2086
      %v2181 = vadd.f32 %v1887, %v2091
      %v2182 = vadd.f32 %v1888, %v2094
      %v2183 = vadd.f32 %v1889, %v2099
      %v2184 = vadd.f32 %v1890, %v2102
      %v2185 = vadd.f32 %v1891, %v2107
      %v2186 = vadd.f32 %v1892, %v2110
      %v2187 = vadd.f32 %v1893, %v2115
      %v2188 = vadd.f32 %v1894, %v2118
      %v2189 = vadd.f32 %v1895, %v2123
      %v2190 = vadd.f32 %v1896, %v2126
      %v2191 = vadd.f32 %v1897, %v2131
      %v2192 = vadd.f32 %v1898, %v2134
      %v2193 = vadd.f32 %v1899, %v2139
      %v2194 = vadd.f32 %v1900, %v2142
      %v2195 = vadd.f32 %v1901, %v2147
      %v2196 = vadd.f32 %v1902, %v2150
      %v2197 = vadd.f32 %v1903, %v2155
      %v2198 = vadd.f32 %v1904, %v2158
      %v2199 = vadd.f32 %v1905, %v2163
      %v2200 = vadd.f32 %v1906, %v2166
      %s2201 = scalar_lea.vmem [#allocation2], 48
      %v2202 = vld [vmem:[%s2201] sm:$0xff]
      %v2203 = vld [vmem:[%s2201 + $0x8] sm:$0xff]
      %v2204 = vld [vmem:[%s2201 + $0x18] sm:$0xff]
      %v2205 = vld [vmem:[%s2201 + $0x20] sm:$0xff]
      %v2206 = vld [vmem:[%s2201 + $0x30] sm:$0xff]
      %v2207 = vld [vmem:[%s2201 + $0x38] sm:$0xff]
      %v2208 = vld [vmem:[%s2201 + $0x48] sm:$0xff]
      %v2209 = vld [vmem:[%s2201 + $0x50] sm:$0xff]
      %v2210 = vld [vmem:[%s2201 + $0x60] sm:$0xff]
      %v2211 = vld [vmem:[%s2201 + $0x68] sm:$0xff]
      %v2212 = vld [vmem:[%s2201 + $0x78] sm:$0xff]
      %v2213 = vld [vmem:[%s2201 + $0x80] sm:$0xff]
      %v2214 = vld [vmem:[%s2201 + $0x90] sm:$0xff]
      %v2215 = vld [vmem:[%s2201 + $0x98] sm:$0xff]
      %v2216 = vld [vmem:[%s2201 + $0xa8] sm:$0xff]
      %v2217 = vld [vmem:[%s2201 + $0xb0] sm:$0xff]
      %v2218 = vld [vmem:[%s2201 + $0xc0] sm:$0xff]
      %v2219 = vld [vmem:[%s2201 + $0xc8] sm:$0xff]
      %v2220 = vld [vmem:[%s2201 + $0xd8] sm:$0xff]
      %v2221 = vld [vmem:[%s2201 + $0xe0] sm:$0xff]
      %v2222 = vld [vmem:[%s2201 + $0xf0] sm:$0xff]
      %v2223 = vld [vmem:[%s2201 + $0xf8] sm:$0xff]
      %v2224 = vld [vmem:[%s2201 + $0x108] sm:$0xff]
      %v2225 = vld [vmem:[%s2201 + $0x110] sm:$0xff]
      %v2226 = vld [vmem:[%s2201 + $0x120] sm:$0xff]
      %v2227 = vld [vmem:[%s2201 + $0x128] sm:$0xff]
      %v2228 = vld [vmem:[%s2201 + $0x138] sm:$0xff]
      %v2229 = vld [vmem:[%s2201 + $0x140] sm:$0xff]
      %v2230 = vld [vmem:[%s2201 + $0x150] sm:$0xff]
      %v2231 = vld [vmem:[%s2201 + $0x158] sm:$0xff]
      %v2232 = vld [vmem:[%s2201 + $0x168] sm:$0xff]
      %v2233 = vld [vmem:[%s2201 + $0x170] sm:$0xff]
      %v2234 = vpack.c.bf16 %v2203, %v2202
      %v2235 = vpack.c.bf16 %v2205, %v2204
      %v2236 = vpack.c.bf16 %v2207, %v2206
      %v2237 = vpack.c.bf16 %v2209, %v2208
      %v2238 = vpack.c.bf16 %v2211, %v2210
      %v2239 = vpack.c.bf16 %v2213, %v2212
      %v2240 = vpack.c.bf16 %v2215, %v2214
      %v2241 = vpack.c.bf16 %v2217, %v2216
      %v2242 = vpack.c.bf16 %v2219, %v2218
      %v2243 = vpack.c.bf16 %v2221, %v2220
      %v2244 = vpack.c.bf16 %v2223, %v2222
      %v2245 = vpack.c.bf16 %v2225, %v2224
      %v2246 = vpack.c.bf16 %v2227, %v2226
      %v2247 = vpack.c.bf16 %v2229, %v2228
      %v2248 = vpack.c.bf16 %v2231, %v2230
      %v2249 = vpack.c.bf16 %v2233, %v2232
      %s2250 = scalar_lea.vmem %s3, 12
      %v2251 = vld [vmem:[%s2250] sm:$0x3]
      %v2253 = vsel %vm412, %v2234, 0
      %v2256 = vsel %vm412, %v2235, 0
      %v2259 = vsel %vm412, %v2236, 0
      %v2262 = vsel %vm412, %v2237, 0
      %v2265 = vsel %vm412, %v2238, 0
      %v2268 = vsel %vm412, %v2239, 0
      %v2271 = vsel %vm412, %v2240, 0
      %v2274 = vsel %vm412, %v2241, 0
      %v2277 = vsel %vm412, %v2242, 0
      %v2280 = vsel %vm412, %v2243, 0
      %v2283 = vsel %vm412, %v2244, 0
      %v2286 = vsel %vm412, %v2245, 0
      %v2289 = vsel %vm412, %v2246, 0
      %v2292 = vsel %vm412, %v2247, 0
      %v2295 = vsel %vm412, %v2248, 0
      %v2298 = vsel %vm412, %v2249, 0
      %v2301 = vsel %vm648, %v2251, 0
      %2303 = vmatprep.subr.bf16.mxu0 0
      %2304 = vmatpush1.bf16.msra.mxu0 %v2301
      %2305 = vmatprep.subr.bf16.mxu0 0
      %2306 = vmatpush1.bf16.msra.mxu0 0
      %2307 = vmatprep.subr.bf16.mxu0 0
      %2308 = vmatpush1.bf16.msra.mxu0 0
      %2309 = vmatprep.subr.bf16.mxu0 0
      %2310 = vmatpush1.bf16.msra.mxu0 0
      %2311 = vmatprep.subr.bf16.mxu0 0
      %2312 = vmatpush1.bf16.msra.mxu0 0
      %2313 = vmatprep.subr.bf16.mxu0 0
      %2314 = vmatpush1.bf16.msra.mxu0 0
      %2315 = vmatprep.subr.bf16.mxu0 0
      %2316 = vmatpush1.bf16.msra.mxu0 0
      %2317 = vmatprep.subr.bf16.mxu0 0
      %2318 = vmatpush1.bf16.msra.mxu0 0
      %2319 = vmatprep.subr.bf16.mxu0 0
      %2320 = vmatpush1.bf16.msra.mxu0 0
      %2321 = vmatprep.subr.bf16.mxu0 0
      %2322 = vmatpush1.bf16.msra.mxu0 0
      %2323 = vmatprep.subr.bf16.mxu0 0
      %2324 = vmatpush1.bf16.msra.mxu0 0
      %2325 = vmatprep.subr.bf16.mxu0 0
      %2326 = vmatpush1.bf16.msra.mxu0 0
      %2327 = vmatprep.subr.bf16.mxu0 0
      %2328 = vmatpush1.bf16.msra.mxu0 0
      %2329 = vmatprep.subr.bf16.mxu0 0
      %2330 = vmatpush1.bf16.msra.mxu0 0
      %2331 = vmatprep.subr.bf16.mxu0 0
      %2332 = vmatpush1.bf16.msra.mxu0 0
      %2333 = vmatprep.subr.bf16.mxu0 0
      %2334 = vmatpush1.bf16.msra.mxu0 0
      %2335 = vmatprep.mubr.bf16.mxu0 0
      %2336 = vmatmul.mubr.bf16.gmra.mrb[0].mxu0 %v2253
      %v2337 = vpop.f32.mrb[0].mxu0
      %v2338 = vadd.f32 0.0, %v2337
      %v2339 = vpop.f32.mrb[0].mxu0
      %v2340 = vpop.f32.mrb[0].mxu0
      %v2341 = vadd.f32 0.0, %v2340
      %v2342 = vpop.f32.mrb[0].mxu0
      %2343 = vmatprep.mubr.bf16.mxu0 0
      %2344 = vmatmul.mubr.bf16.gmra.mrb[0].mxu0 %v2256
      %v2345 = vpop.f32.mrb[0].mxu0
      %v2346 = vadd.f32 0.0, %v2345
      %v2347 = vpop.f32.mrb[0].mxu0
      %v2348 = vpop.f32.mrb[0].mxu0
      %v2349 = vadd.f32 0.0, %v2348
      %v2350 = vpop.f32.mrb[0].mxu0
      %2351 = vmatprep.mubr.bf16.mxu0 0
      %2352 = vmatmul.mubr.bf16.gmra.mrb[0].mxu0 %v2259
      %v2353 = vpop.f32.mrb[0].mxu0
      %v2354 = vadd.f32 0.0, %v2353
      %v2355 = vpop.f32.mrb[0].mxu0
      %v2356 = vpop.f32.mrb[0].mxu0
      %v2357 = vadd.f32 0.0, %v2356
      %v2358 = vpop.f32.mrb[0].mxu0
      %2359 = vmatprep.mubr.bf16.mxu0 0
      %2360 = vmatmul.mubr.bf16.gmra.mrb[0].mxu0 %v2262
      %v2361 = vpop.f32.mrb[0].mxu0
      %v2362 = vadd.f32 0.0, %v2361
      %v2363 = vpop.f32.mrb[0].mxu0
      %v2364 = vpop.f32.mrb[0].mxu0
      %v2365 = vadd.f32 0.0, %v2364
      %v2366 = vpop.f32.mrb[0].mxu0
      %2367 = vmatprep.mubr.bf16.mxu0 0
      %2368 = vmatmul.mubr.bf16.gmra.mrb[0].mxu0 %v2265
      %v2369 = vpop.f32.mrb[0].mxu0
      %v2370 = vadd.f32 0.0, %v2369
      %v2371 = vpop.f32.mrb[0].mxu0
      %v2372 = vpop.f32.mrb[0].mxu0
      %v2373 = vadd.f32 0.0, %v2372
      %v2374 = vpop.f32.mrb[0].mxu0
      %2375 = vmatprep.mubr.bf16.mxu0 0
      %2376 = vmatmul.mubr.bf16.gmra.mrb[0].mxu0 %v2268
      %v2377 = vpop.f32.mrb[0].mxu0
      %v2378 = vadd.f32 0.0, %v2377
      %v2379 = vpop.f32.mrb[0].mxu0
      %v2380 = vpop.f32.mrb[0].mxu0
      %v2381 = vadd.f32 0.0, %v2380
      %v2382 = vpop.f32.mrb[0].mxu0
      %2383 = vmatprep.mubr.bf16.mxu0 0
      %2384 = vmatmul.mubr.bf16.gmra.mrb[0].mxu0 %v2271
      %v2385 = vpop.f32.mrb[0].mxu0
      %v2386 = vadd.f32 0.0, %v2385
      %v2387 = vpop.f32.mrb[0].mxu0
      %v2388 = vpop.f32.mrb[0].mxu0
      %v2389 = vadd.f32 0.0, %v2388
      %v2390 = vpop.f32.mrb[0].mxu0
      %2391 = vmatprep.mubr.bf16.mxu0 0
      %2392 = vmatmul.mubr.bf16.gmra.mrb[0].mxu0 %v2274
      %v2393 = vpop.f32.mrb[0].mxu0
      %v2394 = vadd.f32 0.0, %v2393
      %v2395 = vpop.f32.mrb[0].mxu0
      %v2396 = vpop.f32.mrb[0].mxu0
      %v2397 = vadd.f32 0.0, %v2396
      %v2398 = vpop.f32.mrb[0].mxu0
      %2399 = vmatprep.mubr.bf16.mxu0 0
      %2400 = vmatmul.mubr.bf16.gmra.mrb[0].mxu0 %v2277
      %v2401 = vpop.f32.mrb[0].mxu0
      %v2402 = vadd.f32 0.0, %v2401
      %v2403 = vpop.f32.mrb[0].mxu0
      %v2404 = vpop.f32.mrb[0].mxu0
      %v2405 = vadd.f32 0.0, %v2404
      %v2406 = vpop.f32.mrb[0].mxu0
      %2407 = vmatprep.mubr.bf16.mxu0 0
      %2408 = vmatmul.mubr.bf16.gmra.mrb[0].mxu0 %v2280
      %v2409 = vpop.f32.mrb[0].mxu0
      %v2410 = vadd.f32 0.0, %v2409
      %v2411 = vpop.f32.mrb[0].mxu0
      %v2412 = vpop.f32.mrb[0].mxu0
      %v2413 = vadd.f32 0.0, %v2412
      %v2414 = vpop.f32.mrb[0].mxu0
      %2415 = vmatprep.mubr.bf16.mxu0 0
      %2416 = vmatmul.mubr.bf16.gmra.mrb[0].mxu0 %v2283
      %v2417 = vpop.f32.mrb[0].mxu0
      %v2418 = vadd.f32 0.0, %v2417
      %v2419 = vpop.f32.mrb[0].mxu0
      %v2420 = vpop.f32.mrb[0].mxu0
      %v2421 = vadd.f32 0.0, %v2420
      %v2422 = vpop.f32.mrb[0].mxu0
      %2423 = vmatprep.mubr.bf16.mxu0 0
      %2424 = vmatmul.mubr.bf16.gmra.mrb[0].mxu0 %v2286
      %v2425 = vpop.f32.mrb[0].mxu0
      %v2426 = vadd.f32 0.0, %v2425
      %v2427 = vpop.f32.mrb[0].mxu0
      %v2428 = vpop.f32.mrb[0].mxu0
      %v2429 = vadd.f32 0.0, %v2428
      %v2430 = vpop.f32.mrb[0].mxu0
      %2431 = vmatprep.mubr.bf16.mxu0 0
      %2432 = vmatmul.mubr.bf16.gmra.mrb[0].mxu0 %v2289
      %v2433 = vpop.f32.mrb[0].mxu0
      %v2434 = vadd.f32 0.0, %v2433
      %v2435 = vpop.f32.mrb[0].mxu0
      %v2436 = vpop.f32.mrb[0].mxu0
      %v2437 = vadd.f32 0.0, %v2436
      %v2438 = vpop.f32.mrb[0].mxu0
      %2439 = vmatprep.mubr.bf16.mxu0 0
      %2440 = vmatmul.mubr.bf16.gmra.mrb[0].mxu0 %v2292
      %v2441 = vpop.f32.mrb[0].mxu0
      %v2442 = vadd.f32 0.0, %v2441
      %v2443 = vpop.f32.mrb[0].mxu0
      %v2444 = vpop.f32.mrb[0].mxu0
      %v2445 = vadd.f32 0.0, %v2444
      %v2446 = vpop.f32.mrb[0].mxu0
      %2447 = vmatprep.mubr.bf16.mxu0 0
      %2448 = vmatmul.mubr.bf16.gmra.mrb[0].mxu0 %v2295
      %v2449 = vpop.f32.mrb[0].mxu0
      %v2450 = vadd.f32 0.0, %v2449
      %v2451 = vpop.f32.mrb[0].mxu0
      %v2452 = vpop.f32.mrb[0].mxu0
      %v2453 = vadd.f32 0.0, %v2452
      %v2454 = vpop.f32.mrb[0].mxu0
      %2455 = vmatprep.mubr.bf16.mxu0 0
      %2456 = vmatmul.mubr.bf16.gmra.mrb[0].mxu0 %v2298
      %v2457 = vpop.f32.mrb[0].mxu0
      %v2458 = vadd.f32 0.0, %v2457
      %v2459 = vpop.f32.mrb[0].mxu0
      %v2460 = vpop.f32.mrb[0].mxu0
      %v2461 = vadd.f32 0.0, %v2460
      %v2462 = vpop.f32.mrb[0].mxu0
      %2463 = vdwg.mxu0
      %v2464 = vadd.f32 %v2169, %v2338
      %v2465 = vadd.f32 %v2170, %v2341
      %v2466 = vadd.f32 %v2171, %v2346
      %v2467 = vadd.f32 %v2172, %v2349
      %v2468 = vadd.f32 %v2173, %v2354
      %v2469 = vadd.f32 %v2174, %v2357
      %v2470 = vadd.f32 %v2175, %v2362
      %v2471 = vadd.f32 %v2176, %v2365
      %v2472 = vadd.f32 %v2177, %v2370
      %v2473 = vadd.f32 %v2178, %v2373
      %v2474 = vadd.f32 %v2179, %v2378
      %v2475 = vadd.f32 %v2180, %v2381
      %v2476 = vadd.f32 %v2181, %v2386
      %v2477 = vadd.f32 %v2182, %v2389
      %v2478 = vadd.f32 %v2183, %v2394
      %v2479 = vadd.f32 %v2184, %v2397
      %v2480 = vadd.f32 %v2185, %v2402
      %v2481 = vadd.f32 %v2186, %v2405
      %v2482 = vadd.f32 %v2187, %v2410
      %v2483 = vadd.f32 %v2188, %v2413
      %v2484 = vadd.f32 %v2189, %v2418
      %v2485 = vadd.f32 %v2190, %v2421
      %v2486 = vadd.f32 %v2191, %v2426
      %v2487 = vadd.f32 %v2192, %v2429
      %v2488 = vadd.f32 %v2193, %v2434
      %v2489 = vadd.f32 %v2194, %v2437
      %v2490 = vadd.f32 %v2195, %v2442
      %v2491 = vadd.f32 %v2196, %v2445
      %v2492 = vadd.f32 %v2197, %v2450
      %v2493 = vadd.f32 %v2198, %v2453
      %v2494 = vadd.f32 %v2199, %v2458
      %v2495 = vadd.f32 %v2200, %v2461
      %v2496 = vld [vmem:[%s2201 + $0x1] sm:$0xff]
      %v2497 = vld [vmem:[%s2201 + $0x9] sm:$0xff]
      %v2498 = vld [vmem:[%s2201 + $0x19] sm:$0xff]
      %v2499 = vld [vmem:[%s2201 + $0x21] sm:$0xff]
      %v2500 = vld [vmem:[%s2201 + $0x31] sm:$0xff]
      %v2501 = vld [vmem:[%s2201 + $0x39] sm:$0xff]
      %v2502 = vld [vmem:[%s2201 + $0x49] sm:$0xff]
      %v2503 = vld [vmem:[%s2201 + $0x51] sm:$0xff]
      %v2504 = vld [vmem:[%s2201 + $0x61] sm:$0xff]
      %v2505 = vld [vmem:[%s2201 + $0x69] sm:$0xff]
      %v2506 = vld [vmem:[%s2201 + $0x79] sm:$0xff]
      %v2507 = vld [vmem:[%s2201 + $0x81] sm:$0xff]
      %v2508 = vld [vmem:[%s2201 + $0x91] sm:$0xff]
      %v2509 = vld [vmem:[%s2201 + $0x99] sm:$0xff]
      %v2510 = vld [vmem:[%s2201 + $0xa9] sm:$0xff]
      %v2511 = vld [vmem:[%s2201 + $0xb1] sm:$0xff]
      %v2512 = vld [vmem:[%s2201 + $0xc1] sm:$0xff]
      %v2513 = vld [vmem:[%s2201 + $0xc9] sm:$0xff]
      %v2514 = vld [vmem:[%s2201 + $0xd9] sm:$0xff]
      %v2515 = vld [vmem:[%s2201 + $0xe1] sm:$0xff]
      %v2516 = vld [vmem:[%s2201 + $0xf1] sm:$0xff]
      %v2517 = vld [vmem:[%s2201 + $0xf9] sm:$0xff]
      %v2518 = vld [vmem:[%s2201 + $0x109] sm:$0xff]
      %v2519 = vld [vmem:[%s2201 + $0x111] sm:$0xff]
      %v2520 = vld [vmem:[%s2201 + $0x121] sm:$0xff]
      %v2521 = vld [vmem:[%s2201 + $0x129] sm:$0xff]
      %v2522 = vld [vmem:[%s2201 + $0x139] sm:$0xff]
      %v2523 = vld [vmem:[%s2201 + $0x141] sm:$0xff]
      %v2524 = vld [vmem:[%s2201 + $0x151] sm:$0xff]
      %v2525 = vld [vmem:[%s2201 + $0x159] sm:$0xff]
      %v2526 = vld [vmem:[%s2201 + $0x169] sm:$0xff]
      %v2527 = vld [vmem:[%s2201 + $0x171] sm:$0xff]
      %v2528 = vpack.c.bf16 %v2497, %v2496
      %v2529 = vpack.c.bf16 %v2499, %v2498
      %v2530 = vpack.c.bf16 %v2501, %v2500
      %v2531 = vpack.c.bf16 %v2503, %v2502
      %v2532 = vpack.c.bf16 %v2505, %v2504
      %v2533 = vpack.c.bf16 %v2507, %v2506
      %v2534 = vpack.c.bf16 %v2509, %v2508
      %v2535 = vpack.c.bf16 %v2511, %v2510
      %v2536 = vpack.c.bf16 %v2513, %v2512
      %v2537 = vpack.c.bf16 %v2515, %v2514
      %v2538 = vpack.c.bf16 %v2517, %v2516
      %v2539 = vpack.c.bf16 %v2519, %v2518
      %v2540 = vpack.c.bf16 %v2521, %v2520
      %v2541 = vpack.c.bf16 %v2523, %v2522
      %v2542 = vpack.c.bf16 %v2525, %v2524
      %v2543 = vpack.c.bf16 %v2527, %v2526
      %s2544 = scalar_lea.vmem %s3, 14
      %v2545 = vld [vmem:[%s2544] sm:$0x3]
      %v2547 = vsel %vm412, %v2528, 0
      %v2550 = vsel %vm412, %v2529, 0
      %v2553 = vsel %vm412, %v2530, 0
      %v2556 = vsel %vm412, %v2531, 0
      %v2559 = vsel %vm412, %v2532, 0
      %v2562 = vsel %vm412, %v2533, 0
      %v2565 = vsel %vm412, %v2534, 0
      %v2568 = vsel %vm412, %v2535, 0
      %v2571 = vsel %vm412, %v2536, 0
      %v2574 = vsel %vm412, %v2537, 0
      %v2577 = vsel %vm412, %v2538, 0
      %v2580 = vsel %vm412, %v2539, 0
      %v2583 = vsel %vm412, %v2540, 0
      %v2586 = vsel %vm412, %v2541, 0
      %v2589 = vsel %vm412, %v2542, 0
      %v2592 = vsel %vm412, %v2543, 0
      %v2595 = vsel %vm648, %v2545, 0
      %2597 = vmatprep.subr.bf16.mxu0 0
      %2598 = vmatpush1.bf16.msra.mxu0 %v2595
      %2599 = vmatprep.subr.bf16.mxu0 0
      %2600 = vmatpush1.bf16.msra.mxu0 0
      %2601 = vmatprep.subr.bf16.mxu0 0
      %2602 = vmatpush1.bf16.msra.mxu0 0
      %2603 = vmatprep.subr.bf16.mxu0 0
      %2604 = vmatpush1.bf16.msra.mxu0 0
      %2605 = vmatprep.subr.bf16.mxu0 0
      %2606 = vmatpush1.bf16.msra.mxu0 0
      %2607 = vmatprep.subr.bf16.mxu0 0
      %2608 = vmatpush1.bf16.msra.mxu0 0
      %2609 = vmatprep.subr.bf16.mxu0 0
      %2610 = vmatpush1.bf16.msra.mxu0 0
      %2611 = vmatprep.subr.bf16.mxu0 0
      %2612 = vmatpush1.bf16.msra.mxu0 0
      %2613 = vmatprep.subr.bf16.mxu0 0
      %2614 = vmatpush1.bf16.msra.mxu0 0
      %2615 = vmatprep.subr.bf16.mxu0 0
      %2616 = vmatpush1.bf16.msra.mxu0 0
      %2617 = vmatprep.subr.bf16.mxu0 0
      %2618 = vmatpush1.bf16.msra.mxu0 0
      %2619 = vmatprep.subr.bf16.mxu0 0
      %2620 = vmatpush1.bf16.msra.mxu0 0
      %2621 = vmatprep.subr.bf16.mxu0 0
      %2622 = vmatpush1.bf16.msra.mxu0 0
      %2623 = vmatprep.subr.bf16.mxu0 0
      %2624 = vmatpush1.bf16.msra.mxu0 0
      %2625 = vmatprep.subr.bf16.mxu0 0
      %2626 = vmatpush1.bf16.msra.mxu0 0
      %2627 = vmatprep.subr.bf16.mxu0 0
      %2628 = vmatpush1.bf16.msra.mxu0 0
      %2629 = vmatprep.mubr.bf16.mxu0 0
      %2630 = vmatmul.mubr.bf16.gmra.mrb[0].mxu0 %v2547
      %v2631 = vpop.f32.mrb[0].mxu0
      %v2632 = vadd.f32 0.0, %v2631
      %v2633 = vpop.f32.mrb[0].mxu0
      %v2634 = vpop.f32.mrb[0].mxu0
      %v2635 = vadd.f32 0.0, %v2634
      %v2636 = vpop.f32.mrb[0].mxu0
      %2637 = vmatprep.mubr.bf16.mxu0 0
      %2638 = vmatmul.mubr.bf16.gmra.mrb[0].mxu0 %v2550
      %v2639 = vpop.f32.mrb[0].mxu0
      %v2640 = vadd.f32 0.0, %v2639
      %v2641 = vpop.f32.mrb[0].mxu0
      %v2642 = vpop.f32.mrb[0].mxu0
      %v2643 = vadd.f32 0.0, %v2642
      %v2644 = vpop.f32.mrb[0].mxu0
      %2645 = vmatprep.mubr.bf16.mxu0 0
      %2646 = vmatmul.mubr.bf16.gmra.mrb[0].mxu0 %v2553
      %v2647 = vpop.f32.mrb[0].mxu0
      %v2648 = vadd.f32 0.0, %v2647
      %v2649 = vpop.f32.mrb[0].mxu0
      %v2650 = vpop.f32.mrb[0].mxu0
      %v2651 = vadd.f32 0.0, %v2650
      %v2652 = vpop.f32.mrb[0].mxu0
      %2653 = vmatprep.mubr.bf16.mxu0 0
      %2654 = vmatmul.mubr.bf16.gmra.mrb[0].mxu0 %v2556
      %v2655 = vpop.f32.mrb[0].mxu0
      %v2656 = vadd.f32 0.0, %v2655
      %v2657 = vpop.f32.mrb[0].mxu0
      %v2658 = vpop.f32.mrb[0].mxu0
      %v2659 = vadd.f32 0.0, %v2658
      %v2660 = vpop.f32.mrb[0].mxu0
      %2661 = vmatprep.mubr.bf16.mxu0 0
      %2662 = vmatmul.mubr.bf16.gmra.mrb[0].mxu0 %v2559
      %v2663 = vpop.f32.mrb[0].mxu0
      %v2664 = vadd.f32 0.0, %v2663
      %v2665 = vpop.f32.mrb[0].mxu0
      %v2666 = vpop.f32.mrb[0].mxu0
      %v2667 = vadd.f32 0.0, %v2666
      %v2668 = vpop.f32.mrb[0].mxu0
      %2669 = vmatprep.mubr.bf16.mxu0 0
      %2670 = vmatmul.mubr.bf16.gmra.mrb[0].mxu0 %v2562
      %v2671 = vpop.f32.mrb[0].mxu0
      %v2672 = vadd.f32 0.0, %v2671
      %v2673 = vpop.f32.mrb[0].mxu0
      %v2674 = vpop.f32.mrb[0].mxu0
      %v2675 = vadd.f32 0.0, %v2674
      %v2676 = vpop.f32.mrb[0].mxu0
      %2677 = vmatprep.mubr.bf16.mxu0 0
      %2678 = vmatmul.mubr.bf16.gmra.mrb[0].mxu0 %v2565
      %v2679 = vpop.f32.mrb[0].mxu0
      %v2680 = vadd.f32 0.0, %v2679
      %v2681 = vpop.f32.mrb[0].mxu0
      %v2682 = vpop.f32.mrb[0].mxu0
      %v2683 = vadd.f32 0.0, %v2682
      %v2684 = vpop.f32.mrb[0].mxu0
      %2685 = vmatprep.mubr.bf16.mxu0 0
      %2686 = vmatmul.mubr.bf16.gmra.mrb[0].mxu0 %v2568
      %v2687 = vpop.f32.mrb[0].mxu0
      %v2688 = vadd.f32 0.0, %v2687
      %v2689 = vpop.f32.mrb[0].mxu0
      %v2690 = vpop.f32.mrb[0].mxu0
      %v2691 = vadd.f32 0.0, %v2690
      %v2692 = vpop.f32.mrb[0].mxu0
      %2693 = vmatprep.mubr.bf16.mxu0 0
      %2694 = vmatmul.mubr.bf16.gmra.mrb[0].mxu0 %v2571
      %v2695 = vpop.f32.mrb[0].mxu0
      %v2696 = vadd.f32 0.0, %v2695
      %v2697 = vpop.f32.mrb[0].mxu0
      %v2698 = vpop.f32.mrb[0].mxu0
      %v2699 = vadd.f32 0.0, %v2698
      %v2700 = vpop.f32.mrb[0].mxu0
      %2701 = vmatprep.mubr.bf16.mxu0 0
      %2702 = vmatmul.mubr.bf16.gmra.mrb[0].mxu0 %v2574
      %v2703 = vpop.f32.mrb[0].mxu0
      %v2704 = vadd.f32 0.0, %v2703
      %v2705 = vpop.f32.mrb[0].mxu0
      %v2706 = vpop.f32.mrb[0].mxu0
      %v2707 = vadd.f32 0.0, %v2706
      %v2708 = vpop.f32.mrb[0].mxu0
      %2709 = vmatprep.mubr.bf16.mxu0 0
      %2710 = vmatmul.mubr.bf16.gmra.mrb[0].mxu0 %v2577
      %v2711 = vpop.f32.mrb[0].mxu0
      %v2712 = vadd.f32 0.0, %v2711
      %v2713 = vpop.f32.mrb[0].mxu0
      %v2714 = vpop.f32.mrb[0].mxu0
      %v2715 = vadd.f32 0.0, %v2714
      %v2716 = vpop.f32.mrb[0].mxu0
      %2717 = vmatprep.mubr.bf16.mxu0 0
      %2718 = vmatmul.mubr.bf16.gmra.mrb[0].mxu0 %v2580
      %v2719 = vpop.f32.mrb[0].mxu0
      %v2720 = vadd.f32 0.0, %v2719
      %v2721 = vpop.f32.mrb[0].mxu0
      %v2722 = vpop.f32.mrb[0].mxu0
      %v2723 = vadd.f32 0.0, %v2722
      %v2724 = vpop.f32.mrb[0].mxu0
      %2725 = vmatprep.mubr.bf16.mxu0 0
      %2726 = vmatmul.mubr.bf16.gmra.mrb[0].mxu0 %v2583
      %v2727 = vpop.f32.mrb[0].mxu0
      %v2728 = vadd.f32 0.0, %v2727
      %v2729 = vpop.f32.mrb[0].mxu0
      %v2730 = vpop.f32.mrb[0].mxu0
      %v2731 = vadd.f32 0.0, %v2730
      %v2732 = vpop.f32.mrb[0].mxu0
      %2733 = vmatprep.mubr.bf16.mxu0 0
      %2734 = vmatmul.mubr.bf16.gmra.mrb[0].mxu0 %v2586
      %v2735 = vpop.f32.mrb[0].mxu0
      %v2736 = vadd.f32 0.0, %v2735
      %v2737 = vpop.f32.mrb[0].mxu0
      %v2738 = vpop.f32.mrb[0].mxu0
      %v2739 = vadd.f32 0.0, %v2738
      %v2740 = vpop.f32.mrb[0].mxu0
      %2741 = vmatprep.mubr.bf16.mxu0 0
      %2742 = vmatmul.mubr.bf16.gmra.mrb[0].mxu0 %v2589
      %v2743 = vpop.f32.mrb[0].mxu0
      %v2744 = vadd.f32 0.0, %v2743
      %v2745 = vpop.f32.mrb[0].mxu0
      %v2746 = vpop.f32.mrb[0].mxu0
      %v2747 = vadd.f32 0.0, %v2746
      %v2748 = vpop.f32.mrb[0].mxu0
      %2749 = vmatprep.mubr.bf16.mxu0 0
      %2750 = vmatmul.mubr.bf16.gmra.mrb[0].mxu0 %v2592
      %v2751 = vpop.f32.mrb[0].mxu0
      %v2752 = vadd.f32 0.0, %v2751
      %v2753 = vpop.f32.mrb[0].mxu0
      %v2754 = vpop.f32.mrb[0].mxu0
      %v2755 = vadd.f32 0.0, %v2754
      %v2756 = vpop.f32.mrb[0].mxu0
      %2757 = vdwg.mxu0
      %v2758 = vadd.f32 %v2464, %v2632
      %v2759 = vadd.f32 %v2465, %v2635
      %v2760 = vadd.f32 %v2466, %v2640
      %v2761 = vadd.f32 %v2467, %v2643
      %v2762 = vadd.f32 %v2468, %v2648
      %v2763 = vadd.f32 %v2469, %v2651
      %v2764 = vadd.f32 %v2470, %v2656
      %v2765 = vadd.f32 %v2471, %v2659
      %v2766 = vadd.f32 %v2472, %v2664
      %v2767 = vadd.f32 %v2473, %v2667
      %v2768 = vadd.f32 %v2474, %v2672
      %v2769 = vadd.f32 %v2475, %v2675
      %v2770 = vadd.f32 %v2476, %v2680
      %v2771 = vadd.f32 %v2477, %v2683
      %v2772 = vadd.f32 %v2478, %v2688
      %v2773 = vadd.f32 %v2479, %v2691
      %v2774 = vadd.f32 %v2480, %v2696
      %v2775 = vadd.f32 %v2481, %v2699
      %v2776 = vadd.f32 %v2482, %v2704
      %v2777 = vadd.f32 %v2483, %v2707
      %v2778 = vadd.f32 %v2484, %v2712
      %v2779 = vadd.f32 %v2485, %v2715
      %v2780 = vadd.f32 %v2486, %v2720
      %v2781 = vadd.f32 %v2487, %v2723
      %v2782 = vadd.f32 %v2488, %v2728
      %v2783 = vadd.f32 %v2489, %v2731
      %v2784 = vadd.f32 %v2490, %v2736
      %v2785 = vadd.f32 %v2491, %v2739
      %v2786 = vadd.f32 %v2492, %v2744
      %v2787 = vadd.f32 %v2493, %v2747
      %v2788 = vadd.f32 %v2494, %v2752
      %v2789 = vadd.f32 %v2495, %v2755
      %v2790 = vld [vmem:[%s2201 + $0x2] sm:$0xff]
      %v2791 = vld [vmem:[%s2201 + $0xa] sm:$0xff]
      %v2792 = vld [vmem:[%s2201 + $0x1a] sm:$0xff]
      %v2793 = vld [vmem:[%s2201 + $0x22] sm:$0xff]
      %v2794 = vld [vmem:[%s2201 + $0x32] sm:$0xff]
      %v2795 = vld [vmem:[%s2201 + $0x3a] sm:$0xff]
      %v2796 = vld [vmem:[%s2201 + $0x4a] sm:$0xff]
      %v2797 = vld [vmem:[%s2201 + $0x52] sm:$0xff]
      %v2798 = vld [vmem:[%s2201 + $0x62] sm:$0xff]
      %v2799 = vld [vmem:[%s2201 + $0x6a] sm:$0xff]
      %v2800 = vld [vmem:[%s2201 + $0x7a] sm:$0xff]
      %v2801 = vld [vmem:[%s2201 + $0x82] sm:$0xff]
      %v2802 = vld [vmem:[%s2201 + $0x92] sm:$0xff]
      %v2803 = vld [vmem:[%s2201 + $0x9a] sm:$0xff]
      %v2804 = vld [vmem:[%s2201 + $0xaa] sm:$0xff]
      %v2805 = vld [vmem:[%s2201 + $0xb2] sm:$0xff]
      %v2806 = vld [vmem:[%s2201 + $0xc2] sm:$0xff]
      %v2807 = vld [vmem:[%s2201 + $0xca] sm:$0xff]
      %v2808 = vld [vmem:[%s2201 + $0xda] sm:$0xff]
      %v2809 = vld [vmem:[%s2201 + $0xe2] sm:$0xff]
      %v2810 = vld [vmem:[%s2201 + $0xf2] sm:$0xff]
      %v2811 = vld [vmem:[%s2201 + $0xfa] sm:$0xff]
      %v2812 = vld [vmem:[%s2201 + $0x10a] sm:$0xff]
      %v2813 = vld [vmem:[%s2201 + $0x112] sm:$0xff]
      %v2814 = vld [vmem:[%s2201 + $0x122] sm:$0xff]
      %v2815 = vld [vmem:[%s2201 + $0x12a] sm:$0xff]
      %v2816 = vld [vmem:[%s2201 + $0x13a] sm:$0xff]
      %v2817 = vld [vmem:[%s2201 + $0x142] sm:$0xff]
      %v2818 = vld [vmem:[%s2201 + $0x152] sm:$0xff]
      %v2819 = vld [vmem:[%s2201 + $0x15a] sm:$0xff]
      %v2820 = vld [vmem:[%s2201 + $0x16a] sm:$0xff]
      %v2821 = vld [vmem:[%s2201 + $0x172] sm:$0xff]
      %v2822 = vpack.c.bf16 %v2791, %v2790
      %v2823 = vpack.c.bf16 %v2793, %v2792
      %v2824 = vpack.c.bf16 %v2795, %v2794
      %v2825 = vpack.c.bf16 %v2797, %v2796
      %v2826 = vpack.c.bf16 %v2799, %v2798
      %v2827 = vpack.c.bf16 %v2801, %v2800
      %v2828 = vpack.c.bf16 %v2803, %v2802
      %v2829 = vpack.c.bf16 %v2805, %v2804
      %v2830 = vpack.c.bf16 %v2807, %v2806
      %v2831 = vpack.c.bf16 %v2809, %v2808
      %v2832 = vpack.c.bf16 %v2811, %v2810
      %v2833 = vpack.c.bf16 %v2813, %v2812
      %v2834 = vpack.c.bf16 %v2815, %v2814
      %v2835 = vpack.c.bf16 %v2817, %v2816
      %v2836 = vpack.c.bf16 %v2819, %v2818
      %v2837 = vpack.c.bf16 %v2821, %v2820
      %s2838 = scalar_lea.vmem %s3, 16
      %v2839 = vld [vmem:[%s2838] sm:$0x3]
      %v2841 = vsel %vm412, %v2822, 0
      %v2844 = vsel %vm412, %v2823, 0
      %v2847 = vsel %vm412, %v2824, 0
      %v2850 = vsel %vm412, %v2825, 0
      %v2853 = vsel %vm412, %v2826, 0
      %v2856 = vsel %vm412, %v2827, 0
      %v2859 = vsel %vm412, %v2828, 0
      %v2862 = vsel %vm412, %v2829, 0
      %v2865 = vsel %vm412, %v2830, 0
      %v2868 = vsel %vm412, %v2831, 0
      %v2871 = vsel %vm412, %v2832, 0
      %v2874 = vsel %vm412, %v2833, 0
      %v2877 = vsel %vm412, %v2834, 0
      %v2880 = vsel %vm412, %v2835, 0
      %v2883 = vsel %vm412, %v2836, 0
      %v2886 = vsel %vm412, %v2837, 0
      %v2889 = vsel %vm648, %v2839, 0
      %2891 = vmatprep.subr.bf16.mxu0 0
      %2892 = vmatpush1.bf16.msra.mxu0 %v2889
      %2893 = vmatprep.subr.bf16.mxu0 0
      %2894 = vmatpush1.bf16.msra.mxu0 0
      %2895 = vmatprep.subr.bf16.mxu0 0
      %2896 = vmatpush1.bf16.msra.mxu0 0
      %2897 = vmatprep.subr.bf16.mxu0 0
      %2898 = vmatpush1.bf16.msra.mxu0 0
      %2899 = vmatprep.subr.bf16.mxu0 0
      %2900 = vmatpush1.bf16.msra.mxu0 0
      %2901 = vmatprep.subr.bf16.mxu0 0
      %2902 = vmatpush1.bf16.msra.mxu0 0
      %2903 = vmatprep.subr.bf16.mxu0 0
      %2904 = vmatpush1.bf16.msra.mxu0 0
      %2905 = vmatprep.subr.bf16.mxu0 0
      %2906 = vmatpush1.bf16.msra.mxu0 0
      %2907 = vmatprep.subr.bf16.mxu0 0
      %2908 = vmatpush1.bf16.msra.mxu0 0
      %2909 = vmatprep.subr.bf16.mxu0 0
      %2910 = vmatpush1.bf16.msra.mxu0 0
      %2911 = vmatprep.subr.bf16.mxu0 0
      %2912 = vmatpush1.bf16.msra.mxu0 0
      %2913 = vmatprep.subr.bf16.mxu0 0
      %2914 = vmatpush1.bf16.msra.mxu0 0
      %2915 = vmatprep.subr.bf16.mxu0 0
      %2916 = vmatpush1.bf16.msra.mxu0 0
      %2917 = vmatprep.subr.bf16.mxu0 0
      %2918 = vmatpush1.bf16.msra.mxu0 0
      %2919 = vmatprep.subr.bf16.mxu0 0
      %2920 = vmatpush1.bf16.msra.mxu0 0
      %2921 = vmatprep.subr.bf16.mxu0 0
      %2922 = vmatpush1.bf16.msra.mxu0 0
      %2923 = vmatprep.mubr.bf16.mxu0 0
      %2924 = vmatmul.mubr.bf16.gmra.mrb[0].mxu0 %v2841
      %v2925 = vpop.f32.mrb[0].mxu0
      %v2926 = vadd.f32 0.0, %v2925
      %v2927 = vpop.f32.mrb[0].mxu0
      %v2928 = vpop.f32.mrb[0].mxu0
      %v2929 = vadd.f32 0.0, %v2928
      %v2930 = vpop.f32.mrb[0].mxu0
      %2931 = vmatprep.mubr.bf16.mxu0 0
      %2932 = vmatmul.mubr.bf16.gmra.mrb[0].mxu0 %v2844
      %v2933 = vpop.f32.mrb[0].mxu0
      %v2934 = vadd.f32 0.0, %v2933
      %v2935 = vpop.f32.mrb[0].mxu0
      %v2936 = vpop.f32.mrb[0].mxu0
      %v2937 = vadd.f32 0.0, %v2936
      %v2938 = vpop.f32.mrb[0].mxu0
      %2939 = vmatprep.mubr.bf16.mxu0 0
      %2940 = vmatmul.mubr.bf16.gmra.mrb[0].mxu0 %v2847
      %v2941 = vpop.f32.mrb[0].mxu0
      %v2942 = vadd.f32 0.0, %v2941
      %v2943 = vpop.f32.mrb[0].mxu0
      %v2944 = vpop.f32.mrb[0].mxu0
      %v2945 = vadd.f32 0.0, %v2944
      %v2946 = vpop.f32.mrb[0].mxu0
      %2947 = vmatprep.mubr.bf16.mxu0 0
      %2948 = vmatmul.mubr.bf16.gmra.mrb[0].mxu0 %v2850
      %v2949 = vpop.f32.mrb[0].mxu0
      %v2950 = vadd.f32 0.0, %v2949
      %v2951 = vpop.f32.mrb[0].mxu0
      %v2952 = vpop.f32.mrb[0].mxu0
      %v2953 = vadd.f32 0.0, %v2952
      %v2954 = vpop.f32.mrb[0].mxu0
      %2955 = vmatprep.mubr.bf16.mxu0 0
      %2956 = vmatmul.mubr.bf16.gmra.mrb[0].mxu0 %v2853
      %v2957 = vpop.f32.mrb[0].mxu0
      %v2958 = vadd.f32 0.0, %v2957
      %v2959 = vpop.f32.mrb[0].mxu0
      %v2960 = vpop.f32.mrb[0].mxu0
      %v2961 = vadd.f32 0.0, %v2960
      %v2962 = vpop.f32.mrb[0].mxu0
      %2963 = vmatprep.mubr.bf16.mxu0 0
      %2964 = vmatmul.mubr.bf16.gmra.mrb[0].mxu0 %v2856
      %v2965 = vpop.f32.mrb[0].mxu0
      %v2966 = vadd.f32 0.0, %v2965
      %v2967 = vpop.f32.mrb[0].mxu0
      %v2968 = vpop.f32.mrb[0].mxu0
      %v2969 = vadd.f32 0.0, %v2968
      %v2970 = vpop.f32.mrb[0].mxu0
      %2971 = vmatprep.mubr.bf16.mxu0 0
      %2972 = vmatmul.mubr.bf16.gmra.mrb[0].mxu0 %v2859
      %v2973 = vpop.f32.mrb[0].mxu0
      %v2974 = vadd.f32 0.0, %v2973
      %v2975 = vpop.f32.mrb[0].mxu0
      %v2976 = vpop.f32.mrb[0].mxu0
      %v2977 = vadd.f32 0.0, %v2976
      %v2978 = vpop.f32.mrb[0].mxu0
      %2979 = vmatprep.mubr.bf16.mxu0 0
      %2980 = vmatmul.mubr.bf16.gmra.mrb[0].mxu0 %v2862
      %v2981 = vpop.f32.mrb[0].mxu0
      %v2982 = vadd.f32 0.0, %v2981
      %v2983 = vpop.f32.mrb[0].mxu0
      %v2984 = vpop.f32.mrb[0].mxu0
      %v2985 = vadd.f32 0.0, %v2984
      %v2986 = vpop.f32.mrb[0].mxu0
      %2987 = vmatprep.mubr.bf16.mxu0 0
      %2988 = vmatmul.mubr.bf16.gmra.mrb[0].mxu0 %v2865
      %v2989 = vpop.f32.mrb[0].mxu0
      %v2990 = vadd.f32 0.0, %v2989
      %v2991 = vpop.f32.mrb[0].mxu0
      %v2992 = vpop.f32.mrb[0].mxu0
      %v2993 = vadd.f32 0.0, %v2992
      %v2994 = vpop.f32.mrb[0].mxu0
      %2995 = vmatprep.mubr.bf16.mxu0 0
      %2996 = vmatmul.mubr.bf16.gmra.mrb[0].mxu0 %v2868
      %v2997 = vpop.f32.mrb[0].mxu0
      %v2998 = vadd.f32 0.0, %v2997
      %v2999 = vpop.f32.mrb[0].mxu0
      %v3000 = vpop.f32.mrb[0].mxu0
      %v3001 = vadd.f32 0.0, %v3000
      %v3002 = vpop.f32.mrb[0].mxu0
      %3003 = vmatprep.mubr.bf16.mxu0 0
      %3004 = vmatmul.mubr.bf16.gmra.mrb[0].mxu0 %v2871
      %v3005 = vpop.f32.mrb[0].mxu0
      %v3006 = vadd.f32 0.0, %v3005
      %v3007 = vpop.f32.mrb[0].mxu0
      %v3008 = vpop.f32.mrb[0].mxu0
      %v3009 = vadd.f32 0.0, %v3008
      %v3010 = vpop.f32.mrb[0].mxu0
      %3011 = vmatprep.mubr.bf16.mxu0 0
      %3012 = vmatmul.mubr.bf16.gmra.mrb[0].mxu0 %v2874
      %v3013 = vpop.f32.mrb[0].mxu0
      %v3014 = vadd.f32 0.0, %v3013
      %v3015 = vpop.f32.mrb[0].mxu0
      %v3016 = vpop.f32.mrb[0].mxu0
      %v3017 = vadd.f32 0.0, %v3016
      %v3018 = vpop.f32.mrb[0].mxu0
      %3019 = vmatprep.mubr.bf16.mxu0 0
      %3020 = vmatmul.mubr.bf16.gmra.mrb[0].mxu0 %v2877
      %v3021 = vpop.f32.mrb[0].mxu0
      %v3022 = vadd.f32 0.0, %v3021
      %v3023 = vpop.f32.mrb[0].mxu0
      %v3024 = vpop.f32.mrb[0].mxu0
      %v3025 = vadd.f32 0.0, %v3024
      %v3026 = vpop.f32.mrb[0].mxu0
      %3027 = vmatprep.mubr.bf16.mxu0 0
      %3028 = vmatmul.mubr.bf16.gmra.mrb[0].mxu0 %v2880
      %v3029 = vpop.f32.mrb[0].mxu0
      %v3030 = vadd.f32 0.0, %v3029
      %v3031 = vpop.f32.mrb[0].mxu0
      %v3032 = vpop.f32.mrb[0].mxu0
      %v3033 = vadd.f32 0.0, %v3032
      %v3034 = vpop.f32.mrb[0].mxu0
      %3035 = vmatprep.mubr.bf16.mxu0 0
      %3036 = vmatmul.mubr.bf16.gmra.mrb[0].mxu0 %v2883
      %v3037 = vpop.f32.mrb[0].mxu0
      %v3038 = vadd.f32 0.0, %v3037
      %v3039 = vpop.f32.mrb[0].mxu0
      %v3040 = vpop.f32.mrb[0].mxu0
      %v3041 = vadd.f32 0.0, %v3040
      %v3042 = vpop.f32.mrb[0].mxu0
      %3043 = vmatprep.mubr.bf16.mxu0 0
      %3044 = vmatmul.mubr.bf16.gmra.mrb[0].mxu0 %v2886
      %v3045 = vpop.f32.mrb[0].mxu0
      %v3046 = vadd.f32 0.0, %v3045
      %v3047 = vpop.f32.mrb[0].mxu0
      %v3048 = vpop.f32.mrb[0].mxu0
      %v3049 = vadd.f32 0.0, %v3048
      %v3050 = vpop.f32.mrb[0].mxu0
      %3051 = vdwg.mxu0
      %v3052 = vadd.f32 %v2758, %v2926
      %v3053 = vadd.f32 %v2759, %v2929
      %v3054 = vadd.f32 %v2760, %v2934
      %v3055 = vadd.f32 %v2761, %v2937
      %v3056 = vadd.f32 %v2762, %v2942
      %v3057 = vadd.f32 %v2763, %v2945
      %v3058 = vadd.f32 %v2764, %v2950
      %v3059 = vadd.f32 %v2765, %v2953
      %v3060 = vadd.f32 %v2766, %v2958
      %v3061 = vadd.f32 %v2767, %v2961
      %v3062 = vadd.f32 %v2768, %v2966
      %v3063 = vadd.f32 %v2769, %v2969
      %v3064 = vadd.f32 %v2770, %v2974
      %v3065 = vadd.f32 %v2771, %v2977
      %v3066 = vadd.f32 %v2772, %v2982
      %v3067 = vadd.f32 %v2773, %v2985
      %v3068 = vadd.f32 %v2774, %v2990
      %v3069 = vadd.f32 %v2775, %v2993
      %v3070 = vadd.f32 %v2776, %v2998
      %v3071 = vadd.f32 %v2777, %v3001
      %v3072 = vadd.f32 %v2778, %v3006
      %v3073 = vadd.f32 %v2779, %v3009
      %v3074 = vadd.f32 %v2780, %v3014
      %v3075 = vadd.f32 %v2781, %v3017
      %v3076 = vadd.f32 %v2782, %v3022
      %v3077 = vadd.f32 %v2783, %v3025
      %v3078 = vadd.f32 %v2784, %v3030
      %v3079 = vadd.f32 %v2785, %v3033
      %v3080 = vadd.f32 %v2786, %v3038
      %v3081 = vadd.f32 %v2787, %v3041
      %v3082 = vadd.f32 %v2788, %v3046
      %v3083 = vadd.f32 %v2789, %v3049
      %3084 = vst.msk [vmem:[%s262] sm:$0xff] %vm412, %v3052
      %3085 = vst.msk [vmem:[%s262 + $0x8] sm:$0xff] %vm412, %v3053
      %3086 = vst.msk [vmem:[%s262 + $0x10] sm:$0xff] %vm412, %v3054
      %3087 = vst.msk [vmem:[%s262 + $0x18] sm:$0xff] %vm412, %v3055
      %3088 = vst.msk [vmem:[%s262 + $0x20] sm:$0xff] %vm412, %v3056
      %3089 = vst.msk [vmem:[%s262 + $0x28] sm:$0xff] %vm412, %v3057
      %3090 = vst.msk [vmem:[%s262 + $0x30] sm:$0xff] %vm412, %v3058
      %3091 = vst.msk [vmem:[%s262 + $0x38] sm:$0xff] %vm412, %v3059
      %3092 = vst.msk [vmem:[%s262 + $0x40] sm:$0xff] %vm412, %v3060
      %3093 = vst.msk [vmem:[%s262 + $0x48] sm:$0xff] %vm412, %v3061
      %3094 = vst.msk [vmem:[%s262 + $0x50] sm:$0xff] %vm412, %v3062
      %3095 = vst.msk [vmem:[%s262 + $0x58] sm:$0xff] %vm412, %v3063
      %3096 = vst.msk [vmem:[%s262 + $0x60] sm:$0xff] %vm412, %v3064
      %3097 = vst.msk [vmem:[%s262 + $0x68] sm:$0xff] %vm412, %v3065
      %3098 = vst.msk [vmem:[%s262 + $0x70] sm:$0xff] %vm412, %v3066
      %3099 = vst.msk [vmem:[%s262 + $0x78] sm:$0xff] %vm412, %v3067
      %3100 = vst.msk [vmem:[%s262 + $0x80] sm:$0xff] %vm412, %v3068
      %3101 = vst.msk [vmem:[%s262 + $0x88] sm:$0xff] %vm412, %v3069
      %3102 = vst.msk [vmem:[%s262 + $0x90] sm:$0xff] %vm412, %v3070
      %3103 = vst.msk [vmem:[%s262 + $0x98] sm:$0xff] %vm412, %v3071
      %3104 = vst.msk [vmem:[%s262 + $0xa0] sm:$0xff] %vm412, %v3072
      %3105 = vst.msk [vmem:[%s262 + $0xa8] sm:$0xff] %vm412, %v3073
      %3106 = vst.msk [vmem:[%s262 + $0xb0] sm:$0xff] %vm412, %v3074
      %3107 = vst.msk [vmem:[%s262 + $0xb8] sm:$0xff] %vm412, %v3075
      %3108 = vst.msk [vmem:[%s262 + $0xc0] sm:$0xff] %vm412, %v3076
      %3109 = vst.msk [vmem:[%s262 + $0xc8] sm:$0xff] %vm412, %v3077
      %3110 = vst.msk [vmem:[%s262 + $0xd0] sm:$0xff] %vm412, %v3078
      %3111 = vst.msk [vmem:[%s262 + $0xd8] sm:$0xff] %vm412, %v3079
      %3112 = vst.msk [vmem:[%s262 + $0xe0] sm:$0xff] %vm412, %v3080
      %3113 = vst.msk [vmem:[%s262 + $0xe8] sm:$0xff] %vm412, %v3081
      %3114 = vst.msk [vmem:[%s262 + $0xf0] sm:$0xff] %vm412, %v3082
      %3115 = vst.msk [vmem:[%s262 + $0xf8] sm:$0xff] %vm412, %v3083
      %v3116 = vsel %vm412, %v3052, 0.0
      %v3117 = vsel %vm412, %v3053, 0.0
      %v3118 = vadd.f32 %v3116, %v3117
      %v3119 = vsel %vm412, %v3054, 0.0
      %v3120 = vadd.f32 %v3118, %v3119
      %v3121 = vsel %vm412, %v3055, 0.0
      %v3122 = vadd.f32 %v3120, %v3121
      %v3123 = vsel %vm412, %v3056, 0.0
      %v3124 = vadd.f32 %v3122, %v3123
      %v3125 = vsel %vm412, %v3057, 0.0
      %v3126 = vadd.f32 %v3124, %v3125
      %v3127 = vsel %vm412, %v3058, 0.0
      %v3128 = vadd.f32 %v3126, %v3127
      %v3129 = vsel %vm412, %v3059, 0.0
      %v3130 = vadd.f32 %v3128, %v3129
      %v3131 = vsel %vm412, %v3060, 0.0
      %v3132 = vadd.f32 %v3130, %v3131
      %v3133 = vsel %vm412, %v3061, 0.0
      %v3134 = vadd.f32 %v3132, %v3133
      %v3135 = vsel %vm412, %v3062, 0.0
      %v3136 = vadd.f32 %v3134, %v3135
      %v3137 = vsel %vm412, %v3063, 0.0
      %v3138 = vadd.f32 %v3136, %v3137
      %v3139 = vsel %vm412, %v3064, 0.0
      %v3140 = vadd.f32 %v3138, %v3139
      %v3141 = vsel %vm412, %v3065, 0.0
      %v3142 = vadd.f32 %v3140, %v3141
      %v3143 = vsel %vm412, %v3066, 0.0
      %v3144 = vadd.f32 %v3142, %v3143
      %v3145 = vsel %vm412, %v3067, 0.0
      %v3146 = vadd.f32 %v3144, %v3145
      %v3147 = vsel %vm412, %v3068, 0.0
      %v3148 = vadd.f32 %v3146, %v3147
      %v3149 = vsel %vm412, %v3069, 0.0
      %v3150 = vadd.f32 %v3148, %v3149
      %v3151 = vsel %vm412, %v3070, 0.0
      %v3152 = vadd.f32 %v3150, %v3151
      %v3153 = vsel %vm412, %v3071, 0.0
      %v3154 = vadd.f32 %v3152, %v3153
      %v3155 = vsel %vm412, %v3072, 0.0
      %v3156 = vadd.f32 %v3154, %v3155
      %v3157 = vsel %vm412, %v3073, 0.0
      %v3158 = vadd.f32 %v3156, %v3157
      %v3159 = vsel %vm412, %v3074, 0.0
      %v3160 = vadd.f32 %v3158, %v3159
      %v3161 = vsel %vm412, %v3075, 0.0
      %v3162 = vadd.f32 %v3160, %v3161
      %v3163 = vsel %vm412, %v3076, 0.0
      %v3164 = vadd.f32 %v3162, %v3163
      %v3165 = vsel %vm412, %v3077, 0.0
      %v3166 = vadd.f32 %v3164, %v3165
      %v3167 = vsel %vm412, %v3078, 0.0
      %v3168 = vadd.f32 %v3166, %v3167
      %v3169 = vsel %vm412, %v3079, 0.0
      %v3170 = vadd.f32 %v3168, %v3169
      %v3171 = vsel %vm412, %v3080, 0.0
      %v3172 = vadd.f32 %v3170, %v3171
      %v3173 = vsel %vm412, %v3081, 0.0
      %v3174 = vadd.f32 %v3172, %v3173
      %v3175 = vsel %vm412, %v3082, 0.0
      %v3176 = vadd.f32 %v3174, %v3175
      %v3177 = vsel %vm412, %v3083, 0.0
      %v3178 = vadd.f32 %v3176, %v3177
      %v3179 = vrot.slane %v3178, 4
      %v3180 = vadd.f32 %v3178, %v3179
      %v3181 = vrot.slane %v3180, 2
      %v3182 = vadd.f32 %v3180, %v3181
      %v3183 = vrot.slane %v3182, 1
      %v3184 = vadd.f32 %v3182, %v3183
      %vm3185 = vcmask 24576
      %3186 = vst.msk [vmem:[%s265] sm:$0x1] %vm3185, %v3184
      %v3187 = vmul.f32 %v3052, %v3052
      %v3188 = vmul.f32 %v3053, %v3053
      %v3189 = vmul.f32 %v3054, %v3054
      %v3190 = vmul.f32 %v3055, %v3055
      %v3191 = vmul.f32 %v3056, %v3056
      %v3192 = vmul.f32 %v3057, %v3057
      %v3193 = vmul.f32 %v3058, %v3058
      %v3194 = vmul.f32 %v3059, %v3059
      %v3195 = vmul.f32 %v3060, %v3060
      %v3196 = vmul.f32 %v3061, %v3061
      %v3197 = vmul.f32 %v3062, %v3062
      %v3198 = vmul.f32 %v3063, %v3063
      %v3199 = vmul.f32 %v3064, %v3064
      %v3200 = vmul.f32 %v3065, %v3065
      %v3201 = vmul.f32 %v3066, %v3066
      %v3202 = vmul.f32 %v3067, %v3067
      %v3203 = vmul.f32 %v3068, %v3068
      %v3204 = vmul.f32 %v3069, %v3069
      %v3205 = vmul.f32 %v3070, %v3070
      %v3206 = vmul.f32 %v3071, %v3071
      %v3207 = vmul.f32 %v3072, %v3072
      %v3208 = vmul.f32 %v3073, %v3073
      %v3209 = vmul.f32 %v3074, %v3074
      %v3210 = vmul.f32 %v3075, %v3075
      %v3211 = vmul.f32 %v3076, %v3076
      %v3212 = vmul.f32 %v3077, %v3077
      %v3213 = vmul.f32 %v3078, %v3078
      %v3214 = vmul.f32 %v3079, %v3079
      %v3215 = vmul.f32 %v3080, %v3080
      %v3216 = vmul.f32 %v3081, %v3081
      %v3217 = vmul.f32 %v3082, %v3082
      %v3218 = vmul.f32 %v3083, %v3083
      %v3219 = vsel %vm412, %v3187, 0.0
      %v3220 = vsel %vm412, %v3188, 0.0
      %v3221 = vadd.f32 %v3219, %v3220
      %v3222 = vsel %vm412, %v3189, 0.0
      %v3223 = vadd.f32 %v3221, %v3222
      %v3224 = vsel %vm412, %v3190, 0.0
      %v3225 = vadd.f32 %v3223, %v3224
      %v3226 = vsel %vm412, %v3191, 0.0
      %v3227 = vadd.f32 %v3225, %v3226
      %v3228 = vsel %vm412, %v3192, 0.0
      %v3229 = vadd.f32 %v3227, %v3228
      %v3230 = vsel %vm412, %v3193, 0.0
      %v3231 = vadd.f32 %v3229, %v3230
      %v3232 = vsel %vm412, %v3194, 0.0
      %v3233 = vadd.f32 %v3231, %v3232
      %v3234 = vsel %vm412, %v3195, 0.0
      %v3235 = vadd.f32 %v3233, %v3234
      %v3236 = vsel %vm412, %v3196, 0.0
      %v3237 = vadd.f32 %v3235, %v3236
      %v3238 = vsel %vm412, %v3197, 0.0
      %v3239 = vadd.f32 %v3237, %v3238
      %v3240 = vsel %vm412, %v3198, 0.0
      %v3241 = vadd.f32 %v3239, %v3240
      %v3242 = vsel %vm412, %v3199, 0.0
      %v3243 = vadd.f32 %v3241, %v3242
      %v3244 = vsel %vm412, %v3200, 0.0
      %v3245 = vadd.f32 %v3243, %v3244
      %v3246 = vsel %vm412, %v3201, 0.0
      %v3247 = vadd.f32 %v3245, %v3246
      %v3248 = vsel %vm412, %v3202, 0.0
      %v3249 = vadd.f32 %v3247, %v3248
      %v3250 = vsel %vm412, %v3203, 0.0
      %v3251 = vadd.f32 %v3249, %v3250
      %v3252 = vsel %vm412, %v3204, 0.0
      %v3253 = vadd.f32 %v3251, %v3252
      %v3254 = vsel %vm412, %v3205, 0.0
      %v3255 = vadd.f32 %v3253, %v3254
      %v3256 = vsel %vm412, %v3206, 0.0
      %v3257 = vadd.f32 %v3255, %v3256
      %v3258 = vsel %vm412, %v3207, 0.0
      %v3259 = vadd.f32 %v3257, %v3258
      %v3260 = vsel %vm412, %v3208, 0.0
      %v3261 = vadd.f32 %v3259, %v3260
      %v3262 = vsel %vm412, %v3209, 0.0
      %v3263 = vadd.f32 %v3261, %v3262
      %v3264 = vsel %vm412, %v3210, 0.0
      %v3265 = vadd.f32 %v3263, %v3264
      %v3266 = vsel %vm412, %v3211, 0.0
      %v3267 = vadd.f32 %v3265, %v3266
      %v3268 = vsel %vm412, %v3212, 0.0
      %v3269 = vadd.f32 %v3267, %v3268
      %v3270 = vsel %vm412, %v3213, 0.0
      %v3271 = vadd.f32 %v3269, %v3270
      %v3272 = vsel %vm412, %v3214, 0.0
      %v3273 = vadd.f32 %v3271, %v3272
      %v3274 = vsel %vm412, %v3215, 0.0
      %v3275 = vadd.f32 %v3273, %v3274
      %v3276 = vsel %vm412, %v3216, 0.0
      %v3277 = vadd.f32 %v3275, %v3276
      %v3278 = vsel %vm412, %v3217, 0.0
      %v3279 = vadd.f32 %v3277, %v3278
      %v3280 = vsel %vm412, %v3218, 0.0
      %v3281 = vadd.f32 %v3279, %v3280
      %v3282 = vrot.slane %v3281, 4
      %v3283 = vadd.f32 %v3281, %v3282
      %v3284 = vrot.slane %v3283, 2
      %v3285 = vadd.f32 %v3283, %v3284
      %v3286 = vrot.slane %v3285, 1
      %v3287 = vadd.f32 %v3285, %v3286
      %3288 = vst.msk [vmem:[%s268] sm:$0x1] %vm3185, %v3287
      %p3289 = scmp.lt.s32.totalorder %s18, 1
      %s3290 = scalar_select %p3289, %s18, 1
      %s3291 = smul.addr %s3290, 32
      %s3292 = smul.addr %s3291, 8
      %s3293 = scalar_lea.vmem %s4, %s3292
      %p3294 = scmp.lt.s32.totalorder %s18, 1
      %s3295 = scalar_select %p3294, %s18, 1
      %s3296 = scalar_lea.vmem %s5, %s3295
      %p3297 = scmp.lt.s32.totalorder %s18, 1
      %s3298 = scalar_select %p3297, %s18, 1
      %s3299 = scalar_lea.vmem %s6, %s3298
      // Predicated region
      $region37: #{preact_block_forward.4} parent=35 // pred_check
        %p3300 = pneg %p125
      $region38: #{preact_block_forward.4} parent=35 // pred_check_branch
        %3302 = sbr.rel (%p3300) target = $region40
      $region39: #{preact_block_forward.4} parent=35 // pred_region
        _
      $region40: #{preact_block_forward.4} parent=35 // pred_fallthru
        _
      // Predicated region
      $region41: #{preact_block_forward.4} parent=35 // pred_check
        %p3303 = pneg %p151
      $region42: #{preact_block_forward.4} parent=35 // pred_check_branch
        %3305 = sbr.rel (%p3303) target = $region44
      $region43: #{preact_block_forward.4} parent=35 // pred_region
        _
      $region44: #{preact_block_forward.4} parent=35 // pred_fallthru
        _
      // Predicated region
      $region45: #{preact_block_forward.4} parent=35 // pred_check
        %p3306 = pneg %p177
      $region46: #{preact_block_forward.4} parent=35 // pred_check_branch
        %3308 = sbr.rel (%p3306) target = $region48
      $region47: #{preact_block_forward.4} parent=35 // pred_region
        _
      $region48: #{preact_block_forward.4} parent=35 // pred_fallthru
        _
    $region36: #{preact_block_forward.4} parent=5 // pred_fallthru
      _
    %p3309 = scmp.le.s32.totalorder 2, %s13
    // Predicated region
    $region49: #{preact_block_forward.4} parent=5 // pred_check
      %p3310 = pneg %p3309
    $region50: #{preact_block_forward.4} parent=5 // pred_check_branch
      %3312 = sbr.rel (%p3310) target = $region52
    $region51: #{preact_block_forward.4} parent=5 // pred_region
      %s3313 = ssub.s32 %s13, 2
      // Predicated region
      $region53: #{preact_block_forward.4} parent=51 // pred_check
        %p3314 = pneg %p131
      $region54: #{preact_block_forward.4} parent=51 // pred_check_branch
        %3316 = sbr.rel (%p3314) target = $region56
      $region55: #{preact_block_forward.4} parent=51 // pred_region
        %p3317 = scmp.lt.s32.totalorder %s19, 1
        %s3318 = scalar_select %p3317, %s19, 1
        %s3319 = smul.addr %s3318, 32
        %s3320 = smul.addr %s3319, 8
        %s3321 = scalar_lea.vmem %s4, %s3320
      $region56: #{preact_block_forward.4} parent=51 // pred_fallthru
        _
      // Predicated region
      $region57: #{preact_block_forward.4} parent=51 // pred_check
        %p3322 = pneg %p157
      $region58: #{preact_block_forward.4} parent=51 // pred_check_branch
        %3324 = sbr.rel (%p3322) target = $region60
      $region59: #{preact_block_forward.4} parent=51 // pred_region
        %p3325 = scmp.lt.s32.totalorder %s19, 1
        %s3326 = scalar_select %p3325, %s19, 1
        %s3327 = scalar_lea.vmem %s5, %s3326
      $region60: #{preact_block_forward.4} parent=51 // pred_fallthru
        _
      // Predicated region
      $region61: #{preact_block_forward.4} parent=51 // pred_check
        %p3328 = pneg %p183
      $region62: #{preact_block_forward.4} parent=51 // pred_check_branch
        %3330 = sbr.rel (%p3328) target = $region64
      $region63: #{preact_block_forward.4} parent=51 // pred_region
        %p3331 = scmp.lt.s32.totalorder %s19, 1
        %s3332 = scalar_select %p3331, %s19, 1
        %s3333 = scalar_lea.vmem %s6, %s3332
      $region64: #{preact_block_forward.4} parent=51 // pred_fallthru
        _
    $region52: #{preact_block_forward.4} parent=5 // pred_fallthru
      _
  $region6: #{preact_block_forward.4} parent=0 // loop_footer
    %s17 = sadd.s32 1, %s13
  $region7: #{preact_block_forward.4} parent=0 // loop_footer_branch
    %12 = sbr.rel target = $region3
  $region8: #{preact_block_forward.4} parent=0 // loop_exit
    _

// kernel: preact_block_forward.5
$region0: #{preact_block_forward.5}
  #allocation0 [shape = 'u32[]', space=smem, size = 0x4, offset = 0x4, fixed_abs, tag = 'smem constant byte address 0x4 - core index']
  #allocation1 [shape = 'u32[144,128]{1,0:T(1,128)}', space=vmem, size = 0x12000, scoped, tag = 'internal scratch']
  #allocation2 [shape = 'f32[18,18,4]{2,1,0:T(8,128)}', space=vmem, size = 0x36000, scoped, tag = 'scratch operand']
  %s0 = inlined_call_operand.vmem [shape: f32[2,16,16,4], index: 0, kind: input, shape index: {}]
  %s1 = inlined_call_operand.vmem [shape: f32[1,4], index: 1, kind: input, shape index: {}]
  %s2 = inlined_call_operand.vmem [shape: f32[1,4], index: 2, kind: input, shape index: {}]
  %s3 = inlined_call_operand.vmem [shape: f32[2,16,16,4], index: 3, kind: input, shape index: {}]
  %s4 = inlined_call_operand.vmem [shape: f32[1,4], index: 4, kind: input, shape index: {}]
  %s5 = inlined_call_operand.vmem [shape: f32[1,4], index: 5, kind: input, shape index: {}]
  %s6 = inlined_call_operand.vmem [shape: bf16[9,4,4], index: 6, kind: input, shape index: {}]
  %s7 = inlined_call_operand.vmem [shape: f32[2,16,16,4], index: 7, kind: output, shape index: {}]
  %s8 = sld [smem:[#allocation0]]
  $region61: #{preact_block_forward.5} parent=0
    _
  %s10 = ssub.s32 1, %s8
  %s11 = scalar_select 0, %s10, %s8
  loop: start=0, step=1, limit=4
  $region2: #{preact_block_forward.5} parent=0 // loop_pre_header
    _
  $region3: #{preact_block_forward.5} parent=0 // loop_header
    %s13 = sphi 0, %s17
    %p14 = scmp.ge.s32.totalorder %s13, 4
    %s23 = sphi 0, %s25
    %s26 = sphi 0, %s23
    %s27 = sphi 0, %s26
    %s43 = sphi 0, %s27
    %s47 = sphi 0, %s47
    %s49 = sphi 0, %s47
    %s50 = sphi 0, %s49
    %s64 = sphi 0, %s50
    %s68 = sphi 0, %s68
    %s70 = sphi 0, %s68
    %s71 = sphi 0, %s70
    %s85 = sphi 0, %s71
    %s91 = sphi 0, %s93
    %s94 = sphi 0, %s91
    %s95 = sphi 0, %s94
    %s111 = sphi 0, %s95
    %s115 = sphi 0, %s115
    %s117 = sphi 0, %s115
    %s118 = sphi 0, %s117
    %s132 = sphi 0, %s118
    %s136 = sphi 0, %s136
    %s138 = sphi 0, %s136
    %s139 = sphi 0, %s138
    %s153 = sphi 0, %s139
    %s157 = sphi 0, %s157
    %s159 = sphi 0, %s157
    %s160 = sphi 0, %s159
    %s174 = sphi 0, %s160
    %s180 = sphi 0, %s182
    %s183 = sphi 0, %s180
    %s184 = sphi 0, %s183
    %s200 = sphi 0, %s184
  $region4: #{preact_block_forward.5} parent=0 // loop_header_branch
    %16 = sbr.rel (%p14) target = $region8
  $region5: #{preact_block_forward.5} parent=0 // loop_body
    %s18 = ssub.s32 %s13, 1
    %s19 = ssub.s32 %s13, 2
    %s20 = sadd.s32 %s13, 1
    %s21 = ssub.s32 %s13, %s20
    %p22 = scmp.eq.s32.totalorder %s21, 0
    %s24 = sadd.s32 %s23, 1
    %s25 = scalar_select %p22, %s23, %s24
    %p28 = pneg %p22
    %p29 = scmp.eq.s32.totalorder %s13, 1
    %p30 = por %p28, %p29
    %p31 = scmp.ne.s32.totalorder %s23, %s26
    %p32 = scmp.eq.s32.totalorder %s13, 0
    %p33 = por %p31, %p32
    %p34 = scmp.ne.s32.totalorder %s23, %s26
    %p35 = scmp.eq.s32.totalorder %s18, 1
    %p36 = por %p34, %p35
    %p37 = scmp.ne.s32.totalorder %s26, %s27
    %p38 = scmp.eq.s32.totalorder %s18, 0
    %p39 = por %p37, %p38
    %p40 = scmp.ne.s32.totalorder %s26, %s27
    %p41 = scmp.eq.s32.totalorder %s19, 1
    %p42 = por %p40, %p41
    %p44 = scmp.ne.s32.totalorder %s27, %s43
    %p45 = scmp.eq.s32.totalorder %s19, 0
    %p46 = por %p44, %p45
    %s48 = sadd.s32 %s47, 1
    %p51 = scmp.eq.s32.totalorder %s13, 1
    %p52 = scmp.ne.s32.totalorder %s47, %s49
    %p53 = scmp.eq.s32.totalorder %s13, 0
    %p54 = por %p52, %p53
    %p55 = scmp.ne.s32.totalorder %s47, %s49
    %p56 = scmp.eq.s32.totalorder %s18, 1
    %p57 = por %p55, %p56
    %p58 = scmp.ne.s32.totalorder %s49, %s50
    %p59 = scmp.eq.s32.totalorder %s18, 0
    %p60 = por %p58, %p59
    %p61 = scmp.ne.s32.totalorder %s49, %s50
    %p62 = scmp.eq.s32.totalorder %s19, 1
    %p63 = por %p61, %p62
    %p65 = scmp.ne.s32.totalorder %s50, %s64
    %p66 = scmp.eq.s32.totalorder %s19, 0
    %p67 = por %p65, %p66
    %s69 = sadd.s32 %s68, 1
    %p72 = scmp.eq.s32.totalorder %s13, 1
    %p73 = scmp.ne.s32.totalorder %s68, %s70
    %p74 = scmp.eq.s32.totalorder %s13, 0
    %p75 = por %p73, %p74
    %p76 = scmp.ne.s32.totalorder %s68, %s70
    %p77 = scmp.eq.s32.totalorder %s18, 1
    %p78 = por %p76, %p77
    %p79 = scmp.ne.s32.totalorder %s70, %s71
    %p80 = scmp.eq.s32.totalorder %s18, 0
    %p81 = por %p79, %p80
    %p82 = scmp.ne.s32.totalorder %s70, %s71
    %p83 = scmp.eq.s32.totalorder %s19, 1
    %p84 = por %p82, %p83
    %p86 = scmp.ne.s32.totalorder %s71, %s85
    %p87 = scmp.eq.s32.totalorder %s19, 0
    %p88 = por %p86, %p87
    %s89 = ssub.s32 %s13, %s20
    %p90 = scmp.eq.s32.totalorder %s89, 0
    %s92 = sadd.s32 %s91, 1
    %s93 = scalar_select %p90, %s91, %s92
    %p96 = pneg %p90
    %p97 = scmp.eq.s32.totalorder %s13, 1
    %p98 = por %p96, %p97
    %p99 = scmp.ne.s32.totalorder %s91, %s94
    %p100 = scmp.eq.s32.totalorder %s13, 0
    %p101 = por %p99, %p100
    %p102 = scmp.ne.s32.totalorder %s91, %s94
    %p103 = scmp.eq.s32.totalorder %s18, 1
    %p104 = por %p102, %p103
    %p105 = scmp.ne.s32.totalorder %s94, %s95
    %p106 = scmp.eq.s32.totalorder %s18, 0
    %p107 = por %p105, %p106
    %p108 = scmp.ne.s32.totalorder %s94, %s95
    %p109 = scmp.eq.s32.totalorder %s19, 1
    %p110 = por %p108, %p109
    %p112 = scmp.ne.s32.totalorder %s95, %s111
    %p113 = scmp.eq.s32.totalorder %s19, 0
    %p114 = por %p112, %p113
    %s116 = sadd.s32 %s115, 1
    %p119 = scmp.eq.s32.totalorder %s13, 1
    %p120 = scmp.ne.s32.totalorder %s115, %s117
    %p121 = scmp.eq.s32.totalorder %s13, 0
    %p122 = por %p120, %p121
    %p123 = scmp.ne.s32.totalorder %s115, %s117
    %p124 = scmp.eq.s32.totalorder %s18, 1
    %p125 = por %p123, %p124
    %p126 = scmp.ne.s32.totalorder %s117, %s118
    %p127 = scmp.eq.s32.totalorder %s18, 0
    %p128 = por %p126, %p127
    %p129 = scmp.ne.s32.totalorder %s117, %s118
    %p130 = scmp.eq.s32.totalorder %s19, 1
    %p131 = por %p129, %p130
    %p133 = scmp.ne.s32.totalorder %s118, %s132
    %p134 = scmp.eq.s32.totalorder %s19, 0
    %p135 = por %p133, %p134
    %s137 = sadd.s32 %s136, 1
    %p140 = scmp.eq.s32.totalorder %s13, 1
    %p141 = scmp.ne.s32.totalorder %s136, %s138
    %p142 = scmp.eq.s32.totalorder %s13, 0
    %p143 = por %p141, %p142
    %p144 = scmp.ne.s32.totalorder %s136, %s138
    %p145 = scmp.eq.s32.totalorder %s18, 1
    %p146 = por %p144, %p145
    %p147 = scmp.ne.s32.totalorder %s138, %s139
    %p148 = scmp.eq.s32.totalorder %s18, 0
    %p149 = por %p147, %p148
    %p150 = scmp.ne.s32.totalorder %s138, %s139
    %p151 = scmp.eq.s32.totalorder %s19, 1
    %p152 = por %p150, %p151
    %p154 = scmp.ne.s32.totalorder %s139, %s153
    %p155 = scmp.eq.s32.totalorder %s19, 0
    %p156 = por %p154, %p155
    %s158 = sadd.s32 %s157, 1
    %p161 = scmp.eq.s32.totalorder %s13, 1
    %p162 = scmp.ne.s32.totalorder %s157, %s159
    %p163 = scmp.eq.s32.totalorder %s13, 0
    %p164 = por %p162, %p163
    %p165 = scmp.ne.s32.totalorder %s157, %s159
    %p166 = scmp.eq.s32.totalorder %s18, 1
    %p167 = por %p165, %p166
    %p168 = scmp.ne.s32.totalorder %s159, %s160
    %p169 = scmp.eq.s32.totalorder %s18, 0
    %p170 = por %p168, %p169
    %p171 = scmp.ne.s32.totalorder %s159, %s160
    %p172 = scmp.eq.s32.totalorder %s19, 1
    %p173 = por %p171, %p172
    %p175 = scmp.ne.s32.totalorder %s160, %s174
    %p176 = scmp.eq.s32.totalorder %s19, 0
    %p177 = por %p175, %p176
    %s178 = ssub.s32 %s13, %s20
    %p179 = scmp.eq.s32.totalorder %s178, 0
    %s181 = sadd.s32 %s180, 1
    %s182 = scalar_select %p179, %s180, %s181
    %p185 = pneg %p179
    %p186 = scmp.eq.s32.totalorder %s13, 1
    %p187 = por %p185, %p186
    %p188 = scmp.ne.s32.totalorder %s180, %s183
    %p189 = scmp.eq.s32.totalorder %s13, 0
    %p190 = por %p188, %p189
    %p191 = scmp.ne.s32.totalorder %s180, %s183
    %p192 = scmp.eq.s32.totalorder %s18, 1
    %p193 = por %p191, %p192
    %p194 = scmp.ne.s32.totalorder %s183, %s184
    %p195 = scmp.eq.s32.totalorder %s18, 0
    %p196 = por %p194, %p195
    %p197 = scmp.ne.s32.totalorder %s183, %s184
    %p198 = scmp.eq.s32.totalorder %s19, 1
    %p199 = por %p197, %p198
    %p201 = scmp.ne.s32.totalorder %s184, %s200
    %p202 = scmp.eq.s32.totalorder %s19, 0
    %p203 = por %p201, %p202
    %p204 = scmp.le.s32.totalorder 1, %s13
    %p205 = scmp.lt.s32.totalorder %s13, 3
    %p206 = pnand %p204, %p205
    %p207 = pneg %p206
    // Predicated region
    $region9: #{preact_block_forward.5} parent=5 // pred_check
      _
    $region10: #{preact_block_forward.5} parent=5 // pred_check_branch
      %209 = sbr.rel (%p206) target = $region12
    $region11: #{preact_block_forward.5} parent=5 // pred_region
      %s210 = ssub.s32 %s13, 1
      // Predicated region
      $region13: #{preact_block_forward.5} parent=11 // pred_check
        %p211 = pneg %p60
      $region14: #{preact_block_forward.5} parent=11 // pred_check_branch
        %213 = sbr.rel (%p211) target = $region16
      $region15: #{preact_block_forward.5} parent=11 // pred_region
        _
      $region16: #{preact_block_forward.5} parent=11 // pred_fallthru
        _
      // Predicated region
      $region17: #{preact_block_forward.5} parent=11 // pred_check
        %p214 = pneg %p81
      $region18: #{preact_block_forward.5} parent=11 // pred_check_branch
        %216 = sbr.rel (%p214) target = $region20
      $region19: #{preact_block_forward.5} parent=11 // pred_region
        _
      $region20: #{preact_block_forward.5} parent=11 // pred_fallthru
        _
      // Predicated region
      $region21: #{preact_block_forward.5} parent=11 // pred_check
        %p217 = pneg %p128
      $region22: #{preact_block_forward.5} parent=11 // pred_check_branch
        %219 = sbr.rel (%p217) target = $region24
      $region23: #{preact_block_forward.5} parent=11 // pred_region
        _
      $region24: #{preact_block_forward.5} parent=11 // pred_fallthru
        _
      // Predicated region
      $region25: #{preact_block_forward.5} parent=11 // pred_check
        %p220 = pneg %p149
      $region26: #{preact_block_forward.5} parent=11 // pred_check_branch
        %222 = sbr.rel (%p220) target = $region28
      $region27: #{preact_block_forward.5} parent=11 // pred_region
        _
      $region28: #{preact_block_forward.5} parent=11 // pred_fallthru
        _
      // Predicated region
      $region29: #{preact_block_forward.5} parent=11 // pred_check
        %p223 = pneg %p170
      $region30: #{preact_block_forward.5} parent=11 // pred_check_branch
        %225 = sbr.rel (%p223) target = $region32
      $region31: #{preact_block_forward.5} parent=11 // pred_region
        _
      $region32: #{preact_block_forward.5} parent=11 // pred_fallthru
        _
    $region12: #{preact_block_forward.5} parent=5 // pred_fallthru
      _
    %p226 = scmp.lt.s32.totalorder %s13, 2
    // Predicated region
    $region33: #{preact_block_forward.5} parent=5 // pred_check
      %p227 = pneg %p226
    $region34: #{preact_block_forward.5} parent=5 // pred_check_branch
      %229 = sbr.rel (%p227) target = $region36
    $region35: #{preact_block_forward.5} parent=5 // pred_region
      // Predicated region
      $region37: #{preact_block_forward.5} parent=35 // pred_check
        %p230 = pneg %p33
      $region38: #{preact_block_forward.5} parent=35 // pred_check_branch
        %232 = sbr.rel (%p230) target = $region40
      $region39: #{preact_block_forward.5} parent=35 // pred_region
        %p233 = scmp.lt.s32.totalorder %s13, 1
        %s234 = scalar_select %p233, %s13, 1
        %s235 = smul.addr %s234, 32
        %s236 = smul.addr %s235, 8
        %s237 = scalar_lea.vmem %s0, %s236
      $region40: #{preact_block_forward.5} parent=35 // pred_fallthru
        _
      // Predicated region
      $region41: #{preact_block_forward.5} parent=35 // pred_check
        %p238 = pneg %p101
      $region42: #{preact_block_forward.5} parent=35 // pred_check_branch
        %240 = sbr.rel (%p238) target = $region44
      $region43: #{preact_block_forward.5} parent=35 // pred_region
        %p241 = scmp.lt.s32.totalorder %s13, 1
        %s242 = scalar_select %p241, %s13, 1
        %s243 = smul.addr %s242, 32
        %s244 = smul.addr %s243, 8
        %s245 = scalar_lea.vmem %s3, %s244
      $region44: #{preact_block_forward.5} parent=35 // pred_fallthru
        _
    $region36: #{preact_block_forward.5} parent=5 // pred_fallthru
      _
    %p246 = scmp.le.s32.totalorder 1, %s13
    %p247 = scmp.lt.s32.totalorder %s13, 3
    %p248 = pnand %p246, %p247
    %p249 = pneg %p248
    // Predicated region
    $region45: #{preact_block_forward.5} parent=5 // pred_check
      _
    $region46: #{preact_block_forward.5} parent=5 // pred_check_branch
      %251 = sbr.rel (%p248) target = $region48
    $region47: #{preact_block_forward.5} parent=5 // pred_region
      %s252 = ssub.s32 %s13, 1
      %p253 = scmp.lt.s32.totalorder %s18, 1
      %s254 = scalar_select %p253, %s18, 1
      %s255 = smul.addr %s254, 32
      %s256 = smul.addr %s255, 8
      %s257 = scalar_lea.vmem %s0, %s256
      %p258 = pneg %p39
      %p259 = pneg %p36
      %p260 = pneg %p60
      %p261 = pneg %p57
      %p262 = pneg %p81
      %p263 = pneg %p78
      %p264 = scmp.lt.s32.totalorder %s18, 1
      %s265 = scalar_select %p264, %s18, 1
      %s266 = smul.addr %s265, 32
      %s267 = smul.addr %s266, 8
      %s268 = scalar_lea.vmem %s3, %s267
      %p269 = pneg %p107
      %p270 = pneg %p104
      %p271 = pneg %p128
      %p272 = pneg %p125
      %p273 = pneg %p149
      %p274 = pneg %p146
      %p275 = pneg %p170
      %p276 = pneg %p167
      %p277 = pneg %p196
      %p278 = pneg %p193
      %p279 = scmp.lt.s32.totalorder %s18, 1
      %s280 = scalar_select %p279, %s18, 1
      %s281 = smul.addr %s280, 32
      %s282 = smul.addr %s281, 8
      %s283 = scalar_lea.vmem %s7, %s282
      %p284 = scmp.lt.s32.totalorder %s18, 1
      %s285 = scalar_select %p284, %s18, 1
      %s286 = smul.addr %s285, 32
      %s287 = smul.addr %s286, 8
      %s288 = scalar_lea.vmem %s0, %s287
      %p289 = scmp.lt.s32.totalorder %s18, 1
      %s290 = scalar_select %p289, %s18, 1
      %s291 = smul.addr %s290, 32
      %s292 = smul.addr %s291, 8
      %s293 = scalar_lea.vmem %s3, %s292
      %p294 = scmp.lt.s32.totalorder %s18, 1
      %s295 = scalar_select %p294, %s18, 1
      %s296 = smul.addr %s295, 32
      %s297 = smul.addr %s296, 8
      %s298 = scalar_lea.vmem %s7, %s297
      %v300 = vld [vmem:[%s288] sm:$0xff]
      %v301 = vld [vmem:[%s288 + $0x8] sm:$0xff]
      %v302 = vld [vmem:[%s288 + $0x10] sm:$0xff]
      %v303 = vld [vmem:[%s288 + $0x18] sm:$0xff]
      %v304 = vld [vmem:[%s288 + $0x20] sm:$0xff]
      %v305 = vld [vmem:[%s288 + $0x28] sm:$0xff]
      %v306 = vld [vmem:[%s288 + $0x30] sm:$0xff]
      %v307 = vld [vmem:[%s288 + $0x38] sm:$0xff]
      %v308 = vld [vmem:[%s288 + $0x40] sm:$0xff]
      %v309 = vld [vmem:[%s288 + $0x48] sm:$0xff]
      %v310 = vld [vmem:[%s288 + $0x50] sm:$0xff]
      %v311 = vld [vmem:[%s288 + $0x58] sm:$0xff]
      %v312 = vld [vmem:[%s288 + $0x60] sm:$0xff]
      %v313 = vld [vmem:[%s288 + $0x68] sm:$0xff]
      %v314 = vld [vmem:[%s288 + $0x70] sm:$0xff]
      %v315 = vld [vmem:[%s288 + $0x78] sm:$0xff]
      %v316 = vld [vmem:[%s288 + $0x80] sm:$0xff]
      %v317 = vld [vmem:[%s288 + $0x88] sm:$0xff]
      %v318 = vld [vmem:[%s288 + $0x90] sm:$0xff]
      %v319 = vld [vmem:[%s288 + $0x98] sm:$0xff]
      %v320 = vld [vmem:[%s288 + $0xa0] sm:$0xff]
      %v321 = vld [vmem:[%s288 + $0xa8] sm:$0xff]
      %v322 = vld [vmem:[%s288 + $0xb0] sm:$0xff]
      %v323 = vld [vmem:[%s288 + $0xb8] sm:$0xff]
      %v324 = vld [vmem:[%s288 + $0xc0] sm:$0xff]
      %v325 = vld [vmem:[%s288 + $0xc8] sm:$0xff]
      %v326 = vld [vmem:[%s288 + $0xd0] sm:$0xff]
      %v327 = vld [vmem:[%s288 + $0xd8] sm:$0xff]
      %v328 = vld [vmem:[%s288 + $0xe0] sm:$0xff]
      %v329 = vld [vmem:[%s288 + $0xe8] sm:$0xff]
      %v330 = vld [vmem:[%s288 + $0xf0] sm:$0xff]
      %v331 = vld [vmem:[%s288 + $0xf8] sm:$0xff]
      %v332 = vld [vmem:[%s1] sm:$0x1]
      %v334 = vlaneseq
      %v335 = vshrl.u32 %v334, 7
      %v336 = vsub.s32 0, %v335
      %v337 = vrot.slane %v332, %v336
      %v339 = vmul.f32 %v300, %v337
      %v340 = vmul.f32 %v301, %v337
      %v341 = vmul.f32 %v302, %v337
      %v342 = vmul.f32 %v303, %v337
      %v343 = vmul.f32 %v304, %v337
      %v344 = vmul.f32 %v305, %v337
      %v345 = vmul.f32 %v306, %v337
      %v346 = vmul.f32 %v307, %v337
      %v347 = vmul.f32 %v308, %v337
      %v348 = vmul.f32 %v309, %v337
      %v349 = vmul.f32 %v310, %v337
      %v350 = vmul.f32 %v311, %v337
      %v351 = vmul.f32 %v312, %v337
      %v352 = vmul.f32 %v313, %v337
      %v353 = vmul.f32 %v314, %v337
      %v354 = vmul.f32 %v315, %v337
      %v355 = vmul.f32 %v316, %v337
      %v356 = vmul.f32 %v317, %v337
      %v357 = vmul.f32 %v318, %v337
      %v358 = vmul.f32 %v319, %v337
      %v359 = vmul.f32 %v320, %v337
      %v360 = vmul.f32 %v321, %v337
      %v361 = vmul.f32 %v322, %v337
      %v362 = vmul.f32 %v323, %v337
      %v363 = vmul.f32 %v324, %v337
      %v364 = vmul.f32 %v325, %v337
      %v365 = vmul.f32 %v326, %v337
      %v366 = vmul.f32 %v327, %v337
      %v367 = vmul.f32 %v328, %v337
      %v368 = vmul.f32 %v329, %v337
      %v369 = vmul.f32 %v330, %v337
      %v370 = vmul.f32 %v331, %v337
      %v371 = vld [vmem:[%s2] sm:$0x1]
      %v373 = vlaneseq
      %v374 = vshrl.u32 %v373, 7
      %v375 = vsub.s32 0, %v374
      %v376 = vrot.slane %v371, %v375
      %v378 = vadd.f32 %v339, %v376
      %v379 = vadd.f32 %v340, %v376
      %v380 = vadd.f32 %v341, %v376
      %v381 = vadd.f32 %v342, %v376
      %v382 = vadd.f32 %v343, %v376
      %v383 = vadd.f32 %v344, %v376
      %v384 = vadd.f32 %v345, %v376
      %v385 = vadd.f32 %v346, %v376
      %v386 = vadd.f32 %v347, %v376
      %v387 = vadd.f32 %v348, %v376
      %v388 = vadd.f32 %v349, %v376
      %v389 = vadd.f32 %v350, %v376
      %v390 = vadd.f32 %v351, %v376
      %v391 = vadd.f32 %v352, %v376
      %v392 = vadd.f32 %v353, %v376
      %v393 = vadd.f32 %v354, %v376
      %v394 = vadd.f32 %v355, %v376
      %v395 = vadd.f32 %v356, %v376
      %v396 = vadd.f32 %v357, %v376
      %v397 = vadd.f32 %v358, %v376
      %v398 = vadd.f32 %v359, %v376
      %v399 = vadd.f32 %v360, %v376
      %v400 = vadd.f32 %v361, %v376
      %v401 = vadd.f32 %v362, %v376
      %v402 = vadd.f32 %v363, %v376
      %v403 = vadd.f32 %v364, %v376
      %v404 = vadd.f32 %v365, %v376
      %v405 = vadd.f32 %v366, %v376
      %v406 = vadd.f32 %v367, %v376
      %v407 = vadd.f32 %v368, %v376
      %v408 = vadd.f32 %v369, %v376
      %v409 = vadd.f32 %v370, %v376
      %v410 = vmax.f32 %v378, 0.0
      %v411 = vmax.f32 %v379, 0.0
      %v412 = vmax.f32 %v380, 0.0
      %v413 = vmax.f32 %v381, 0.0
      %v414 = vmax.f32 %v382, 0.0
      %v415 = vmax.f32 %v383, 0.0
      %v416 = vmax.f32 %v384, 0.0
      %v417 = vmax.f32 %v385, 0.0
      %v418 = vmax.f32 %v386, 0.0
      %v419 = vmax.f32 %v387, 0.0
      %v420 = vmax.f32 %v388, 0.0
      %v421 = vmax.f32 %v389, 0.0
      %v422 = vmax.f32 %v390, 0.0
      %v423 = vmax.f32 %v391, 0.0
      %v424 = vmax.f32 %v392, 0.0
      %v425 = vmax.f32 %v393, 0.0
      %v426 = vmax.f32 %v394, 0.0
      %v427 = vmax.f32 %v395, 0.0
      %v428 = vmax.f32 %v396, 0.0
      %v429 = vmax.f32 %v397, 0.0
      %v430 = vmax.f32 %v398, 0.0
      %v431 = vmax.f32 %v399, 0.0
      %v432 = vmax.f32 %v400, 0.0
      %v433 = vmax.f32 %v401, 0.0
      %v434 = vmax.f32 %v402, 0.0
      %v435 = vmax.f32 %v403, 0.0
      %v436 = vmax.f32 %v404, 0.0
      %v437 = vmax.f32 %v405, 0.0
      %v438 = vmax.f32 %v406, 0.0
      %v439 = vmax.f32 %v407, 0.0
      %v440 = vmax.f32 %v408, 0.0
      %v441 = vmax.f32 %v409, 0.0
      %v442 = vld [vmem:[%s293] sm:$0xff]
      %v443 = vld [vmem:[%s293 + $0x8] sm:$0xff]
      %v444 = vld [vmem:[%s293 + $0x10] sm:$0xff]
      %v445 = vld [vmem:[%s293 + $0x18] sm:$0xff]
      %v446 = vld [vmem:[%s293 + $0x20] sm:$0xff]
      %v447 = vld [vmem:[%s293 + $0x28] sm:$0xff]
      %v448 = vld [vmem:[%s293 + $0x30] sm:$0xff]
      %v449 = vld [vmem:[%s293 + $0x38] sm:$0xff]
      %v450 = vld [vmem:[%s293 + $0x40] sm:$0xff]
      %v451 = vld [vmem:[%s293 + $0x48] sm:$0xff]
      %v452 = vld [vmem:[%s293 + $0x50] sm:$0xff]
      %v453 = vld [vmem:[%s293 + $0x58] sm:$0xff]
      %v454 = vld [vmem:[%s293 + $0x60] sm:$0xff]
      %v455 = vld [vmem:[%s293 + $0x68] sm:$0xff]
      %v456 = vld [vmem:[%s293 + $0x70] sm:$0xff]
      %v457 = vld [vmem:[%s293 + $0x78] sm:$0xff]
      %v458 = vld [vmem:[%s293 + $0x80] sm:$0xff]
      %v459 = vld [vmem:[%s293 + $0x88] sm:$0xff]
      %v460 = vld [vmem:[%s293 + $0x90] sm:$0xff]
      %v461 = vld [vmem:[%s293 + $0x98] sm:$0xff]
      %v462 = vld [vmem:[%s293 + $0xa0] sm:$0xff]
      %v463 = vld [vmem:[%s293 + $0xa8] sm:$0xff]
      %v464 = vld [vmem:[%s293 + $0xb0] sm:$0xff]
      %v465 = vld [vmem:[%s293 + $0xb8] sm:$0xff]
      %v466 = vld [vmem:[%s293 + $0xc0] sm:$0xff]
      %v467 = vld [vmem:[%s293 + $0xc8] sm:$0xff]
      %v468 = vld [vmem:[%s293 + $0xd0] sm:$0xff]
      %v469 = vld [vmem:[%s293 + $0xd8] sm:$0xff]
      %v470 = vld [vmem:[%s293 + $0xe0] sm:$0xff]
      %v471 = vld [vmem:[%s293 + $0xe8] sm:$0xff]
      %v472 = vld [vmem:[%s293 + $0xf0] sm:$0xff]
      %v473 = vld [vmem:[%s293 + $0xf8] sm:$0xff]
      %v474 = vld [vmem:[%s4] sm:$0x1]
      %v476 = vlaneseq
      %v477 = vshrl.u32 %v476, 7
      %v478 = vsub.s32 0, %v477
      %v479 = vrot.slane %v474, %v478
      %v481 = vmul.f32 %v442, %v479
      %v482 = vmul.f32 %v443, %v479
      %v483 = vmul.f32 %v444, %v479
      %v484 = vmul.f32 %v445, %v479
      %v485 = vmul.f32 %v446, %v479
      %v486 = vmul.f32 %v447, %v479
      %v487 = vmul.f32 %v448, %v479
      %v488 = vmul.f32 %v449, %v479
      %v489 = vmul.f32 %v450, %v479
      %v490 = vmul.f32 %v451, %v479
      %v491 = vmul.f32 %v452, %v479
      %v492 = vmul.f32 %v453, %v479
      %v493 = vmul.f32 %v454, %v479
      %v494 = vmul.f32 %v455, %v479
      %v495 = vmul.f32 %v456, %v479
      %v496 = vmul.f32 %v457, %v479
      %v497 = vmul.f32 %v458, %v479
      %v498 = vmul.f32 %v459, %v479
      %v499 = vmul.f32 %v460, %v479
      %v500 = vmul.f32 %v461, %v479
      %v501 = vmul.f32 %v462, %v479
      %v502 = vmul.f32 %v463, %v479
      %v503 = vmul.f32 %v464, %v479
      %v504 = vmul.f32 %v465, %v479
      %v505 = vmul.f32 %v466, %v479
      %v506 = vmul.f32 %v467, %v479
      %v507 = vmul.f32 %v468, %v479
      %v508 = vmul.f32 %v469, %v479
      %v509 = vmul.f32 %v470, %v479
      %v510 = vmul.f32 %v471, %v479
      %v511 = vmul.f32 %v472, %v479
      %v512 = vmul.f32 %v473, %v479
      %v513 = vld [vmem:[%s5] sm:$0x1]
      %v515 = vlaneseq
      %v516 = vshrl.u32 %v515, 7
      %v517 = vsub.s32 0, %v516
      %v518 = vrot.slane %v513, %v517
      %v520 = vadd.f32 %v481, %v518
      %v521 = vadd.f32 %v482, %v518
      %v522 = vadd.f32 %v483, %v518
      %v523 = vadd.f32 %v484, %v518
      %v524 = vadd.f32 %v485, %v518
      %v525 = vadd.f32 %v486, %v518
      %v526 = vadd.f32 %v487, %v518
      %v527 = vadd.f32 %v488, %v518
      %v528 = vadd.f32 %v489, %v518
      %v529 = vadd.f32 %v490, %v518
      %v530 = vadd.f32 %v491, %v518
      %v531 = vadd.f32 %v492, %v518
      %v532 = vadd.f32 %v493, %v518
      %v533 = vadd.f32 %v494, %v518
      %v534 = vadd.f32 %v495, %v518
      %v535 = vadd.f32 %v496, %v518
      %v536 = vadd.f32 %v497, %v518
      %v537 = vadd.f32 %v498, %v518
      %v538 = vadd.f32 %v499, %v518
      %v539 = vadd.f32 %v500, %v518
      %v540 = vadd.f32 %v501, %v518
      %v541 = vadd.f32 %v502, %v518
      %v542 = vadd.f32 %v503, %v518
      %v543 = vadd.f32 %v504, %v518
      %v544 = vadd.f32 %v505, %v518
      %v545 = vadd.f32 %v506, %v518
      %v546 = vadd.f32 %v507, %v518
      %v547 = vadd.f32 %v508, %v518
      %v548 = vadd.f32 %v509, %v518
      %v549 = vadd.f32 %v510, %v518
      %v550 = vadd.f32 %v511, %v518
      %v551 = vadd.f32 %v512, %v518
      %v552 = vmax.f32 %v520, 0.0
      %v553 = vmax.f32 %v521, 0.0
      %v554 = vmax.f32 %v522, 0.0
      %v555 = vmax.f32 %v523, 0.0
      %v556 = vmax.f32 %v524, 0.0
      %v557 = vmax.f32 %v525, 0.0
      %v558 = vmax.f32 %v526, 0.0
      %v559 = vmax.f32 %v527, 0.0
      %v560 = vmax.f32 %v528, 0.0
      %v561 = vmax.f32 %v529, 0.0
      %v562 = vmax.f32 %v530, 0.0
      %v563 = vmax.f32 %v531, 0.0
      %v564 = vmax.f32 %v532, 0.0
      %v565 = vmax.f32 %v533, 0.0
      %v566 = vmax.f32 %v534, 0.0
      %v567 = vmax.f32 %v535, 0.0
      %v568 = vmax.f32 %v536, 0.0
      %v569 = vmax.f32 %v537, 0.0
      %v570 = vmax.f32 %v538, 0.0
      %v571 = vmax.f32 %v539, 0.0
      %v572 = vmax.f32 %v540, 0.0
      %v573 = vmax.f32 %v541, 0.0
      %v574 = vmax.f32 %v542, 0.0
      %v575 = vmax.f32 %v543, 0.0
      %v576 = vmax.f32 %v544, 0.0
      %v577 = vmax.f32 %v545, 0.0
      %v578 = vmax.f32 %v546, 0.0
      %v579 = vmax.f32 %v547, 0.0
      %v580 = vmax.f32 %v548, 0.0
      %v581 = vmax.f32 %v549, 0.0
      %v582 = vmax.f32 %v550, 0.0
      %v583 = vmax.f32 %v551, 0.0
      %vm584 = vcmask 31744
      %585 = vst.msk [vmem:[#allocation2] sm:$0xff] %vm584, 0.0
      %586 = vst.msk [vmem:[#allocation2 + $0x8] sm:$0xff] %vm584, 0.0
      %vm587 = vcmask 25600
      %588 = vst.msk [vmem:[#allocation2 + $0x10] sm:$0x3] %vm587, 0.0
      %589 = vst.msk [vmem:[#allocation2 + $0x18] sm:$0xff] %vm584, 0.0
      %590 = vst.msk [vmem:[#allocation2 + $0x20] sm:$0xff] %vm584, 0.0
      %591 = vst.msk [vmem:[#allocation2 + $0x28] sm:$0x3] %vm587, 0.0
      %592 = vst.msk [vmem:[#allocation2 + $0x30] sm:$0xff] %vm584, 0.0
      %593 = vst.msk [vmem:[#allocation2 + $0x38] sm:$0xff] %vm584, 0.0
      %594 = vst.msk [vmem:[#allocation2 + $0x40] sm:$0x3] %vm587, 0.0
      %595 = vst.msk [vmem:[#allocation2 + $0x48] sm:$0xff] %vm584, 0.0
      %596 = vst.msk [vmem:[#allocation2 + $0x50] sm:$0xff] %vm584, 0.0
      %597 = vst.msk [vmem:[#allocation2 + $0x58] sm:$0x3] %vm587, 0.0
      %598 = vst.msk [vmem:[#allocation2 + $0x60] sm:$0xff] %vm584, 0.0
      %599 = vst.msk [vmem:[#allocation2 + $0x68] sm:$0xff] %vm584, 0.0
      %600 = vst.msk [vmem:[#allocation2 + $0x70] sm:$0x3] %vm587, 0.0
      %601 = vst.msk [vmem:[#allocation2 + $0x78] sm:$0xff] %vm584, 0.0
      %602 = vst.msk [vmem:[#allocation2 + $0x80] sm:$0xff] %vm584, 0.0
      %603 = vst.msk [vmem:[#allocation2 + $0x88] sm:$0x3] %vm587, 0.0
      %604 = vst.msk [vmem:[#allocation2 + $0x90] sm:$0xff] %vm584, 0.0
      %605 = vst.msk [vmem:[#allocation2 + $0x98] sm:$0xff] %vm584, 0.0
      %606 = vst.msk [vmem:[#allocation2 + $0xa0] sm:$0x3] %vm587, 0.0
      %607 = vst.msk [vmem:[#allocation2 + $0xa8] sm:$0xff] %vm584, 0.0
      %608 = vst.msk [vmem:[#allocation2 + $0xb0] sm:$0xff] %vm584, 0.0
      %609 = vst.msk [vmem:[#allocation2 + $0xb8] sm:$0x3] %vm587, 0.0
      %610 = vst.msk [vmem:[#allocation2 + $0xc0] sm:$0xff] %vm584, 0.0
      %611 = vst.msk [vmem:[#allocation2 + $0xc8] sm:$0xff] %vm584, 0.0
      %612 = vst.msk [vmem:[#allocation2 + $0xd0] sm:$0x3] %vm587, 0.0
      %613 = vst.msk [vmem:[#allocation2 + $0xd8] sm:$0xff] %vm584, 0.0
      %614 = vst.msk [vmem:[#allocation2 + $0xe0] sm:$0xff] %vm584, 0.0
      %615 = vst.msk [vmem:[#allocation2 + $0xe8] sm:$0x3] %vm587, 0.0
      %616 = vst.msk [vmem:[#allocation2 + $0xf0] sm:$0xff] %vm584, 0.0
      %617 = vst.msk [vmem:[#allocation2 + $0xf8] sm:$0xff] %vm584, 0.0
      %618 = vst.msk [vmem:[#allocation2 + $0x100] sm:$0x3] %vm587, 0.0
      %619 = vst.msk [vmem:[#allocation2 + $0x108] sm:$0xff] %vm584, 0.0
      %620 = vst.msk [vmem:[#allocation2 + $0x110] sm:$0xff] %vm584, 0.0
      %621 = vst.msk [vmem:[#allocation2 + $0x118] sm:$0x3] %vm587, 0.0
      %622 = vst.msk [vmem:[#allocation2 + $0x120] sm:$0xff] %vm584, 0.0
      %623 = vst.msk [vmem:[#allocation2 + $0x128] sm:$0xff] %vm584, 0.0
      %624 = vst.msk [vmem:[#allocation2 + $0x130] sm:$0x3] %vm587, 0.0
      %625 = vst.msk [vmem:[#allocation2 + $0x138] sm:$0xff] %vm584, 0.0
      %626 = vst.msk [vmem:[#allocation2 + $0x140] sm:$0xff] %vm584, 0.0
      %627 = vst.msk [vmem:[#allocation2 + $0x148] sm:$0x3] %vm587, 0.0
      %628 = vst.msk [vmem:[#allocation2 + $0x150] sm:$0xff] %vm584, 0.0
      %629 = vst.msk [vmem:[#allocation2 + $0x158] sm:$0xff] %vm584, 0.0
      %630 = vst.msk [vmem:[#allocation2 + $0x160] sm:$0x3] %vm587, 0.0
      %631 = vst.msk [vmem:[#allocation2 + $0x168] sm:$0xff] %vm584, 0.0
      %632 = vst.msk [vmem:[#allocation2 + $0x170] sm:$0xff] %vm584, 0.0
      %633 = vst.msk [vmem:[#allocation2 + $0x178] sm:$0x3] %vm587, 0.0
      %634 = vst.msk [vmem:[#allocation2 + $0x180] sm:$0xff] %vm584, 0.0
      %635 = vst.msk [vmem:[#allocation2 + $0x188] sm:$0xff] %vm584, 0.0
      %636 = vst.msk [vmem:[#allocation2 + $0x190] sm:$0x3] %vm587, 0.0
      %637 = vst.msk [vmem:[#allocation2 + $0x198] sm:$0xff] %vm584, 0.0
      %638 = vst.msk [vmem:[#allocation2 + $0x1a0] sm:$0xff] %vm584, 0.0
      %639 = vst.msk [vmem:[#allocation2 + $0x1a8] sm:$0x3] %vm587, 0.0
      %s640 = scalar_lea.vmem [#allocation2], 24
      %641 = vst.msk [vmem:[%s640 + $0x1] sm:$0xff] %vm584, %v552
      %642 = vst.msk [vmem:[%s640 + $0x9] sm:$0xff] %vm584, %v553
      %643 = vst.msk [vmem:[%s640 + $0x19] sm:$0xff] %vm584, %v554
      %644 = vst.msk [vmem:[%s640 + $0x21] sm:$0xff] %vm584, %v555
      %645 = vst.msk [vmem:[%s640 + $0x31] sm:$0xff] %vm584, %v556
      %646 = vst.msk [vmem:[%s640 + $0x39] sm:$0xff] %vm584, %v557
      %647 = vst.msk [vmem:[%s640 + $0x49] sm:$0xff] %vm584, %v558
      %648 = vst.msk [vmem:[%s640 + $0x51] sm:$0xff] %vm584, %v559
      %649 = vst.msk [vmem:[%s640 + $0x61] sm:$0xff] %vm584, %v560
      %650 = vst.msk [vmem:[%s640 + $0x69] sm:$0xff] %vm584, %v561
      %651 = vst.msk [vmem:[%s640 + $0x79] sm:$0xff] %vm584, %v562
      %652 = vst.msk [vmem:[%s640 + $0x81] sm:$0xff] %vm584, %v563
      %653 = vst.msk [vmem:[%s640 + $0x91] sm:$0xff] %vm584, %v564
      %654 = vst.msk [vmem:[%s640 + $0x99] sm:$0xff] %vm584, %v565
      %655 = vst.msk [vmem:[%s640 + $0xa9] sm:$0xff] %vm584, %v566
      %656 = vst.msk [vmem:[%s640 + $0xb1] sm:$0xff] %vm584, %v567
      %657 = vst.msk [vmem:[%s640 + $0xc1] sm:$0xff] %vm584, %v568
      %658 = vst.msk [vmem:[%s640 + $0xc9] sm:$0xff] %vm584, %v569
      %659 = vst.msk [vmem:[%s640 + $0xd9] sm:$0xff] %vm584, %v570
      %660 = vst.msk [vmem:[%s640 + $0xe1] sm:$0xff] %vm584, %v571
      %661 = vst.msk [vmem:[%s640 + $0xf1] sm:$0xff] %vm584, %v572
      %662 = vst.msk [vmem:[%s640 + $0xf9] sm:$0xff] %vm584, %v573
      %663 = vst.msk [vmem:[%s640 + $0x109] sm:$0xff] %vm584, %v574
      %664 = vst.msk [vmem:[%s640 + $0x111] sm:$0xff] %vm584, %v575
      %665 = vst.msk [vmem:[%s640 + $0x121] sm:$0xff] %vm584, %v576
      %666 = vst.msk [vmem:[%s640 + $0x129] sm:$0xff] %vm584, %v577
      %667 = vst.msk [vmem:[%s640 + $0x139] sm:$0xff] %vm584, %v578
      %668 = vst.msk [vmem:[%s640 + $0x141] sm:$0xff] %vm584, %v579
      %669 = vst.msk [vmem:[%s640 + $0x151] sm:$0xff] %vm584, %v580
      %670 = vst.msk [vmem:[%s640 + $0x159] sm:$0xff] %vm584, %v581
      %671 = vst.msk [vmem:[%s640 + $0x169] sm:$0xff] %vm584, %v582
      %672 = vst.msk [vmem:[%s640 + $0x171] sm:$0xff] %vm584, %v583
      %v673 = vld [vmem:[#allocation2] sm:$0xff]
      %v674 = vld [vmem:[#allocation2 + $0x8] sm:$0xff]
      %v675 = vld [vmem:[#allocation2 + $0x18] sm:$0xff]
      %v676 = vld [vmem:[#allocation2 + $0x20] sm:$0xff]
      %v677 = vld [vmem:[#allocation2 + $0x30] sm:$0xff]
      %v678 = vld [vmem:[#allocation2 + $0x38] sm:$0xff]
      %v679 = vld [vmem:[#allocation2 + $0x48] sm:$0xff]
      %v680 = vld [vmem:[#allocation2 + $0x50] sm:$0xff]
      %v681 = vld [vmem:[#allocation2 + $0x60] sm:$0xff]
      %v682 = vld [vmem:[#allocation2 + $0x68] sm:$0xff]
      %v683 = vld [vmem:[#allocation2 + $0x78] sm:$0xff]
      %v684 = vld [vmem:[#allocation2 + $0x80] sm:$0xff]
      %v685 = vld [vmem:[#allocation2 + $0x90] sm:$0xff]
      %v686 = vld [vmem:[#allocation2 + $0x98] sm:$0xff]
      %v687 = vld [vmem:[#allocation2 + $0xa8] sm:$0xff]
      %v688 = vld [vmem:[#allocation2 + $0xb0] sm:$0xff]
      %v689 = vld [vmem:[#allocation2 + $0xc0] sm:$0xff]
      %v690 = vld [vmem:[#allocation2 + $0xc8] sm:$0xff]
      %v691 = vld [vmem:[#allocation2 + $0xd8] sm:$0xff]
      %v692 = vld [vmem:[#allocation2 + $0xe0] sm:$0xff]
      %v693 = vld [vmem:[#allocation2 + $0xf0] sm:$0xff]
      %v694 = vld [vmem:[#allocation2 + $0xf8] sm:$0xff]
      %v695 = vld [vmem:[#allocation2 + $0x108] sm:$0xff]
      %v696 = vld [vmem:[#allocation2 + $0x110] sm:$0xff]
      %v697 = vld [vmem:[#allocation2 + $0x120] sm:$0xff]
      %v698 = vld [vmem:[#allocation2 + $0x128] sm:$0xff]
      %v699 = vld [vmem:[#allocation2 + $0x138] sm:$0xff]
      %v700 = vld [vmem:[#allocation2 + $0x140] sm:$0xff]
      %v701 = vld [vmem:[#allocation2 + $0x150] sm:$0xff]
      %v702 = vld [vmem:[#allocation2 + $0x158] sm:$0xff]
      %v703 = vld [vmem:[#allocation2 + $0x168] sm:$0xff]
      %v704 = vld [vmem:[#allocation2 + $0x170] sm:$0xff]
      %v705 = vpack.c.bf16 %v674, %v673
      %v706 = vpack.c.bf16 %v676, %v675
      %v707 = vpack.c.bf16 %v678, %v677
      %v708 = vpack.c.bf16 %v680, %v679
      %v709 = vpack.c.bf16 %v682, %v681
      %v710 = vpack.c.bf16 %v684, %v683
      %v711 = vpack.c.bf16 %v686, %v685
      %v712 = vpack.c.bf16 %v688, %v687
      %v713 = vpack.c.bf16 %v690, %v689
      %v714 = vpack.c.bf16 %v692, %v691
      %v715 = vpack.c.bf16 %v694, %v693
      %v716 = vpack.c.bf16 %v696, %v695
      %v717 = vpack.c.bf16 %v698, %v697
      %v718 = vpack.c.bf16 %v700, %v699
      %v719 = vpack.c.bf16 %v702, %v701
      %v720 = vpack.c.bf16 %v704, %v703
      %v721 = vld [vmem:[%s6] sm:$0x3]
      %v722 = vld [vmem:[#allocation2 + $0x1] sm:$0xff]
      %v723 = vld [vmem:[#allocation2 + $0x9] sm:$0xff]
      %v724 = vld [vmem:[#allocation2 + $0x19] sm:$0xff]
      %v725 = vld [vmem:[#allocation2 + $0x21] sm:$0xff]
      %v726 = vld [vmem:[#allocation2 + $0x31] sm:$0xff]
      %v727 = vld [vmem:[#allocation2 + $0x39] sm:$0xff]
      %v728 = vld [vmem:[#allocation2 + $0x49] sm:$0xff]
      %v729 = vld [vmem:[#allocation2 + $0x51] sm:$0xff]
      %v730 = vld [vmem:[#allocation2 + $0x61] sm:$0xff]
      %v731 = vld [vmem:[#allocation2 + $0x69] sm:$0xff]
      %v732 = vld [vmem:[#allocation2 + $0x79] sm:$0xff]
      %v733 = vld [vmem:[#allocation2 + $0x81] sm:$0xff]
      %v734 = vld [vmem:[#allocation2 + $0x91] sm:$0xff]
      %v735 = vld [vmem:[#allocation2 + $0x99] sm:$0xff]
      %v736 = vld [vmem:[#allocation2 + $0xa9] sm:$0xff]
      %v737 = vld [vmem:[#allocation2 + $0xb1] sm:$0xff]
      %v738 = vld [vmem:[#allocation2 + $0xc1] sm:$0xff]
      %v739 = vld [vmem:[#allocation2 + $0xc9] sm:$0xff]
      %v740 = vld [vmem:[#allocation2 + $0xd9] sm:$0xff]
      %v741 = vld [vmem:[#allocation2 + $0xe1] sm:$0xff]
      %v742 = vld [vmem:[#allocation2 + $0xf1] sm:$0xff]
      %v743 = vld [vmem:[#allocation2 + $0xf9] sm:$0xff]
      %v744 = vld [vmem:[#allocation2 + $0x109] sm:$0xff]
      %v745 = vld [vmem:[#allocation2 + $0x111] sm:$0xff]
      %v746 = vld [vmem:[#allocation2 + $0x121] sm:$0xff]
      %v747 = vld [vmem:[#allocation2 + $0x129] sm:$0xff]
      %v748 = vld [vmem:[#allocation2 + $0x139] sm:$0xff]
      %v749 = vld [vmem:[#allocation2 + $0x141] sm:$0xff]
      %v750 = vld [vmem:[#allocation2 + $0x151] sm:$0xff]
      %v751 = vld [vmem:[#allocation2 + $0x159] sm:$0xff]
      %v752 = vld [vmem:[#allocation2 + $0x169] sm:$0xff]
      %v753 = vld [vmem:[#allocation2 + $0x171] sm:$0xff]
      %v754 = vpack.c.bf16 %v723, %v722
      %v755 = vpack.c.bf16 %v725, %v724
      %v756 = vpack.c.bf16 %v727, %v726
      %v757 = vpack.c.bf16 %v729, %v728
      %v758 = vpack.c.bf16 %v731, %v730
      %v759 = vpack.c.bf16 %v733, %v732
      %v760 = vpack.c.bf16 %v735, %v734
      %v761 = vpack.c.bf16 %v737, %v736
      %v762 = vpack.c.bf16 %v739, %v738
      %v763 = vpack.c.bf16 %v741, %v740
      %v764 = vpack.c.bf16 %v743, %v742
      %v765 = vpack.c.bf16 %v745, %v744
      %v766 = vpack.c.bf16 %v747, %v746
      %v767 = vpack.c.bf16 %v749, %v748
      %v768 = vpack.c.bf16 %v751, %v750
      %v769 = vpack.c.bf16 %v753, %v752
      %s770 = scalar_lea.vmem %s6, 2
      %v771 = vld [vmem:[%s770] sm:$0x3]
      %v773 = vsel %vm584, %v754, 0
      %v776 = vsel %vm584, %v755, 0
      %v779 = vsel %vm584, %v756, 0
      %v782 = vsel %vm584, %v757, 0
      %v785 = vsel %vm584, %v758, 0
      %v788 = vsel %vm584, %v759, 0
      %v791 = vsel %vm584, %v760, 0
      %v794 = vsel %vm584, %v761, 0
      %v797 = vsel %vm584, %v762, 0
      %v800 = vsel %vm584, %v763, 0
      %v803 = vsel %vm584, %v764, 0
      %v806 = vsel %vm584, %v765, 0
      %v809 = vsel %vm584, %v766, 0
      %v812 = vsel %vm584, %v767, 0
      %v815 = vsel %vm584, %v768, 0
      %v818 = vsel %vm584, %v769, 0
      %vm820 = vcmask 1041408
      %v822 = vsel %vm820, %v771, 0
      %824 = vmatprep.subr.bf16.mxu0 0
      %825 = vmatpush1.bf16.msra.mxu0 %v822
      %826 = vmatprep.subr.bf16.mxu0 0
      %827 = vmatpush1.bf16.msra.mxu0 0
      %828 = vmatprep.subr.bf16.mxu0 0
      %829 = vmatpush1.bf16.msra.mxu0 0
      %830 = vmatprep.subr.bf16.mxu0 0
      %831 = vmatpush1.bf16.msra.mxu0 0
      %832 = vmatprep.subr.bf16.mxu0 0
      %833 = vmatpush1.bf16.msra.mxu0 0
      %834 = vmatprep.subr.bf16.mxu0 0
      %835 = vmatpush1.bf16.msra.mxu0 0
      %836 = vmatprep.subr.bf16.mxu0 0
      %837 = vmatpush1.bf16.msra.mxu0 0
      %838 = vmatprep.subr.bf16.mxu0 0
      %839 = vmatpush1.bf16.msra.mxu0 0
      %840 = vmatprep.subr.bf16.mxu0 0
      %841 = vmatpush1.bf16.msra.mxu0 0
      %842 = vmatprep.subr.bf16.mxu0 0
      %843 = vmatpush1.bf16.msra.mxu0 0
      %844 = vmatprep.subr.bf16.mxu0 0
      %845 = vmatpush1.bf16.msra.mxu0 0
      %846 = vmatprep.subr.bf16.mxu0 0
      %847 = vmatpush1.bf16.msra.mxu0 0
      %848 = vmatprep.subr.bf16.mxu0 0
      %849 = vmatpush1.bf16.msra.mxu0 0
      %850 = vmatprep.subr.bf16.mxu0 0
      %851 = vmatpush1.bf16.msra.mxu0 0
      %852 = vmatprep.subr.bf16.mxu0 0
      %853 = vmatpush1.bf16.msra.mxu0 0
      %854 = vmatprep.subr.bf16.mxu0 0
      %855 = vmatpush1.bf16.msra.mxu0 0
      %856 = vmatprep.mubr.bf16.mxu0 0
      %857 = vmatmul.mubr.bf16.gmra.mrb[0].mxu0 %v773
      %v858 = vpop.f32.mrb[0].mxu0
      %v859 = vadd.f32 0.0, %v858
      %v860 = vpop.f32.mrb[0].mxu0
      %v861 = vpop.f32.mrb[0].mxu0
      %v862 = vadd.f32 0.0, %v861
      %v863 = vpop.f32.mrb[0].mxu0
      %864 = vmatprep.mubr.bf16.mxu0 0
      %865 = vmatmul.mubr.bf16.gmra.mrb[0].mxu0 %v776
      %v866 = vpop.f32.mrb[0].mxu0
      %v867 = vadd.f32 0.0, %v866
      %v868 = vpop.f32.mrb[0].mxu0
      %v869 = vpop.f32.mrb[0].mxu0
      %v870 = vadd.f32 0.0, %v869
      %v871 = vpop.f32.mrb[0].mxu0
      %872 = vmatprep.mubr.bf16.mxu0 0
      %873 = vmatmul.mubr.bf16.gmra.mrb[0].mxu0 %v779
      %v874 = vpop.f32.mrb[0].mxu0
      %v875 = vadd.f32 0.0, %v874
      %v876 = vpop.f32.mrb[0].mxu0
      %v877 = vpop.f32.mrb[0].mxu0
      %v878 = vadd.f32 0.0, %v877
      %v879 = vpop.f32.mrb[0].mxu0
      %880 = vmatprep.mubr.bf16.mxu0 0
      %881 = vmatmul.mubr.bf16.gmra.mrb[0].mxu0 %v782
      %v882 = vpop.f32.mrb[0].mxu0
      %v883 = vadd.f32 0.0, %v882
      %v884 = vpop.f32.mrb[0].mxu0
      %v885 = vpop.f32.mrb[0].mxu0
      %v886 = vadd.f32 0.0, %v885
      %v887 = vpop.f32.mrb[0].mxu0
      %888 = vmatprep.mubr.bf16.mxu0 0
      %889 = vmatmul.mubr.bf16.gmra.mrb[0].mxu0 %v785
      %v890 = vpop.f32.mrb[0].mxu0
      %v891 = vadd.f32 0.0, %v890
      %v892 = vpop.f32.mrb[0].mxu0
      %v893 = vpop.f32.mrb[0].mxu0
      %v894 = vadd.f32 0.0, %v893
      %v895 = vpop.f32.mrb[0].mxu0
      %896 = vmatprep.mubr.bf16.mxu0 0
      %897 = vmatmul.mubr.bf16.gmra.mrb[0].mxu0 %v788
      %v898 = vpop.f32.mrb[0].mxu0
      %v899 = vadd.f32 0.0, %v898
      %v900 = vpop.f32.mrb[0].mxu0
      %v901 = vpop.f32.mrb[0].mxu0
      %v902 = vadd.f32 0.0, %v901
      %v903 = vpop.f32.mrb[0].mxu0
      %904 = vmatprep.mubr.bf16.mxu0 0
      %905 = vmatmul.mubr.bf16.gmra.mrb[0].mxu0 %v791
      %v906 = vpop.f32.mrb[0].mxu0
      %v907 = vadd.f32 0.0, %v906
      %v908 = vpop.f32.mrb[0].mxu0
      %v909 = vpop.f32.mrb[0].mxu0
      %v910 = vadd.f32 0.0, %v909
      %v911 = vpop.f32.mrb[0].mxu0
      %912 = vmatprep.mubr.bf16.mxu0 0
      %913 = vmatmul.mubr.bf16.gmra.mrb[0].mxu0 %v794
      %v914 = vpop.f32.mrb[0].mxu0
      %v915 = vadd.f32 0.0, %v914
      %v916 = vpop.f32.mrb[0].mxu0
      %v917 = vpop.f32.mrb[0].mxu0
      %v918 = vadd.f32 0.0, %v917
      %v919 = vpop.f32.mrb[0].mxu0
      %920 = vmatprep.mubr.bf16.mxu0 0
      %921 = vmatmul.mubr.bf16.gmra.mrb[0].mxu0 %v797
      %v922 = vpop.f32.mrb[0].mxu0
      %v923 = vadd.f32 0.0, %v922
      %v924 = vpop.f32.mrb[0].mxu0
      %v925 = vpop.f32.mrb[0].mxu0
      %v926 = vadd.f32 0.0, %v925
      %v927 = vpop.f32.mrb[0].mxu0
      %928 = vmatprep.mubr.bf16.mxu0 0
      %929 = vmatmul.mubr.bf16.gmra.mrb[0].mxu0 %v800
      %v930 = vpop.f32.mrb[0].mxu0
      %v931 = vadd.f32 0.0, %v930
      %v932 = vpop.f32.mrb[0].mxu0
      %v933 = vpop.f32.mrb[0].mxu0
      %v934 = vadd.f32 0.0, %v933
      %v935 = vpop.f32.mrb[0].mxu0
      %936 = vmatprep.mubr.bf16.mxu0 0
      %937 = vmatmul.mubr.bf16.gmra.mrb[0].mxu0 %v803
      %v938 = vpop.f32.mrb[0].mxu0
      %v939 = vadd.f32 0.0, %v938
      %v940 = vpop.f32.mrb[0].mxu0
      %v941 = vpop.f32.mrb[0].mxu0
      %v942 = vadd.f32 0.0, %v941
      %v943 = vpop.f32.mrb[0].mxu0
      %944 = vmatprep.mubr.bf16.mxu0 0
      %945 = vmatmul.mubr.bf16.gmra.mrb[0].mxu0 %v806
      %v946 = vpop.f32.mrb[0].mxu0
      %v947 = vadd.f32 0.0, %v946
      %v948 = vpop.f32.mrb[0].mxu0
      %v949 = vpop.f32.mrb[0].mxu0
      %v950 = vadd.f32 0.0, %v949
      %v951 = vpop.f32.mrb[0].mxu0
      %952 = vmatprep.mubr.bf16.mxu0 0
      %953 = vmatmul.mubr.bf16.gmra.mrb[0].mxu0 %v809
      %v954 = vpop.f32.mrb[0].mxu0
      %v955 = vadd.f32 0.0, %v954
      %v956 = vpop.f32.mrb[0].mxu0
      %v957 = vpop.f32.mrb[0].mxu0
      %v958 = vadd.f32 0.0, %v957
      %v959 = vpop.f32.mrb[0].mxu0
      %960 = vmatprep.mubr.bf16.mxu0 0
      %961 = vmatmul.mubr.bf16.gmra.mrb[0].mxu0 %v812
      %v962 = vpop.f32.mrb[0].mxu0
      %v963 = vadd.f32 0.0, %v962
      %v964 = vpop.f32.mrb[0].mxu0
      %v965 = vpop.f32.mrb[0].mxu0
      %v966 = vadd.f32 0.0, %v965
      %v967 = vpop.f32.mrb[0].mxu0
      %968 = vmatprep.mubr.bf16.mxu0 0
      %969 = vmatmul.mubr.bf16.gmra.mrb[0].mxu0 %v815
      %v970 = vpop.f32.mrb[0].mxu0
      %v971 = vadd.f32 0.0, %v970
      %v972 = vpop.f32.mrb[0].mxu0
      %v973 = vpop.f32.mrb[0].mxu0
      %v974 = vadd.f32 0.0, %v973
      %v975 = vpop.f32.mrb[0].mxu0
      %976 = vmatprep.mubr.bf16.mxu0 0
      %977 = vmatmul.mubr.bf16.gmra.mrb[0].mxu0 %v818
      %v978 = vpop.f32.mrb[0].mxu0
      %v979 = vadd.f32 0.0, %v978
      %v980 = vpop.f32.mrb[0].mxu0
      %v981 = vpop.f32.mrb[0].mxu0
      %v982 = vadd.f32 0.0, %v981
      %v983 = vpop.f32.mrb[0].mxu0
      %984 = vdwg.mxu0
      %v986 = vsel %vm584, %v705, 0
      %v989 = vsel %vm584, %v706, 0
      %v992 = vsel %vm584, %v707, 0
      %v995 = vsel %vm584, %v708, 0
      %v998 = vsel %vm584, %v709, 0
      %v1001 = vsel %vm584, %v710, 0
      %v1004 = vsel %vm584, %v711, 0
      %v1007 = vsel %vm584, %v712, 0
      %v1010 = vsel %vm584, %v713, 0
      %v1013 = vsel %vm584, %v714, 0
      %v1016 = vsel %vm584, %v715, 0
      %v1019 = vsel %vm584, %v716, 0
      %v1022 = vsel %vm584, %v717, 0
      %v1025 = vsel %vm584, %v718, 0
      %v1028 = vsel %vm584, %v719, 0
      %v1031 = vsel %vm584, %v720, 0
      %v1034 = vsel %vm820, %v721, 0
      %1036 = vmatprep.subr.bf16.mxu0 0
      %1037 = vmatpush1.bf16.msra.mxu0 %v1034
      %1038 = vmatprep.subr.bf16.mxu0 0
      %1039 = vmatpush1.bf16.msra.mxu0 0
      %1040 = vmatprep.subr.bf16.mxu0 0
      %1041 = vmatpush1.bf16.msra.mxu0 0
      %1042 = vmatprep.subr.bf16.mxu0 0
      %1043 = vmatpush1.bf16.msra.mxu0 0
      %1044 = vmatprep.subr.bf16.mxu0 0
      %1045 = vmatpush1.bf16.msra.mxu0 0
      %1046 = vmatprep.subr.bf16.mxu0 0
      %1047 = vmatpush1.bf16.msra.mxu0 0
      %1048 = vmatprep.subr.bf16.mxu0 0
      %1049 = vmatpush1.bf16.msra.mxu0 0
      %1050 = vmatprep.subr.bf16.mxu0 0
      %1051 = vmatpush1.bf16.msra.mxu0 0
      %1052 = vmatprep.subr.bf16.mxu0 0
      %1053 = vmatpush1.bf16.msra.mxu0 0
      %1054 = vmatprep.subr.bf16.mxu0 0
      %1055 = vmatpush1.bf16.msra.mxu0 0
      %1056 = vmatprep.subr.bf16.mxu0 0
      %1057 = vmatpush1.bf16.msra.mxu0 0
      %1058 = vmatprep.subr.bf16.mxu0 0
      %1059 = vmatpush1.bf16.msra.mxu0 0
      %1060 = vmatprep.subr.bf16.mxu0 0
      %1061 = vmatpush1.bf16.msra.mxu0 0
      %1062 = vmatprep.subr.bf16.mxu0 0
      %1063 = vmatpush1.bf16.msra.mxu0 0
      %1064 = vmatprep.subr.bf16.mxu0 0
      %1065 = vmatpush1.bf16.msra.mxu0 0
      %1066 = vmatprep.subr.bf16.mxu0 0
      %1067 = vmatpush1.bf16.msra.mxu0 0
      %1068 = vmatprep.mubr.bf16.mxu0 0
      %1069 = vmatmul.mubr.bf16.gmra.mrb[0].mxu0 %v986
      %v1070 = vpop.f32.mrb[0].mxu0
      %v1071 = vadd.f32 %v859, %v1070
      %v1072 = vpop.f32.mrb[0].mxu0
      %v1073 = vpop.f32.mrb[0].mxu0
      %v1074 = vadd.f32 %v862, %v1073
      %v1075 = vpop.f32.mrb[0].mxu0
      %1076 = vmatprep.mubr.bf16.mxu0 0
      %1077 = vmatmul.mubr.bf16.gmra.mrb[0].mxu0 %v989
      %v1078 = vpop.f32.mrb[0].mxu0
      %v1079 = vadd.f32 %v867, %v1078
      %v1080 = vpop.f32.mrb[0].mxu0
      %v1081 = vpop.f32.mrb[0].mxu0
      %v1082 = vadd.f32 %v870, %v1081
      %v1083 = vpop.f32.mrb[0].mxu0
      %1084 = vmatprep.mubr.bf16.mxu0 0
      %1085 = vmatmul.mubr.bf16.gmra.mrb[0].mxu0 %v992
      %v1086 = vpop.f32.mrb[0].mxu0
      %v1087 = vadd.f32 %v875, %v1086
      %v1088 = vpop.f32.mrb[0].mxu0
      %v1089 = vpop.f32.mrb[0].mxu0
      %v1090 = vadd.f32 %v878, %v1089
      %v1091 = vpop.f32.mrb[0].mxu0
      %1092 = vmatprep.mubr.bf16.mxu0 0
      %1093 = vmatmul.mubr.bf16.gmra.mrb[0].mxu0 %v995
      %v1094 = vpop.f32.mrb[0].mxu0
      %v1095 = vadd.f32 %v883, %v1094
      %v1096 = vpop.f32.mrb[0].mxu0
      %v1097 = vpop.f32.mrb[0].mxu0
      %v1098 = vadd.f32 %v886, %v1097
      %v1099 = vpop.f32.mrb[0].mxu0
      %1100 = vmatprep.mubr.bf16.mxu0 0
      %1101 = vmatmul.mubr.bf16.gmra.mrb[0].mxu0 %v998
      %v1102 = vpop.f32.mrb[0].mxu0
      %v1103 = vadd.f32 %v891, %v1102
      %v1104 = vpop.f32.mrb[0].mxu0
      %v1105 = vpop.f32.mrb[0].mxu0
      %v1106 = vadd.f32 %v894, %v1105
      %v1107 = vpop.f32.mrb[0].mxu0
      %1108 = vmatprep.mubr.bf16.mxu0 0
      %1109 = vmatmul.mubr.bf16.gmra.mrb[0].mxu0 %v1001
      %v1110 = vpop.f32.mrb[0].mxu0
      %v1111 = vadd.f32 %v899, %v1110
      %v1112 = vpop.f32.mrb[0].mxu0
      %v1113 = vpop.f32.mrb[0].mxu0
      %v1114 = vadd.f32 %v902, %v1113
      %v1115 = vpop.f32.mrb[0].mxu0
      %1116 = vmatprep.mubr.bf16.mxu0 0
      %1117 = vmatmul.mubr.bf16.gmra.mrb[0].mxu0 %v1004
      %v1118 = vpop.f32.mrb[0].mxu0
      %v1119 = vadd.f32 %v907, %v1118
      %v1120 = vpop.f32.mrb[0].mxu0
      %v1121 = vpop.f32.mrb[0].mxu0
      %v1122 = vadd.f32 %v910, %v1121
      %v1123 = vpop.f32.mrb[0].mxu0
      %1124 = vmatprep.mubr.bf16.mxu0 0
      %1125 = vmatmul.mubr.bf16.gmra.mrb[0].mxu0 %v1007
      %v1126 = vpop.f32.mrb[0].mxu0
      %v1127 = vadd.f32 %v915, %v1126
      %v1128 = vpop.f32.mrb[0].mxu0
      %v1129 = vpop.f32.mrb[0].mxu0
      %v1130 = vadd.f32 %v918, %v1129
      %v1131 = vpop.f32.mrb[0].mxu0
      %1132 = vmatprep.mubr.bf16.mxu0 0
      %1133 = vmatmul.mubr.bf16.gmra.mrb[0].mxu0 %v1010
      %v1134 = vpop.f32.mrb[0].mxu0
      %v1135 = vadd.f32 %v923, %v1134
      %v1136 = vpop.f32.mrb[0].mxu0
      %v1137 = vpop.f32.mrb[0].mxu0
      %v1138 = vadd.f32 %v926, %v1137
      %v1139 = vpop.f32.mrb[0].mxu0
      %1140 = vmatprep.mubr.bf16.mxu0 0
      %1141 = vmatmul.mubr.bf16.gmra.mrb[0].mxu0 %v1013
      %v1142 = vpop.f32.mrb[0].mxu0
      %v1143 = vadd.f32 %v931, %v1142
      %v1144 = vpop.f32.mrb[0].mxu0
      %v1145 = vpop.f32.mrb[0].mxu0
      %v1146 = vadd.f32 %v934, %v1145
      %v1147 = vpop.f32.mrb[0].mxu0
      %1148 = vmatprep.mubr.bf16.mxu0 0
      %1149 = vmatmul.mubr.bf16.gmra.mrb[0].mxu0 %v1016
      %v1150 = vpop.f32.mrb[0].mxu0
      %v1151 = vadd.f32 %v939, %v1150
      %v1152 = vpop.f32.mrb[0].mxu0
      %v1153 = vpop.f32.mrb[0].mxu0
      %v1154 = vadd.f32 %v942, %v1153
      %v1155 = vpop.f32.mrb[0].mxu0
      %1156 = vmatprep.mubr.bf16.mxu0 0
      %1157 = vmatmul.mubr.bf16.gmra.mrb[0].mxu0 %v1019
      %v1158 = vpop.f32.mrb[0].mxu0
      %v1159 = vadd.f32 %v947, %v1158
      %v1160 = vpop.f32.mrb[0].mxu0
      %v1161 = vpop.f32.mrb[0].mxu0
      %v1162 = vadd.f32 %v950, %v1161
      %v1163 = vpop.f32.mrb[0].mxu0
      %1164 = vmatprep.mubr.bf16.mxu0 0
      %1165 = vmatmul.mubr.bf16.gmra.mrb[0].mxu0 %v1022
      %v1166 = vpop.f32.mrb[0].mxu0
      %v1167 = vadd.f32 %v955, %v1166
      %v1168 = vpop.f32.mrb[0].mxu0
      %v1169 = vpop.f32.mrb[0].mxu0
      %v1170 = vadd.f32 %v958, %v1169
      %v1171 = vpop.f32.mrb[0].mxu0
      %1172 = vmatprep.mubr.bf16.mxu0 0
      %1173 = vmatmul.mubr.bf16.gmra.mrb[0].mxu0 %v1025
      %v1174 = vpop.f32.mrb[0].mxu0
      %v1175 = vadd.f32 %v963, %v1174
      %v1176 = vpop.f32.mrb[0].mxu0
      %v1177 = vpop.f32.mrb[0].mxu0
      %v1178 = vadd.f32 %v966, %v1177
      %v1179 = vpop.f32.mrb[0].mxu0
      %1180 = vmatprep.mubr.bf16.mxu0 0
      %1181 = vmatmul.mubr.bf16.gmra.mrb[0].mxu0 %v1028
      %v1182 = vpop.f32.mrb[0].mxu0
      %v1183 = vadd.f32 %v971, %v1182
      %v1184 = vpop.f32.mrb[0].mxu0
      %v1185 = vpop.f32.mrb[0].mxu0
      %v1186 = vadd.f32 %v974, %v1185
      %v1187 = vpop.f32.mrb[0].mxu0
      %1188 = vmatprep.mubr.bf16.mxu0 0
      %1189 = vmatmul.mubr.bf16.gmra.mrb[0].mxu0 %v1031
      %v1190 = vpop.f32.mrb[0].mxu0
      %v1191 = vadd.f32 %v979, %v1190
      %v1192 = vpop.f32.mrb[0].mxu0
      %v1193 = vpop.f32.mrb[0].mxu0
      %v1194 = vadd.f32 %v982, %v1193
      %v1195 = vpop.f32.mrb[0].mxu0
      %1196 = vdwg.mxu0
      %v1197 = vld [vmem:[#allocation2 + $0x2] sm:$0xff]
      %v1198 = vld [vmem:[#allocation2 + $0xa] sm:$0xff]
      %v1199 = vld [vmem:[#allocation2 + $0x1a] sm:$0xff]
      %v1200 = vld [vmem:[#allocation2 + $0x22] sm:$0xff]
      %v1201 = vld [vmem:[#allocation2 + $0x32] sm:$0xff]
      %v1202 = vld [vmem:[#allocation2 + $0x3a] sm:$0xff]
      %v1203 = vld [vmem:[#allocation2 + $0x4a] sm:$0xff]
      %v1204 = vld [vmem:[#allocation2 + $0x52] sm:$0xff]
      %v1205 = vld [vmem:[#allocation2 + $0x62] sm:$0xff]
      %v1206 = vld [vmem:[#allocation2 + $0x6a] sm:$0xff]
      %v1207 = vld [vmem:[#allocation2 + $0x7a] sm:$0xff]
      %v1208 = vld [vmem:[#allocation2 + $0x82] sm:$0xff]
      %v1209 = vld [vmem:[#allocation2 + $0x92] sm:$0xff]
      %v1210 = vld [vmem:[#allocation2 + $0x9a] sm:$0xff]
      %v1211 = vld [vmem:[#allocation2 + $0xaa] sm:$0xff]
      %v1212 = vld [vmem:[#allocation2 + $0xb2] sm:$0xff]
      %v1213 = vld [vmem:[#allocation2 + $0xc2] sm:$0xff]
      %v1214 = vld [vmem:[#allocation2 + $0xca] sm:$0xff]
      %v1215 = vld [vmem:[#allocation2 + $0xda] sm:$0xff]
      %v1216 = vld [vmem:[#allocation2 + $0xe2] sm:$0xff]
      %v1217 = vld [vmem:[#allocation2 + $0xf2] sm:$0xff]
      %v1218 = vld [vmem:[#allocation2 + $0xfa] sm:$0xff]
      %v1219 = vld [vmem:[#allocation2 + $0x10a] sm:$0xff]
      %v1220 = vld [vmem:[#allocation2 + $0x112] sm:$0xff]
      %v1221 = vld [vmem:[#allocation2 + $0x122] sm:$0xff]
      %v1222 = vld [vmem:[#allocation2 + $0x12a] sm:$0xff]
      %v1223 = vld [vmem:[#allocation2 + $0x13a] sm:$0xff]
      %v1224 = vld [vmem:[#allocation2 + $0x142] sm:$0xff]
      %v1225 = vld [vmem:[#allocation2 + $0x152] sm:$0xff]
      %v1226 = vld [vmem:[#allocation2 + $0x15a] sm:$0xff]
      %v1227 = vld [vmem:[#allocation2 + $0x16a] sm:$0xff]
      %v1228 = vld [vmem:[#allocation2 + $0x172] sm:$0xff]
      %v1229 = vpack.c.bf16 %v1198, %v1197
      %v1230 = vpack.c.bf16 %v1200, %v1199
      %v1231 = vpack.c.bf16 %v1202, %v1201
      %v1232 = vpack.c.bf16 %v1204, %v1203
      %v1233 = vpack.c.bf16 %v1206, %v1205
      %v1234 = vpack.c.bf16 %v1208, %v1207
      %v1235 = vpack.c.bf16 %v1210, %v1209
      %v1236 = vpack.c.bf16 %v1212, %v1211
      %v1237 = vpack.c.bf16 %v1214, %v1213
      %v1238 = vpack.c.bf16 %v1216, %v1215
      %v1239 = vpack.c.bf16 %v1218, %v1217
      %v1240 = vpack.c.bf16 %v1220, %v1219
      %v1241 = vpack.c.bf16 %v1222, %v1221
      %v1242 = vpack.c.bf16 %v1224, %v1223
      %v1243 = vpack.c.bf16 %v1226, %v1225
      %v1244 = vpack.c.bf16 %v1228, %v1227
      %s1245 = scalar_lea.vmem %s6, 4
      %v1246 = vld [vmem:[%s1245] sm:$0x3]
      %v1248 = vsel %vm584, %v1229, 0
      %v1251 = vsel %vm584, %v1230, 0
      %v1254 = vsel %vm584, %v1231, 0
      %v1257 = vsel %vm584, %v1232, 0
      %v1260 = vsel %vm584, %v1233, 0
      %v1263 = vsel %vm584, %v1234, 0
      %v1266 = vsel %vm584, %v1235, 0
      %v1269 = vsel %vm584, %v1236, 0
      %v1272 = vsel %vm584, %v1237, 0
      %v1275 = vsel %vm584, %v1238, 0
      %v1278 = vsel %vm584, %v1239, 0
      %v1281 = vsel %vm584, %v1240, 0
      %v1284 = vsel %vm584, %v1241, 0
      %v1287 = vsel %vm584, %v1242, 0
      %v1290 = vsel %vm584, %v1243, 0
      %v1293 = vsel %vm584, %v1244, 0
      %v1296 = vsel %vm820, %v1246, 0
      %1298 = vmatprep.subr.bf16.mxu0 0
      %1299 = vmatpush1.bf16.msra.mxu0 %v1296
      %1300 = vmatprep.subr.bf16.mxu0 0
      %1301 = vmatpush1.bf16.msra.mxu0 0
      %1302 = vmatprep.subr.bf16.mxu0 0
      %1303 = vmatpush1.bf16.msra.mxu0 0
      %1304 = vmatprep.subr.bf16.mxu0 0
      %1305 = vmatpush1.bf16.msra.mxu0 0
      %1306 = vmatprep.subr.bf16.mxu0 0
      %1307 = vmatpush1.bf16.msra.mxu0 0
      %1308 = vmatprep.subr.bf16.mxu0 0
      %1309 = vmatpush1.bf16.msra.mxu0 0
      %1310 = vmatprep.subr.bf16.mxu0 0
      %1311 = vmatpush1.bf16.msra.mxu0 0
      %1312 = vmatprep.subr.bf16.mxu0 0
      %1313 = vmatpush1.bf16.msra.mxu0 0
      %1314 = vmatprep.subr.bf16.mxu0 0
      %1315 = vmatpush1.bf16.msra.mxu0 0
      %1316 = vmatprep.subr.bf16.mxu0 0
      %1317 = vmatpush1.bf16.msra.mxu0 0
      %1318 = vmatprep.subr.bf16.mxu0 0
      %1319 = vmatpush1.bf16.msra.mxu0 0
      %1320 = vmatprep.subr.bf16.mxu0 0
      %1321 = vmatpush1.bf16.msra.mxu0 0
      %1322 = vmatprep.subr.bf16.mxu0 0
      %1323 = vmatpush1.bf16.msra.mxu0 0
      %1324 = vmatprep.subr.bf16.mxu0 0
      %1325 = vmatpush1.bf16.msra.mxu0 0
      %1326 = vmatprep.subr.bf16.mxu0 0
      %1327 = vmatpush1.bf16.msra.mxu0 0
      %1328 = vmatprep.subr.bf16.mxu0 0
      %1329 = vmatpush1.bf16.msra.mxu0 0
      %1330 = vmatprep.mubr.bf16.mxu0 0
      %1331 = vmatmul.mubr.bf16.gmra.mrb[0].mxu0 %v1248
      %v1332 = vpop.f32.mrb[0].mxu0
      %v1333 = vadd.f32 0.0, %v1332
      %v1334 = vpop.f32.mrb[0].mxu0
      %v1335 = vpop.f32.mrb[0].mxu0
      %v1336 = vadd.f32 0.0, %v1335
      %v1337 = vpop.f32.mrb[0].mxu0
      %1338 = vmatprep.mubr.bf16.mxu0 0
      %1339 = vmatmul.mubr.bf16.gmra.mrb[0].mxu0 %v1251
      %v1340 = vpop.f32.mrb[0].mxu0
      %v1341 = vadd.f32 0.0, %v1340
      %v1342 = vpop.f32.mrb[0].mxu0
      %v1343 = vpop.f32.mrb[0].mxu0
      %v1344 = vadd.f32 0.0, %v1343
      %v1345 = vpop.f32.mrb[0].mxu0
      %1346 = vmatprep.mubr.bf16.mxu0 0
      %1347 = vmatmul.mubr.bf16.gmra.mrb[0].mxu0 %v1254
      %v1348 = vpop.f32.mrb[0].mxu0
      %v1349 = vadd.f32 0.0, %v1348
      %v1350 = vpop.f32.mrb[0].mxu0
      %v1351 = vpop.f32.mrb[0].mxu0
      %v1352 = vadd.f32 0.0, %v1351
      %v1353 = vpop.f32.mrb[0].mxu0
      %1354 = vmatprep.mubr.bf16.mxu0 0
      %1355 = vmatmul.mubr.bf16.gmra.mrb[0].mxu0 %v1257
      %v1356 = vpop.f32.mrb[0].mxu0
      %v1357 = vadd.f32 0.0, %v1356
      %v1358 = vpop.f32.mrb[0].mxu0
      %v1359 = vpop.f32.mrb[0].mxu0
      %v1360 = vadd.f32 0.0, %v1359
      %v1361 = vpop.f32.mrb[0].mxu0
      %1362 = vmatprep.mubr.bf16.mxu0 0
      %1363 = vmatmul.mubr.bf16.gmra.mrb[0].mxu0 %v1260
      %v1364 = vpop.f32.mrb[0].mxu0
      %v1365 = vadd.f32 0.0, %v1364
      %v1366 = vpop.f32.mrb[0].mxu0
      %v1367 = vpop.f32.mrb[0].mxu0
      %v1368 = vadd.f32 0.0, %v1367
      %v1369 = vpop.f32.mrb[0].mxu0
      %1370 = vmatprep.mubr.bf16.mxu0 0
      %1371 = vmatmul.mubr.bf16.gmra.mrb[0].mxu0 %v1263
      %v1372 = vpop.f32.mrb[0].mxu0
      %v1373 = vadd.f32 0.0, %v1372
      %v1374 = vpop.f32.mrb[0].mxu0
      %v1375 = vpop.f32.mrb[0].mxu0
      %v1376 = vadd.f32 0.0, %v1375
      %v1377 = vpop.f32.mrb[0].mxu0
      %1378 = vmatprep.mubr.bf16.mxu0 0
      %1379 = vmatmul.mubr.bf16.gmra.mrb[0].mxu0 %v1266
      %v1380 = vpop.f32.mrb[0].mxu0
      %v1381 = vadd.f32 0.0, %v1380
      %v1382 = vpop.f32.mrb[0].mxu0
      %v1383 = vpop.f32.mrb[0].mxu0
      %v1384 = vadd.f32 0.0, %v1383
      %v1385 = vpop.f32.mrb[0].mxu0
      %1386 = vmatprep.mubr.bf16.mxu0 0
      %1387 = vmatmul.mubr.bf16.gmra.mrb[0].mxu0 %v1269
      %v1388 = vpop.f32.mrb[0].mxu0
      %v1389 = vadd.f32 0.0, %v1388
      %v1390 = vpop.f32.mrb[0].mxu0
      %v1391 = vpop.f32.mrb[0].mxu0
      %v1392 = vadd.f32 0.0, %v1391
      %v1393 = vpop.f32.mrb[0].mxu0
      %1394 = vmatprep.mubr.bf16.mxu0 0
      %1395 = vmatmul.mubr.bf16.gmra.mrb[0].mxu0 %v1272
      %v1396 = vpop.f32.mrb[0].mxu0
      %v1397 = vadd.f32 0.0, %v1396
      %v1398 = vpop.f32.mrb[0].mxu0
      %v1399 = vpop.f32.mrb[0].mxu0
      %v1400 = vadd.f32 0.0, %v1399
      %v1401 = vpop.f32.mrb[0].mxu0
      %1402 = vmatprep.mubr.bf16.mxu0 0
      %1403 = vmatmul.mubr.bf16.gmra.mrb[0].mxu0 %v1275
      %v1404 = vpop.f32.mrb[0].mxu0
      %v1405 = vadd.f32 0.0, %v1404
      %v1406 = vpop.f32.mrb[0].mxu0
      %v1407 = vpop.f32.mrb[0].mxu0
      %v1408 = vadd.f32 0.0, %v1407
      %v1409 = vpop.f32.mrb[0].mxu0
      %1410 = vmatprep.mubr.bf16.mxu0 0
      %1411 = vmatmul.mubr.bf16.gmra.mrb[0].mxu0 %v1278
      %v1412 = vpop.f32.mrb[0].mxu0
      %v1413 = vadd.f32 0.0, %v1412
      %v1414 = vpop.f32.mrb[0].mxu0
      %v1415 = vpop.f32.mrb[0].mxu0
      %v1416 = vadd.f32 0.0, %v1415
      %v1417 = vpop.f32.mrb[0].mxu0
      %1418 = vmatprep.mubr.bf16.mxu0 0
      %1419 = vmatmul.mubr.bf16.gmra.mrb[0].mxu0 %v1281
      %v1420 = vpop.f32.mrb[0].mxu0
      %v1421 = vadd.f32 0.0, %v1420
      %v1422 = vpop.f32.mrb[0].mxu0
      %v1423 = vpop.f32.mrb[0].mxu0
      %v1424 = vadd.f32 0.0, %v1423
      %v1425 = vpop.f32.mrb[0].mxu0
      %1426 = vmatprep.mubr.bf16.mxu0 0
      %1427 = vmatmul.mubr.bf16.gmra.mrb[0].mxu0 %v1284
      %v1428 = vpop.f32.mrb[0].mxu0
      %v1429 = vadd.f32 0.0, %v1428
      %v1430 = vpop.f32.mrb[0].mxu0
      %v1431 = vpop.f32.mrb[0].mxu0
      %v1432 = vadd.f32 0.0, %v1431
      %v1433 = vpop.f32.mrb[0].mxu0
      %1434 = vmatprep.mubr.bf16.mxu0 0
      %1435 = vmatmul.mubr.bf16.gmra.mrb[0].mxu0 %v1287
      %v1436 = vpop.f32.mrb[0].mxu0
      %v1437 = vadd.f32 0.0, %v1436
      %v1438 = vpop.f32.mrb[0].mxu0
      %v1439 = vpop.f32.mrb[0].mxu0
      %v1440 = vadd.f32 0.0, %v1439
      %v1441 = vpop.f32.mrb[0].mxu0
      %1442 = vmatprep.mubr.bf16.mxu0 0
      %1443 = vmatmul.mubr.bf16.gmra.mrb[0].mxu0 %v1290
      %v1444 = vpop.f32.mrb[0].mxu0
      %v1445 = vadd.f32 0.0, %v1444
      %v1446 = vpop.f32.mrb[0].mxu0
      %v1447 = vpop.f32.mrb[0].mxu0
      %v1448 = vadd.f32 0.0, %v1447
      %v1449 = vpop.f32.mrb[0].mxu0
      %1450 = vmatprep.mubr.bf16.mxu0 0
      %1451 = vmatmul.mubr.bf16.gmra.mrb[0].mxu0 %v1293
      %v1452 = vpop.f32.mrb[0].mxu0
      %v1453 = vadd.f32 0.0, %v1452
      %v1454 = vpop.f32.mrb[0].mxu0
      %v1455 = vpop.f32.mrb[0].mxu0
      %v1456 = vadd.f32 0.0, %v1455
      %v1457 = vpop.f32.mrb[0].mxu0
      %1458 = vdwg.mxu0
      %v1459 = vadd.f32 %v1071, %v1333
      %v1460 = vadd.f32 %v1074, %v1336
      %v1461 = vadd.f32 %v1079, %v1341
      %v1462 = vadd.f32 %v1082, %v1344
      %v1463 = vadd.f32 %v1087, %v1349
      %v1464 = vadd.f32 %v1090, %v1352
      %v1465 = vadd.f32 %v1095, %v1357
      %v1466 = vadd.f32 %v1098, %v1360
      %v1467 = vadd.f32 %v1103, %v1365
      %v1468 = vadd.f32 %v1106, %v1368
      %v1469 = vadd.f32 %v1111, %v1373
      %v1470 = vadd.f32 %v1114, %v1376
      %v1471 = vadd.f32 %v1119, %v1381
      %v1472 = vadd.f32 %v1122, %v1384
      %v1473 = vadd.f32 %v1127, %v1389
      %v1474 = vadd.f32 %v1130, %v1392
      %v1475 = vadd.f32 %v1135, %v1397
      %v1476 = vadd.f32 %v1138, %v1400
      %v1477 = vadd.f32 %v1143, %v1405
      %v1478 = vadd.f32 %v1146, %v1408
      %v1479 = vadd.f32 %v1151, %v1413
      %v1480 = vadd.f32 %v1154, %v1416
      %v1481 = vadd.f32 %v1159, %v1421
      %v1482 = vadd.f32 %v1162, %v1424
      %v1483 = vadd.f32 %v1167, %v1429
      %v1484 = vadd.f32 %v1170, %v1432
      %v1485 = vadd.f32 %v1175, %v1437
      %v1486 = vadd.f32 %v1178, %v1440
      %v1487 = vadd.f32 %v1183, %v1445
      %v1488 = vadd.f32 %v1186, %v1448
      %v1489 = vadd.f32 %v1191, %v1453
      %v1490 = vadd.f32 %v1194, %v1456
      %v1491 = vld [vmem:[%s640] sm:$0xff]
      %v1492 = vld [vmem:[%s640 + $0x8] sm:$0xff]
      %v1493 = vld [vmem:[%s640 + $0x18] sm:$0xff]
      %v1494 = vld [vmem:[%s640 + $0x20] sm:$0xff]
      %v1495 = vld [vmem:[%s640 + $0x30] sm:$0xff]
      %v1496 = vld [vmem:[%s640 + $0x38] sm:$0xff]
      %v1497 = vld [vmem:[%s640 + $0x48] sm:$0xff]
      %v1498 = vld [vmem:[%s640 + $0x50] sm:$0xff]
      %v1499 = vld [vmem:[%s640 + $0x60] sm:$0xff]
      %v1500 = vld [vmem:[%s640 + $0x68] sm:$0xff]
      %v1501 = vld [vmem:[%s640 + $0x78] sm:$0xff]
      %v1502 = vld [vmem:[%s640 + $0x80] sm:$0xff]
      %v1503 = vld [vmem:[%s640 + $0x90] sm:$0xff]
      %v1504 = vld [vmem:[%s640 + $0x98] sm:$0xff]
      %v1505 = vld [vmem:[%s640 + $0xa8] sm:$0xff]
      %v1506 = vld [vmem:[%s640 + $0xb0] sm:$0xff]
      %v1507 = vld [vmem:[%s640 + $0xc0] sm:$0xff]
      %v1508 = vld [vmem:[%s640 + $0xc8] sm:$0xff]
      %v1509 = vld [vmem:[%s640 + $0xd8] sm:$0xff]
      %v1510 = vld [vmem:[%s640 + $0xe0] sm:$0xff]
      %v1511 = vld [vmem:[%s640 + $0xf0] sm:$0xff]
      %v1512 = vld [vmem:[%s640 + $0xf8] sm:$0xff]
      %v1513 = vld [vmem:[%s640 + $0x108] sm:$0xff]
      %v1514 = vld [vmem:[%s640 + $0x110] sm:$0xff]
      %v1515 = vld [vmem:[%s640 + $0x120] sm:$0xff]
      %v1516 = vld [vmem:[%s640 + $0x128] sm:$0xff]
      %v1517 = vld [vmem:[%s640 + $0x138] sm:$0xff]
      %v1518 = vld [vmem:[%s640 + $0x140] sm:$0xff]
      %v1519 = vld [vmem:[%s640 + $0x150] sm:$0xff]
      %v1520 = vld [vmem:[%s640 + $0x158] sm:$0xff]
      %v1521 = vld [vmem:[%s640 + $0x168] sm:$0xff]
      %v1522 = vld [vmem:[%s640 + $0x170] sm:$0xff]
      %v1523 = vpack.c.bf16 %v1492, %v1491
      %v1524 = vpack.c.bf16 %v1494, %v1493
      %v1525 = vpack.c.bf16 %v1496, %v1495
      %v1526 = vpack.c.bf16 %v1498, %v1497
      %v1527 = vpack.c.bf16 %v1500, %v1499
      %v1528 = vpack.c.bf16 %v1502, %v1501
      %v1529 = vpack.c.bf16 %v1504, %v1503
      %v1530 = vpack.c.bf16 %v1506, %v1505
      %v1531 = vpack.c.bf16 %v1508, %v1507
      %v1532 = vpack.c.bf16 %v1510, %v1509
      %v1533 = vpack.c.bf16 %v1512, %v1511
      %v1534 = vpack.c.bf16 %v1514, %v1513
      %v1535 = vpack.c.bf16 %v1516, %v1515
      %v1536 = vpack.c.bf16 %v1518, %v1517
      %v1537 = vpack.c.bf16 %v1520, %v1519
      %v1538 = vpack.c.bf16 %v1522, %v1521
      %s1539 = scalar_lea.vmem %s6, 6
      %v1540 = vld [vmem:[%s1539] sm:$0x3]
      %v1542 = vsel %vm584, %v1523, 0
      %v1545 = vsel %vm584, %v1524, 0
      %v1548 = vsel %vm584, %v1525, 0
      %v1551 = vsel %vm584, %v1526, 0
      %v1554 = vsel %vm584, %v1527, 0
      %v1557 = vsel %vm584, %v1528, 0
      %v1560 = vsel %vm584, %v1529, 0
      %v1563 = vsel %vm584, %v1530, 0
      %v1566 = vsel %vm584, %v1531, 0
      %v1569 = vsel %vm584, %v1532, 0
      %v1572 = vsel %vm584, %v1533, 0
      %v1575 = vsel %vm584, %v1534, 0
      %v1578 = vsel %vm584, %v1535, 0
      %v1581 = vsel %vm584, %v1536, 0
      %v1584 = vsel %vm584, %v1537, 0
      %v1587 = vsel %vm584, %v1538, 0
      %v1590 = vsel %vm820, %v1540, 0
      %1592 = vmatprep.subr.bf16.mxu0 0
      %1593 = vmatpush1.bf16.msra.mxu0 %v1590
      %1594 = vmatprep.subr.bf16.mxu0 0
      %1595 = vmatpush1.bf16.msra.mxu0 0
      %1596 = vmatprep.subr.bf16.mxu0 0
      %1597 = vmatpush1.bf16.msra.mxu0 0
      %1598 = vmatprep.subr.bf16.mxu0 0
      %1599 = vmatpush1.bf16.msra.mxu0 0
      %1600 = vmatprep.subr.bf16.mxu0 0
      %1601 = vmatpush1.bf16.msra.mxu0 0
      %1602 = vmatprep.subr.bf16.mxu0 0
      %1603 = vmatpush1.bf16.msra.mxu0 0
      %1604 = vmatprep.subr.bf16.mxu0 0
      %1605 = vmatpush1.bf16.msra.mxu0 0
      %1606 = vmatprep.subr.bf16.mxu0 0
      %1607 = vmatpush1.bf16.msra.mxu0 0
      %1608 = vmatprep.subr.bf16.mxu0 0
      %1609 = vmatpush1.bf16.msra.mxu0 0
      %1610 = vmatprep.subr.bf16.mxu0 0
      %1611 = vmatpush1.bf16.msra.mxu0 0
      %1612 = vmatprep.subr.bf16.mxu0 0
      %1613 = vmatpush1.bf16.msra.mxu0 0
      %1614 = vmatprep.subr.bf16.mxu0 0
      %1615 = vmatpush1.bf16.msra.mxu0 0
      %1616 = vmatprep.subr.bf16.mxu0 0
      %1617 = vmatpush1.bf16.msra.mxu0 0
      %1618 = vmatprep.subr.bf16.mxu0 0
      %1619 = vmatpush1.bf16.msra.mxu0 0
      %1620 = vmatprep.subr.bf16.mxu0 0
      %1621 = vmatpush1.bf16.msra.mxu0 0
      %1622 = vmatprep.subr.bf16.mxu0 0
      %1623 = vmatpush1.bf16.msra.mxu0 0
      %1624 = vmatprep.mubr.bf16.mxu0 0
      %1625 = vmatmul.mubr.bf16.gmra.mrb[0].mxu0 %v1542
      %v1626 = vpop.f32.mrb[0].mxu0
      %v1627 = vadd.f32 0.0, %v1626
      %v1628 = vpop.f32.mrb[0].mxu0
      %v1629 = vpop.f32.mrb[0].mxu0
      %v1630 = vadd.f32 0.0, %v1629
      %v1631 = vpop.f32.mrb[0].mxu0
      %1632 = vmatprep.mubr.bf16.mxu0 0
      %1633 = vmatmul.mubr.bf16.gmra.mrb[0].mxu0 %v1545
      %v1634 = vpop.f32.mrb[0].mxu0
      %v1635 = vadd.f32 0.0, %v1634
      %v1636 = vpop.f32.mrb[0].mxu0
      %v1637 = vpop.f32.mrb[0].mxu0
      %v1638 = vadd.f32 0.0, %v1637
      %v1639 = vpop.f32.mrb[0].mxu0
      %1640 = vmatprep.mubr.bf16.mxu0 0
      %1641 = vmatmul.mubr.bf16.gmra.mrb[0].mxu0 %v1548
      %v1642 = vpop.f32.mrb[0].mxu0
      %v1643 = vadd.f32 0.0, %v1642
      %v1644 = vpop.f32.mrb[0].mxu0
      %v1645 = vpop.f32.mrb[0].mxu0
      %v1646 = vadd.f32 0.0, %v1645
      %v1647 = vpop.f32.mrb[0].mxu0
      %1648 = vmatprep.mubr.bf16.mxu0 0
      %1649 = vmatmul.mubr.bf16.gmra.mrb[0].mxu0 %v1551
      %v1650 = vpop.f32.mrb[0].mxu0
      %v1651 = vadd.f32 0.0, %v1650
      %v1652 = vpop.f32.mrb[0].mxu0
      %v1653 = vpop.f32.mrb[0].mxu0
      %v1654 = vadd.f32 0.0, %v1653
      %v1655 = vpop.f32.mrb[0].mxu0
      %1656 = vmatprep.mubr.bf16.mxu0 0
      %1657 = vmatmul.mubr.bf16.gmra.mrb[0].mxu0 %v1554
      %v1658 = vpop.f32.mrb[0].mxu0
      %v1659 = vadd.f32 0.0, %v1658
      %v1660 = vpop.f32.mrb[0].mxu0
      %v1661 = vpop.f32.mrb[0].mxu0
      %v1662 = vadd.f32 0.0, %v1661
      %v1663 = vpop.f32.mrb[0].mxu0
      %1664 = vmatprep.mubr.bf16.mxu0 0
      %1665 = vmatmul.mubr.bf16.gmra.mrb[0].mxu0 %v1557
      %v1666 = vpop.f32.mrb[0].mxu0
      %v1667 = vadd.f32 0.0, %v1666
      %v1668 = vpop.f32.mrb[0].mxu0
      %v1669 = vpop.f32.mrb[0].mxu0
      %v1670 = vadd.f32 0.0, %v1669
      %v1671 = vpop.f32.mrb[0].mxu0
      %1672 = vmatprep.mubr.bf16.mxu0 0
      %1673 = vmatmul.mubr.bf16.gmra.mrb[0].mxu0 %v1560
      %v1674 = vpop.f32.mrb[0].mxu0
      %v1675 = vadd.f32 0.0, %v1674
      %v1676 = vpop.f32.mrb[0].mxu0
      %v1677 = vpop.f32.mrb[0].mxu0
      %v1678 = vadd.f32 0.0, %v1677
      %v1679 = vpop.f32.mrb[0].mxu0
      %1680 = vmatprep.mubr.bf16.mxu0 0
      %1681 = vmatmul.mubr.bf16.gmra.mrb[0].mxu0 %v1563
      %v1682 = vpop.f32.mrb[0].mxu0
      %v1683 = vadd.f32 0.0, %v1682
      %v1684 = vpop.f32.mrb[0].mxu0
      %v1685 = vpop.f32.mrb[0].mxu0
      %v1686 = vadd.f32 0.0, %v1685
      %v1687 = vpop.f32.mrb[0].mxu0
      %1688 = vmatprep.mubr.bf16.mxu0 0
      %1689 = vmatmul.mubr.bf16.gmra.mrb[0].mxu0 %v1566
      %v1690 = vpop.f32.mrb[0].mxu0
      %v1691 = vadd.f32 0.0, %v1690
      %v1692 = vpop.f32.mrb[0].mxu0
      %v1693 = vpop.f32.mrb[0].mxu0
      %v1694 = vadd.f32 0.0, %v1693
      %v1695 = vpop.f32.mrb[0].mxu0
      %1696 = vmatprep.mubr.bf16.mxu0 0
      %1697 = vmatmul.mubr.bf16.gmra.mrb[0].mxu0 %v1569
      %v1698 = vpop.f32.mrb[0].mxu0
      %v1699 = vadd.f32 0.0, %v1698
      %v1700 = vpop.f32.mrb[0].mxu0
      %v1701 = vpop.f32.mrb[0].mxu0
      %v1702 = vadd.f32 0.0, %v1701
      %v1703 = vpop.f32.mrb[0].mxu0
      %1704 = vmatprep.mubr.bf16.mxu0 0
      %1705 = vmatmul.mubr.bf16.gmra.mrb[0].mxu0 %v1572
      %v1706 = vpop.f32.mrb[0].mxu0
      %v1707 = vadd.f32 0.0, %v1706
      %v1708 = vpop.f32.mrb[0].mxu0
      %v1709 = vpop.f32.mrb[0].mxu0
      %v1710 = vadd.f32 0.0, %v1709
      %v1711 = vpop.f32.mrb[0].mxu0
      %1712 = vmatprep.mubr.bf16.mxu0 0
      %1713 = vmatmul.mubr.bf16.gmra.mrb[0].mxu0 %v1575
      %v1714 = vpop.f32.mrb[0].mxu0
      %v1715 = vadd.f32 0.0, %v1714
      %v1716 = vpop.f32.mrb[0].mxu0
      %v1717 = vpop.f32.mrb[0].mxu0
      %v1718 = vadd.f32 0.0, %v1717
      %v1719 = vpop.f32.mrb[0].mxu0
      %1720 = vmatprep.mubr.bf16.mxu0 0
      %1721 = vmatmul.mubr.bf16.gmra.mrb[0].mxu0 %v1578
      %v1722 = vpop.f32.mrb[0].mxu0
      %v1723 = vadd.f32 0.0, %v1722
      %v1724 = vpop.f32.mrb[0].mxu0
      %v1725 = vpop.f32.mrb[0].mxu0
      %v1726 = vadd.f32 0.0, %v1725
      %v1727 = vpop.f32.mrb[0].mxu0
      %1728 = vmatprep.mubr.bf16.mxu0 0
      %1729 = vmatmul.mubr.bf16.gmra.mrb[0].mxu0 %v1581
      %v1730 = vpop.f32.mrb[0].mxu0
      %v1731 = vadd.f32 0.0, %v1730
      %v1732 = vpop.f32.mrb[0].mxu0
      %v1733 = vpop.f32.mrb[0].mxu0
      %v1734 = vadd.f32 0.0, %v1733
      %v1735 = vpop.f32.mrb[0].mxu0
      %1736 = vmatprep.mubr.bf16.mxu0 0
      %1737 = vmatmul.mubr.bf16.gmra.mrb[0].mxu0 %v1584
      %v1738 = vpop.f32.mrb[0].mxu0
      %v1739 = vadd.f32 0.0, %v1738
      %v1740 = vpop.f32.mrb[0].mxu0
      %v1741 = vpop.f32.mrb[0].mxu0
      %v1742 = vadd.f32 0.0, %v1741
      %v1743 = vpop.f32.mrb[0].mxu0
      %1744 = vmatprep.mubr.bf16.mxu0 0
      %1745 = vmatmul.mubr.bf16.gmra.mrb[0].mxu0 %v1587
      %v1746 = vpop.f32.mrb[0].mxu0
      %v1747 = vadd.f32 0.0, %v1746
      %v1748 = vpop.f32.mrb[0].mxu0
      %v1749 = vpop.f32.mrb[0].mxu0
      %v1750 = vadd.f32 0.0, %v1749
      %v1751 = vpop.f32.mrb[0].mxu0
      %1752 = vdwg.mxu0
      %v1753 = vadd.f32 %v1459, %v1627
      %v1754 = vadd.f32 %v1460, %v1630
      %v1755 = vadd.f32 %v1461, %v1635
      %v1756 = vadd.f32 %v1462, %v1638
      %v1757 = vadd.f32 %v1463, %v1643
      %v1758 = vadd.f32 %v1464, %v1646
      %v1759 = vadd.f32 %v1465, %v1651
      %v1760 = vadd.f32 %v1466, %v1654
      %v1761 = vadd.f32 %v1467, %v1659
      %v1762 = vadd.f32 %v1468, %v1662
      %v1763 = vadd.f32 %v1469, %v1667
      %v1764 = vadd.f32 %v1470, %v1670
      %v1765 = vadd.f32 %v1471, %v1675
      %v1766 = vadd.f32 %v1472, %v1678
      %v1767 = vadd.f32 %v1473, %v1683
      %v1768 = vadd.f32 %v1474, %v1686
      %v1769 = vadd.f32 %v1475, %v1691
      %v1770 = vadd.f32 %v1476, %v1694
      %v1771 = vadd.f32 %v1477, %v1699
      %v1772 = vadd.f32 %v1478, %v1702
      %v1773 = vadd.f32 %v1479, %v1707
      %v1774 = vadd.f32 %v1480, %v1710
      %v1775 = vadd.f32 %v1481, %v1715
      %v1776 = vadd.f32 %v1482, %v1718
      %v1777 = vadd.f32 %v1483, %v1723
      %v1778 = vadd.f32 %v1484, %v1726
      %v1779 = vadd.f32 %v1485, %v1731
      %v1780 = vadd.f32 %v1486, %v1734
      %v1781 = vadd.f32 %v1487, %v1739
      %v1782 = vadd.f32 %v1488, %v1742
      %v1783 = vadd.f32 %v1489, %v1747
      %v1784 = vadd.f32 %v1490, %v1750
      %v1785 = vld [vmem:[%s640 + $0x1] sm:$0xff]
      %v1786 = vld [vmem:[%s640 + $0x9] sm:$0xff]
      %v1787 = vld [vmem:[%s640 + $0x19] sm:$0xff]
      %v1788 = vld [vmem:[%s640 + $0x21] sm:$0xff]
      %v1789 = vld [vmem:[%s640 + $0x31] sm:$0xff]
      %v1790 = vld [vmem:[%s640 + $0x39] sm:$0xff]
      %v1791 = vld [vmem:[%s640 + $0x49] sm:$0xff]
      %v1792 = vld [vmem:[%s640 + $0x51] sm:$0xff]
      %v1793 = vld [vmem:[%s640 + $0x61] sm:$0xff]
      %v1794 = vld [vmem:[%s640 + $0x69] sm:$0xff]
      %v1795 = vld [vmem:[%s640 + $0x79] sm:$0xff]
      %v1796 = vld [vmem:[%s640 + $0x81] sm:$0xff]
      %v1797 = vld [vmem:[%s640 + $0x91] sm:$0xff]
      %v1798 = vld [vmem:[%s640 + $0x99] sm:$0xff]
      %v1799 = vld [vmem:[%s640 + $0xa9] sm:$0xff]
      %v1800 = vld [vmem:[%s640 + $0xb1] sm:$0xff]
      %v1801 = vld [vmem:[%s640 + $0xc1] sm:$0xff]
      %v1802 = vld [vmem:[%s640 + $0xc9] sm:$0xff]
      %v1803 = vld [vmem:[%s640 + $0xd9] sm:$0xff]
      %v1804 = vld [vmem:[%s640 + $0xe1] sm:$0xff]
      %v1805 = vld [vmem:[%s640 + $0xf1] sm:$0xff]
      %v1806 = vld [vmem:[%s640 + $0xf9] sm:$0xff]
      %v1807 = vld [vmem:[%s640 + $0x109] sm:$0xff]
      %v1808 = vld [vmem:[%s640 + $0x111] sm:$0xff]
      %v1809 = vld [vmem:[%s640 + $0x121] sm:$0xff]
      %v1810 = vld [vmem:[%s640 + $0x129] sm:$0xff]
      %v1811 = vld [vmem:[%s640 + $0x139] sm:$0xff]
      %v1812 = vld [vmem:[%s640 + $0x141] sm:$0xff]
      %v1813 = vld [vmem:[%s640 + $0x151] sm:$0xff]
      %v1814 = vld [vmem:[%s640 + $0x159] sm:$0xff]
      %v1815 = vld [vmem:[%s640 + $0x169] sm:$0xff]
      %v1816 = vld [vmem:[%s640 + $0x171] sm:$0xff]
      %v1817 = vpack.c.bf16 %v1786, %v1785
      %v1818 = vpack.c.bf16 %v1788, %v1787
      %v1819 = vpack.c.bf16 %v1790, %v1789
      %v1820 = vpack.c.bf16 %v1792, %v1791
      %v1821 = vpack.c.bf16 %v1794, %v1793
      %v1822 = vpack.c.bf16 %v1796, %v1795
      %v1823 = vpack.c.bf16 %v1798, %v1797
      %v1824 = vpack.c.bf16 %v1800, %v1799
      %v1825 = vpack.c.bf16 %v1802, %v1801
      %v1826 = vpack.c.bf16 %v1804, %v1803
      %v1827 = vpack.c.bf16 %v1806, %v1805
      %v1828 = vpack.c.bf16 %v1808, %v1807
      %v1829 = vpack.c.bf16 %v1810, %v1809
      %v1830 = vpack.c.bf16 %v1812, %v1811
      %v1831 = vpack.c.bf16 %v1814, %v1813
      %v1832 = vpack.c.bf16 %v1816, %v1815
      %s1833 = scalar_lea.vmem %s6, 8
      %v1834 = vld [vmem:[%s1833] sm:$0x3]
      %v1836 = vsel %vm584, %v1817, 0
      %v1839 = vsel %vm584, %v1818, 0
      %v1842 = vsel %vm584, %v1819, 0
      %v1845 = vsel %vm584, %v1820, 0
      %v1848 = vsel %vm584, %v1821, 0
      %v1851 = vsel %vm584, %v1822, 0
      %v1854 = vsel %vm584, %v1823, 0
      %v1857 = vsel %vm584, %v1824, 0
      %v1860 = vsel %vm584, %v1825, 0
      %v1863 = vsel %vm584, %v1826, 0
      %v1866 = vsel %vm584, %v1827, 0
      %v1869 = vsel %vm584, %v1828, 0
      %v1872 = vsel %vm584, %v1829, 0
      %v1875 = vsel %vm584, %v1830, 0
      %v1878 = vsel %vm584, %v1831, 0
      %v1881 = vsel %vm584, %v1832, 0
      %v1884 = vsel %vm820, %v1834, 0
      %1886 = vmatprep.subr.bf16.mxu0 0
      %1887 = vmatpush1.bf16.msra.mxu0 %v1884
      %1888 = vmatprep.subr.bf16.mxu0 0
      %1889 = vmatpush1.bf16.msra.mxu0 0
      %1890 = vmatprep.subr.bf16.mxu0 0
      %1891 = vmatpush1.bf16.msra.mxu0 0
      %1892 = vmatprep.subr.bf16.mxu0 0
      %1893 = vmatpush1.bf16.msra.mxu0 0
      %1894 = vmatprep.subr.bf16.mxu0 0
      %1895 = vmatpush1.bf16.msra.mxu0 0
      %1896 = vmatprep.subr.bf16.mxu0 0
      %1897 = vmatpush1.bf16.msra.mxu0 0
      %1898 = vmatprep.subr.bf16.mxu0 0
      %1899 = vmatpush1.bf16.msra.mxu0 0
      %1900 = vmatprep.subr.bf16.mxu0 0
      %1901 = vmatpush1.bf16.msra.mxu0 0
      %1902 = vmatprep.subr.bf16.mxu0 0
      %1903 = vmatpush1.bf16.msra.mxu0 0
      %1904 = vmatprep.subr.bf16.mxu0 0
      %1905 = vmatpush1.bf16.msra.mxu0 0
      %1906 = vmatprep.subr.bf16.mxu0 0
      %1907 = vmatpush1.bf16.msra.mxu0 0
      %1908 = vmatprep.subr.bf16.mxu0 0
      %1909 = vmatpush1.bf16.msra.mxu0 0
      %1910 = vmatprep.subr.bf16.mxu0 0
      %1911 = vmatpush1.bf16.msra.mxu0 0
      %1912 = vmatprep.subr.bf16.mxu0 0
      %1913 = vmatpush1.bf16.msra.mxu0 0
      %1914 = vmatprep.subr.bf16.mxu0 0
      %1915 = vmatpush1.bf16.msra.mxu0 0
      %1916 = vmatprep.subr.bf16.mxu0 0
      %1917 = vmatpush1.bf16.msra.mxu0 0
      %1918 = vmatprep.mubr.bf16.mxu0 0
      %1919 = vmatmul.mubr.bf16.gmra.mrb[0].mxu0 %v1836
      %v1920 = vpop.f32.mrb[0].mxu0
      %v1921 = vadd.f32 0.0, %v1920
      %v1922 = vpop.f32.mrb[0].mxu0
      %v1923 = vpop.f32.mrb[0].mxu0
      %v1924 = vadd.f32 0.0, %v1923
      %v1925 = vpop.f32.mrb[0].mxu0
      %1926 = vmatprep.mubr.bf16.mxu0 0
      %1927 = vmatmul.mubr.bf16.gmra.mrb[0].mxu0 %v1839
      %v1928 = vpop.f32.mrb[0].mxu0
      %v1929 = vadd.f32 0.0, %v1928
      %v1930 = vpop.f32.mrb[0].mxu0
      %v1931 = vpop.f32.mrb[0].mxu0
      %v1932 = vadd.f32 0.0, %v1931
      %v1933 = vpop.f32.mrb[0].mxu0
      %1934 = vmatprep.mubr.bf16.mxu0 0
      %1935 = vmatmul.mubr.bf16.gmra.mrb[0].mxu0 %v1842
      %v1936 = vpop.f32.mrb[0].mxu0
      %v1937 = vadd.f32 0.0, %v1936
      %v1938 = vpop.f32.mrb[0].mxu0
      %v1939 = vpop.f32.mrb[0].mxu0
      %v1940 = vadd.f32 0.0, %v1939
      %v1941 = vpop.f32.mrb[0].mxu0
      %1942 = vmatprep.mubr.bf16.mxu0 0
      %1943 = vmatmul.mubr.bf16.gmra.mrb[0].mxu0 %v1845
      %v1944 = vpop.f32.mrb[0].mxu0
      %v1945 = vadd.f32 0.0, %v1944
      %v1946 = vpop.f32.mrb[0].mxu0
      %v1947 = vpop.f32.mrb[0].mxu0
      %v1948 = vadd.f32 0.0, %v1947
      %v1949 = vpop.f32.mrb[0].mxu0
      %1950 = vmatprep.mubr.bf16.mxu0 0
      %1951 = vmatmul.mubr.bf16.gmra.mrb[0].mxu0 %v1848
      %v1952 = vpop.f32.mrb[0].mxu0
      %v1953 = vadd.f32 0.0, %v1952
      %v1954 = vpop.f32.mrb[0].mxu0
      %v1955 = vpop.f32.mrb[0].mxu0
      %v1956 = vadd.f32 0.0, %v1955
      %v1957 = vpop.f32.mrb[0].mxu0
      %1958 = vmatprep.mubr.bf16.mxu0 0
      %1959 = vmatmul.mubr.bf16.gmra.mrb[0].mxu0 %v1851
      %v1960 = vpop.f32.mrb[0].mxu0
      %v1961 = vadd.f32 0.0, %v1960
      %v1962 = vpop.f32.mrb[0].mxu0
      %v1963 = vpop.f32.mrb[0].mxu0
      %v1964 = vadd.f32 0.0, %v1963
      %v1965 = vpop.f32.mrb[0].mxu0
      %1966 = vmatprep.mubr.bf16.mxu0 0
      %1967 = vmatmul.mubr.bf16.gmra.mrb[0].mxu0 %v1854
      %v1968 = vpop.f32.mrb[0].mxu0
      %v1969 = vadd.f32 0.0, %v1968
      %v1970 = vpop.f32.mrb[0].mxu0
      %v1971 = vpop.f32.mrb[0].mxu0
      %v1972 = vadd.f32 0.0, %v1971
      %v1973 = vpop.f32.mrb[0].mxu0
      %1974 = vmatprep.mubr.bf16.mxu0 0
      %1975 = vmatmul.mubr.bf16.gmra.mrb[0].mxu0 %v1857
      %v1976 = vpop.f32.mrb[0].mxu0
      %v1977 = vadd.f32 0.0, %v1976
      %v1978 = vpop.f32.mrb[0].mxu0
      %v1979 = vpop.f32.mrb[0].mxu0
      %v1980 = vadd.f32 0.0, %v1979
      %v1981 = vpop.f32.mrb[0].mxu0
      %1982 = vmatprep.mubr.bf16.mxu0 0
      %1983 = vmatmul.mubr.bf16.gmra.mrb[0].mxu0 %v1860
      %v1984 = vpop.f32.mrb[0].mxu0
      %v1985 = vadd.f32 0.0, %v1984
      %v1986 = vpop.f32.mrb[0].mxu0
      %v1987 = vpop.f32.mrb[0].mxu0
      %v1988 = vadd.f32 0.0, %v1987
      %v1989 = vpop.f32.mrb[0].mxu0
      %1990 = vmatprep.mubr.bf16.mxu0 0
      %1991 = vmatmul.mubr.bf16.gmra.mrb[0].mxu0 %v1863
      %v1992 = vpop.f32.mrb[0].mxu0
      %v1993 = vadd.f32 0.0, %v1992
      %v1994 = vpop.f32.mrb[0].mxu0
      %v1995 = vpop.f32.mrb[0].mxu0
      %v1996 = vadd.f32 0.0, %v1995
      %v1997 = vpop.f32.mrb[0].mxu0
      %1998 = vmatprep.mubr.bf16.mxu0 0
      %1999 = vmatmul.mubr.bf16.gmra.mrb[0].mxu0 %v1866
      %v2000 = vpop.f32.mrb[0].mxu0
      %v2001 = vadd.f32 0.0, %v2000
      %v2002 = vpop.f32.mrb[0].mxu0
      %v2003 = vpop.f32.mrb[0].mxu0
      %v2004 = vadd.f32 0.0, %v2003
      %v2005 = vpop.f32.mrb[0].mxu0
      %2006 = vmatprep.mubr.bf16.mxu0 0
      %2007 = vmatmul.mubr.bf16.gmra.mrb[0].mxu0 %v1869
      %v2008 = vpop.f32.mrb[0].mxu0
      %v2009 = vadd.f32 0.0, %v2008
      %v2010 = vpop.f32.mrb[0].mxu0
      %v2011 = vpop.f32.mrb[0].mxu0
      %v2012 = vadd.f32 0.0, %v2011
      %v2013 = vpop.f32.mrb[0].mxu0
      %2014 = vmatprep.mubr.bf16.mxu0 0
      %2015 = vmatmul.mubr.bf16.gmra.mrb[0].mxu0 %v1872
      %v2016 = vpop.f32.mrb[0].mxu0
      %v2017 = vadd.f32 0.0, %v2016
      %v2018 = vpop.f32.mrb[0].mxu0
      %v2019 = vpop.f32.mrb[0].mxu0
      %v2020 = vadd.f32 0.0, %v2019
      %v2021 = vpop.f32.mrb[0].mxu0
      %2022 = vmatprep.mubr.bf16.mxu0 0
      %2023 = vmatmul.mubr.bf16.gmra.mrb[0].mxu0 %v1875
      %v2024 = vpop.f32.mrb[0].mxu0
      %v2025 = vadd.f32 0.0, %v2024
      %v2026 = vpop.f32.mrb[0].mxu0
      %v2027 = vpop.f32.mrb[0].mxu0
      %v2028 = vadd.f32 0.0, %v2027
      %v2029 = vpop.f32.mrb[0].mxu0
      %2030 = vmatprep.mubr.bf16.mxu0 0
      %2031 = vmatmul.mubr.bf16.gmra.mrb[0].mxu0 %v1878
      %v2032 = vpop.f32.mrb[0].mxu0
      %v2033 = vadd.f32 0.0, %v2032
      %v2034 = vpop.f32.mrb[0].mxu0
      %v2035 = vpop.f32.mrb[0].mxu0
      %v2036 = vadd.f32 0.0, %v2035
      %v2037 = vpop.f32.mrb[0].mxu0
      %2038 = vmatprep.mubr.bf16.mxu0 0
      %2039 = vmatmul.mubr.bf16.gmra.mrb[0].mxu0 %v1881
      %v2040 = vpop.f32.mrb[0].mxu0
      %v2041 = vadd.f32 0.0, %v2040
      %v2042 = vpop.f32.mrb[0].mxu0
      %v2043 = vpop.f32.mrb[0].mxu0
      %v2044 = vadd.f32 0.0, %v2043
      %v2045 = vpop.f32.mrb[0].mxu0
      %2046 = vdwg.mxu0
      %v2047 = vadd.f32 %v1753, %v1921
      %v2048 = vadd.f32 %v1754, %v1924
      %v2049 = vadd.f32 %v1755, %v1929
      %v2050 = vadd.f32 %v1756, %v1932
      %v2051 = vadd.f32 %v1757, %v1937
      %v2052 = vadd.f32 %v1758, %v1940
      %v2053 = vadd.f32 %v1759, %v1945
      %v2054 = vadd.f32 %v1760, %v1948
      %v2055 = vadd.f32 %v1761, %v1953
      %v2056 = vadd.f32 %v1762, %v1956
      %v2057 = vadd.f32 %v1763, %v1961
      %v2058 = vadd.f32 %v1764, %v1964
      %v2059 = vadd.f32 %v1765, %v1969
      %v2060 = vadd.f32 %v1766, %v1972
      %v2061 = vadd.f32 %v1767, %v1977
      %v2062 = vadd.f32 %v1768, %v1980
      %v2063 = vadd.f32 %v1769, %v1985
      %v2064 = vadd.f32 %v1770, %v1988
      %v2065 = vadd.f32 %v1771, %v1993
      %v2066 = vadd.f32 %v1772, %v1996
      %v2067 = vadd.f32 %v1773, %v2001
      %v2068 = vadd.f32 %v1774, %v2004
      %v2069 = vadd.f32 %v1775, %v2009
      %v2070 = vadd.f32 %v1776, %v2012
      %v2071 = vadd.f32 %v1777, %v2017
      %v2072 = vadd.f32 %v1778, %v2020
      %v2073 = vadd.f32 %v1779, %v2025
      %v2074 = vadd.f32 %v1780, %v2028
      %v2075 = vadd.f32 %v1781, %v2033
      %v2076 = vadd.f32 %v1782, %v2036
      %v2077 = vadd.f32 %v1783, %v2041
      %v2078 = vadd.f32 %v1784, %v2044
      %v2079 = vld [vmem:[%s640 + $0x2] sm:$0xff]
      %v2080 = vld [vmem:[%s640 + $0xa] sm:$0xff]
      %v2081 = vld [vmem:[%s640 + $0x1a] sm:$0xff]
      %v2082 = vld [vmem:[%s640 + $0x22] sm:$0xff]
      %v2083 = vld [vmem:[%s640 + $0x32] sm:$0xff]
      %v2084 = vld [vmem:[%s640 + $0x3a] sm:$0xff]
      %v2085 = vld [vmem:[%s640 + $0x4a] sm:$0xff]
      %v2086 = vld [vmem:[%s640 + $0x52] sm:$0xff]
      %v2087 = vld [vmem:[%s640 + $0x62] sm:$0xff]
      %v2088 = vld [vmem:[%s640 + $0x6a] sm:$0xff]
      %v2089 = vld [vmem:[%s640 + $0x7a] sm:$0xff]
      %v2090 = vld [vmem:[%s640 + $0x82] sm:$0xff]
      %v2091 = vld [vmem:[%s640 + $0x92] sm:$0xff]
      %v2092 = vld [vmem:[%s640 + $0x9a] sm:$0xff]
      %v2093 = vld [vmem:[%s640 + $0xaa] sm:$0xff]
      %v2094 = vld [vmem:[%s640 + $0xb2] sm:$0xff]
      %v2095 = vld [vmem:[%s640 + $0xc2] sm:$0xff]
      %v2096 = vld [vmem:[%s640 + $0xca] sm:$0xff]
      %v2097 = vld [vmem:[%s640 + $0xda] sm:$0xff]
      %v2098 = vld [vmem:[%s640 + $0xe2] sm:$0xff]
      %v2099 = vld [vmem:[%s640 + $0xf2] sm:$0xff]
      %v2100 = vld [vmem:[%s640 + $0xfa] sm:$0xff]
      %v2101 = vld [vmem:[%s640 + $0x10a] sm:$0xff]
      %v2102 = vld [vmem:[%s640 + $0x112] sm:$0xff]
      %v2103 = vld [vmem:[%s640 + $0x122] sm:$0xff]
      %v2104 = vld [vmem:[%s640 + $0x12a] sm:$0xff]
      %v2105 = vld [vmem:[%s640 + $0x13a] sm:$0xff]
      %v2106 = vld [vmem:[%s640 + $0x142] sm:$0xff]
      %v2107 = vld [vmem:[%s640 + $0x152] sm:$0xff]
      %v2108 = vld [vmem:[%s640 + $0x15a] sm:$0xff]
      %v2109 = vld [vmem:[%s640 + $0x16a] sm:$0xff]
      %v2110 = vld [vmem:[%s640 + $0x172] sm:$0xff]
      %v2111 = vpack.c.bf16 %v2080, %v2079
      %v2112 = vpack.c.bf16 %v2082, %v2081
      %v2113 = vpack.c.bf16 %v2084, %v2083
      %v2114 = vpack.c.bf16 %v2086, %v2085
      %v2115 = vpack.c.bf16 %v2088, %v2087
      %v2116 = vpack.c.bf16 %v2090, %v2089
      %v2117 = vpack.c.bf16 %v2092, %v2091
      %v2118 = vpack.c.bf16 %v2094, %v2093
      %v2119 = vpack.c.bf16 %v2096, %v2095
      %v2120 = vpack.c.bf16 %v2098, %v2097
      %v2121 = vpack.c.bf16 %v2100, %v2099
      %v2122 = vpack.c.bf16 %v2102, %v2101
      %v2123 = vpack.c.bf16 %v2104, %v2103
      %v2124 = vpack.c.bf16 %v2106, %v2105
      %v2125 = vpack.c.bf16 %v2108, %v2107
      %v2126 = vpack.c.bf16 %v2110, %v2109
      %s2127 = scalar_lea.vmem %s6, 10
      %v2128 = vld [vmem:[%s2127] sm:$0x3]
      %v2130 = vsel %vm584, %v2111, 0
      %v2133 = vsel %vm584, %v2112, 0
      %v2136 = vsel %vm584, %v2113, 0
      %v2139 = vsel %vm584, %v2114, 0
      %v2142 = vsel %vm584, %v2115, 0
      %v2145 = vsel %vm584, %v2116, 0
      %v2148 = vsel %vm584, %v2117, 0
      %v2151 = vsel %vm584, %v2118, 0
      %v2154 = vsel %vm584, %v2119, 0
      %v2157 = vsel %vm584, %v2120, 0
      %v2160 = vsel %vm584, %v2121, 0
      %v2163 = vsel %vm584, %v2122, 0
      %v2166 = vsel %vm584, %v2123, 0
      %v2169 = vsel %vm584, %v2124, 0
      %v2172 = vsel %vm584, %v2125, 0
      %v2175 = vsel %vm584, %v2126, 0
      %v2178 = vsel %vm820, %v2128, 0
      %2180 = vmatprep.subr.bf16.mxu0 0
      %2181 = vmatpush1.bf16.msra.mxu0 %v2178
      %2182 = vmatprep.subr.bf16.mxu0 0
      %2183 = vmatpush1.bf16.msra.mxu0 0
      %2184 = vmatprep.subr.bf16.mxu0 0
      %2185 = vmatpush1.bf16.msra.mxu0 0
      %2186 = vmatprep.subr.bf16.mxu0 0
      %2187 = vmatpush1.bf16.msra.mxu0 0
      %2188 = vmatprep.subr.bf16.mxu0 0
      %2189 = vmatpush1.bf16.msra.mxu0 0
      %2190 = vmatprep.subr.bf16.mxu0 0
      %2191 = vmatpush1.bf16.msra.mxu0 0
      %2192 = vmatprep.subr.bf16.mxu0 0
      %2193 = vmatpush1.bf16.msra.mxu0 0
      %2194 = vmatprep.subr.bf16.mxu0 0
      %2195 = vmatpush1.bf16.msra.mxu0 0
      %2196 = vmatprep.subr.bf16.mxu0 0
      %2197 = vmatpush1.bf16.msra.mxu0 0
      %2198 = vmatprep.subr.bf16.mxu0 0
      %2199 = vmatpush1.bf16.msra.mxu0 0
      %2200 = vmatprep.subr.bf16.mxu0 0
      %2201 = vmatpush1.bf16.msra.mxu0 0
      %2202 = vmatprep.subr.bf16.mxu0 0
      %2203 = vmatpush1.bf16.msra.mxu0 0
      %2204 = vmatprep.subr.bf16.mxu0 0
      %2205 = vmatpush1.bf16.msra.mxu0 0
      %2206 = vmatprep.subr.bf16.mxu0 0
      %2207 = vmatpush1.bf16.msra.mxu0 0
      %2208 = vmatprep.subr.bf16.mxu0 0
      %2209 = vmatpush1.bf16.msra.mxu0 0
      %2210 = vmatprep.subr.bf16.mxu0 0
      %2211 = vmatpush1.bf16.msra.mxu0 0
      %2212 = vmatprep.mubr.bf16.mxu0 0
      %2213 = vmatmul.mubr.bf16.gmra.mrb[0].mxu0 %v2130
      %v2214 = vpop.f32.mrb[0].mxu0
      %v2215 = vadd.f32 0.0, %v2214
      %v2216 = vpop.f32.mrb[0].mxu0
      %v2217 = vpop.f32.mrb[0].mxu0
      %v2218 = vadd.f32 0.0, %v2217
      %v2219 = vpop.f32.mrb[0].mxu0
      %2220 = vmatprep.mubr.bf16.mxu0 0
      %2221 = vmatmul.mubr.bf16.gmra.mrb[0].mxu0 %v2133
      %v2222 = vpop.f32.mrb[0].mxu0
      %v2223 = vadd.f32 0.0, %v2222
      %v2224 = vpop.f32.mrb[0].mxu0
      %v2225 = vpop.f32.mrb[0].mxu0
      %v2226 = vadd.f32 0.0, %v2225
      %v2227 = vpop.f32.mrb[0].mxu0
      %2228 = vmatprep.mubr.bf16.mxu0 0
      %2229 = vmatmul.mubr.bf16.gmra.mrb[0].mxu0 %v2136
      %v2230 = vpop.f32.mrb[0].mxu0
      %v2231 = vadd.f32 0.0, %v2230
      %v2232 = vpop.f32.mrb[0].mxu0
      %v2233 = vpop.f32.mrb[0].mxu0
      %v2234 = vadd.f32 0.0, %v2233
      %v2235 = vpop.f32.mrb[0].mxu0
      %2236 = vmatprep.mubr.bf16.mxu0 0
      %2237 = vmatmul.mubr.bf16.gmra.mrb[0].mxu0 %v2139
      %v2238 = vpop.f32.mrb[0].mxu0
      %v2239 = vadd.f32 0.0, %v2238
      %v2240 = vpop.f32.mrb[0].mxu0
      %v2241 = vpop.f32.mrb[0].mxu0
      %v2242 = vadd.f32 0.0, %v2241
      %v2243 = vpop.f32.mrb[0].mxu0
      %2244 = vmatprep.mubr.bf16.mxu0 0
      %2245 = vmatmul.mubr.bf16.gmra.mrb[0].mxu0 %v2142
      %v2246 = vpop.f32.mrb[0].mxu0
      %v2247 = vadd.f32 0.0, %v2246
      %v2248 = vpop.f32.mrb[0].mxu0
      %v2249 = vpop.f32.mrb[0].mxu0
      %v2250 = vadd.f32 0.0, %v2249
      %v2251 = vpop.f32.mrb[0].mxu0
      %2252 = vmatprep.mubr.bf16.mxu0 0
      %2253 = vmatmul.mubr.bf16.gmra.mrb[0].mxu0 %v2145
      %v2254 = vpop.f32.mrb[0].mxu0
      %v2255 = vadd.f32 0.0, %v2254
      %v2256 = vpop.f32.mrb[0].mxu0
      %v2257 = vpop.f32.mrb[0].mxu0
      %v2258 = vadd.f32 0.0, %v2257
      %v2259 = vpop.f32.mrb[0].mxu0
      %2260 = vmatprep.mubr.bf16.mxu0 0
      %2261 = vmatmul.mubr.bf16.gmra.mrb[0].mxu0 %v2148
      %v2262 = vpop.f32.mrb[0].mxu0
      %v2263 = vadd.f32 0.0, %v2262
      %v2264 = vpop.f32.mrb[0].mxu0
      %v2265 = vpop.f32.mrb[0].mxu0
      %v2266 = vadd.f32 0.0, %v2265
      %v2267 = vpop.f32.mrb[0].mxu0
      %2268 = vmatprep.mubr.bf16.mxu0 0
      %2269 = vmatmul.mubr.bf16.gmra.mrb[0].mxu0 %v2151
      %v2270 = vpop.f32.mrb[0].mxu0
      %v2271 = vadd.f32 0.0, %v2270
      %v2272 = vpop.f32.mrb[0].mxu0
      %v2273 = vpop.f32.mrb[0].mxu0
      %v2274 = vadd.f32 0.0, %v2273
      %v2275 = vpop.f32.mrb[0].mxu0
      %2276 = vmatprep.mubr.bf16.mxu0 0
      %2277 = vmatmul.mubr.bf16.gmra.mrb[0].mxu0 %v2154
      %v2278 = vpop.f32.mrb[0].mxu0
      %v2279 = vadd.f32 0.0, %v2278
      %v2280 = vpop.f32.mrb[0].mxu0
      %v2281 = vpop.f32.mrb[0].mxu0
      %v2282 = vadd.f32 0.0, %v2281
      %v2283 = vpop.f32.mrb[0].mxu0
      %2284 = vmatprep.mubr.bf16.mxu0 0
      %2285 = vmatmul.mubr.bf16.gmra.mrb[0].mxu0 %v2157
      %v2286 = vpop.f32.mrb[0].mxu0
      %v2287 = vadd.f32 0.0, %v2286
      %v2288 = vpop.f32.mrb[0].mxu0
      %v2289 = vpop.f32.mrb[0].mxu0
      %v2290 = vadd.f32 0.0, %v2289
      %v2291 = vpop.f32.mrb[0].mxu0
      %2292 = vmatprep.mubr.bf16.mxu0 0
      %2293 = vmatmul.mubr.bf16.gmra.mrb[0].mxu0 %v2160
      %v2294 = vpop.f32.mrb[0].mxu0
      %v2295 = vadd.f32 0.0, %v2294
      %v2296 = vpop.f32.mrb[0].mxu0
      %v2297 = vpop.f32.mrb[0].mxu0
      %v2298 = vadd.f32 0.0, %v2297
      %v2299 = vpop.f32.mrb[0].mxu0
      %2300 = vmatprep.mubr.bf16.mxu0 0
      %2301 = vmatmul.mubr.bf16.gmra.mrb[0].mxu0 %v2163
      %v2302 = vpop.f32.mrb[0].mxu0
      %v2303 = vadd.f32 0.0, %v2302
      %v2304 = vpop.f32.mrb[0].mxu0
      %v2305 = vpop.f32.mrb[0].mxu0
      %v2306 = vadd.f32 0.0, %v2305
      %v2307 = vpop.f32.mrb[0].mxu0
      %2308 = vmatprep.mubr.bf16.mxu0 0
      %2309 = vmatmul.mubr.bf16.gmra.mrb[0].mxu0 %v2166
      %v2310 = vpop.f32.mrb[0].mxu0
      %v2311 = vadd.f32 0.0, %v2310
      %v2312 = vpop.f32.mrb[0].mxu0
      %v2313 = vpop.f32.mrb[0].mxu0
      %v2314 = vadd.f32 0.0, %v2313
      %v2315 = vpop.f32.mrb[0].mxu0
      %2316 = vmatprep.mubr.bf16.mxu0 0
      %2317 = vmatmul.mubr.bf16.gmra.mrb[0].mxu0 %v2169
      %v2318 = vpop.f32.mrb[0].mxu0
      %v2319 = vadd.f32 0.0, %v2318
      %v2320 = vpop.f32.mrb[0].mxu0
      %v2321 = vpop.f32.mrb[0].mxu0
      %v2322 = vadd.f32 0.0, %v2321
      %v2323 = vpop.f32.mrb[0].mxu0
      %2324 = vmatprep.mubr.bf16.mxu0 0
      %2325 = vmatmul.mubr.bf16.gmra.mrb[0].mxu0 %v2172
      %v2326 = vpop.f32.mrb[0].mxu0
      %v2327 = vadd.f32 0.0, %v2326
      %v2328 = vpop.f32.mrb[0].mxu0
      %v2329 = vpop.f32.mrb[0].mxu0
      %v2330 = vadd.f32 0.0, %v2329
      %v2331 = vpop.f32.mrb[0].mxu0
      %2332 = vmatprep.mubr.bf16.mxu0 0
      %2333 = vmatmul.mubr.bf16.gmra.mrb[0].mxu0 %v2175
      %v2334 = vpop.f32.mrb[0].mxu0
      %v2335 = vadd.f32 0.0, %v2334
      %v2336 = vpop.f32.mrb[0].mxu0
      %v2337 = vpop.f32.mrb[0].mxu0
      %v2338 = vadd.f32 0.0, %v2337
      %v2339 = vpop.f32.mrb[0].mxu0
      %2340 = vdwg.mxu0
      %v2341 = vadd.f32 %v2047, %v2215
      %v2342 = vadd.f32 %v2048, %v2218
      %v2343 = vadd.f32 %v2049, %v2223
      %v2344 = vadd.f32 %v2050, %v2226
      %v2345 = vadd.f32 %v2051, %v2231
      %v2346 = vadd.f32 %v2052, %v2234
      %v2347 = vadd.f32 %v2053, %v2239
      %v2348 = vadd.f32 %v2054, %v2242
      %v2349 = vadd.f32 %v2055, %v2247
      %v2350 = vadd.f32 %v2056, %v2250
      %v2351 = vadd.f32 %v2057, %v2255
      %v2352 = vadd.f32 %v2058, %v2258
      %v2353 = vadd.f32 %v2059, %v2263
      %v2354 = vadd.f32 %v2060, %v2266
      %v2355 = vadd.f32 %v2061, %v2271
      %v2356 = vadd.f32 %v2062, %v2274
      %v2357 = vadd.f32 %v2063, %v2279
      %v2358 = vadd.f32 %v2064, %v2282
      %v2359 = vadd.f32 %v2065, %v2287
      %v2360 = vadd.f32 %v2066, %v2290
      %v2361 = vadd.f32 %v2067, %v2295
      %v2362 = vadd.f32 %v2068, %v2298
      %v2363 = vadd.f32 %v2069, %v2303
      %v2364 = vadd.f32 %v2070, %v2306
      %v2365 = vadd.f32 %v2071, %v2311
      %v2366 = vadd.f32 %v2072, %v2314
      %v2367 = vadd.f32 %v2073, %v2319
      %v2368 = vadd.f32 %v2074, %v2322
      %v2369 = vadd.f32 %v2075, %v2327
      %v2370 = vadd.f32 %v2076, %v2330
      %v2371 = vadd.f32 %v2077, %v2335
      %v2372 = vadd.f32 %v2078, %v2338
      %s2373 = scalar_lea.vmem [#allocation2], 48
      %v2374 = vld [vmem:[%s2373] sm:$0xff]
      %v2375 = vld [vmem:[%s2373 + $0x8] sm:$0xff]
      %v2376 = vld [vmem:[%s2373 + $0x18] sm:$0xff]
      %v2377 = vld [vmem:[%s2373 + $0x20] sm:$0xff]
      %v2378 = vld [vmem:[%s2373 + $0x30] sm:$0xff]
      %v2379 = vld [vmem:[%s2373 + $0x38] sm:$0xff]
      %v2380 = vld [vmem:[%s2373 + $0x48] sm:$0xff]
      %v2381 = vld [vmem:[%s2373 + $0x50] sm:$0xff]
      %v2382 = vld [vmem:[%s2373 + $0x60] sm:$0xff]
      %v2383 = vld [vmem:[%s2373 + $0x68] sm:$0xff]
      %v2384 = vld [vmem:[%s2373 + $0x78] sm:$0xff]
      %v2385 = vld [vmem:[%s2373 + $0x80] sm:$0xff]
      %v2386 = vld [vmem:[%s2373 + $0x90] sm:$0xff]
      %v2387 = vld [vmem:[%s2373 + $0x98] sm:$0xff]
      %v2388 = vld [vmem:[%s2373 + $0xa8] sm:$0xff]
      %v2389 = vld [vmem:[%s2373 + $0xb0] sm:$0xff]
      %v2390 = vld [vmem:[%s2373 + $0xc0] sm:$0xff]
      %v2391 = vld [vmem:[%s2373 + $0xc8] sm:$0xff]
      %v2392 = vld [vmem:[%s2373 + $0xd8] sm:$0xff]
      %v2393 = vld [vmem:[%s2373 + $0xe0] sm:$0xff]
      %v2394 = vld [vmem:[%s2373 + $0xf0] sm:$0xff]
      %v2395 = vld [vmem:[%s2373 + $0xf8] sm:$0xff]
      %v2396 = vld [vmem:[%s2373 + $0x108] sm:$0xff]
      %v2397 = vld [vmem:[%s2373 + $0x110] sm:$0xff]
      %v2398 = vld [vmem:[%s2373 + $0x120] sm:$0xff]
      %v2399 = vld [vmem:[%s2373 + $0x128] sm:$0xff]
      %v2400 = vld [vmem:[%s2373 + $0x138] sm:$0xff]
      %v2401 = vld [vmem:[%s2373 + $0x140] sm:$0xff]
      %v2402 = vld [vmem:[%s2373 + $0x150] sm:$0xff]
      %v2403 = vld [vmem:[%s2373 + $0x158] sm:$0xff]
      %v2404 = vld [vmem:[%s2373 + $0x168] sm:$0xff]
      %v2405 = vld [vmem:[%s2373 + $0x170] sm:$0xff]
      %v2406 = vpack.c.bf16 %v2375, %v2374
      %v2407 = vpack.c.bf16 %v2377, %v2376
      %v2408 = vpack.c.bf16 %v2379, %v2378
      %v2409 = vpack.c.bf16 %v2381, %v2380
      %v2410 = vpack.c.bf16 %v2383, %v2382
      %v2411 = vpack.c.bf16 %v2385, %v2384
      %v2412 = vpack.c.bf16 %v2387, %v2386
      %v2413 = vpack.c.bf16 %v2389, %v2388
      %v2414 = vpack.c.bf16 %v2391, %v2390
      %v2415 = vpack.c.bf16 %v2393, %v2392
      %v2416 = vpack.c.bf16 %v2395, %v2394
      %v2417 = vpack.c.bf16 %v2397, %v2396
      %v2418 = vpack.c.bf16 %v2399, %v2398
      %v2419 = vpack.c.bf16 %v2401, %v2400
      %v2420 = vpack.c.bf16 %v2403, %v2402
      %v2421 = vpack.c.bf16 %v2405, %v2404
      %s2422 = scalar_lea.vmem %s6, 12
      %v2423 = vld [vmem:[%s2422] sm:$0x3]
      %v2425 = vsel %vm584, %v2406, 0
      %v2428 = vsel %vm584, %v2407, 0
      %v2431 = vsel %vm584, %v2408, 0
      %v2434 = vsel %vm584, %v2409, 0
      %v2437 = vsel %vm584, %v2410, 0
      %v2440 = vsel %vm584, %v2411, 0
      %v2443 = vsel %vm584, %v2412, 0
      %v2446 = vsel %vm584, %v2413, 0
      %v2449 = vsel %vm584, %v2414, 0
      %v2452 = vsel %vm584, %v2415, 0
      %v2455 = vsel %vm584, %v2416, 0
      %v2458 = vsel %vm584, %v2417, 0
      %v2461 = vsel %vm584, %v2418, 0
      %v2464 = vsel %vm584, %v2419, 0
      %v2467 = vsel %vm584, %v2420, 0
      %v2470 = vsel %vm584, %v2421, 0
      %v2473 = vsel %vm820, %v2423, 0
      %2475 = vmatprep.subr.bf16.mxu0 0
      %2476 = vmatpush1.bf16.msra.mxu0 %v2473
      %2477 = vmatprep.subr.bf16.mxu0 0
      %2478 = vmatpush1.bf16.msra.mxu0 0
      %2479 = vmatprep.subr.bf16.mxu0 0
      %2480 = vmatpush1.bf16.msra.mxu0 0
      %2481 = vmatprep.subr.bf16.mxu0 0
      %2482 = vmatpush1.bf16.msra.mxu0 0
      %2483 = vmatprep.subr.bf16.mxu0 0
      %2484 = vmatpush1.bf16.msra.mxu0 0
      %2485 = vmatprep.subr.bf16.mxu0 0
      %2486 = vmatpush1.bf16.msra.mxu0 0
      %2487 = vmatprep.subr.bf16.mxu0 0
      %2488 = vmatpush1.bf16.msra.mxu0 0
      %2489 = vmatprep.subr.bf16.mxu0 0
      %2490 = vmatpush1.bf16.msra.mxu0 0
      %2491 = vmatprep.subr.bf16.mxu0 0
      %2492 = vmatpush1.bf16.msra.mxu0 0
      %2493 = vmatprep.subr.bf16.mxu0 0
      %2494 = vmatpush1.bf16.msra.mxu0 0
      %2495 = vmatprep.subr.bf16.mxu0 0
      %2496 = vmatpush1.bf16.msra.mxu0 0
      %2497 = vmatprep.subr.bf16.mxu0 0
      %2498 = vmatpush1.bf16.msra.mxu0 0
      %2499 = vmatprep.subr.bf16.mxu0 0
      %2500 = vmatpush1.bf16.msra.mxu0 0
      %2501 = vmatprep.subr.bf16.mxu0 0
      %2502 = vmatpush1.bf16.msra.mxu0 0
      %2503 = vmatprep.subr.bf16.mxu0 0
      %2504 = vmatpush1.bf16.msra.mxu0 0
      %2505 = vmatprep.subr.bf16.mxu0 0
      %2506 = vmatpush1.bf16.msra.mxu0 0
      %2507 = vmatprep.mubr.bf16.mxu0 0
      %2508 = vmatmul.mubr.bf16.gmra.mrb[0].mxu0 %v2425
      %v2509 = vpop.f32.mrb[0].mxu0
      %v2510 = vadd.f32 0.0, %v2509
      %v2511 = vpop.f32.mrb[0].mxu0
      %v2512 = vpop.f32.mrb[0].mxu0
      %v2513 = vadd.f32 0.0, %v2512
      %v2514 = vpop.f32.mrb[0].mxu0
      %2515 = vmatprep.mubr.bf16.mxu0 0
      %2516 = vmatmul.mubr.bf16.gmra.mrb[0].mxu0 %v2428
      %v2517 = vpop.f32.mrb[0].mxu0
      %v2518 = vadd.f32 0.0, %v2517
      %v2519 = vpop.f32.mrb[0].mxu0
      %v2520 = vpop.f32.mrb[0].mxu0
      %v2521 = vadd.f32 0.0, %v2520
      %v2522 = vpop.f32.mrb[0].mxu0
      %2523 = vmatprep.mubr.bf16.mxu0 0
      %2524 = vmatmul.mubr.bf16.gmra.mrb[0].mxu0 %v2431
      %v2525 = vpop.f32.mrb[0].mxu0
      %v2526 = vadd.f32 0.0, %v2525
      %v2527 = vpop.f32.mrb[0].mxu0
      %v2528 = vpop.f32.mrb[0].mxu0
      %v2529 = vadd.f32 0.0, %v2528
      %v2530 = vpop.f32.mrb[0].mxu0
      %2531 = vmatprep.mubr.bf16.mxu0 0
      %2532 = vmatmul.mubr.bf16.gmra.mrb[0].mxu0 %v2434
      %v2533 = vpop.f32.mrb[0].mxu0
      %v2534 = vadd.f32 0.0, %v2533
      %v2535 = vpop.f32.mrb[0].mxu0
      %v2536 = vpop.f32.mrb[0].mxu0
      %v2537 = vadd.f32 0.0, %v2536
      %v2538 = vpop.f32.mrb[0].mxu0
      %2539 = vmatprep.mubr.bf16.mxu0 0
      %2540 = vmatmul.mubr.bf16.gmra.mrb[0].mxu0 %v2437
      %v2541 = vpop.f32.mrb[0].mxu0
      %v2542 = vadd.f32 0.0, %v2541
      %v2543 = vpop.f32.mrb[0].mxu0
      %v2544 = vpop.f32.mrb[0].mxu0
      %v2545 = vadd.f32 0.0, %v2544
      %v2546 = vpop.f32.mrb[0].mxu0
      %2547 = vmatprep.mubr.bf16.mxu0 0
      %2548 = vmatmul.mubr.bf16.gmra.mrb[0].mxu0 %v2440
      %v2549 = vpop.f32.mrb[0].mxu0
      %v2550 = vadd.f32 0.0, %v2549
      %v2551 = vpop.f32.mrb[0].mxu0
      %v2552 = vpop.f32.mrb[0].mxu0
      %v2553 = vadd.f32 0.0, %v2552
      %v2554 = vpop.f32.mrb[0].mxu0
      %2555 = vmatprep.mubr.bf16.mxu0 0
      %2556 = vmatmul.mubr.bf16.gmra.mrb[0].mxu0 %v2443
      %v2557 = vpop.f32.mrb[0].mxu0
      %v2558 = vadd.f32 0.0, %v2557
      %v2559 = vpop.f32.mrb[0].mxu0
      %v2560 = vpop.f32.mrb[0].mxu0
      %v2561 = vadd.f32 0.0, %v2560
      %v2562 = vpop.f32.mrb[0].mxu0
      %2563 = vmatprep.mubr.bf16.mxu0 0
      %2564 = vmatmul.mubr.bf16.gmra.mrb[0].mxu0 %v2446
      %v2565 = vpop.f32.mrb[0].mxu0
      %v2566 = vadd.f32 0.0, %v2565
      %v2567 = vpop.f32.mrb[0].mxu0
      %v2568 = vpop.f32.mrb[0].mxu0
      %v2569 = vadd.f32 0.0, %v2568
      %v2570 = vpop.f32.mrb[0].mxu0
      %2571 = vmatprep.mubr.bf16.mxu0 0
      %2572 = vmatmul.mubr.bf16.gmra.mrb[0].mxu0 %v2449
      %v2573 = vpop.f32.mrb[0].mxu0
      %v2574 = vadd.f32 0.0, %v2573
      %v2575 = vpop.f32.mrb[0].mxu0
      %v2576 = vpop.f32.mrb[0].mxu0
      %v2577 = vadd.f32 0.0, %v2576
      %v2578 = vpop.f32.mrb[0].mxu0
      %2579 = vmatprep.mubr.bf16.mxu0 0
      %2580 = vmatmul.mubr.bf16.gmra.mrb[0].mxu0 %v2452
      %v2581 = vpop.f32.mrb[0].mxu0
      %v2582 = vadd.f32 0.0, %v2581
      %v2583 = vpop.f32.mrb[0].mxu0
      %v2584 = vpop.f32.mrb[0].mxu0
      %v2585 = vadd.f32 0.0, %v2584
      %v2586 = vpop.f32.mrb[0].mxu0
      %2587 = vmatprep.mubr.bf16.mxu0 0
      %2588 = vmatmul.mubr.bf16.gmra.mrb[0].mxu0 %v2455
      %v2589 = vpop.f32.mrb[0].mxu0
      %v2590 = vadd.f32 0.0, %v2589
      %v2591 = vpop.f32.mrb[0].mxu0
      %v2592 = vpop.f32.mrb[0].mxu0
      %v2593 = vadd.f32 0.0, %v2592
      %v2594 = vpop.f32.mrb[0].mxu0
      %2595 = vmatprep.mubr.bf16.mxu0 0
      %2596 = vmatmul.mubr.bf16.gmra.mrb[0].mxu0 %v2458
      %v2597 = vpop.f32.mrb[0].mxu0
      %v2598 = vadd.f32 0.0, %v2597
      %v2599 = vpop.f32.mrb[0].mxu0
      %v2600 = vpop.f32.mrb[0].mxu0
      %v2601 = vadd.f32 0.0, %v2600
      %v2602 = vpop.f32.mrb[0].mxu0
      %2603 = vmatprep.mubr.bf16.mxu0 0
      %2604 = vmatmul.mubr.bf16.gmra.mrb[0].mxu0 %v2461
      %v2605 = vpop.f32.mrb[0].mxu0
      %v2606 = vadd.f32 0.0, %v2605
      %v2607 = vpop.f32.mrb[0].mxu0
      %v2608 = vpop.f32.mrb[0].mxu0
      %v2609 = vadd.f32 0.0, %v2608
      %v2610 = vpop.f32.mrb[0].mxu0
      %2611 = vmatprep.mubr.bf16.mxu0 0
      %2612 = vmatmul.mubr.bf16.gmra.mrb[0].mxu0 %v2464
      %v2613 = vpop.f32.mrb[0].mxu0
      %v2614 = vadd.f32 0.0, %v2613
      %v2615 = vpop.f32.mrb[0].mxu0
      %v2616 = vpop.f32.mrb[0].mxu0
      %v2617 = vadd.f32 0.0, %v2616
      %v2618 = vpop.f32.mrb[0].mxu0
      %2619 = vmatprep.mubr.bf16.mxu0 0
      %2620 = vmatmul.mubr.bf16.gmra.mrb[0].mxu0 %v2467
      %v2621 = vpop.f32.mrb[0].mxu0
      %v2622 = vadd.f32 0.0, %v2621
      %v2623 = vpop.f32.mrb[0].mxu0
      %v2624 = vpop.f32.mrb[0].mxu0
      %v2625 = vadd.f32 0.0, %v2624
      %v2626 = vpop.f32.mrb[0].mxu0
      %2627 = vmatprep.mubr.bf16.mxu0 0
      %2628 = vmatmul.mubr.bf16.gmra.mrb[0].mxu0 %v2470
      %v2629 = vpop.f32.mrb[0].mxu0
      %v2630 = vadd.f32 0.0, %v2629
      %v2631 = vpop.f32.mrb[0].mxu0
      %v2632 = vpop.f32.mrb[0].mxu0
      %v2633 = vadd.f32 0.0, %v2632
      %v2634 = vpop.f32.mrb[0].mxu0
      %2635 = vdwg.mxu0
      %v2636 = vadd.f32 %v2341, %v2510
      %v2637 = vadd.f32 %v2342, %v2513
      %v2638 = vadd.f32 %v2343, %v2518
      %v2639 = vadd.f32 %v2344, %v2521
      %v2640 = vadd.f32 %v2345, %v2526
      %v2641 = vadd.f32 %v2346, %v2529
      %v2642 = vadd.f32 %v2347, %v2534
      %v2643 = vadd.f32 %v2348, %v2537
      %v2644 = vadd.f32 %v2349, %v2542
      %v2645 = vadd.f32 %v2350, %v2545
      %v2646 = vadd.f32 %v2351, %v2550
      %v2647 = vadd.f32 %v2352, %v2553
      %v2648 = vadd.f32 %v2353, %v2558
      %v2649 = vadd.f32 %v2354, %v2561
      %v2650 = vadd.f32 %v2355, %v2566
      %v2651 = vadd.f32 %v2356, %v2569
      %v2652 = vadd.f32 %v2357, %v2574
      %v2653 = vadd.f32 %v2358, %v2577
      %v2654 = vadd.f32 %v2359, %v2582
      %v2655 = vadd.f32 %v2360, %v2585
      %v2656 = vadd.f32 %v2361, %v2590
      %v2657 = vadd.f32 %v2362, %v2593
      %v2658 = vadd.f32 %v2363, %v2598
      %v2659 = vadd.f32 %v2364, %v2601
      %v2660 = vadd.f32 %v2365, %v2606
      %v2661 = vadd.f32 %v2366, %v2609
      %v2662 = vadd.f32 %v2367, %v2614
      %v2663 = vadd.f32 %v2368, %v2617
      %v2664 = vadd.f32 %v2369, %v2622
      %v2665 = vadd.f32 %v2370, %v2625
      %v2666 = vadd.f32 %v2371, %v2630
      %v2667 = vadd.f32 %v2372, %v2633
      %v2668 = vld [vmem:[%s2373 + $0x1] sm:$0xff]
      %v2669 = vld [vmem:[%s2373 + $0x9] sm:$0xff]
      %v2670 = vld [vmem:[%s2373 + $0x19] sm:$0xff]
      %v2671 = vld [vmem:[%s2373 + $0x21] sm:$0xff]
      %v2672 = vld [vmem:[%s2373 + $0x31] sm:$0xff]
      %v2673 = vld [vmem:[%s2373 + $0x39] sm:$0xff]
      %v2674 = vld [vmem:[%s2373 + $0x49] sm:$0xff]
      %v2675 = vld [vmem:[%s2373 + $0x51] sm:$0xff]
      %v2676 = vld [vmem:[%s2373 + $0x61] sm:$0xff]
      %v2677 = vld [vmem:[%s2373 + $0x69] sm:$0xff]
      %v2678 = vld [vmem:[%s2373 + $0x79] sm:$0xff]
      %v2679 = vld [vmem:[%s2373 + $0x81] sm:$0xff]
      %v2680 = vld [vmem:[%s2373 + $0x91] sm:$0xff]
      %v2681 = vld [vmem:[%s2373 + $0x99] sm:$0xff]
      %v2682 = vld [vmem:[%s2373 + $0xa9] sm:$0xff]
      %v2683 = vld [vmem:[%s2373 + $0xb1] sm:$0xff]
      %v2684 = vld [vmem:[%s2373 + $0xc1] sm:$0xff]
      %v2685 = vld [vmem:[%s2373 + $0xc9] sm:$0xff]
      %v2686 = vld [vmem:[%s2373 + $0xd9] sm:$0xff]
      %v2687 = vld [vmem:[%s2373 + $0xe1] sm:$0xff]
      %v2688 = vld [vmem:[%s2373 + $0xf1] sm:$0xff]
      %v2689 = vld [vmem:[%s2373 + $0xf9] sm:$0xff]
      %v2690 = vld [vmem:[%s2373 + $0x109] sm:$0xff]
      %v2691 = vld [vmem:[%s2373 + $0x111] sm:$0xff]
      %v2692 = vld [vmem:[%s2373 + $0x121] sm:$0xff]
      %v2693 = vld [vmem:[%s2373 + $0x129] sm:$0xff]
      %v2694 = vld [vmem:[%s2373 + $0x139] sm:$0xff]
      %v2695 = vld [vmem:[%s2373 + $0x141] sm:$0xff]
      %v2696 = vld [vmem:[%s2373 + $0x151] sm:$0xff]
      %v2697 = vld [vmem:[%s2373 + $0x159] sm:$0xff]
      %v2698 = vld [vmem:[%s2373 + $0x169] sm:$0xff]
      %v2699 = vld [vmem:[%s2373 + $0x171] sm:$0xff]
      %v2700 = vpack.c.bf16 %v2669, %v2668
      %v2701 = vpack.c.bf16 %v2671, %v2670
      %v2702 = vpack.c.bf16 %v2673, %v2672
      %v2703 = vpack.c.bf16 %v2675, %v2674
      %v2704 = vpack.c.bf16 %v2677, %v2676
      %v2705 = vpack.c.bf16 %v2679, %v2678
      %v2706 = vpack.c.bf16 %v2681, %v2680
      %v2707 = vpack.c.bf16 %v2683, %v2682
      %v2708 = vpack.c.bf16 %v2685, %v2684
      %v2709 = vpack.c.bf16 %v2687, %v2686
      %v2710 = vpack.c.bf16 %v2689, %v2688
      %v2711 = vpack.c.bf16 %v2691, %v2690
      %v2712 = vpack.c.bf16 %v2693, %v2692
      %v2713 = vpack.c.bf16 %v2695, %v2694
      %v2714 = vpack.c.bf16 %v2697, %v2696
      %v2715 = vpack.c.bf16 %v2699, %v2698
      %s2716 = scalar_lea.vmem %s6, 14
      %v2717 = vld [vmem:[%s2716] sm:$0x3]
      %v2719 = vsel %vm584, %v2700, 0
      %v2722 = vsel %vm584, %v2701, 0
      %v2725 = vsel %vm584, %v2702, 0
      %v2728 = vsel %vm584, %v2703, 0
      %v2731 = vsel %vm584, %v2704, 0
      %v2734 = vsel %vm584, %v2705, 0
      %v2737 = vsel %vm584, %v2706, 0
      %v2740 = vsel %vm584, %v2707, 0
      %v2743 = vsel %vm584, %v2708, 0
      %v2746 = vsel %vm584, %v2709, 0
      %v2749 = vsel %vm584, %v2710, 0
      %v2752 = vsel %vm584, %v2711, 0
      %v2755 = vsel %vm584, %v2712, 0
      %v2758 = vsel %vm584, %v2713, 0
      %v2761 = vsel %vm584, %v2714, 0
      %v2764 = vsel %vm584, %v2715, 0
      %v2767 = vsel %vm820, %v2717, 0
      %2769 = vmatprep.subr.bf16.mxu0 0
      %2770 = vmatpush1.bf16.msra.mxu0 %v2767
      %2771 = vmatprep.subr.bf16.mxu0 0
      %2772 = vmatpush1.bf16.msra.mxu0 0
      %2773 = vmatprep.subr.bf16.mxu0 0
      %2774 = vmatpush1.bf16.msra.mxu0 0
      %2775 = vmatprep.subr.bf16.mxu0 0
      %2776 = vmatpush1.bf16.msra.mxu0 0
      %2777 = vmatprep.subr.bf16.mxu0 0
      %2778 = vmatpush1.bf16.msra.mxu0 0
      %2779 = vmatprep.subr.bf16.mxu0 0
      %2780 = vmatpush1.bf16.msra.mxu0 0
      %2781 = vmatprep.subr.bf16.mxu0 0
      %2782 = vmatpush1.bf16.msra.mxu0 0
      %2783 = vmatprep.subr.bf16.mxu0 0
      %2784 = vmatpush1.bf16.msra.mxu0 0
      %2785 = vmatprep.subr.bf16.mxu0 0
      %2786 = vmatpush1.bf16.msra.mxu0 0
      %2787 = vmatprep.subr.bf16.mxu0 0
      %2788 = vmatpush1.bf16.msra.mxu0 0
      %2789 = vmatprep.subr.bf16.mxu0 0
      %2790 = vmatpush1.bf16.msra.mxu0 0
      %2791 = vmatprep.subr.bf16.mxu0 0
      %2792 = vmatpush1.bf16.msra.mxu0 0
      %2793 = vmatprep.subr.bf16.mxu0 0
      %2794 = vmatpush1.bf16.msra.mxu0 0
      %2795 = vmatprep.subr.bf16.mxu0 0
      %2796 = vmatpush1.bf16.msra.mxu0 0
      %2797 = vmatprep.subr.bf16.mxu0 0
      %2798 = vmatpush1.bf16.msra.mxu0 0
      %2799 = vmatprep.subr.bf16.mxu0 0
      %2800 = vmatpush1.bf16.msra.mxu0 0
      %2801 = vmatprep.mubr.bf16.mxu0 0
      %2802 = vmatmul.mubr.bf16.gmra.mrb[0].mxu0 %v2719
      %v2803 = vpop.f32.mrb[0].mxu0
      %v2804 = vadd.f32 0.0, %v2803
      %v2805 = vpop.f32.mrb[0].mxu0
      %v2806 = vpop.f32.mrb[0].mxu0
      %v2807 = vadd.f32 0.0, %v2806
      %v2808 = vpop.f32.mrb[0].mxu0
      %2809 = vmatprep.mubr.bf16.mxu0 0
      %2810 = vmatmul.mubr.bf16.gmra.mrb[0].mxu0 %v2722
      %v2811 = vpop.f32.mrb[0].mxu0
      %v2812 = vadd.f32 0.0, %v2811
      %v2813 = vpop.f32.mrb[0].mxu0
      %v2814 = vpop.f32.mrb[0].mxu0
      %v2815 = vadd.f32 0.0, %v2814
      %v2816 = vpop.f32.mrb[0].mxu0
      %2817 = vmatprep.mubr.bf16.mxu0 0
      %2818 = vmatmul.mubr.bf16.gmra.mrb[0].mxu0 %v2725
      %v2819 = vpop.f32.mrb[0].mxu0
      %v2820 = vadd.f32 0.0, %v2819
      %v2821 = vpop.f32.mrb[0].mxu0
      %v2822 = vpop.f32.mrb[0].mxu0
      %v2823 = vadd.f32 0.0, %v2822
      %v2824 = vpop.f32.mrb[0].mxu0
      %2825 = vmatprep.mubr.bf16.mxu0 0
      %2826 = vmatmul.mubr.bf16.gmra.mrb[0].mxu0 %v2728
      %v2827 = vpop.f32.mrb[0].mxu0
      %v2828 = vadd.f32 0.0, %v2827
      %v2829 = vpop.f32.mrb[0].mxu0
      %v2830 = vpop.f32.mrb[0].mxu0
      %v2831 = vadd.f32 0.0, %v2830
      %v2832 = vpop.f32.mrb[0].mxu0
      %2833 = vmatprep.mubr.bf16.mxu0 0
      %2834 = vmatmul.mubr.bf16.gmra.mrb[0].mxu0 %v2731
      %v2835 = vpop.f32.mrb[0].mxu0
      %v2836 = vadd.f32 0.0, %v2835
      %v2837 = vpop.f32.mrb[0].mxu0
      %v2838 = vpop.f32.mrb[0].mxu0
      %v2839 = vadd.f32 0.0, %v2838
      %v2840 = vpop.f32.mrb[0].mxu0
      %2841 = vmatprep.mubr.bf16.mxu0 0
      %2842 = vmatmul.mubr.bf16.gmra.mrb[0].mxu0 %v2734
      %v2843 = vpop.f32.mrb[0].mxu0
      %v2844 = vadd.f32 0.0, %v2843
      %v2845 = vpop.f32.mrb[0].mxu0
      %v2846 = vpop.f32.mrb[0].mxu0
      %v2847 = vadd.f32 0.0, %v2846
      %v2848 = vpop.f32.mrb[0].mxu0
      %2849 = vmatprep.mubr.bf16.mxu0 0
      %2850 = vmatmul.mubr.bf16.gmra.mrb[0].mxu0 %v2737
      %v2851 = vpop.f32.mrb[0].mxu0
      %v2852 = vadd.f32 0.0, %v2851
      %v2853 = vpop.f32.mrb[0].mxu0
      %v2854 = vpop.f32.mrb[0].mxu0
      %v2855 = vadd.f32 0.0, %v2854
      %v2856 = vpop.f32.mrb[0].mxu0
      %2857 = vmatprep.mubr.bf16.mxu0 0
      %2858 = vmatmul.mubr.bf16.gmra.mrb[0].mxu0 %v2740
      %v2859 = vpop.f32.mrb[0].mxu0
      %v2860 = vadd.f32 0.0, %v2859
      %v2861 = vpop.f32.mrb[0].mxu0
      %v2862 = vpop.f32.mrb[0].mxu0
      %v2863 = vadd.f32 0.0, %v2862
      %v2864 = vpop.f32.mrb[0].mxu0
      %2865 = vmatprep.mubr.bf16.mxu0 0
      %2866 = vmatmul.mubr.bf16.gmra.mrb[0].mxu0 %v2743
      %v2867 = vpop.f32.mrb[0].mxu0
      %v2868 = vadd.f32 0.0, %v2867
      %v2869 = vpop.f32.mrb[0].mxu0
      %v2870 = vpop.f32.mrb[0].mxu0
      %v2871 = vadd.f32 0.0, %v2870
      %v2872 = vpop.f32.mrb[0].mxu0
      %2873 = vmatprep.mubr.bf16.mxu0 0
      %2874 = vmatmul.mubr.bf16.gmra.mrb[0].mxu0 %v2746
      %v2875 = vpop.f32.mrb[0].mxu0
      %v2876 = vadd.f32 0.0, %v2875
      %v2877 = vpop.f32.mrb[0].mxu0
      %v2878 = vpop.f32.mrb[0].mxu0
      %v2879 = vadd.f32 0.0, %v2878
      %v2880 = vpop.f32.mrb[0].mxu0
      %2881 = vmatprep.mubr.bf16.mxu0 0
      %2882 = vmatmul.mubr.bf16.gmra.mrb[0].mxu0 %v2749
      %v2883 = vpop.f32.mrb[0].mxu0
      %v2884 = vadd.f32 0.0, %v2883
      %v2885 = vpop.f32.mrb[0].mxu0
      %v2886 = vpop.f32.mrb[0].mxu0
      %v2887 = vadd.f32 0.0, %v2886
      %v2888 = vpop.f32.mrb[0].mxu0
      %2889 = vmatprep.mubr.bf16.mxu0 0
      %2890 = vmatmul.mubr.bf16.gmra.mrb[0].mxu0 %v2752
      %v2891 = vpop.f32.mrb[0].mxu0
      %v2892 = vadd.f32 0.0, %v2891
      %v2893 = vpop.f32.mrb[0].mxu0
      %v2894 = vpop.f32.mrb[0].mxu0
      %v2895 = vadd.f32 0.0, %v2894
      %v2896 = vpop.f32.mrb[0].mxu0
      %2897 = vmatprep.mubr.bf16.mxu0 0
      %2898 = vmatmul.mubr.bf16.gmra.mrb[0].mxu0 %v2755
      %v2899 = vpop.f32.mrb[0].mxu0
      %v2900 = vadd.f32 0.0, %v2899
      %v2901 = vpop.f32.mrb[0].mxu0
      %v2902 = vpop.f32.mrb[0].mxu0
      %v2903 = vadd.f32 0.0, %v2902
      %v2904 = vpop.f32.mrb[0].mxu0
      %2905 = vmatprep.mubr.bf16.mxu0 0
      %2906 = vmatmul.mubr.bf16.gmra.mrb[0].mxu0 %v2758
      %v2907 = vpop.f32.mrb[0].mxu0
      %v2908 = vadd.f32 0.0, %v2907
      %v2909 = vpop.f32.mrb[0].mxu0
      %v2910 = vpop.f32.mrb[0].mxu0
      %v2911 = vadd.f32 0.0, %v2910
      %v2912 = vpop.f32.mrb[0].mxu0
      %2913 = vmatprep.mubr.bf16.mxu0 0
      %2914 = vmatmul.mubr.bf16.gmra.mrb[0].mxu0 %v2761
      %v2915 = vpop.f32.mrb[0].mxu0
      %v2916 = vadd.f32 0.0, %v2915
      %v2917 = vpop.f32.mrb[0].mxu0
      %v2918 = vpop.f32.mrb[0].mxu0
      %v2919 = vadd.f32 0.0, %v2918
      %v2920 = vpop.f32.mrb[0].mxu0
      %2921 = vmatprep.mubr.bf16.mxu0 0
      %2922 = vmatmul.mubr.bf16.gmra.mrb[0].mxu0 %v2764
      %v2923 = vpop.f32.mrb[0].mxu0
      %v2924 = vadd.f32 0.0, %v2923
      %v2925 = vpop.f32.mrb[0].mxu0
      %v2926 = vpop.f32.mrb[0].mxu0
      %v2927 = vadd.f32 0.0, %v2926
      %v2928 = vpop.f32.mrb[0].mxu0
      %2929 = vdwg.mxu0
      %v2930 = vadd.f32 %v2636, %v2804
      %v2931 = vadd.f32 %v2637, %v2807
      %v2932 = vadd.f32 %v2638, %v2812
      %v2933 = vadd.f32 %v2639, %v2815
      %v2934 = vadd.f32 %v2640, %v2820
      %v2935 = vadd.f32 %v2641, %v2823
      %v2936 = vadd.f32 %v2642, %v2828
      %v2937 = vadd.f32 %v2643, %v2831
      %v2938 = vadd.f32 %v2644, %v2836
      %v2939 = vadd.f32 %v2645, %v2839
      %v2940 = vadd.f32 %v2646, %v2844
      %v2941 = vadd.f32 %v2647, %v2847
      %v2942 = vadd.f32 %v2648, %v2852
      %v2943 = vadd.f32 %v2649, %v2855
      %v2944 = vadd.f32 %v2650, %v2860
      %v2945 = vadd.f32 %v2651, %v2863
      %v2946 = vadd.f32 %v2652, %v2868
      %v2947 = vadd.f32 %v2653, %v2871
      %v2948 = vadd.f32 %v2654, %v2876
      %v2949 = vadd.f32 %v2655, %v2879
      %v2950 = vadd.f32 %v2656, %v2884
      %v2951 = vadd.f32 %v2657, %v2887
      %v2952 = vadd.f32 %v2658, %v2892
      %v2953 = vadd.f32 %v2659, %v2895
      %v2954 = vadd.f32 %v2660, %v2900
      %v2955 = vadd.f32 %v2661, %v2903
      %v2956 = vadd.f32 %v2662, %v2908
      %v2957 = vadd.f32 %v2663, %v2911
      %v2958 = vadd.f32 %v2664, %v2916
      %v2959 = vadd.f32 %v2665, %v2919
      %v2960 = vadd.f32 %v2666, %v2924
      %v2961 = vadd.f32 %v2667, %v2927
      %v2962 = vld [vmem:[%s2373 + $0x2] sm:$0xff]
      %v2963 = vld [vmem:[%s2373 + $0xa] sm:$0xff]
      %v2964 = vld [vmem:[%s2373 + $0x1a] sm:$0xff]
      %v2965 = vld [vmem:[%s2373 + $0x22] sm:$0xff]
      %v2966 = vld [vmem:[%s2373 + $0x32] sm:$0xff]
      %v2967 = vld [vmem:[%s2373 + $0x3a] sm:$0xff]
      %v2968 = vld [vmem:[%s2373 + $0x4a] sm:$0xff]
      %v2969 = vld [vmem:[%s2373 + $0x52] sm:$0xff]
      %v2970 = vld [vmem:[%s2373 + $0x62] sm:$0xff]
      %v2971 = vld [vmem:[%s2373 + $0x6a] sm:$0xff]
      %v2972 = vld [vmem:[%s2373 + $0x7a] sm:$0xff]
      %v2973 = vld [vmem:[%s2373 + $0x82] sm:$0xff]
      %v2974 = vld [vmem:[%s2373 + $0x92] sm:$0xff]
      %v2975 = vld [vmem:[%s2373 + $0x9a] sm:$0xff]
      %v2976 = vld [vmem:[%s2373 + $0xaa] sm:$0xff]
      %v2977 = vld [vmem:[%s2373 + $0xb2] sm:$0xff]
      %v2978 = vld [vmem:[%s2373 + $0xc2] sm:$0xff]
      %v2979 = vld [vmem:[%s2373 + $0xca] sm:$0xff]
      %v2980 = vld [vmem:[%s2373 + $0xda] sm:$0xff]
      %v2981 = vld [vmem:[%s2373 + $0xe2] sm:$0xff]
      %v2982 = vld [vmem:[%s2373 + $0xf2] sm:$0xff]
      %v2983 = vld [vmem:[%s2373 + $0xfa] sm:$0xff]
      %v2984 = vld [vmem:[%s2373 + $0x10a] sm:$0xff]
      %v2985 = vld [vmem:[%s2373 + $0x112] sm:$0xff]
      %v2986 = vld [vmem:[%s2373 + $0x122] sm:$0xff]
      %v2987 = vld [vmem:[%s2373 + $0x12a] sm:$0xff]
      %v2988 = vld [vmem:[%s2373 + $0x13a] sm:$0xff]
      %v2989 = vld [vmem:[%s2373 + $0x142] sm:$0xff]
      %v2990 = vld [vmem:[%s2373 + $0x152] sm:$0xff]
      %v2991 = vld [vmem:[%s2373 + $0x15a] sm:$0xff]
      %v2992 = vld [vmem:[%s2373 + $0x16a] sm:$0xff]
      %v2993 = vld [vmem:[%s2373 + $0x172] sm:$0xff]
      %v2994 = vpack.c.bf16 %v2963, %v2962
      %v2995 = vpack.c.bf16 %v2965, %v2964
      %v2996 = vpack.c.bf16 %v2967, %v2966
      %v2997 = vpack.c.bf16 %v2969, %v2968
      %v2998 = vpack.c.bf16 %v2971, %v2970
      %v2999 = vpack.c.bf16 %v2973, %v2972
      %v3000 = vpack.c.bf16 %v2975, %v2974
      %v3001 = vpack.c.bf16 %v2977, %v2976
      %v3002 = vpack.c.bf16 %v2979, %v2978
      %v3003 = vpack.c.bf16 %v2981, %v2980
      %v3004 = vpack.c.bf16 %v2983, %v2982
      %v3005 = vpack.c.bf16 %v2985, %v2984
      %v3006 = vpack.c.bf16 %v2987, %v2986
      %v3007 = vpack.c.bf16 %v2989, %v2988
      %v3008 = vpack.c.bf16 %v2991, %v2990
      %v3009 = vpack.c.bf16 %v2993, %v2992
      %s3010 = scalar_lea.vmem %s6, 16
      %v3011 = vld [vmem:[%s3010] sm:$0x3]
      %v3013 = vsel %vm584, %v2994, 0
      %v3016 = vsel %vm584, %v2995, 0
      %v3019 = vsel %vm584, %v2996, 0
      %v3022 = vsel %vm584, %v2997, 0
      %v3025 = vsel %vm584, %v2998, 0
      %v3028 = vsel %vm584, %v2999, 0
      %v3031 = vsel %vm584, %v3000, 0
      %v3034 = vsel %vm584, %v3001, 0
      %v3037 = vsel %vm584, %v3002, 0
      %v3040 = vsel %vm584, %v3003, 0
      %v3043 = vsel %vm584, %v3004, 0
      %v3046 = vsel %vm584, %v3005, 0
      %v3049 = vsel %vm584, %v3006, 0
      %v3052 = vsel %vm584, %v3007, 0
      %v3055 = vsel %vm584, %v3008, 0
      %v3058 = vsel %vm584, %v3009, 0
      %v3061 = vsel %vm820, %v3011, 0
      %3063 = vmatprep.subr.bf16.mxu0 0
      %3064 = vmatpush1.bf16.msra.mxu0 %v3061
      %3065 = vmatprep.subr.bf16.mxu0 0
      %3066 = vmatpush1.bf16.msra.mxu0 0
      %3067 = vmatprep.subr.bf16.mxu0 0
      %3068 = vmatpush1.bf16.msra.mxu0 0
      %3069 = vmatprep.subr.bf16.mxu0 0
      %3070 = vmatpush1.bf16.msra.mxu0 0
      %3071 = vmatprep.subr.bf16.mxu0 0
      %3072 = vmatpush1.bf16.msra.mxu0 0
      %3073 = vmatprep.subr.bf16.mxu0 0
      %3074 = vmatpush1.bf16.msra.mxu0 0
      %3075 = vmatprep.subr.bf16.mxu0 0
      %3076 = vmatpush1.bf16.msra.mxu0 0
      %3077 = vmatprep.subr.bf16.mxu0 0
      %3078 = vmatpush1.bf16.msra.mxu0 0
      %3079 = vmatprep.subr.bf16.mxu0 0
      %3080 = vmatpush1.bf16.msra.mxu0 0
      %3081 = vmatprep.subr.bf16.mxu0 0
      %3082 = vmatpush1.bf16.msra.mxu0 0
      %3083 = vmatprep.subr.bf16.mxu0 0
      %3084 = vmatpush1.bf16.msra.mxu0 0
      %3085 = vmatprep.subr.bf16.mxu0 0
      %3086 = vmatpush1.bf16.msra.mxu0 0
      %3087 = vmatprep.subr.bf16.mxu0 0
      %3088 = vmatpush1.bf16.msra.mxu0 0
      %3089 = vmatprep.subr.bf16.mxu0 0
      %3090 = vmatpush1.bf16.msra.mxu0 0
      %3091 = vmatprep.subr.bf16.mxu0 0
      %3092 = vmatpush1.bf16.msra.mxu0 0
      %3093 = vmatprep.subr.bf16.mxu0 0
      %3094 = vmatpush1.bf16.msra.mxu0 0
      %3095 = vmatprep.mubr.bf16.mxu0 0
      %3096 = vmatmul.mubr.bf16.gmra.mrb[0].mxu0 %v3013
      %v3097 = vpop.f32.mrb[0].mxu0
      %v3098 = vadd.f32 0.0, %v3097
      %v3099 = vpop.f32.mrb[0].mxu0
      %v3100 = vpop.f32.mrb[0].mxu0
      %v3101 = vadd.f32 0.0, %v3100
      %v3102 = vpop.f32.mrb[0].mxu0
      %3103 = vmatprep.mubr.bf16.mxu0 0
      %3104 = vmatmul.mubr.bf16.gmra.mrb[0].mxu0 %v3016
      %v3105 = vpop.f32.mrb[0].mxu0
      %v3106 = vadd.f32 0.0, %v3105
      %v3107 = vpop.f32.mrb[0].mxu0
      %v3108 = vpop.f32.mrb[0].mxu0
      %v3109 = vadd.f32 0.0, %v3108
      %v3110 = vpop.f32.mrb[0].mxu0
      %3111 = vmatprep.mubr.bf16.mxu0 0
      %3112 = vmatmul.mubr.bf16.gmra.mrb[0].mxu0 %v3019
      %v3113 = vpop.f32.mrb[0].mxu0
      %v3114 = vadd.f32 0.0, %v3113
      %v3115 = vpop.f32.mrb[0].mxu0
      %v3116 = vpop.f32.mrb[0].mxu0
      %v3117 = vadd.f32 0.0, %v3116
      %v3118 = vpop.f32.mrb[0].mxu0
      %3119 = vmatprep.mubr.bf16.mxu0 0
      %3120 = vmatmul.mubr.bf16.gmra.mrb[0].mxu0 %v3022
      %v3121 = vpop.f32.mrb[0].mxu0
      %v3122 = vadd.f32 0.0, %v3121
      %v3123 = vpop.f32.mrb[0].mxu0
      %v3124 = vpop.f32.mrb[0].mxu0
      %v3125 = vadd.f32 0.0, %v3124
      %v3126 = vpop.f32.mrb[0].mxu0
      %3127 = vmatprep.mubr.bf16.mxu0 0
      %3128 = vmatmul.mubr.bf16.gmra.mrb[0].mxu0 %v3025
      %v3129 = vpop.f32.mrb[0].mxu0
      %v3130 = vadd.f32 0.0, %v3129
      %v3131 = vpop.f32.mrb[0].mxu0
      %v3132 = vpop.f32.mrb[0].mxu0
      %v3133 = vadd.f32 0.0, %v3132
      %v3134 = vpop.f32.mrb[0].mxu0
      %3135 = vmatprep.mubr.bf16.mxu0 0
      %3136 = vmatmul.mubr.bf16.gmra.mrb[0].mxu0 %v3028
      %v3137 = vpop.f32.mrb[0].mxu0
      %v3138 = vadd.f32 0.0, %v3137
      %v3139 = vpop.f32.mrb[0].mxu0
      %v3140 = vpop.f32.mrb[0].mxu0
      %v3141 = vadd.f32 0.0, %v3140
      %v3142 = vpop.f32.mrb[0].mxu0
      %3143 = vmatprep.mubr.bf16.mxu0 0
      %3144 = vmatmul.mubr.bf16.gmra.mrb[0].mxu0 %v3031
      %v3145 = vpop.f32.mrb[0].mxu0
      %v3146 = vadd.f32 0.0, %v3145
      %v3147 = vpop.f32.mrb[0].mxu0
      %v3148 = vpop.f32.mrb[0].mxu0
      %v3149 = vadd.f32 0.0, %v3148
      %v3150 = vpop.f32.mrb[0].mxu0
      %3151 = vmatprep.mubr.bf16.mxu0 0
      %3152 = vmatmul.mubr.bf16.gmra.mrb[0].mxu0 %v3034
      %v3153 = vpop.f32.mrb[0].mxu0
      %v3154 = vadd.f32 0.0, %v3153
      %v3155 = vpop.f32.mrb[0].mxu0
      %v3156 = vpop.f32.mrb[0].mxu0
      %v3157 = vadd.f32 0.0, %v3156
      %v3158 = vpop.f32.mrb[0].mxu0
      %3159 = vmatprep.mubr.bf16.mxu0 0
      %3160 = vmatmul.mubr.bf16.gmra.mrb[0].mxu0 %v3037
      %v3161 = vpop.f32.mrb[0].mxu0
      %v3162 = vadd.f32 0.0, %v3161
      %v3163 = vpop.f32.mrb[0].mxu0
      %v3164 = vpop.f32.mrb[0].mxu0
      %v3165 = vadd.f32 0.0, %v3164
      %v3166 = vpop.f32.mrb[0].mxu0
      %3167 = vmatprep.mubr.bf16.mxu0 0
      %3168 = vmatmul.mubr.bf16.gmra.mrb[0].mxu0 %v3040
      %v3169 = vpop.f32.mrb[0].mxu0
      %v3170 = vadd.f32 0.0, %v3169
      %v3171 = vpop.f32.mrb[0].mxu0
      %v3172 = vpop.f32.mrb[0].mxu0
      %v3173 = vadd.f32 0.0, %v3172
      %v3174 = vpop.f32.mrb[0].mxu0
      %3175 = vmatprep.mubr.bf16.mxu0 0
      %3176 = vmatmul.mubr.bf16.gmra.mrb[0].mxu0 %v3043
      %v3177 = vpop.f32.mrb[0].mxu0
      %v3178 = vadd.f32 0.0, %v3177
      %v3179 = vpop.f32.mrb[0].mxu0
      %v3180 = vpop.f32.mrb[0].mxu0
      %v3181 = vadd.f32 0.0, %v3180
      %v3182 = vpop.f32.mrb[0].mxu0
      %3183 = vmatprep.mubr.bf16.mxu0 0
      %3184 = vmatmul.mubr.bf16.gmra.mrb[0].mxu0 %v3046
      %v3185 = vpop.f32.mrb[0].mxu0
      %v3186 = vadd.f32 0.0, %v3185
      %v3187 = vpop.f32.mrb[0].mxu0
      %v3188 = vpop.f32.mrb[0].mxu0
      %v3189 = vadd.f32 0.0, %v3188
      %v3190 = vpop.f32.mrb[0].mxu0
      %3191 = vmatprep.mubr.bf16.mxu0 0
      %3192 = vmatmul.mubr.bf16.gmra.mrb[0].mxu0 %v3049
      %v3193 = vpop.f32.mrb[0].mxu0
      %v3194 = vadd.f32 0.0, %v3193
      %v3195 = vpop.f32.mrb[0].mxu0
      %v3196 = vpop.f32.mrb[0].mxu0
      %v3197 = vadd.f32 0.0, %v3196
      %v3198 = vpop.f32.mrb[0].mxu0
      %3199 = vmatprep.mubr.bf16.mxu0 0
      %3200 = vmatmul.mubr.bf16.gmra.mrb[0].mxu0 %v3052
      %v3201 = vpop.f32.mrb[0].mxu0
      %v3202 = vadd.f32 0.0, %v3201
      %v3203 = vpop.f32.mrb[0].mxu0
      %v3204 = vpop.f32.mrb[0].mxu0
      %v3205 = vadd.f32 0.0, %v3204
      %v3206 = vpop.f32.mrb[0].mxu0
      %3207 = vmatprep.mubr.bf16.mxu0 0
      %3208 = vmatmul.mubr.bf16.gmra.mrb[0].mxu0 %v3055
      %v3209 = vpop.f32.mrb[0].mxu0
      %v3210 = vadd.f32 0.0, %v3209
      %v3211 = vpop.f32.mrb[0].mxu0
      %v3212 = vpop.f32.mrb[0].mxu0
      %v3213 = vadd.f32 0.0, %v3212
      %v3214 = vpop.f32.mrb[0].mxu0
      %3215 = vmatprep.mubr.bf16.mxu0 0
      %3216 = vmatmul.mubr.bf16.gmra.mrb[0].mxu0 %v3058
      %v3217 = vpop.f32.mrb[0].mxu0
      %v3218 = vadd.f32 0.0, %v3217
      %v3219 = vpop.f32.mrb[0].mxu0
      %v3220 = vpop.f32.mrb[0].mxu0
      %v3221 = vadd.f32 0.0, %v3220
      %v3222 = vpop.f32.mrb[0].mxu0
      %3223 = vdwg.mxu0
      %v3224 = vadd.f32 %v2930, %v3098
      %v3225 = vadd.f32 %v2931, %v3101
      %v3226 = vadd.f32 %v2932, %v3106
      %v3227 = vadd.f32 %v2933, %v3109
      %v3228 = vadd.f32 %v2934, %v3114
      %v3229 = vadd.f32 %v2935, %v3117
      %v3230 = vadd.f32 %v2936, %v3122
      %v3231 = vadd.f32 %v2937, %v3125
      %v3232 = vadd.f32 %v2938, %v3130
      %v3233 = vadd.f32 %v2939, %v3133
      %v3234 = vadd.f32 %v2940, %v3138
      %v3235 = vadd.f32 %v2941, %v3141
      %v3236 = vadd.f32 %v2942, %v3146
      %v3237 = vadd.f32 %v2943, %v3149
      %v3238 = vadd.f32 %v2944, %v3154
      %v3239 = vadd.f32 %v2945, %v3157
      %v3240 = vadd.f32 %v2946, %v3162
      %v3241 = vadd.f32 %v2947, %v3165
      %v3242 = vadd.f32 %v2948, %v3170
      %v3243 = vadd.f32 %v2949, %v3173
      %v3244 = vadd.f32 %v2950, %v3178
      %v3245 = vadd.f32 %v2951, %v3181
      %v3246 = vadd.f32 %v2952, %v3186
      %v3247 = vadd.f32 %v2953, %v3189
      %v3248 = vadd.f32 %v2954, %v3194
      %v3249 = vadd.f32 %v2955, %v3197
      %v3250 = vadd.f32 %v2956, %v3202
      %v3251 = vadd.f32 %v2957, %v3205
      %v3252 = vadd.f32 %v2958, %v3210
      %v3253 = vadd.f32 %v2959, %v3213
      %v3254 = vadd.f32 %v2960, %v3218
      %v3255 = vadd.f32 %v2961, %v3221
      %v3256 = vadd.f32 %v3224, %v410
      %v3257 = vadd.f32 %v3225, %v411
      %v3258 = vadd.f32 %v3226, %v412
      %v3259 = vadd.f32 %v3227, %v413
      %v3260 = vadd.f32 %v3228, %v414
      %v3261 = vadd.f32 %v3229, %v415
      %v3262 = vadd.f32 %v3230, %v416
      %v3263 = vadd.f32 %v3231, %v417
      %v3264 = vadd.f32 %v3232, %v418
      %v3265 = vadd.f32 %v3233, %v419
      %v3266 = vadd.f32 %v3234, %v420
      %v3267 = vadd.f32 %v3235, %v421
      %v3268 = vadd.f32 %v3236, %v422
      %v3269 = vadd.f32 %v3237, %v423
      %v3270 = vadd.f32 %v3238, %v424
      %v3271 = vadd.f32 %v3239, %v425
      %v3272 = vadd.f32 %v3240, %v426
      %v3273 = vadd.f32 %v3241, %v427
      %v3274 = vadd.f32 %v3242, %v428
      %v3275 = vadd.f32 %v3243, %v429
      %v3276 = vadd.f32 %v3244, %v430
      %v3277 = vadd.f32 %v3245, %v431
      %v3278 = vadd.f32 %v3246, %v432
      %v3279 = vadd.f32 %v3247, %v433
      %v3280 = vadd.f32 %v3248, %v434
      %v3281 = vadd.f32 %v3249, %v435
      %v3282 = vadd.f32 %v3250, %v436
      %v3283 = vadd.f32 %v3251, %v437
      %v3284 = vadd.f32 %v3252, %v438
      %v3285 = vadd.f32 %v3253, %v439
      %v3286 = vadd.f32 %v3254, %v440
      %v3287 = vadd.f32 %v3255, %v441
      %3288 = vst.msk [vmem:[%s298] sm:$0xff] %vm584, %v3256
      %3289 = vst.msk [vmem:[%s298 + $0x8] sm:$0xff] %vm584, %v3257
      %3290 = vst.msk [vmem:[%s298 + $0x10] sm:$0xff] %vm584, %v3258
      %3291 = vst.msk [vmem:[%s298 + $0x18] sm:$0xff] %vm584, %v3259
      %3292 = vst.msk [vmem:[%s298 + $0x20] sm:$0xff] %vm584, %v3260
      %3293 = vst.msk [vmem:[%s298 + $0x28] sm:$0xff] %vm584, %v3261
      %3294 = vst.msk [vmem:[%s298 + $0x30] sm:$0xff] %vm584, %v3262
      %3295 = vst.msk [vmem:[%s298 + $0x38] sm:$0xff] %vm584, %v3263
      %3296 = vst.msk [vmem:[%s298 + $0x40] sm:$0xff] %vm584, %v3264
      %3297 = vst.msk [vmem:[%s298 + $0x48] sm:$0xff] %vm584, %v3265
      %3298 = vst.msk [vmem:[%s298 + $0x50] sm:$0xff] %vm584, %v3266
      %3299 = vst.msk [vmem:[%s298 + $0x58] sm:$0xff] %vm584, %v3267
      %3300 = vst.msk [vmem:[%s298 + $0x60] sm:$0xff] %vm584, %v3268
      %3301 = vst.msk [vmem:[%s298 + $0x68] sm:$0xff] %vm584, %v3269
      %3302 = vst.msk [vmem:[%s298 + $0x70] sm:$0xff] %vm584, %v3270
      %3303 = vst.msk [vmem:[%s298 + $0x78] sm:$0xff] %vm584, %v3271
      %3304 = vst.msk [vmem:[%s298 + $0x80] sm:$0xff] %vm584, %v3272
      %3305 = vst.msk [vmem:[%s298 + $0x88] sm:$0xff] %vm584, %v3273
      %3306 = vst.msk [vmem:[%s298 + $0x90] sm:$0xff] %vm584, %v3274
      %3307 = vst.msk [vmem:[%s298 + $0x98] sm:$0xff] %vm584, %v3275
      %3308 = vst.msk [vmem:[%s298 + $0xa0] sm:$0xff] %vm584, %v3276
      %3309 = vst.msk [vmem:[%s298 + $0xa8] sm:$0xff] %vm584, %v3277
      %3310 = vst.msk [vmem:[%s298 + $0xb0] sm:$0xff] %vm584, %v3278
      %3311 = vst.msk [vmem:[%s298 + $0xb8] sm:$0xff] %vm584, %v3279
      %3312 = vst.msk [vmem:[%s298 + $0xc0] sm:$0xff] %vm584, %v3280
      %3313 = vst.msk [vmem:[%s298 + $0xc8] sm:$0xff] %vm584, %v3281
      %3314 = vst.msk [vmem:[%s298 + $0xd0] sm:$0xff] %vm584, %v3282
      %3315 = vst.msk [vmem:[%s298 + $0xd8] sm:$0xff] %vm584, %v3283
      %3316 = vst.msk [vmem:[%s298 + $0xe0] sm:$0xff] %vm584, %v3284
      %3317 = vst.msk [vmem:[%s298 + $0xe8] sm:$0xff] %vm584, %v3285
      %3318 = vst.msk [vmem:[%s298 + $0xf0] sm:$0xff] %vm584, %v3286
      %3319 = vst.msk [vmem:[%s298 + $0xf8] sm:$0xff] %vm584, %v3287
      %p3320 = scmp.lt.s32.totalorder %s18, 1
      %s3321 = scalar_select %p3320, %s18, 1
      %s3322 = smul.addr %s3321, 32
      %s3323 = smul.addr %s3322, 8
      %s3324 = scalar_lea.vmem %s7, %s3323
      // Predicated region
      $region49: #{preact_block_forward.5} parent=47 // pred_check
        %p3325 = pneg %p193
      $region50: #{preact_block_forward.5} parent=47 // pred_check_branch
        %3327 = sbr.rel (%p3325) target = $region52
      $region51: #{preact_block_forward.5} parent=47 // pred_region
        _
      $region52: #{preact_block_forward.5} parent=47 // pred_fallthru
        _
    $region48: #{preact_block_forward.5} parent=5 // pred_fallthru
      _
    %p3328 = scmp.le.s32.totalorder 2, %s13
    // Predicated region
    $region53: #{preact_block_forward.5} parent=5 // pred_check
      %p3329 = pneg %p3328
    $region54: #{preact_block_forward.5} parent=5 // pred_check_branch
      %3331 = sbr.rel (%p3329) target = $region56
    $region55: #{preact_block_forward.5} parent=5 // pred_region
      %s3332 = ssub.s32 %s13, 2
      // Predicated region
      $region57: #{preact_block_forward.5} parent=55 // pred_check
        %p3333 = pneg %p199
      $region58: #{preact_block_forward.5} parent=55 // pred_check_branch
        %3335 = sbr.rel (%p3333) target = $region60
      $region59: #{preact_block_forward.5} parent=55 // pred_region
        %p3336 = scmp.lt.s32.totalorder %s19, 1
        %s3337 = scalar_select %p3336, %s19, 1
        %s3338 = smul.addr %s3337, 32
        %s3339 = smul.addr %s3338, 8
        %s3340 = scalar_lea.vmem %s7, %s3339
      $region60: #{preact_block_forward.5} parent=55 // pred_fallthru
        _
    $region56: #{preact_block_forward.5} parent=5 // pred_fallthru
      _
  $region6: #{preact_block_forward.5} parent=0 // loop_footer
    %s17 = sadd.s32 1, %s13
  $region7: #{preact_block_forward.5} parent=0 // loop_footer_branch
    %12 = sbr.rel target = $region3
  $region8: #{preact_block_forward.5} parent=0 // loop_exit
    _

</llo_original>
